<compile_context>
chip_gen: v7x
topology: tpu7x:2x2x1
jax: 0.10.0
libtpu: 0.0.40
codegen_flags: <defaults>
</compile_context>

<pallas_src>
import functools

import jax
import jax.numpy as jnp
import numpy as np
from jax.experimental import pallas as pl
from jax.experimental.pallas import tpu as pltpu

BN_EPS = 1e-5
VMEM_LIMIT = 16 * 1024 * 1024
F32 = jnp.float32
BF16 = jnp.bfloat16


def _round_up(x, m):
    return ((x + m - 1) // m) * m


# ------------------------------ Pallas kernels ------------------------------


def _stem_kernel(a_ref, w_ref, b_ref, o_ref):
    """o = relu(W_folded @ A + b); A is a (Kp, TM) im2col tile (bf16)."""
    a = a_ref[...].astype(jnp.float32)
    acc = jnp.dot(w_ref[...], a, preferred_element_type=jnp.float32)
    o_ref[...] = jnp.maximum(acc + b_ref[...], 0.0).astype(o_ref.dtype)


def _maxpool_kernel(w_ref, o_ref):
    """(9, C, M) stacked 3x3/s2 windows -> (C, M) max."""
    w = w_ref[...].astype(jnp.float32)
    m = w[0]
    for t in range(1, 9):
        m = jnp.maximum(m, w[t])
    o_ref[...] = m.astype(o_ref.dtype)


def _shift_lanes(h, k):
    """out[:, m] = h[:, m + k] with zero fill; k is static."""
    c, m = h.shape
    if k == 0:
        return h
    if abs(k) >= m:
        return jnp.zeros_like(h)
    if k > 0:
        return jnp.concatenate([h[:, k:], jnp.zeros((c, k), h.dtype)], axis=1)
    return jnp.concatenate([jnp.zeros((c, -k), h.dtype), h[:, :m + k]], axis=1)


def _conv3x3_same(h, wcat, mask, wo):
    """3x3/s1/p1 conv on a flattened (C, M=B*Ho*Wo) grid as one K=9C GEMM.

    Tap shifts are static lane shifts; `mask` (9C, M) zeroes taps that would
    read outside the image (also kills cross-row / cross-batch leakage).
    """
    taps = [_shift_lanes(h, di * wo + dj)
            for di in (-1, 0, 1) for dj in (-1, 0, 1)]
    a = jnp.concatenate(taps, axis=0) * mask
    return jnp.dot(wcat, a, preferred_element_type=jnp.float32)


def _layer_kernel(a1_ref, msk_ref, w1a_ref, b1a_ref, w2a_ref, b2a_ref,
                  w1b_ref, b1b_ref, w2b_ref, b2b_ref, o_ref, *, wo, cin):
    """Two fused BasicBlocks with identity residual in block 0 (layer1)."""
    a1 = a1_ref[...].astype(jnp.float32)
    mask = msk_ref[...]
    # block 0: conv1 (im2col done XLA-side in a1) -> conv2 (in-kernel taps)
    h = jnp.maximum(
        jnp.dot(w1a_ref[...], a1, preferred_element_type=jnp.float32)
        + b1a_ref[...], 0.0)
    ident = a1[4 * cin:5 * cin, :]            # center tap == x (stride 1)
    y0 = jnp.maximum(_conv3x3_same(h, w2a_ref[...], mask, wo)
                     + b2a_ref[...] + ident, 0.0)
    # block 1 (identity residual)
    h1 = jnp.maximum(_conv3x3_same(y0, w1b_ref[...], mask, wo)
                     + b1b_ref[...], 0.0)
    y1 = jnp.maximum(_conv3x3_same(h1, w2b_ref[...], mask, wo)
                     + b2b_ref[...] + y0, 0.0)
    o_ref[...] = y1.astype(o_ref.dtype)


def _layer_ds_kernel(a1_ref, msk_ref, w1a_ref, b1a_ref, wd_ref, bd_ref,
                     w2a_ref, b2a_ref, w1b_ref, b1b_ref, w2b_ref, b2b_ref,
                     o_ref, *, wo, cin):
    """Two fused BasicBlocks; block 0 has a 1x1/stride-s downsample residual.

    The downsample input (x sampled at stride s) is exactly the center-tap
    rows of the conv1 im2col a1, so the layer input is read only once.
    """
    a1 = a1_ref[...].astype(jnp.float32)
    mask = msk_ref[...]
    h = jnp.maximum(
        jnp.dot(w1a_ref[...], a1, preferred_element_type=jnp.float32)
        + b1a_ref[...], 0.0)
    xc = a1[4 * cin:5 * cin, :]
    ident = (jnp.dot(wd_ref[...], xc, preferred_element_type=jnp.float32)
             + bd_ref[...])
    y0 = jnp.maximum(_conv3x3_same(h, w2a_ref[...], mask, wo)
                     + b2a_ref[...] + ident, 0.0)
    h1 = jnp.maximum(_conv3x3_same(y0, w1b_ref[...], mask, wo)
                     + b1b_ref[...], 0.0)
    y1 = jnp.maximum(_conv3x3_same(h1, w2b_ref[...], mask, wo)
                     + b2b_ref[...] + y0, 0.0)
    o_ref[...] = y1.astype(o_ref.dtype)


# ------------------------------- glue helpers -------------------------------


def _im2col_cm(x_cm, kh, kw, stride, pad):
    """(C,B,H,W) -> (kh*kw*C, B*Ho*Wo) patches, K ordered (tap, channel)."""
    C, B, H, W = x_cm.shape
    xp = jnp.pad(x_cm, ((0, 0), (0, 0), (pad, pad), (pad, pad)))
    Ho = (H + 2 * pad - kh) // stride + 1
    Wo = (W + 2 * pad - kw) // stride + 1
    cols = []
    for i in range(kh):
        for j in range(kw):
            sl = xp[:, :, i:i + stride * (Ho - 1) + 1:stride,
                          j:j + stride * (Wo - 1) + 1:stride]
            cols.append(sl.reshape(C, B * Ho * Wo))
    return jnp.concatenate(cols, axis=0), (Ho, Wo)


def stem_conv_bn_relu(x_cm, w, scale, bias, *, tm=256):
    """7x7/s2/p3 conv + folded BN + ReLU as a lane-dense (cout, M) GEMM."""
    kh, kw, cin, cout = w.shape
    a, (Ho, Wo) = _im2col_cm(x_cm, kh, kw, 2, 3)
    K, M = a.shape
    Kp = _round_up(K, 128)          # 147 -> 256: lane-dense weight, no masks
    Mp = _round_up(M, tm)
    a = jnp.pad(a, ((0, Kp - K), (0, Mp - M))).astype(BF16)
    wt = (w.reshape(K, cout) * scale[None, :]).T        # BN scale folded in
    wt = jnp.pad(wt, ((0, 0), (0, Kp - K))).astype(F32)
    b = bias.reshape(cout, 1).astype(F32)
    out = pl.pallas_call(
        _stem_kernel,
        out_shape=jax.ShapeDtypeStruct((cout, Mp), BF16),
        grid=(Mp // tm,),
        in_specs=[pl.BlockSpec((Kp, tm), lambda i: (0, i)),
                  pl.BlockSpec((cout, Kp), lambda i: (0, 0)),
                  pl.BlockSpec((cout, 1), lambda i: (0, 0))],
        out_specs=pl.BlockSpec((cout, tm), lambda i: (0, i)),
        compiler_params=pltpu.CompilerParams(
            dimension_semantics=("parallel",),
            vmem_limit_bytes=VMEM_LIMIT),
    )(a, wt, b)
    return out[:, :M], (Ho, Wo)


def maxpool_3x3_s2_p1(x_flat, B, H, W):
    """nn.MaxPool2d(3, stride=2, padding=1) on (C, B*H*W) activations."""
    C = x_flat.shape[0]
    x4 = x_flat.reshape(C, B, H, W)
    k, s, p = 3, 2, 1
    Ho = (H + 2 * p - k) // s + 1
    Wo = (W + 2 * p - k) // s + 1
    xp = jnp.pad(x4, ((0, 0), (0, 0), (p, p), (p, p)),
                 constant_values=-jnp.inf)
    wins = []
    for i in range(k):
        for j in range(k):
            wins.append(xp[:, :, i:i + s * (Ho - 1) + 1:s,
                              j:j + s * (Wo - 1) + 1:s].reshape(C, B * Ho * Wo))
    wins = jnp.stack(wins, axis=0)                       # (9, C, M), tiny
    out = pl.pallas_call(
        _maxpool_kernel,
        out_shape=jax.ShapeDtypeStruct((C, B * Ho * Wo), x_flat.dtype),
        compiler_params=pltpu.CompilerParams(vmem_limit_bytes=VMEM_LIMIT),
    )(wins)
    return out, (Ho, Wo)


@functools.lru_cache(maxsize=None)
def _tap_masks_np(B, Ho, Wo, C):
    """(9*C, M) 0/1 mask: is tap (di,dj) in-bounds at output (b,ho,wo)?"""
    M = B * Ho * Wo
    m = np.zeros((9, C, M), np.float32)
    t = 0
    for di in (-1, 0, 1):
        for dj in (-1, 0, 1):
            for b in range(B):
                for ho in range(Ho):
                    for wo in range(Wo):
                        if 0 <= ho + di < Ho and 0 <= wo + dj < Wo:
                            m[t, :, b * Ho * Wo + ho * Wo + wo] = 1.0
            t += 1
    return m.reshape(9 * C, M)


def _fold3x3_cat(w, scale):
    """(3,3,cin,cout) HWIO + BN scale -> (cout, 9*cin), tap-major columns."""
    kh, kw, cin, cout = w.shape
    wf = (w * scale.reshape(1, 1, 1, cout)).reshape(9 * cin, cout)
    return wf.T.astype(F32)


def fused_layer(x_flat, layer_params, B, H, W, stride):
    """One ResNet layer (two BasicBlocks) as a single fused pallas_call."""
    blk0, blk1 = layer_params
    cin = x_flat.shape[0]
    cout = blk0["conv1"][0].shape[-1]
    x4 = x_flat.reshape(cin, B, H, W)
    a1, (Ho, Wo) = _im2col_cm(x4, 3, 3, stride, 1)       # (9*cin, M) conv1 taps
    a1 = a1.astype(BF16)
    M = B * Ho * Wo
    mask = jnp.asarray(_tap_masks_np(B, Ho, Wo, cout))   # (9*cout, M) f32

    w1a = _fold3x3_cat(blk0["conv1"][0], blk0["conv1"][1])
    b1a = blk0["conv1"][2].reshape(cout, 1).astype(F32)
    w2a = _fold3x3_cat(blk0["conv2"][0], blk0["conv2"][1])
    b2a = blk0["conv2"][2].reshape(cout, 1).astype(F32)
    w1b = _fold3x3_cat(blk1["conv1"][0], blk1["conv1"][1])
    b1b = blk1["conv1"][2].reshape(cout, 1).astype(F32)
    w2b = _fold3x3_cat(blk1["conv2"][0], blk1["conv2"][1])
    b2b = blk1["conv2"][2].reshape(cout, 1).astype(F32)

    cparams = pltpu.CompilerParams(vmem_limit_bytes=VMEM_LIMIT)
    out_shape = jax.ShapeDtypeStruct((cout, M), BF16)
    if "downsample" in blk0:
        wd, scd, bd = blk0["downsample"]
        wdt = (wd.reshape(cin, cout) * scd[None, :]).T.astype(F32)
        bdv = bd.reshape(cout, 1).astype(F32)
        out = pl.pallas_call(
            functools.partial(_layer_ds_kernel, wo=Wo, cin=cin),
            out_shape=out_shape, compiler_params=cparams,
        )(a1, mask, w1a, b1a, wdt, bdv, w2a, b2a, w1b, b1b, w2b, b2b)
    else:
        out = pl.pallas_call(
            functools.partial(_layer_kernel, wo=Wo, cin=cin),
            out_shape=out_shape, compiler_params=cparams,
        )(a1, mask, w1a, b1a, w2a, b2a, w1b, b1b, w2b, b2b)
    return out, (Ho, Wo)


# ----------------------------- parameter setup ------------------------------


def _make_conv_bn_params(key, kh, kw, cin, cout):
    k1, k2, k3, k4, k5 = jax.random.split(key, 5)
    w = jax.random.normal(k1, (kh, kw, cin, cout), jnp.float32)
    w = w * (1.0 / np.sqrt(kh * kw * cin))
    gamma = 1.0 + 0.1 * jax.random.normal(k2, (cout,), jnp.float32)
    beta = 0.1 * jax.random.normal(k3, (cout,), jnp.float32)
    mean = 0.1 * jax.random.normal(k4, (cout,), jnp.float32)
    var = jnp.abs(jax.random.normal(k5, (cout,), jnp.float32)) + 0.5
    # BN folded in inference mode (running stats): y = conv(x)*scale + bias
    scale = gamma / jnp.sqrt(var + BN_EPS)
    bias = beta - mean * scale
    return (w, scale, bias)


def init_params(key, in_ch=3, base=8):
    keys = iter(jax.random.split(key, 64))
    cbn = lambda kh, kw, ci, co: _make_conv_bn_params(next(keys), kh, kw, ci, co)
    params = {"conv1": cbn(7, 7, in_ch, base)}
    chans = [base, base, base * 2, base * 4, base * 8]
    layers = []
    for li in range(4):
        cin, cout = chans[li], chans[li + 1]
        stride = 1 if li == 0 else 2
        b1 = {"conv1": cbn(3, 3, cin, cout), "conv2": cbn(3, 3, cout, cout)}
        if stride != 1 or cin != cout:
            b1["downsample"] = cbn(1, 1, cin, cout)
        b2 = {"conv1": cbn(3, 3, cout, cout), "conv2": cbn(3, 3, cout, cout)}
        layers.append([b1, b2])
    params["layers"] = layers
    return params


# ------------------------------- forward pass -------------------------------


def encode_uv_forward(params, x_nchw):
    """EncodeUV.forward: returns (x0, x4, x3, x2, x1) in NCHW like PyTorch."""
    B = x_nchw.shape[0]
    x_cm = jnp.transpose(x_nchw, (1, 0, 2, 3)).astype(F32)     # (C, B, H, W)
    x0_flat, (H0, W0) = stem_conv_bn_relu(x_cm, *params["conv1"])
    cur, (Hc, Wc) = maxpool_3x3_s2_p1(x0_flat, B, H0, W0)

    feats = []
    for li, layer in enumerate(params["layers"]):
        stride = 1 if li == 0 else 2
        cur, (Hc, Wc) = fused_layer(cur, layer, B, Hc, Wc, stride)
        feats.append((cur, Hc, Wc))

    def to_nchw(flat, Hh, Ww):
        C = flat.shape[0]
        return jnp.transpose(flat.reshape(C, B, Hh, Ww),
                             (1, 0, 2, 3)).astype(F32)

    x0 = to_nchw(x0_flat, H0, W0)
    x1, x2, x3, x4 = [to_nchw(f, h, w) for (f, h, w) in feats]
    return (x0, x4, x3, x2, x1)


# ----------------------------------- main ------------------------------------

if __name__ == "__main__":
    key = jax.random.PRNGKey(0)
    k_param, k_data = jax.random.split(key)
    params = init_params(k_param, in_ch=3, base=8)
    x = jax.random.normal(k_data, (2, 3, 32, 32), jnp.float32)  # NCHW like torch

    fwd = jax.jit(encode_uv_forward)
    outs = jax.block_until_ready(fwd(params, x))
    x0, x4, x3, x2, x1 = outs

    assert x0.shape == (2, 8, 16, 16)
    assert x1.shape == (2, 8, 8, 8)
    assert x2.shape == (2, 16, 4, 4)
    assert x3.shape == (2, 32, 2, 2)
    assert x4.shape == (2, 64, 1, 1)
    assert all(bool(jnp.isfinite(t).all()) for t in (x0, x4, x3, x2, x1))
    print("KERNEL_OK")
</pallas_src>

<mosaic_0001>
module attributes {stable_mosaic.version = 11 : i64} {
  func.func @_stem_kernel(%arg0: i32, %arg1: memref<256x256xbf16, #tpu.memory_space<vmem>>, %arg2: memref<8x256xf32, #tpu.memory_space<vmem>>, %arg3: memref<8x1xf32, #tpu.memory_space<vmem>>, %arg4: memref<8x256xbf16, #tpu.memory_space<vmem>>) attributes {dimension_semantics = [#tpu.dimension_semantics<parallel>], iteration_bounds = array<i64: 2>, scalar_prefetch = 0 : i64, scratch_operands = 0 : i64, tpu.core_type = #tpu.core_type<tc>, window_params = [{transform_indices = @transform_0, window_bounds = array<i64: 256, 256>}, {pipeline_mode = #tpu.pipeline_mode<synchronous>, transform_indices = @transform_1, window_bounds = array<i64: 8, 256>}, {pipeline_mode = #tpu.pipeline_mode<synchronous>, transform_indices = @transform_2, window_bounds = array<i64: 8, 1>}, {transform_indices = @transform_3, window_bounds = array<i64: 8, 256>}]} {
    %c0 = arith.constant 0 : index
    %c0_0 = arith.constant 0 : index
    %0 = vector.load %arg1[%c0, %c0_0] : memref<256x256xbf16, #tpu.memory_space<vmem>>, vector<256x256xbf16>
    %1 = arith.extf %0 : vector<256x256xbf16> to vector<256x256xf32>
    %c0_1 = arith.constant 0 : index
    %c0_2 = arith.constant 0 : index
    %2 = vector.load %arg2[%c0_1, %c0_2] : memref<8x256xf32, #tpu.memory_space<vmem>>, vector<8x256xf32>
    %cst = arith.constant dense<0.000000e+00> : vector<8x256xf32>
    %3 = tpu.matmul %2, %1, %cst {dimension_numbers = #tpu.dot_dimension_numbers<[1], [0], [0], [1], [0, 0, 1, 1], [], []>} : vector<8x256xf32>, vector<256x256xf32>, vector<8x256xf32> -> vector<8x256xf32>
    %c0_3 = arith.constant 0 : index
    %c0_4 = arith.constant 0 : index
    %4 = vector.load %arg3[%c0_3, %c0_4] : memref<8x1xf32, #tpu.memory_space<vmem>>, vector<8x1xf32>
    %5 = vector.broadcast %4 : vector<8x1xf32> to vector<8x256xf32>
    %6 = arith.addf %3, %5 : vector<8x256xf32>
    %cst_5 = arith.constant 0.000000e+00 : f32
    %7 = vector.broadcast %cst_5 : f32 to vector<8x256xf32>
    %8 = arith.maximumf %6, %7 : vector<8x256xf32>
    %9 = arith.truncf %8 : vector<8x256xf32> to vector<8x256xbf16>
    %c0_6 = arith.constant 0 : index
    %c0_7 = arith.constant 0 : index
    %10 = vector.load %arg4[%c0_6, %c0_7] : memref<8x256xbf16, #tpu.memory_space<vmem>>, vector<8x256xbf16>
    tpu.vector_store %arg4[%c0_6, %c0_7], %9 {strides = array<i32>} : memref<8x256xbf16, #tpu.memory_space<vmem>>, vector<8x256xbf16>,
    return
  }
  func.func @transform_0(%arg0: i32) -> (i32, i32) {
    %c0_i32 = arith.constant 0 : i32
    %c0_i32_0 = arith.constant 0 : i32
    return %c0_i32, %arg0 : i32, i32
  }
  func.func @transform_1(%arg0: i32) -> (i32, i32) {
    %c0_i32 = arith.constant 0 : i32
    %c0_i32_0 = arith.constant 0 : i32
    %c0_i32_1 = arith.constant 0 : i32
    return %c0_i32, %c0_i32_0 : i32, i32
  }
  func.func @transform_2(%arg0: i32) -> (i32, i32) {
    %c0_i32 = arith.constant 0 : i32
    %c0_i32_0 = arith.constant 0 : i32
    %c0_i32_1 = arith.constant 0 : i32
    return %c0_i32, %c0_i32_0 : i32, i32
  }
  func.func @transform_3(%arg0: i32) -> (i32, i32) {
    %c0_i32 = arith.constant 0 : i32
    %c0_i32_0 = arith.constant 0 : i32
    return %c0_i32, %arg0 : i32, i32
  }
}

module attributes {stable_mosaic.version = 11 : i64} {
  func.func @_maxpool_kernel(%arg0: memref<9x8x128xbf16, #tpu.memory_space<vmem>>, %arg1: memref<8x128xbf16, #tpu.memory_space<vmem>>) attributes {dimension_semantics = [], scalar_prefetch = 0 : i64, scratch_operands = 0 : i64, tpu.core_type = #tpu.core_type<tc>} {
    %c0 = arith.constant 0 : index
    %c0_0 = arith.constant 0 : index
    %c0_1 = arith.constant 0 : index
    %0 = vector.load %arg0[%c0, %c0_0, %c0_1] : memref<9x8x128xbf16, #tpu.memory_space<vmem>>, vector<9x8x128xbf16>
    %1 = arith.extf %0 : vector<9x8x128xbf16> to vector<9x8x128xf32>
    %2 = vector.extract_strided_slice %1 {offsets = [0, 0, 0], sizes = [1, 8, 128], strides = [1, 1, 1]} : vector<9x8x128xf32> to vector<1x8x128xf32>
    %3 = vector.shape_cast %2 : vector<1x8x128xf32> to vector<8x128xf32>
    %4 = vector.extract_strided_slice %1 {offsets = [1, 0, 0], sizes = [1, 8, 128], strides = [1, 1, 1]} : vector<9x8x128xf32> to vector<1x8x128xf32>
    %5 = vector.shape_cast %4 : vector<1x8x128xf32> to vector<8x128xf32>
    %6 = arith.maximumf %3, %5 : vector<8x128xf32>
    %7 = vector.extract_strided_slice %1 {offsets = [2, 0, 0], sizes = [1, 8, 128], strides = [1, 1, 1]} : vector<9x8x128xf32> to vector<1x8x128xf32>
    %8 = vector.shape_cast %7 : vector<1x8x128xf32> to vector<8x128xf32>
    %9 = arith.maximumf %6, %8 : vector<8x128xf32>
    %10 = vector.extract_strided_slice %1 {offsets = [3, 0, 0], sizes = [1, 8, 128], strides = [1, 1, 1]} : vector<9x8x128xf32> to vector<1x8x128xf32>
    %11 = vector.shape_cast %10 : vector<1x8x128xf32> to vector<8x128xf32>
    %12 = arith.maximumf %9, %11 : vector<8x128xf32>
    %13 = vector.extract_strided_slice %1 {offsets = [4, 0, 0], sizes = [1, 8, 128], strides = [1, 1, 1]} : vector<9x8x128xf32> to vector<1x8x128xf32>
    %14 = vector.shape_cast %13 : vector<1x8x128xf32> to vector<8x128xf32>
    %15 = arith.maximumf %12, %14 : vector<8x128xf32>
    %16 = vector.extract_strided_slice %1 {offsets = [5, 0, 0], sizes = [1, 8, 128], strides = [1, 1, 1]} : vector<9x8x128xf32> to vector<1x8x128xf32>
    %17 = vector.shape_cast %16 : vector<1x8x128xf32> to vector<8x128xf32>
    %18 = arith.maximumf %15, %17 : vector<8x128xf32>
    %19 = vector.extract_strided_slice %1 {offsets = [6, 0, 0], sizes = [1, 8, 128], strides = [1, 1, 1]} : vector<9x8x128xf32> to vector<1x8x128xf32>
    %20 = vector.shape_cast %19 : vector<1x8x128xf32> to vector<8x128xf32>
    %21 = arith.maximumf %18, %20 : vector<8x128xf32>
    %22 = vector.extract_strided_slice %1 {offsets = [7, 0, 0], sizes = [1, 8, 128], strides = [1, 1, 1]} : vector<9x8x128xf32> to vector<1x8x128xf32>
    %23 = vector.shape_cast %22 : vector<1x8x128xf32> to vector<8x128xf32>
    %24 = arith.maximumf %21, %23 : vector<8x128xf32>
    %25 = vector.extract_strided_slice %1 {offsets = [8, 0, 0], sizes = [1, 8, 128], strides = [1, 1, 1]} : vector<9x8x128xf32> to vector<1x8x128xf32>
    %26 = vector.shape_cast %25 : vector<1x8x128xf32> to vector<8x128xf32>
    %27 = arith.maximumf %24, %26 : vector<8x128xf32>
    %28 = arith.truncf %27 : vector<8x128xf32> to vector<8x128xbf16>
    %c0_2 = arith.constant 0 : index
    %c0_3 = arith.constant 0 : index
    %29 = vector.load %arg1[%c0_2, %c0_3] : memref<8x128xbf16, #tpu.memory_space<vmem>>, vector<8x128xbf16>
    tpu.vector_store %arg1[%c0_2, %c0_3], %28 {strides = array<i32>} : memref<8x128xbf16, #tpu.memory_space<vmem>>, vector<8x128xbf16>,
    return
  }
}

module attributes {stable_mosaic.version = 11 : i64} {
  func.func @_layer_kernel(%arg0: memref<72x128xbf16, #tpu.memory_space<vmem>>, %arg1: memref<72x128xf32, #tpu.memory_space<vmem>>, %arg2: memref<8x72xf32, #tpu.memory_space<vmem>>, %arg3: memref<8x1xf32, #tpu.memory_space<vmem>>, %arg4: memref<8x72xf32, #tpu.memory_space<vmem>>, %arg5: memref<8x1xf32, #tpu.memory_space<vmem>>, %arg6: memref<8x72xf32, #tpu.memory_space<vmem>>, %arg7: memref<8x1xf32, #tpu.memory_space<vmem>>, %arg8: memref<8x72xf32, #tpu.memory_space<vmem>>, %arg9: memref<8x1xf32, #tpu.memory_space<vmem>>, %arg10: memref<8x128xbf16, #tpu.memory_space<vmem>>) attributes {dimension_semantics = [], scalar_prefetch = 0 : i64, scratch_operands = 0 : i64, tpu.core_type = #tpu.core_type<tc>} {
    %c0 = arith.constant 0 : index
    %c0_0 = arith.constant 0 : index
    %0 = vector.load %arg0[%c0, %c0_0] : memref<72x128xbf16, #tpu.memory_space<vmem>>, vector<72x128xbf16>
    %1 = arith.extf %0 : vector<72x128xbf16> to vector<72x128xf32>
    %c0_1 = arith.constant 0 : index
    %c0_2 = arith.constant 0 : index
    %2 = vector.load %arg1[%c0_1, %c0_2] : memref<72x128xf32, #tpu.memory_space<vmem>>, vector<72x128xf32>
    %c0_3 = arith.constant 0 : index
    %c0_4 = arith.constant 0 : index
    %3 = vector.load %arg2[%c0_3, %c0_4] : memref<8x72xf32, #tpu.memory_space<vmem>>, vector<8x72xf32>
    %cst = arith.constant dense<0.000000e+00> : vector<8x128xf32>
    %4 = tpu.matmul %3, %1, %cst {dimension_numbers = #tpu.dot_dimension_numbers<[1], [0], [0], [1], [0, 0, 1, 1], [], []>} : vector<8x72xf32>, vector<72x128xf32>, vector<8x128xf32> -> vector<8x128xf32>
    %c0_5 = arith.constant 0 : index
    %c0_6 = arith.constant 0 : index
    %5 = vector.load %arg3[%c0_5, %c0_6] : memref<8x1xf32, #tpu.memory_space<vmem>>, vector<8x1xf32>
    %6 = vector.broadcast %5 : vector<8x1xf32> to vector<8x128xf32>
    %7 = arith.addf %4, %6 : vector<8x128xf32>
    %cst_7 = arith.constant 0.000000e+00 : f32
    %8 = vector.broadcast %cst_7 : f32 to vector<8x128xf32>
    %9 = arith.maximumf %7, %8 : vector<8x128xf32>
    %10 = vector.extract_strided_slice %1 {offsets = [32, 0], sizes = [8, 128], strides = [1, 1]} : vector<72x128xf32> to vector<8x128xf32>
    %c0_8 = arith.constant 0 : index
    %c0_9 = arith.constant 0 : index
    %11 = vector.load %arg4[%c0_8, %c0_9] : memref<8x72xf32, #tpu.memory_space<vmem>>, vector<8x72xf32>
    %cst_10 = arith.constant 0.000000e+00 : f32
    %12 = vector.broadcast %cst_10 : f32 to vector<8x9xf32>
    %13 = vector.extract_strided_slice %9 {offsets = [0, 0], sizes = [8, 119], strides = [1, 1]} : vector<8x128xf32> to vector<8x119xf32>
    %14 = tpu.concatenate %12, %13 in 1 : vector<8x9xf32>, vector<8x119xf32> -> vector<8x128xf32>
    %cst_11 = arith.constant 0.000000e+00 : f32
    %15 = vector.broadcast %cst_11 : f32 to vector<8x8xf32>
    %16 = vector.extract_strided_slice %9 {offsets = [0, 0], sizes = [8, 120], strides = [1, 1]} : vector<8x128xf32> to vector<8x120xf32>
    %17 = tpu.concatenate %15, %16 in 1 : vector<8x8xf32>, vector<8x120xf32> -> vector<8x128xf32>
    %cst_12 = arith.constant 0.000000e+00 : f32
    %18 = vector.broadcast %cst_12 : f32 to vector<8x7xf32>
    %19 = vector.extract_strided_slice %9 {offsets = [0, 0], sizes = [8, 121], strides = [1, 1]} : vector<8x128xf32> to vector<8x121xf32>
    %20 = tpu.concatenate %18, %19 in 1 : vector<8x7xf32>, vector<8x121xf32> -> vector<8x128xf32>
    %cst_13 = arith.constant 0.000000e+00 : f32
    %21 = vector.broadcast %cst_13 : f32 to vector<8x1xf32>
    %22 = vector.extract_strided_slice %9 {offsets = [0, 0], sizes = [8, 127], strides = [1, 1]} : vector<8x128xf32> to vector<8x127xf32>
    %23 = tpu.concatenate %21, %22 in 1 : vector<8x1xf32>, vector<8x127xf32> -> vector<8x128xf32>
    %24 = vector.extract_strided_slice %9 {offsets = [0, 1], sizes = [8, 127], strides = [1, 1]} : vector<8x128xf32> to vector<8x127xf32>
    %cst_14 = arith.constant 0.000000e+00 : f32
    %25 = vector.broadcast %cst_14 : f32 to vector<8x1xf32>
    %26 = tpu.concatenate %24, %25 in 1 : vector<8x127xf32>, vector<8x1xf32> -> vector<8x128xf32>
    %27 = vector.extract_strided_slice %9 {offsets = [0, 7], sizes = [8, 121], strides = [1, 1]} : vector<8x128xf32> to vector<8x121xf32>
    %cst_15 = arith.constant 0.000000e+00 : f32
    %28 = vector.broadcast %cst_15 : f32 to vector<8x7xf32>
    %29 = tpu.concatenate %27, %28 in 1 : vector<8x121xf32>, vector<8x7xf32> -> vector<8x128xf32>
    %30 = vector.extract_strided_slice %9 {offsets = [0, 8], sizes = [8, 120], strides = [1, 1]} : vector<8x128xf32> to vector<8x120xf32>
    %cst_16 = arith.constant 0.000000e+00 : f32
    %31 = vector.broadcast %cst_16 : f32 to vector<8x8xf32>
    %32 = tpu.concatenate %30, %31 in 1 : vector<8x120xf32>, vector<8x8xf32> -> vector<8x128xf32>
    %33 = vector.extract_strided_slice %9 {offsets = [0, 9], sizes = [8, 119], strides = [1, 1]} : vector<8x128xf32> to vector<8x119xf32>
    %cst_17 = arith.constant 0.000000e+00 : f32
    %34 = vector.broadcast %cst_17 : f32 to vector<8x9xf32>
    %35 = tpu.concatenate %33, %34 in 1 : vector<8x119xf32>, vector<8x9xf32> -> vector<8x128xf32>
    %36 = tpu.concatenate %14, %17, %20, %23, %9, %26, %29, %32, %35 in 0 : vector<8x128xf32>, vector<8x128xf32>, vector<8x128xf32>, vector<8x128xf32>, vector<8x128xf32>, vector<8x128xf32>, vector<8x128xf32>, vector<8x128xf32>, vector<8x128xf32> -> vector<72x128xf32>
    %37 = arith.mulf %36, %2 : vector<72x128xf32>
    %cst_18 = arith.constant dense<0.000000e+00> : vector<8x128xf32>
    %38 = tpu.matmul %11, %37, %cst_18 {dimension_numbers = #tpu.dot_dimension_numbers<[1], [0], [0], [1], [0, 0, 1, 1], [], []>} : vector<8x72xf32>, vector<72x128xf32>, vector<8x128xf32> -> vector<8x128xf32>
    %c0_19 = arith.constant 0 : index
    %c0_20 = arith.constant 0 : index
    %39 = vector.load %arg5[%c0_19, %c0_20] : memref<8x1xf32, #tpu.memory_space<vmem>>, vector<8x1xf32>
    %40 = vector.broadcast %39 : vector<8x1xf32> to vector<8x128xf32>
    %41 = arith.addf %38, %40 : vector<8x128xf32>
    %42 = arith.addf %41, %10 : vector<8x128xf32>
    %cst_21 = arith.constant 0.000000e+00 : f32
    %43 = vector.broadcast %cst_21 : f32 to vector<8x128xf32>
    %44 = arith.maximumf %42, %43 : vector<8x128xf32>
    %c0_22 = arith.constant 0 : index
    %c0_23 = arith.constant 0 : index
    %45 = vector.load %arg6[%c0_22, %c0_23] : memref<8x72xf32, #tpu.memory_space<vmem>>, vector<8x72xf32>
    %cst_24 = arith.constant 0.000000e+00 : f32
    %46 = vector.broadcast %cst_24 : f32 to vector<8x9xf32>
    %47 = vector.extract_strided_slice %44 {offsets = [0, 0], sizes = [8, 119], strides = [1, 1]} : vector<8x128xf32> to vector<8x119xf32>
    %48 = tpu.concatenate %46, %47 in 1 : vector<8x9xf32>, vector<8x119xf32> -> vector<8x128xf32>
    %cst_25 = arith.constant 0.000000e+00 : f32
    %49 = vector.broadcast %cst_25 : f32 to vector<8x8xf32>
    %50 = vector.extract_strided_slice %44 {offsets = [0, 0], sizes = [8, 120], strides = [1, 1]} : vector<8x128xf32> to vector<8x120xf32>
    %51 = tpu.concatenate %49, %50 in 1 : vector<8x8xf32>, vector<8x120xf32> -> vector<8x128xf32>
    %cst_26 = arith.constant 0.000000e+00 : f32
    %52 = vector.broadcast %cst_26 : f32 to vector<8x7xf32>
    %53 = vector.extract_strided_slice %44 {offsets = [0, 0], sizes = [8, 121], strides = [1, 1]} : vector<8x128xf32> to vector<8x121xf32>
    %54 = tpu.concatenate %52, %53 in 1 : vector<8x7xf32>, vector<8x121xf32> -> vector<8x128xf32>
    %cst_27 = arith.constant 0.000000e+00 : f32
    %55 = vector.broadcast %cst_27 : f32 to vector<8x1xf32>
    %56 = vector.extract_strided_slice %44 {offsets = [0, 0], sizes = [8, 127], strides = [1, 1]} : vector<8x128xf32> to vector<8x127xf32>
    %57 = tpu.concatenate %55, %56 in 1 : vector<8x1xf32>, vector<8x127xf32> -> vector<8x128xf32>
    %58 = vector.extract_strided_slice %44 {offsets = [0, 1], sizes = [8, 127], strides = [1, 1]} : vector<8x128xf32> to vector<8x127xf32>
    %cst_28 = arith.constant 0.000000e+00 : f32
    %59 = vector.broadcast %cst_28 : f32 to vector<8x1xf32>
    %60 = tpu.concatenate %58, %59 in 1 : vector<8x127xf32>, vector<8x1xf32> -> vector<8x128xf32>
    %61 = vector.extract_strided_slice %44 {offsets = [0, 7], sizes = [8, 121], strides = [1, 1]} : vector<8x128xf32> to vector<8x121xf32>
    %cst_29 = arith.constant 0.000000e+00 : f32
    %62 = vector.broadcast %cst_29 : f32 to vector<8x7xf32>
    %63 = tpu.concatenate %61, %62 in 1 : vector<8x121xf32>, vector<8x7xf32> -> vector<8x128xf32>
    %64 = vector.extract_strided_slice %44 {offsets = [0, 8], sizes = [8, 120], strides = [1, 1]} : vector<8x128xf32> to vector<8x120xf32>
    %cst_30 = arith.constant 0.000000e+00 : f32
    %65 = vector.broadcast %cst_30 : f32 to vector<8x8xf32>
    %66 = tpu.concatenate %64, %65 in 1 : vector<8x120xf32>, vector<8x8xf32> -> vector<8x128xf32>
    %67 = vector.extract_strided_slice %44 {offsets = [0, 9], sizes = [8, 119], strides = [1, 1]} : vector<8x128xf32> to vector<8x119xf32>
    %cst_31 = arith.constant 0.000000e+00 : f32
    %68 = vector.broadcast %cst_31 : f32 to vector<8x9xf32>
    %69 = tpu.concatenate %67, %68 in 1 : vector<8x119xf32>, vector<8x9xf32> -> vector<8x128xf32>
    %70 = tpu.concatenate %48, %51, %54, %57, %44, %60, %63, %66, %69 in 0 : vector<8x128xf32>, vector<8x128xf32>, vector<8x128xf32>, vector<8x128xf32>, vector<8x128xf32>, vector<8x128xf32>, vector<8x128xf32>, vector<8x128xf32>, vector<8x128xf32> -> vector<72x128xf32>
    %71 = arith.mulf %70, %2 : vector<72x128xf32>
    %cst_32 = arith.constant dense<0.000000e+00> : vector<8x128xf32>
    %72 = tpu.matmul %45, %71, %cst_32 {dimension_numbers = #tpu.dot_dimension_numbers<[1], [0], [0], [1], [0, 0, 1, 1], [], []>} : vector<8x72xf32>, vector<72x128xf32>, vector<8x128xf32> -> vector<8x128xf32>
    %c0_33 = arith.constant 0 : index
    %c0_34 = arith.constant 0 : index
    %73 = vector.load %arg7[%c0_33, %c0_34] : memref<8x1xf32, #tpu.memory_space<vmem>>, vector<8x1xf32>
    %74 = vector.broadcast %73 : vector<8x1xf32> to vector<8x128xf32>
    %75 = arith.addf %72, %74 : vector<8x128xf32>
    %cst_35 = arith.constant 0.000000e+00 : f32
    %76 = vector.broadcast %cst_35 : f32 to vector<8x128xf32>
    %77 = arith.maximumf %75, %76 : vector<8x128xf32>
    %c0_36 = arith.constant 0 : index
    %c0_37 = arith.constant 0 : index
    %78 = vector.load %arg8[%c0_36, %c0_37] : memref<8x72xf32, #tpu.memory_space<vmem>>, vector<8x72xf32>
    %cst_38 = arith.constant 0.000000e+00 : f32
    %79 = vector.broadcast %cst_38 : f32 to vector<8x9xf32>
    %80 = vector.extract_strided_slice %77 {offsets = [0, 0], sizes = [8, 119], strides = [1, 1]} : vector<8x128xf32> to vector<8x119xf32>
    %81 = tpu.concatenate %79, %80 in 1 : vector<8x9xf32>, vector<8x119xf32> -> vector<8x128xf32>
    %cst_39 = arith.constant 0.000000e+00 : f32
    %82 = vector.broadcast %cst_39 : f32 to vector<8x8xf32>
    %83 = vector.extract_strided_slice %77 {offsets = [0, 0], sizes = [8, 120], strides = [1, 1]} : vector<8x128xf32> to vector<8x120xf32>
    %84 = tpu.concatenate %82, %83 in 1 : vector<8x8xf32>, vector<8x120xf32> -> vector<8x128xf32>
    %cst_40 = arith.constant 0.000000e+00 : f32
    %85 = vector.broadcast %cst_40 : f32 to vector<8x7xf32>
    %86 = vector.extract_strided_slice %77 {offsets = [0, 0], sizes = [8, 121], strides = [1, 1]} : vector<8x128xf32> to vector<8x121xf32>
    %87 = tpu.concatenate %85, %86 in 1 : vector<8x7xf32>, vector<8x121xf32> -> vector<8x128xf32>
    %cst_41 = arith.constant 0.000000e+00 : f32
    %88 = vector.broadcast %cst_41 : f32 to vector<8x1xf32>
    %89 = vector.extract_strided_slice %77 {offsets = [0, 0], sizes = [8, 127], strides = [1, 1]} : vector<8x128xf32> to vector<8x127xf32>
    %90 = tpu.concatenate %88, %89 in 1 : vector<8x1xf32>, vector<8x127xf32> -> vector<8x128xf32>
    %91 = vector.extract_strided_slice %77 {offsets = [0, 1], sizes = [8, 127], strides = [1, 1]} : vector<8x128xf32> to vector<8x127xf32>
    %cst_42 = arith.constant 0.000000e+00 : f32
    %92 = vector.broadcast %cst_42 : f32 to vector<8x1xf32>
    %93 = tpu.concatenate %91, %92 in 1 : vector<8x127xf32>, vector<8x1xf32> -> vector<8x128xf32>
    %94 = vector.extract_strided_slice %77 {offsets = [0, 7], sizes = [8, 121], strides = [1, 1]} : vector<8x128xf32> to vector<8x121xf32>
    %cst_43 = arith.constant 0.000000e+00 : f32
    %95 = vector.broadcast %cst_43 : f32 to vector<8x7xf32>
    %96 = tpu.concatenate %94, %95 in 1 : vector<8x121xf32>, vector<8x7xf32> -> vector<8x128xf32>
    %97 = vector.extract_strided_slice %77 {offsets = [0, 8], sizes = [8, 120], strides = [1, 1]} : vector<8x128xf32> to vector<8x120xf32>
    %cst_44 = arith.constant 0.000000e+00 : f32
    %98 = vector.broadcast %cst_44 : f32 to vector<8x8xf32>
    %99 = tpu.concatenate %97, %98 in 1 : vector<8x120xf32>, vector<8x8xf32> -> vector<8x128xf32>
    %100 = vector.extract_strided_slice %77 {offsets = [0, 9], sizes = [8, 119], strides = [1, 1]} : vector<8x128xf32> to vector<8x119xf32>
    %cst_45 = arith.constant 0.000000e+00 : f32
    %101 = vector.broadcast %cst_45 : f32 to vector<8x9xf32>
    %102 = tpu.concatenate %100, %101 in 1 : vector<8x119xf32>, vector<8x9xf32> -> vector<8x128xf32>
    %103 = tpu.concatenate %81, %84, %87, %90, %77, %93, %96, %99, %102 in 0 : vector<8x128xf32>, vector<8x128xf32>, vector<8x128xf32>, vector<8x128xf32>, vector<8x128xf32>, vector<8x128xf32>, vector<8x128xf32>, vector<8x128xf32>, vector<8x128xf32> -> vector<72x128xf32>
    %104 = arith.mulf %103, %2 : vector<72x128xf32>
    %cst_46 = arith.constant dense<0.000000e+00> : vector<8x128xf32>
    %105 = tpu.matmul %78, %104, %cst_46 {dimension_numbers = #tpu.dot_dimension_numbers<[1], [0], [0], [1], [0, 0, 1, 1], [], []>} : vector<8x72xf32>, vector<72x128xf32>, vector<8x128xf32> -> vector<8x128xf32>
    %c0_47 = arith.constant 0 : index
    %c0_48 = arith.constant 0 : index
    %106 = vector.load %arg9[%c0_47, %c0_48] : memref<8x1xf32, #tpu.memory_space<vmem>>, vector<8x1xf32>
    %107 = vector.broadcast %106 : vector<8x1xf32> to vector<8x128xf32>
    %108 = arith.addf %105, %107 : vector<8x128xf32>
    %109 = arith.addf %108, %44 : vector<8x128xf32>
    %cst_49 = arith.constant 0.000000e+00 : f32
    %110 = vector.broadcast %cst_49 : f32 to vector<8x128xf32>
    %111 = arith.maximumf %109, %110 : vector<8x128xf32>
    %112 = arith.truncf %111 : vector<8x128xf32> to vector<8x128xbf16>
    %c0_50 = arith.constant 0 : index
    %c0_51 = arith.constant 0 : index
    %113 = vector.load %arg10[%c0_50, %c0_51] : memref<8x128xbf16, #tpu.memory_space<vmem>>, vector<8x128xbf16>
    tpu.vector_store %arg10[%c0_50, %c0_51], %112 {strides = array<i32>} : memref<8x128xbf16, #tpu.memory_space<vmem>>, vector<8x128xbf16>,
    return
  }
}

module attributes {stable_mosaic.version = 11 : i64} {
  func.func @_layer_ds_kernel(%arg0: memref<72x32xbf16, #tpu.memory_space<vmem>>, %arg1: memref<144x32xf32, #tpu.memory_space<vmem>>, %arg2: memref<16x72xf32, #tpu.memory_space<vmem>>, %arg3: memref<16x1xf32, #tpu.memory_space<vmem>>, %arg4: memref<16x8xf32, #tpu.memory_space<vmem>>, %arg5: memref<16x1xf32, #tpu.memory_space<vmem>>, %arg6: memref<16x144xf32, #tpu.memory_space<vmem>>, %arg7: memref<16x1xf32, #tpu.memory_space<vmem>>, %arg8: memref<16x144xf32, #tpu.memory_space<vmem>>, %arg9: memref<16x1xf32, #tpu.memory_space<vmem>>, %arg10: memref<16x144xf32, #tpu.memory_space<vmem>>, %arg11: memref<16x1xf32, #tpu.memory_space<vmem>>, %arg12: memref<16x32xbf16, #tpu.memory_space<vmem>>) attributes {dimension_semantics = [], scalar_prefetch = 0 : i64, scratch_operands = 0 : i64, tpu.core_type = #tpu.core_type<tc>} {
    %c0 = arith.constant 0 : index
    %c0_0 = arith.constant 0 : index
    %0 = vector.load %arg0[%c0, %c0_0] : memref<72x32xbf16, #tpu.memory_space<vmem>>, vector<72x32xbf16>
    %1 = arith.extf %0 : vector<72x32xbf16> to vector<72x32xf32>
    %c0_1 = arith.constant 0 : index
    %c0_2 = arith.constant 0 : index
    %2 = vector.load %arg1[%c0_1, %c0_2] : memref<144x32xf32, #tpu.memory_space<vmem>>, vector<144x32xf32>
    %c0_3 = arith.constant 0 : index
    %c0_4 = arith.constant 0 : index
    %3 = vector.load %arg2[%c0_3, %c0_4] : memref<16x72xf32, #tpu.memory_space<vmem>>, vector<16x72xf32>
    %cst = arith.constant dense<0.000000e+00> : vector<16x32xf32>
    %4 = tpu.matmul %3, %1, %cst {dimension_numbers = #tpu.dot_dimension_numbers<[1], [0], [0], [1], [0, 0, 1, 1], [], []>} : vector<16x72xf32>, vector<72x32xf32>, vector<16x32xf32> -> vector<16x32xf32>
    %c0_5 = arith.constant 0 : index
    %c0_6 = arith.constant 0 : index
    %5 = vector.load %arg3[%c0_5, %c0_6] : memref<16x1xf32, #tpu.memory_space<vmem>>, vector<16x1xf32>
    %6 = vector.broadcast %5 : vector<16x1xf32> to vector<16x32xf32>
    %7 = arith.addf %4, %6 : vector<16x32xf32>
    %cst_7 = arith.constant 0.000000e+00 : f32
    %8 = vector.broadcast %cst_7 : f32 to vector<16x32xf32>
    %9 = arith.maximumf %7, %8 : vector<16x32xf32>
    %10 = vector.extract_strided_slice %1 {offsets = [32, 0], sizes = [8, 32], strides = [1, 1]} : vector<72x32xf32> to vector<8x32xf32>
    %c0_8 = arith.constant 0 : index
    %c0_9 = arith.constant 0 : index
    %11 = vector.load %arg4[%c0_8, %c0_9] : memref<16x8xf32, #tpu.memory_space<vmem>>, vector<16x8xf32>
    %cst_10 = arith.constant dense<0.000000e+00> : vector<16x32xf32>
    %12 = tpu.matmul %11, %10, %cst_10 {dimension_numbers = #tpu.dot_dimension_numbers<[1], [0], [0], [1], [0, 0, 1, 1], [], []>} : vector<16x8xf32>, vector<8x32xf32>, vector<16x32xf32> -> vector<16x32xf32>
    %c0_11 = arith.constant 0 : index
    %c0_12 = arith.constant 0 : index
    %13 = vector.load %arg5[%c0_11, %c0_12] : memref<16x1xf32, #tpu.memory_space<vmem>>, vector<16x1xf32>
    %14 = vector.broadcast %13 : vector<16x1xf32> to vector<16x32xf32>
    %15 = arith.addf %12, %14 : vector<16x32xf32>
    %c0_13 = arith.constant 0 : index
    %c0_14 = arith.constant 0 : index
    %16 = vector.load %arg6[%c0_13, %c0_14] : memref<16x144xf32, #tpu.memory_space<vmem>>, vector<16x144xf32>
    %cst_15 = arith.constant 0.000000e+00 : f32
    %17 = vector.broadcast %cst_15 : f32 to vector<16x5xf32>
    %18 = vector.extract_strided_slice %9 {offsets = [0, 0], sizes = [16, 27], strides = [1, 1]} : vector<16x32xf32> to vector<16x27xf32>
    %19 = tpu.concatenate %17, %18 in 1 : vector<16x5xf32>, vector<16x27xf32> -> vector<16x32xf32>
    %cst_16 = arith.constant 0.000000e+00 : f32
    %20 = vector.broadcast %cst_16 : f32 to vector<16x4xf32>
    %21 = vector.extract_strided_slice %9 {offsets = [0, 0], sizes = [16, 28], strides = [1, 1]} : vector<16x32xf32> to vector<16x28xf32>
    %22 = tpu.concatenate %20, %21 in 1 : vector<16x4xf32>, vector<16x28xf32> -> vector<16x32xf32>
    %cst_17 = arith.constant 0.000000e+00 : f32
    %23 = vector.broadcast %cst_17 : f32 to vector<16x3xf32>
    %24 = vector.extract_strided_slice %9 {offsets = [0, 0], sizes = [16, 29], strides = [1, 1]} : vector<16x32xf32> to vector<16x29xf32>
    %25 = tpu.concatenate %23, %24 in 1 : vector<16x3xf32>, vector<16x29xf32> -> vector<16x32xf32>
    %cst_18 = arith.constant 0.000000e+00 : f32
    %26 = vector.broadcast %cst_18 : f32 to vector<16x1xf32>
    %27 = vector.extract_strided_slice %9 {offsets = [0, 0], sizes = [16, 31], strides = [1, 1]} : vector<16x32xf32> to vector<16x31xf32>
    %28 = tpu.concatenate %26, %27 in 1 : vector<16x1xf32>, vector<16x31xf32> -> vector<16x32xf32>
    %29 = vector.extract_strided_slice %9 {offsets = [0, 1], sizes = [16, 31], strides = [1, 1]} : vector<16x32xf32> to vector<16x31xf32>
    %cst_19 = arith.constant 0.000000e+00 : f32
    %30 = vector.broadcast %cst_19 : f32 to vector<16x1xf32>
    %31 = tpu.concatenate %29, %30 in 1 : vector<16x31xf32>, vector<16x1xf32> -> vector<16x32xf32>
    %32 = vector.extract_strided_slice %9 {offsets = [0, 3], sizes = [16, 29], strides = [1, 1]} : vector<16x32xf32> to vector<16x29xf32>
    %cst_20 = arith.constant 0.000000e+00 : f32
    %33 = vector.broadcast %cst_20 : f32 to vector<16x3xf32>
    %34 = tpu.concatenate %32, %33 in 1 : vector<16x29xf32>, vector<16x3xf32> -> vector<16x32xf32>
    %35 = vector.extract_strided_slice %9 {offsets = [0, 4], sizes = [16, 28], strides = [1, 1]} : vector<16x32xf32> to vector<16x28xf32>
    %cst_21 = arith.constant 0.000000e+00 : f32
    %36 = vector.broadcast %cst_21 : f32 to vector<16x4xf32>
    %37 = tpu.concatenate %35, %36 in 1 : vector<16x28xf32>, vector<16x4xf32> -> vector<16x32xf32>
    %38 = vector.extract_strided_slice %9 {offsets = [0, 5], sizes = [16, 27], strides = [1, 1]} : vector<16x32xf32> to vector<16x27xf32>
    %cst_22 = arith.constant 0.000000e+00 : f32
    %39 = vector.broadcast %cst_22 : f32 to vector<16x5xf32>
    %40 = tpu.concatenate %38, %39 in 1 : vector<16x27xf32>, vector<16x5xf32> -> vector<16x32xf32>
    %41 = tpu.concatenate %19, %22, %25, %28, %9, %31, %34, %37, %40 in 0 : vector<16x32xf32>, vector<16x32xf32>, vector<16x32xf32>, vector<16x32xf32>, vector<16x32xf32>, vector<16x32xf32>, vector<16x32xf32>, vector<16x32xf32>, vector<16x32xf32> -> vector<144x32xf32>
    %42 = arith.mulf %41, %2 : vector<144x32xf32>
    %cst_23 = arith.constant dense<0.000000e+00> : vector<16x32xf32>
    %43 = tpu.matmul %16, %42, %cst_23 {dimension_numbers = #tpu.dot_dimension_numbers<[1], [0], [0], [1], [0, 0, 1, 1], [], []>} : vector<16x144xf32>, vector<144x32xf32>, vector<16x32xf32> -> vector<16x32xf32>
    %c0_24 = arith.constant 0 : index
    %c0_25 = arith.constant 0 : index
    %44 = vector.load %arg7[%c0_24, %c0_25] : memref<16x1xf32, #tpu.memory_space<vmem>>, vector<16x1xf32>
    %45 = vector.broadcast %44 : vector<16x1xf32> to vector<16x32xf32>
    %46 = arith.addf %43, %45 : vector<16x32xf32>
    %47 = arith.addf %46, %15 : vector<16x32xf32>
    %cst_26 = arith.constant 0.000000e+00 : f32
    %48 = vector.broadcast %cst_26 : f32 to vector<16x32xf32>
    %49 = arith.maximumf %47, %48 : vector<16x32xf32>
    %c0_27 = arith.constant 0 : index
    %c0_28 = arith.constant 0 : index
    %50 = vector.load %arg8[%c0_27, %c0_28] : memref<16x144xf32, #tpu.memory_space<vmem>>, vector<16x144xf32>
    %cst_29 = arith.constant 0.000000e+00 : f32
    %51 = vector.broadcast %cst_29 : f32 to vector<16x5xf32>
    %52 = vector.extract_strided_slice %49 {offsets = [0, 0], sizes = [16, 27], strides = [1, 1]} : vector<16x32xf32> to vector<16x27xf32>
    %53 = tpu.concatenate %51, %52 in 1 : vector<16x5xf32>, vector<16x27xf32> -> vector<16x32xf32>
    %cst_30 = arith.constant 0.000000e+00 : f32
    %54 = vector.broadcast %cst_30 : f32 to vector<16x4xf32>
    %55 = vector.extract_strided_slice %49 {offsets = [0, 0], sizes = [16, 28], strides = [1, 1]} : vector<16x32xf32> to vector<16x28xf32>
    %56 = tpu.concatenate %54, %55 in 1 : vector<16x4xf32>, vector<16x28xf32> -> vector<16x32xf32>
    %cst_31 = arith.constant 0.000000e+00 : f32
    %57 = vector.broadcast %cst_31 : f32 to vector<16x3xf32>
    %58 = vector.extract_strided_slice %49 {offsets = [0, 0], sizes = [16, 29], strides = [1, 1]} : vector<16x32xf32> to vector<16x29xf32>
    %59 = tpu.concatenate %57, %58 in 1 : vector<16x3xf32>, vector<16x29xf32> -> vector<16x32xf32>
    %cst_32 = arith.constant 0.000000e+00 : f32
    %60 = vector.broadcast %cst_32 : f32 to vector<16x1xf32>
    %61 = vector.extract_strided_slice %49 {offsets = [0, 0], sizes = [16, 31], strides = [1, 1]} : vector<16x32xf32> to vector<16x31xf32>
    %62 = tpu.concatenate %60, %61 in 1 : vector<16x1xf32>, vector<16x31xf32> -> vector<16x32xf32>
    %63 = vector.extract_strided_slice %49 {offsets = [0, 1], sizes = [16, 31], strides = [1, 1]} : vector<16x32xf32> to vector<16x31xf32>
    %cst_33 = arith.constant 0.000000e+00 : f32
    %64 = vector.broadcast %cst_33 : f32 to vector<16x1xf32>
    %65 = tpu.concatenate %63, %64 in 1 : vector<16x31xf32>, vector<16x1xf32> -> vector<16x32xf32>
    %66 = vector.extract_strided_slice %49 {offsets = [0, 3], sizes = [16, 29], strides = [1, 1]} : vector<16x32xf32> to vector<16x29xf32>
    %cst_34 = arith.constant 0.000000e+00 : f32
    %67 = vector.broadcast %cst_34 : f32 to vector<16x3xf32>
    %68 = tpu.concatenate %66, %67 in 1 : vector<16x29xf32>, vector<16x3xf32> -> vector<16x32xf32>
    %69 = vector.extract_strided_slice %49 {offsets = [0, 4], sizes = [16, 28], strides = [1, 1]} : vector<16x32xf32> to vector<16x28xf32>
    %cst_35 = arith.constant 0.000000e+00 : f32
    %70 = vector.broadcast %cst_35 : f32 to vector<16x4xf32>
    %71 = tpu.concatenate %69, %70 in 1 : vector<16x28xf32>, vector<16x4xf32> -> vector<16x32xf32>
    %72 = vector.extract_strided_slice %49 {offsets = [0, 5], sizes = [16, 27], strides = [1, 1]} : vector<16x32xf32> to vector<16x27xf32>
    %cst_36 = arith.constant 0.000000e+00 : f32
    %73 = vector.broadcast %cst_36 : f32 to vector<16x5xf32>
    %74 = tpu.concatenate %72, %73 in 1 : vector<16x27xf32>, vector<16x5xf32> -> vector<16x32xf32>
    %75 = tpu.concatenate %53, %56, %59, %62, %49, %65, %68, %71, %74 in 0 : vector<16x32xf32>, vector<16x32xf32>, vector<16x32xf32>, vector<16x32xf32>, vector<16x32xf32>, vector<16x32xf32>, vector<16x32xf32>, vector<16x32xf32>, vector<16x32xf32> -> vector<144x32xf32>
    %76 = arith.mulf %75, %2 : vector<144x32xf32>
    %cst_37 = arith.constant dense<0.000000e+00> : vector<16x32xf32>
    %77 = tpu.matmul %50, %76, %cst_37 {dimension_numbers = #tpu.dot_dimension_numbers<[1], [0], [0], [1], [0, 0, 1, 1], [], []>} : vector<16x144xf32>, vector<144x32xf32>, vector<16x32xf32> -> vector<16x32xf32>
    %c0_38 = arith.constant 0 : index
    %c0_39 = arith.constant 0 : index
    %78 = vector.load %arg9[%c0_38, %c0_39] : memref<16x1xf32, #tpu.memory_space<vmem>>, vector<16x1xf32>
    %79 = vector.broadcast %78 : vector<16x1xf32> to vector<16x32xf32>
    %80 = arith.addf %77, %79 : vector<16x32xf32>
    %cst_40 = arith.constant 0.000000e+00 : f32
    %81 = vector.broadcast %cst_40 : f32 to vector<16x32xf32>
    %82 = arith.maximumf %80, %81 : vector<16x32xf32>
    %c0_41 = arith.constant 0 : index
    %c0_42 = arith.constant 0 : index
    %83 = vector.load %arg10[%c0_41, %c0_42] : memref<16x144xf32, #tpu.memory_space<vmem>>, vector<16x144xf32>
    %cst_43 = arith.constant 0.000000e+00 : f32
    %84 = vector.broadcast %cst_43 : f32 to vector<16x5xf32>
    %85 = vector.extract_strided_slice %82 {offsets = [0, 0], sizes = [16, 27], strides = [1, 1]} : vector<16x32xf32> to vector<16x27xf32>
    %86 = tpu.concatenate %84, %85 in 1 : vector<16x5xf32>, vector<16x27xf32> -> vector<16x32xf32>
    %cst_44 = arith.constant 0.000000e+00 : f32
    %87 = vector.broadcast %cst_44 : f32 to vector<16x4xf32>
    %88 = vector.extract_strided_slice %82 {offsets = [0, 0], sizes = [16, 28], strides = [1, 1]} : vector<16x32xf32> to vector<16x28xf32>
    %89 = tpu.concatenate %87, %88 in 1 : vector<16x4xf32>, vector<16x28xf32> -> vector<16x32xf32>
    %cst_45 = arith.constant 0.000000e+00 : f32
    %90 = vector.broadcast %cst_45 : f32 to vector<16x3xf32>
    %91 = vector.extract_strided_slice %82 {offsets = [0, 0], sizes = [16, 29], strides = [1, 1]} : vector<16x32xf32> to vector<16x29xf32>
    %92 = tpu.concatenate %90, %91 in 1 : vector<16x3xf32>, vector<16x29xf32> -> vector<16x32xf32>
    %cst_46 = arith.constant 0.000000e+00 : f32
    %93 = vector.broadcast %cst_46 : f32 to vector<16x1xf32>
    %94 = vector.extract_strided_slice %82 {offsets = [0, 0], sizes = [16, 31], strides = [1, 1]} : vector<16x32xf32> to vector<16x31xf32>
    %95 = tpu.concatenate %93, %94 in 1 : vector<16x1xf32>, vector<16x31xf32> -> vector<16x32xf32>
    %96 = vector.extract_strided_slice %82 {offsets = [0, 1], sizes = [16, 31], strides = [1, 1]} : vector<16x32xf32> to vector<16x31xf32>
    %cst_47 = arith.constant 0.000000e+00 : f32
    %97 = vector.broadcast %cst_47 : f32 to vector<16x1xf32>
    %98 = tpu.concatenate %96, %97 in 1 : vector<16x31xf32>, vector<16x1xf32> -> vector<16x32xf32>
    %99 = vector.extract_strided_slice %82 {offsets = [0, 3], sizes = [16, 29], strides = [1, 1]} : vector<16x32xf32> to vector<16x29xf32>
    %cst_48 = arith.constant 0.000000e+00 : f32
    %100 = vector.broadcast %cst_48 : f32 to vector<16x3xf32>
    %101 = tpu.concatenate %99, %100 in 1 : vector<16x29xf32>, vector<16x3xf32> -> vector<16x32xf32>
    %102 = vector.extract_strided_slice %82 {offsets = [0, 4], sizes = [16, 28], strides = [1, 1]} : vector<16x32xf32> to vector<16x28xf32>
    %cst_49 = arith.constant 0.000000e+00 : f32
    %103 = vector.broadcast %cst_49 : f32 to vector<16x4xf32>
    %104 = tpu.concatenate %102, %103 in 1 : vector<16x28xf32>, vector<16x4xf32> -> vector<16x32xf32>
    %105 = vector.extract_strided_slice %82 {offsets = [0, 5], sizes = [16, 27], strides = [1, 1]} : vector<16x32xf32> to vector<16x27xf32>
    %cst_50 = arith.constant 0.000000e+00 : f32
    %106 = vector.broadcast %cst_50 : f32 to vector<16x5xf32>
    %107 = tpu.concatenate %105, %106 in 1 : vector<16x27xf32>, vector<16x5xf32> -> vector<16x32xf32>
    %108 = tpu.concatenate %86, %89, %92, %95, %82, %98, %101, %104, %107 in 0 : vector<16x32xf32>, vector<16x32xf32>, vector<16x32xf32>, vector<16x32xf32>, vector<16x32xf32>, vector<16x32xf32>, vector<16x32xf32>, vector<16x32xf32>, vector<16x32xf32> -> vector<144x32xf32>
    %109 = arith.mulf %108, %2 : vector<144x32xf32>
    %cst_51 = arith.constant dense<0.000000e+00> : vector<16x32xf32>
    %110 = tpu.matmul %83, %109, %cst_51 {dimension_numbers = #tpu.dot_dimension_numbers<[1], [0], [0], [1], [0, 0, 1, 1], [], []>} : vector<16x144xf32>, vector<144x32xf32>, vector<16x32xf32> -> vector<16x32xf32>
    %c0_52 = arith.constant 0 : index
    %c0_53 = arith.constant 0 : index
    %111 = vector.load %arg11[%c0_52, %c0_53] : memref<16x1xf32, #tpu.memory_space<vmem>>, vector<16x1xf32>
    %112 = vector.broadcast %111 : vector<16x1xf32> to vector<16x32xf32>
    %113 = arith.addf %110, %112 : vector<16x32xf32>
    %114 = arith.addf %113, %49 : vector<16x32xf32>
    %cst_54 = arith.constant 0.000000e+00 : f32
    %115 = vector.broadcast %cst_54 : f32 to vector<16x32xf32>
    %116 = arith.maximumf %114, %115 : vector<16x32xf32>
    %117 = arith.truncf %116 : vector<16x32xf32> to vector<16x32xbf16>
    %c0_55 = arith.constant 0 : index
    %c0_56 = arith.constant 0 : index
    %118 = vector.load %arg12[%c0_55, %c0_56] : memref<16x32xbf16, #tpu.memory_space<vmem>>, vector<16x32xbf16>
    tpu.vector_store %arg12[%c0_55, %c0_56], %117 {strides = array<i32>} : memref<16x32xbf16, #tpu.memory_space<vmem>>, vector<16x32xbf16>,
    return
  }
}

module attributes {stable_mosaic.version = 11 : i64} {
  func.func @_layer_ds_kernel(%arg0: memref<144x8xbf16, #tpu.memory_space<vmem>>, %arg1: memref<288x8xf32, #tpu.memory_space<vmem>>, %arg2: memref<32x144xf32, #tpu.memory_space<vmem>>, %arg3: memref<32x1xf32, #tpu.memory_space<vmem>>, %arg4: memref<32x16xf32, #tpu.memory_space<vmem>>, %arg5: memref<32x1xf32, #tpu.memory_space<vmem>>, %arg6: memref<32x288xf32, #tpu.memory_space<vmem>>, %arg7: memref<32x1xf32, #tpu.memory_space<vmem>>, %arg8: memref<32x288xf32, #tpu.memory_space<vmem>>, %arg9: memref<32x1xf32, #tpu.memory_space<vmem>>, %arg10: memref<32x288xf32, #tpu.memory_space<vmem>>, %arg11: memref<32x1xf32, #tpu.memory_space<vmem>>, %arg12: memref<32x8xbf16, #tpu.memory_space<vmem>>) attributes {dimension_semantics = [], scalar_prefetch = 0 : i64, scratch_operands = 0 : i64, tpu.core_type = #tpu.core_type<tc>} {
    %c0 = arith.constant 0 : index
    %c0_0 = arith.constant 0 : index
    %0 = vector.load %arg0[%c0, %c0_0] : memref<144x8xbf16, #tpu.memory_space<vmem>>, vector<144x8xbf16>
    %1 = arith.extf %0 : vector<144x8xbf16> to vector<144x8xf32>
    %c0_1 = arith.constant 0 : index
    %c0_2 = arith.constant 0 : index
    %2 = vector.load %arg1[%c0_1, %c0_2] : memref<288x8xf32, #tpu.memory_space<vmem>>, vector<288x8xf32>
    %c0_3 = arith.constant 0 : index
    %c0_4 = arith.constant 0 : index
    %3 = vector.load %arg2[%c0_3, %c0_4] : memref<32x144xf32, #tpu.memory_space<vmem>>, vector<32x144xf32>
    %cst = arith.constant dense<0.000000e+00> : vector<32x8xf32>
    %4 = tpu.matmul %3, %1, %cst {dimension_numbers = #tpu.dot_dimension_numbers<[1], [0], [0], [1], [0, 0, 1, 1], [], []>} : vector<32x144xf32>, vector<144x8xf32>, vector<32x8xf32> -> vector<32x8xf32>
    %c0_5 = arith.constant 0 : index
    %c0_6 = arith.constant 0 : index
    %5 = vector.load %arg3[%c0_5, %c0_6] : memref<32x1xf32, #tpu.memory_space<vmem>>, vector<32x1xf32>
    %6 = vector.broadcast %5 : vector<32x1xf32> to vector<32x8xf32>
    %7 = arith.addf %4, %6 : vector<32x8xf32>
    %cst_7 = arith.constant 0.000000e+00 : f32
    %8 = vector.broadcast %cst_7 : f32 to vector<32x8xf32>
    %9 = arith.maximumf %7, %8 : vector<32x8xf32>
    %10 = vector.extract_strided_slice %1 {offsets = [64, 0], sizes = [16, 8], strides = [1, 1]} : vector<144x8xf32> to vector<16x8xf32>
    %c0_8 = arith.constant 0 : index
    %c0_9 = arith.constant 0 : index
    %11 = vector.load %arg4[%c0_8, %c0_9] : memref<32x16xf32, #tpu.memory_space<vmem>>, vector<32x16xf32>
    %cst_10 = arith.constant dense<0.000000e+00> : vector<32x8xf32>
    %12 = tpu.matmul %11, %10, %cst_10 {dimension_numbers = #tpu.dot_dimension_numbers<[1], [0], [0], [1], [0, 0, 1, 1], [], []>} : vector<32x16xf32>, vector<16x8xf32>, vector<32x8xf32> -> vector<32x8xf32>
    %c0_11 = arith.constant 0 : index
    %c0_12 = arith.constant 0 : index
    %13 = vector.load %arg5[%c0_11, %c0_12] : memref<32x1xf32, #tpu.memory_space<vmem>>, vector<32x1xf32>
    %14 = vector.broadcast %13 : vector<32x1xf32> to vector<32x8xf32>
    %15 = arith.addf %12, %14 : vector<32x8xf32>
    %c0_13 = arith.constant 0 : index
    %c0_14 = arith.constant 0 : index
    %16 = vector.load %arg6[%c0_13, %c0_14] : memref<32x288xf32, #tpu.memory_space<vmem>>, vector<32x288xf32>
    %cst_15 = arith.constant 0.000000e+00 : f32
    %17 = vector.broadcast %cst_15 : f32 to vector<32x3xf32>
    %18 = vector.extract_strided_slice %9 {offsets = [0, 0], sizes = [32, 5], strides = [1, 1]} : vector<32x8xf32> to vector<32x5xf32>
    %19 = tpu.concatenate %17, %18 in 1 : vector<32x3xf32>, vector<32x5xf32> -> vector<32x8xf32>
    %cst_16 = arith.constant 0.000000e+00 : f32
    %20 = vector.broadcast %cst_16 : f32 to vector<32x2xf32>
    %21 = vector.extract_strided_slice %9 {offsets = [0, 0], sizes = [32, 6], strides = [1, 1]} : vector<32x8xf32> to vector<32x6xf32>
    %22 = tpu.concatenate %20, %21 in 1 : vector<32x2xf32>, vector<32x6xf32> -> vector<32x8xf32>
    %cst_17 = arith.constant 0.000000e+00 : f32
    %23 = vector.broadcast %cst_17 : f32 to vector<32x1xf32>
    %24 = vector.extract_strided_slice %9 {offsets = [0, 0], sizes = [32, 7], strides = [1, 1]} : vector<32x8xf32> to vector<32x7xf32>
    %25 = tpu.concatenate %23, %24 in 1 : vector<32x1xf32>, vector<32x7xf32> -> vector<32x8xf32>
    %cst_18 = arith.constant 0.000000e+00 : f32
    %26 = vector.broadcast %cst_18 : f32 to vector<32x1xf32>
    %27 = vector.extract_strided_slice %9 {offsets = [0, 0], sizes = [32, 7], strides = [1, 1]} : vector<32x8xf32> to vector<32x7xf32>
    %28 = tpu.concatenate %26, %27 in 1 : vector<32x1xf32>, vector<32x7xf32> -> vector<32x8xf32>
    %29 = vector.extract_strided_slice %9 {offsets = [0, 1], sizes = [32, 7], strides = [1, 1]} : vector<32x8xf32> to vector<32x7xf32>
    %cst_19 = arith.constant 0.000000e+00 : f32
    %30 = vector.broadcast %cst_19 : f32 to vector<32x1xf32>
    %31 = tpu.concatenate %29, %30 in 1 : vector<32x7xf32>, vector<32x1xf32> -> vector<32x8xf32>
    %32 = vector.extract_strided_slice %9 {offsets = [0, 1], sizes = [32, 7], strides = [1, 1]} : vector<32x8xf32> to vector<32x7xf32>
    %cst_20 = arith.constant 0.000000e+00 : f32
    %33 = vector.broadcast %cst_20 : f32 to vector<32x1xf32>
    %34 = tpu.concatenate %32, %33 in 1 : vector<32x7xf32>, vector<32x1xf32> -> vector<32x8xf32>
    %35 = vector.extract_strided_slice %9 {offsets = [0, 2], sizes = [32, 6], strides = [1, 1]} : vector<32x8xf32> to vector<32x6xf32>
    %cst_21 = arith.constant 0.000000e+00 : f32
    %36 = vector.broadcast %cst_21 : f32 to vector<32x2xf32>
    %37 = tpu.concatenate %35, %36 in 1 : vector<32x6xf32>, vector<32x2xf32> -> vector<32x8xf32>
    %38 = vector.extract_strided_slice %9 {offsets = [0, 3], sizes = [32, 5], strides = [1, 1]} : vector<32x8xf32> to vector<32x5xf32>
    %cst_22 = arith.constant 0.000000e+00 : f32
    %39 = vector.broadcast %cst_22 : f32 to vector<32x3xf32>
    %40 = tpu.concatenate %38, %39 in 1 : vector<32x5xf32>, vector<32x3xf32> -> vector<32x8xf32>
    %41 = tpu.concatenate %19, %22, %25, %28, %9, %31, %34, %37, %40 in 0 : vector<32x8xf32>, vector<32x8xf32>, vector<32x8xf32>, vector<32x8xf32>, vector<32x8xf32>, vector<32x8xf32>, vector<32x8xf32>, vector<32x8xf32>, vector<32x8xf32> -> vector<288x8xf32>
    %42 = arith.mulf %41, %2 : vector<288x8xf32>
    %cst_23 = arith.constant dense<0.000000e+00> : vector<32x8xf32>
    %43 = tpu.matmul %16, %42, %cst_23 {dimension_numbers = #tpu.dot_dimension_numbers<[1], [0], [0], [1], [0, 0, 1, 1], [], []>} : vector<32x288xf32>, vector<288x8xf32>, vector<32x8xf32> -> vector<32x8xf32>
    %c0_24 = arith.constant 0 : index
    %c0_25 = arith.constant 0 : index
    %44 = vector.load %arg7[%c0_24, %c0_25] : memref<32x1xf32, #tpu.memory_space<vmem>>, vector<32x1xf32>
    %45 = vector.broadcast %44 : vector<32x1xf32> to vector<32x8xf32>
    %46 = arith.addf %43, %45 : vector<32x8xf32>
    %47 = arith.addf %46, %15 : vector<32x8xf32>
    %cst_26 = arith.constant 0.000000e+00 : f32
    %48 = vector.broadcast %cst_26 : f32 to vector<32x8xf32>
    %49 = arith.maximumf %47, %48 : vector<32x8xf32>
    %c0_27 = arith.constant 0 : index
    %c0_28 = arith.constant 0 : index
    %50 = vector.load %arg8[%c0_27, %c0_28] : memref<32x288xf32, #tpu.memory_space<vmem>>, vector<32x288xf32>
    %cst_29 = arith.constant 0.000000e+00 : f32
    %51 = vector.broadcast %cst_29 : f32 to vector<32x3xf32>
    %52 = vector.extract_strided_slice %49 {offsets = [0, 0], sizes = [32, 5], strides = [1, 1]} : vector<32x8xf32> to vector<32x5xf32>
    %53 = tpu.concatenate %51, %52 in 1 : vector<32x3xf32>, vector<32x5xf32> -> vector<32x8xf32>
    %cst_30 = arith.constant 0.000000e+00 : f32
    %54 = vector.broadcast %cst_30 : f32 to vector<32x2xf32>
    %55 = vector.extract_strided_slice %49 {offsets = [0, 0], sizes = [32, 6], strides = [1, 1]} : vector<32x8xf32> to vector<32x6xf32>
    %56 = tpu.concatenate %54, %55 in 1 : vector<32x2xf32>, vector<32x6xf32> -> vector<32x8xf32>
    %cst_31 = arith.constant 0.000000e+00 : f32
    %57 = vector.broadcast %cst_31 : f32 to vector<32x1xf32>
    %58 = vector.extract_strided_slice %49 {offsets = [0, 0], sizes = [32, 7], strides = [1, 1]} : vector<32x8xf32> to vector<32x7xf32>
    %59 = tpu.concatenate %57, %58 in 1 : vector<32x1xf32>, vector<32x7xf32> -> vector<32x8xf32>
    %cst_32 = arith.constant 0.000000e+00 : f32
    %60 = vector.broadcast %cst_32 : f32 to vector<32x1xf32>
    %61 = vector.extract_strided_slice %49 {offsets = [0, 0], sizes = [32, 7], strides = [1, 1]} : vector<32x8xf32> to vector<32x7xf32>
    %62 = tpu.concatenate %60, %61 in 1 : vector<32x1xf32>, vector<32x7xf32> -> vector<32x8xf32>
    %63 = vector.extract_strided_slice %49 {offsets = [0, 1], sizes = [32, 7], strides = [1, 1]} : vector<32x8xf32> to vector<32x7xf32>
    %cst_33 = arith.constant 0.000000e+00 : f32
    %64 = vector.broadcast %cst_33 : f32 to vector<32x1xf32>
    %65 = tpu.concatenate %63, %64 in 1 : vector<32x7xf32>, vector<32x1xf32> -> vector<32x8xf32>
    %66 = vector.extract_strided_slice %49 {offsets = [0, 1], sizes = [32, 7], strides = [1, 1]} : vector<32x8xf32> to vector<32x7xf32>
    %cst_34 = arith.constant 0.000000e+00 : f32
    %67 = vector.broadcast %cst_34 : f32 to vector<32x1xf32>
    %68 = tpu.concatenate %66, %67 in 1 : vector<32x7xf32>, vector<32x1xf32> -> vector<32x8xf32>
    %69 = vector.extract_strided_slice %49 {offsets = [0, 2], sizes = [32, 6], strides = [1, 1]} : vector<32x8xf32> to vector<32x6xf32>
    %cst_35 = arith.constant 0.000000e+00 : f32
    %70 = vector.broadcast %cst_35 : f32 to vector<32x2xf32>
    %71 = tpu.concatenate %69, %70 in 1 : vector<32x6xf32>, vector<32x2xf32> -> vector<32x8xf32>
    %72 = vector.extract_strided_slice %49 {offsets = [0, 3], sizes = [32, 5], strides = [1, 1]} : vector<32x8xf32> to vector<32x5xf32>
    %cst_36 = arith.constant 0.000000e+00 : f32
    %73 = vector.broadcast %cst_36 : f32 to vector<32x3xf32>
    %74 = tpu.concatenate %72, %73 in 1 : vector<32x5xf32>, vector<32x3xf32> -> vector<32x8xf32>
    %75 = tpu.concatenate %53, %56, %59, %62, %49, %65, %68, %71, %74 in 0 : vector<32x8xf32>, vector<32x8xf32>, vector<32x8xf32>, vector<32x8xf32>, vector<32x8xf32>, vector<32x8xf32>, vector<32x8xf32>, vector<32x8xf32>, vector<32x8xf32> -> vector<288x8xf32>
    %76 = arith.mulf %75, %2 : vector<288x8xf32>
    %cst_37 = arith.constant dense<0.000000e+00> : vector<32x8xf32>
    %77 = tpu.matmul %50, %76, %cst_37 {dimension_numbers = #tpu.dot_dimension_numbers<[1], [0], [0], [1], [0, 0, 1, 1], [], []>} : vector<32x288xf32>, vector<288x8xf32>, vector<32x8xf32> -> vector<32x8xf32>
    %c0_38 = arith.constant 0 : index
    %c0_39 = arith.constant 0 : index
    %78 = vector.load %arg9[%c0_38, %c0_39] : memref<32x1xf32, #tpu.memory_space<vmem>>, vector<32x1xf32>
    %79 = vector.broadcast %78 : vector<32x1xf32> to vector<32x8xf32>
    %80 = arith.addf %77, %79 : vector<32x8xf32>
    %cst_40 = arith.constant 0.000000e+00 : f32
    %81 = vector.broadcast %cst_40 : f32 to vector<32x8xf32>
    %82 = arith.maximumf %80, %81 : vector<32x8xf32>
    %c0_41 = arith.constant 0 : index
    %c0_42 = arith.constant 0 : index
    %83 = vector.load %arg10[%c0_41, %c0_42] : memref<32x288xf32, #tpu.memory_space<vmem>>, vector<32x288xf32>
    %cst_43 = arith.constant 0.000000e+00 : f32
    %84 = vector.broadcast %cst_43 : f32 to vector<32x3xf32>
    %85 = vector.extract_strided_slice %82 {offsets = [0, 0], sizes = [32, 5], strides = [1, 1]} : vector<32x8xf32> to vector<32x5xf32>
    %86 = tpu.concatenate %84, %85 in 1 : vector<32x3xf32>, vector<32x5xf32> -> vector<32x8xf32>
    %cst_44 = arith.constant 0.000000e+00 : f32
    %87 = vector.broadcast %cst_44 : f32 to vector<32x2xf32>
    %88 = vector.extract_strided_slice %82 {offsets = [0, 0], sizes = [32, 6], strides = [1, 1]} : vector<32x8xf32> to vector<32x6xf32>
    %89 = tpu.concatenate %87, %88 in 1 : vector<32x2xf32>, vector<32x6xf32> -> vector<32x8xf32>
    %cst_45 = arith.constant 0.000000e+00 : f32
    %90 = vector.broadcast %cst_45 : f32 to vector<32x1xf32>
    %91 = vector.extract_strided_slice %82 {offsets = [0, 0], sizes = [32, 7], strides = [1, 1]} : vector<32x8xf32> to vector<32x7xf32>
    %92 = tpu.concatenate %90, %91 in 1 : vector<32x1xf32>, vector<32x7xf32> -> vector<32x8xf32>
    %cst_46 = arith.constant 0.000000e+00 : f32
    %93 = vector.broadcast %cst_46 : f32 to vector<32x1xf32>
    %94 = vector.extract_strided_slice %82 {offsets = [0, 0], sizes = [32, 7], strides = [1, 1]} : vector<32x8xf32> to vector<32x7xf32>
    %95 = tpu.concatenate %93, %94 in 1 : vector<32x1xf32>, vector<32x7xf32> -> vector<32x8xf32>
    %96 = vector.extract_strided_slice %82 {offsets = [0, 1], sizes = [32, 7], strides = [1, 1]} : vector<32x8xf32> to vector<32x7xf32>
    %cst_47 = arith.constant 0.000000e+00 : f32
    %97 = vector.broadcast %cst_47 : f32 to vector<32x1xf32>
    %98 = tpu.concatenate %96, %97 in 1 : vector<32x7xf32>, vector<32x1xf32> -> vector<32x8xf32>
    %99 = vector.extract_strided_slice %82 {offsets = [0, 1], sizes = [32, 7], strides = [1, 1]} : vector<32x8xf32> to vector<32x7xf32>
    %cst_48 = arith.constant 0.000000e+00 : f32
    %100 = vector.broadcast %cst_48 : f32 to vector<32x1xf32>
    %101 = tpu.concatenate %99, %100 in 1 : vector<32x7xf32>, vector<32x1xf32> -> vector<32x8xf32>
    %102 = vector.extract_strided_slice %82 {offsets = [0, 2], sizes = [32, 6], strides = [1, 1]} : vector<32x8xf32> to vector<32x6xf32>
    %cst_49 = arith.constant 0.000000e+00 : f32
    %103 = vector.broadcast %cst_49 : f32 to vector<32x2xf32>
    %104 = tpu.concatenate %102, %103 in 1 : vector<32x6xf32>, vector<32x2xf32> -> vector<32x8xf32>
    %105 = vector.extract_strided_slice %82 {offsets = [0, 3], sizes = [32, 5], strides = [1, 1]} : vector<32x8xf32> to vector<32x5xf32>
    %cst_50 = arith.constant 0.000000e+00 : f32
    %106 = vector.broadcast %cst_50 : f32 to vector<32x3xf32>
    %107 = tpu.concatenate %105, %106 in 1 : vector<32x5xf32>, vector<32x3xf32> -> vector<32x8xf32>
    %108 = tpu.concatenate %86, %89, %92, %95, %82, %98, %101, %104, %107 in 0 : vector<32x8xf32>, vector<32x8xf32>, vector<32x8xf32>, vector<32x8xf32>, vector<32x8xf32>, vector<32x8xf32>, vector<32x8xf32>, vector<32x8xf32>, vector<32x8xf32> -> vector<288x8xf32>
    %109 = arith.mulf %108, %2 : vector<288x8xf32>
    %cst_51 = arith.constant dense<0.000000e+00> : vector<32x8xf32>
    %110 = tpu.matmul %83, %109, %cst_51 {dimension_numbers = #tpu.dot_dimension_numbers<[1], [0], [0], [1], [0, 0, 1, 1], [], []>} : vector<32x288xf32>, vector<288x8xf32>, vector<32x8xf32> -> vector<32x8xf32>
    %c0_52 = arith.constant 0 : index
    %c0_53 = arith.constant 0 : index
    %111 = vector.load %arg11[%c0_52, %c0_53] : memref<32x1xf32, #tpu.memory_space<vmem>>, vector<32x1xf32>
    %112 = vector.broadcast %111 : vector<32x1xf32> to vector<32x8xf32>
    %113 = arith.addf %110, %112 : vector<32x8xf32>
    %114 = arith.addf %113, %49 : vector<32x8xf32>
    %cst_54 = arith.constant 0.000000e+00 : f32
    %115 = vector.broadcast %cst_54 : f32 to vector<32x8xf32>
    %116 = arith.maximumf %114, %115 : vector<32x8xf32>
    %117 = arith.truncf %116 : vector<32x8xf32> to vector<32x8xbf16>
    %c0_55 = arith.constant 0 : index
    %c0_56 = arith.constant 0 : index
    %118 = vector.load %arg12[%c0_55, %c0_56] : memref<32x8xbf16, #tpu.memory_space<vmem>>, vector<32x8xbf16>
    tpu.vector_store %arg12[%c0_55, %c0_56], %117 {strides = array<i32>} : memref<32x8xbf16, #tpu.memory_space<vmem>>, vector<32x8xbf16>,
    return
  }
}

module attributes {stable_mosaic.version = 11 : i64} {
  func.func @_layer_ds_kernel(%arg0: memref<288x2xbf16, #tpu.memory_space<vmem>>, %arg1: memref<576x2xf32, #tpu.memory_space<vmem>>, %arg2: memref<64x288xf32, #tpu.memory_space<vmem>>, %arg3: memref<64x1xf32, #tpu.memory_space<vmem>>, %arg4: memref<64x32xf32, #tpu.memory_space<vmem>>, %arg5: memref<64x1xf32, #tpu.memory_space<vmem>>, %arg6: memref<64x576xf32, #tpu.memory_space<vmem>>, %arg7: memref<64x1xf32, #tpu.memory_space<vmem>>, %arg8: memref<64x576xf32, #tpu.memory_space<vmem>>, %arg9: memref<64x1xf32, #tpu.memory_space<vmem>>, %arg10: memref<64x576xf32, #tpu.memory_space<vmem>>, %arg11: memref<64x1xf32, #tpu.memory_space<vmem>>, %arg12: memref<64x2xbf16, #tpu.memory_space<vmem>>) attributes {dimension_semantics = [], scalar_prefetch = 0 : i64, scratch_operands = 0 : i64, tpu.core_type = #tpu.core_type<tc>} {
    %c0 = arith.constant 0 : index
    %c0_0 = arith.constant 0 : index
    %0 = vector.load %arg0[%c0, %c0_0] : memref<288x2xbf16, #tpu.memory_space<vmem>>, vector<288x2xbf16>
    %1 = arith.extf %0 : vector<288x2xbf16> to vector<288x2xf32>
    %c0_1 = arith.constant 0 : index
    %c0_2 = arith.constant 0 : index
    %2 = vector.load %arg1[%c0_1, %c0_2] : memref<576x2xf32, #tpu.memory_space<vmem>>, vector<576x2xf32>
    %c0_3 = arith.constant 0 : index
    %c0_4 = arith.constant 0 : index
    %3 = vector.load %arg2[%c0_3, %c0_4] : memref<64x288xf32, #tpu.memory_space<vmem>>, vector<64x288xf32>
    %cst = arith.constant dense<0.000000e+00> : vector<64x2xf32>
    %4 = tpu.matmul %3, %1, %cst {dimension_numbers = #tpu.dot_dimension_numbers<[1], [0], [0], [1], [0, 0, 1, 1], [], []>} : vector<64x288xf32>, vector<288x2xf32>, vector<64x2xf32> -> vector<64x2xf32>
    %c0_5 = arith.constant 0 : index
    %c0_6 = arith.constant 0 : index
    %5 = vector.load %arg3[%c0_5, %c0_6] : memref<64x1xf32, #tpu.memory_space<vmem>>, vector<64x1xf32>
    %6 = vector.broadcast %5 : vector<64x1xf32> to vector<64x2xf32>
    %7 = arith.addf %4, %6 : vector<64x2xf32>
    %cst_7 = arith.constant 0.000000e+00 : f32
    %8 = vector.broadcast %cst_7 : f32 to vector<64x2xf32>
    %9 = arith.maximumf %7, %8 : vector<64x2xf32>
    %10 = vector.extract_strided_slice %1 {offsets = [128, 0], sizes = [32, 2], strides = [1, 1]} : vector<288x2xf32> to vector<32x2xf32>
    %c0_8 = arith.constant 0 : index
    %c0_9 = arith.constant 0 : index
    %11 = vector.load %arg4[%c0_8, %c0_9] : memref<64x32xf32, #tpu.memory_space<vmem>>, vector<64x32xf32>
    %cst_10 = arith.constant dense<0.000000e+00> : vector<64x2xf32>
    %12 = tpu.matmul %11, %10, %cst_10 {dimension_numbers = #tpu.dot_dimension_numbers<[1], [0], [0], [1], [0, 0, 1, 1], [], []>} : vector<64x32xf32>, vector<32x2xf32>, vector<64x2xf32> -> vector<64x2xf32>
    %c0_11 = arith.constant 0 : index
    %c0_12 = arith.constant 0 : index
    %13 = vector.load %arg5[%c0_11, %c0_12] : memref<64x1xf32, #tpu.memory_space<vmem>>, vector<64x1xf32>
    %14 = vector.broadcast %13 : vector<64x1xf32> to vector<64x2xf32>
    %15 = arith.addf %12, %14 : vector<64x2xf32>
    %c0_13 = arith.constant 0 : index
    %c0_14 = arith.constant 0 : index
    %16 = vector.load %arg6[%c0_13, %c0_14] : memref<64x576xf32, #tpu.memory_space<vmem>>, vector<64x576xf32>
    %cst_15 = arith.constant 0.000000e+00 : f32
    %17 = vector.broadcast %cst_15 : f32 to vector<64x2xf32>
    %cst_16 = arith.constant 0.000000e+00 : f32
    %18 = vector.broadcast %cst_16 : f32 to vector<64x1xf32>
    %19 = vector.extract_strided_slice %9 {offsets = [0, 0], sizes = [64, 1], strides = [1, 1]} : vector<64x2xf32> to vector<64x1xf32>
    %20 = tpu.concatenate %18, %19 in 1 : vector<64x1xf32>, vector<64x1xf32> -> vector<64x2xf32>
    %cst_17 = arith.constant 0.000000e+00 : f32
    %21 = vector.broadcast %cst_17 : f32 to vector<64x1xf32>
    %22 = vector.extract_strided_slice %9 {offsets = [0, 0], sizes = [64, 1], strides = [1, 1]} : vector<64x2xf32> to vector<64x1xf32>
    %23 = tpu.concatenate %21, %22 in 1 : vector<64x1xf32>, vector<64x1xf32> -> vector<64x2xf32>
    %24 = vector.extract_strided_slice %9 {offsets = [0, 1], sizes = [64, 1], strides = [1, 1]} : vector<64x2xf32> to vector<64x1xf32>
    %cst_18 = arith.constant 0.000000e+00 : f32
    %25 = vector.broadcast %cst_18 : f32 to vector<64x1xf32>
    %26 = tpu.concatenate %24, %25 in 1 : vector<64x1xf32>, vector<64x1xf32> -> vector<64x2xf32>
    %27 = vector.extract_strided_slice %9 {offsets = [0, 1], sizes = [64, 1], strides = [1, 1]} : vector<64x2xf32> to vector<64x1xf32>
    %cst_19 = arith.constant 0.000000e+00 : f32
    %28 = vector.broadcast %cst_19 : f32 to vector<64x1xf32>
    %29 = tpu.concatenate %27, %28 in 1 : vector<64x1xf32>, vector<64x1xf32> -> vector<64x2xf32>
    %cst_20 = arith.constant 0.000000e+00 : f32
    %30 = vector.broadcast %cst_20 : f32 to vector<64x2xf32>
    %31 = tpu.concatenate %17, %20, %9, %23, %9, %26, %9, %29, %30 in 0 : vector<64x2xf32>, vector<64x2xf32>, vector<64x2xf32>, vector<64x2xf32>, vector<64x2xf32>, vector<64x2xf32>, vector<64x2xf32>, vector<64x2xf32>, vector<64x2xf32> -> vector<576x2xf32>
    %32 = arith.mulf %31, %2 : vector<576x2xf32>
    %cst_21 = arith.constant dense<0.000000e+00> : vector<64x2xf32>
    %33 = tpu.matmul %16, %32, %cst_21 {dimension_numbers = #tpu.dot_dimension_numbers<[1], [0], [0], [1], [0, 0, 1, 1], [], []>} : vector<64x576xf32>, vector<576x2xf32>, vector<64x2xf32> -> vector<64x2xf32>
    %c0_22 = arith.constant 0 : index
    %c0_23 = arith.constant 0 : index
    %34 = vector.load %arg7[%c0_22, %c0_23] : memref<64x1xf32, #tpu.memory_space<vmem>>, vector<64x1xf32>
    %35 = vector.broadcast %34 : vector<64x1xf32> to vector<64x2xf32>
    %36 = arith.addf %33, %35 : vector<64x2xf32>
    %37 = arith.addf %36, %15 : vector<64x2xf32>
    %cst_24 = arith.constant 0.000000e+00 : f32
    %38 = vector.broadcast %cst_24 : f32 to vector<64x2xf32>
    %39 = arith.maximumf %37, %38 : vector<64x2xf32>
    %c0_25 = arith.constant 0 : index
    %c0_26 = arith.constant 0 : index
    %40 = vector.load %arg8[%c0_25, %c0_26] : memref<64x576xf32, #tpu.memory_space<vmem>>, vector<64x576xf32>
    %cst_27 = arith.constant 0.000000e+00 : f32
    %41 = vector.broadcast %cst_27 : f32 to vector<64x2xf32>
    %cst_28 = arith.constant 0.000000e+00 : f32
    %42 = vector.broadcast %cst_28 : f32 to vector<64x1xf32>
    %43 = vector.extract_strided_slice %39 {offsets = [0, 0], sizes = [64, 1], strides = [1, 1]} : vector<64x2xf32> to vector<64x1xf32>
    %44 = tpu.concatenate %42, %43 in 1 : vector<64x1xf32>, vector<64x1xf32> -> vector<64x2xf32>
    %cst_29 = arith.constant 0.000000e+00 : f32
    %45 = vector.broadcast %cst_29 : f32 to vector<64x1xf32>
    %46 = vector.extract_strided_slice %39 {offsets = [0, 0], sizes = [64, 1], strides = [1, 1]} : vector<64x2xf32> to vector<64x1xf32>
    %47 = tpu.concatenate %45, %46 in 1 : vector<64x1xf32>, vector<64x1xf32> -> vector<64x2xf32>
    %48 = vector.extract_strided_slice %39 {offsets = [0, 1], sizes = [64, 1], strides = [1, 1]} : vector<64x2xf32> to vector<64x1xf32>
    %cst_30 = arith.constant 0.000000e+00 : f32
    %49 = vector.broadcast %cst_30 : f32 to vector<64x1xf32>
    %50 = tpu.concatenate %48, %49 in 1 : vector<64x1xf32>, vector<64x1xf32> -> vector<64x2xf32>
    %51 = vector.extract_strided_slice %39 {offsets = [0, 1], sizes = [64, 1], strides = [1, 1]} : vector<64x2xf32> to vector<64x1xf32>
    %cst_31 = arith.constant 0.000000e+00 : f32
    %52 = vector.broadcast %cst_31 : f32 to vector<64x1xf32>
    %53 = tpu.concatenate %51, %52 in 1 : vector<64x1xf32>, vector<64x1xf32> -> vector<64x2xf32>
    %cst_32 = arith.constant 0.000000e+00 : f32
    %54 = vector.broadcast %cst_32 : f32 to vector<64x2xf32>
    %55 = tpu.concatenate %41, %44, %39, %47, %39, %50, %39, %53, %54 in 0 : vector<64x2xf32>, vector<64x2xf32>, vector<64x2xf32>, vector<64x2xf32>, vector<64x2xf32>, vector<64x2xf32>, vector<64x2xf32>, vector<64x2xf32>, vector<64x2xf32> -> vector<576x2xf32>
    %56 = arith.mulf %55, %2 : vector<576x2xf32>
    %cst_33 = arith.constant dense<0.000000e+00> : vector<64x2xf32>
    %57 = tpu.matmul %40, %56, %cst_33 {dimension_numbers = #tpu.dot_dimension_numbers<[1], [0], [0], [1], [0, 0, 1, 1], [], []>} : vector<64x576xf32>, vector<576x2xf32>, vector<64x2xf32> -> vector<64x2xf32>
    %c0_34 = arith.constant 0 : index
    %c0_35 = arith.constant 0 : index
    %58 = vector.load %arg9[%c0_34, %c0_35] : memref<64x1xf32, #tpu.memory_space<vmem>>, vector<64x1xf32>
    %59 = vector.broadcast %58 : vector<64x1xf32> to vector<64x2xf32>
    %60 = arith.addf %57, %59 : vector<64x2xf32>
    %cst_36 = arith.constant 0.000000e+00 : f32
    %61 = vector.broadcast %cst_36 : f32 to vector<64x2xf32>
    %62 = arith.maximumf %60, %61 : vector<64x2xf32>
    %c0_37 = arith.constant 0 : index
    %c0_38 = arith.constant 0 : index
    %63 = vector.load %arg10[%c0_37, %c0_38] : memref<64x576xf32, #tpu.memory_space<vmem>>, vector<64x576xf32>
    %cst_39 = arith.constant 0.000000e+00 : f32
    %64 = vector.broadcast %cst_39 : f32 to vector<64x2xf32>
    %cst_40 = arith.constant 0.000000e+00 : f32
    %65 = vector.broadcast %cst_40 : f32 to vector<64x1xf32>
    %66 = vector.extract_strided_slice %62 {offsets = [0, 0], sizes = [64, 1], strides = [1, 1]} : vector<64x2xf32> to vector<64x1xf32>
    %67 = tpu.concatenate %65, %66 in 1 : vector<64x1xf32>, vector<64x1xf32> -> vector<64x2xf32>
    %cst_41 = arith.constant 0.000000e+00 : f32
    %68 = vector.broadcast %cst_41 : f32 to vector<64x1xf32>
    %69 = vector.extract_strided_slice %62 {offsets = [0, 0], sizes = [64, 1], strides = [1, 1]} : vector<64x2xf32> to vector<64x1xf32>
    %70 = tpu.concatenate %68, %69 in 1 : vector<64x1xf32>, vector<64x1xf32> -> vector<64x2xf32>
    %71 = vector.extract_strided_slice %62 {offsets = [0, 1], sizes = [64, 1], strides = [1, 1]} : vector<64x2xf32> to vector<64x1xf32>
    %cst_42 = arith.constant 0.000000e+00 : f32
    %72 = vector.broadcast %cst_42 : f32 to vector<64x1xf32>
    %73 = tpu.concatenate %71, %72 in 1 : vector<64x1xf32>, vector<64x1xf32> -> vector<64x2xf32>
    %74 = vector.extract_strided_slice %62 {offsets = [0, 1], sizes = [64, 1], strides = [1, 1]} : vector<64x2xf32> to vector<64x1xf32>
    %cst_43 = arith.constant 0.000000e+00 : f32
    %75 = vector.broadcast %cst_43 : f32 to vector<64x1xf32>
    %76 = tpu.concatenate %74, %75 in 1 : vector<64x1xf32>, vector<64x1xf32> -> vector<64x2xf32>
    %cst_44 = arith.constant 0.000000e+00 : f32
    %77 = vector.broadcast %cst_44 : f32 to vector<64x2xf32>
    %78 = tpu.concatenate %64, %67, %62, %70, %62, %73, %62, %76, %77 in 0 : vector<64x2xf32>, vector<64x2xf32>, vector<64x2xf32>, vector<64x2xf32>, vector<64x2xf32>, vector<64x2xf32>, vector<64x2xf32>, vector<64x2xf32>, vector<64x2xf32> -> vector<576x2xf32>
    %79 = arith.mulf %78, %2 : vector<576x2xf32>
    %cst_45 = arith.constant dense<0.000000e+00> : vector<64x2xf32>
    %80 = tpu.matmul %63, %79, %cst_45 {dimension_numbers = #tpu.dot_dimension_numbers<[1], [0], [0], [1], [0, 0, 1, 1], [], []>} : vector<64x576xf32>, vector<576x2xf32>, vector<64x2xf32> -> vector<64x2xf32>
    %c0_46 = arith.constant 0 : index
    %c0_47 = arith.constant 0 : index
    %81 = vector.load %arg11[%c0_46, %c0_47] : memref<64x1xf32, #tpu.memory_space<vmem>>, vector<64x1xf32>
    %82 = vector.broadcast %81 : vector<64x1xf32> to vector<64x2xf32>
    %83 = arith.addf %80, %82 : vector<64x2xf32>
    %84 = arith.addf %83, %39 : vector<64x2xf32>
    %cst_48 = arith.constant 0.000000e+00 : f32
    %85 = vector.broadcast %cst_48 : f32 to vector<64x2xf32>
    %86 = arith.maximumf %84, %85 : vector<64x2xf32>
    %87 = arith.truncf %86 : vector<64x2xf32> to vector<64x2xbf16>
    %c0_49 = arith.constant 0 : index
    %c0_50 = arith.constant 0 : index
    %88 = vector.load %arg12[%c0_49, %c0_50] : memref<64x2xbf16, #tpu.memory_space<vmem>>, vector<64x2xbf16>
    tpu.vector_store %arg12[%c0_49, %c0_50], %87 {strides = array<i32>} : memref<64x2xbf16, #tpu.memory_space<vmem>>, vector<64x2xbf16>,
    return
  }
}

</mosaic_0001>

<llo_original>
// kernel: encode_uv_forward.7
$region0: #{encode_uv_forward.7}
  #allocation0 [shape = 'u32[]', space=smem, size = 0x4, offset = 0x4, fixed_abs, tag = 'smem constant byte address 0x4 - core index']
  #allocation1 [shape = 'u32[144,128]{1,0:T(1,128)}', space=vmem, size = 0x12000, scoped, tag = 'internal scratch']
  %s0 = inlined_call_operand.vmem [shape: bf16[9,8,128], index: 0, kind: input, shape index: {}]
  %s1 = inlined_call_operand.vmem [shape: bf16[8,128], index: 1, kind: output, shape index: {}]
  %s2 = sld [smem:[#allocation0]]
  $region14: #{encode_uv_forward.7} parent=0
    _
  %s4 = ssub.s32 1, %s2
  %s5 = scalar_select 0, %s4, %s2
  // Predicated region
  $region2: #{encode_uv_forward.7} parent=0 // pred_check
    _
  $region3: #{encode_uv_forward.7} parent=0 // pred_check_branch
    %7 = sbr.rel (0) target = $region5
  $region4: #{encode_uv_forward.7} parent=0 // pred_region
    _
  $region5: #{encode_uv_forward.7} parent=0 // pred_fallthru
    _
  %v8 = vld [vmem:[%s0] sm:$0xf]
  %v9 = vld [vmem:[%s0 + $0x4] sm:$0xf]
  %v10 = vld [vmem:[%s0 + $0x8] sm:$0xf]
  %v11 = vld [vmem:[%s0 + $0xc] sm:$0xf]
  %v12 = vld [vmem:[%s0 + $0x10] sm:$0xf]
  %v13 = vld [vmem:[%s0 + $0x14] sm:$0xf]
  %v14 = vld [vmem:[%s0 + $0x18] sm:$0xf]
  %v15 = vld [vmem:[%s0 + $0x1c] sm:$0xf]
  %v16 = vld [vmem:[%s0 + $0x20] sm:$0xf]
  %v17 = vunpack.c.l.bf16 %v8
  %v18 = vunpack.c.l.bf16 %v9
  %v19 = vunpack.c.l.bf16 %v10
  %v20 = vunpack.c.l.bf16 %v11
  %v21 = vunpack.c.l.bf16 %v12
  %v22 = vunpack.c.l.bf16 %v13
  %v23 = vunpack.c.l.bf16 %v14
  %v24 = vunpack.c.l.bf16 %v15
  %v25 = vunpack.c.l.bf16 %v16
  %v26 = vmax.f32 %v17, %v18
  %v27 = vmax.f32 %v26, %v19
  %v28 = vmax.f32 %v27, %v20
  %v29 = vmax.f32 %v28, %v21
  %v30 = vmax.f32 %v29, %v22
  %v31 = vmax.f32 %v30, %v23
  %v32 = vmax.f32 %v31, %v24
  %v33 = vmax.f32 %v32, %v25
  %v34 = vpack.c.bf16 %v33, %v33
  %35 = vst [vmem:[%s1] sm:$0xf] %v34
  // Predicated region
  $region6: #{encode_uv_forward.7} parent=0 // pred_check
    _
  $region7: #{encode_uv_forward.7} parent=0 // pred_check_branch
    %37 = sbr.rel (0) target = $region9
  $region8: #{encode_uv_forward.7} parent=0 // pred_region
    _
  $region9: #{encode_uv_forward.7} parent=0 // pred_fallthru
    _
  // Predicated region
  $region10: #{encode_uv_forward.7} parent=0 // pred_check
    _
  $region11: #{encode_uv_forward.7} parent=0 // pred_check_branch
    %39 = sbr.rel (0) target = $region13
  $region12: #{encode_uv_forward.7} parent=0 // pred_region
    _
  $region13: #{encode_uv_forward.7} parent=0 // pred_fallthru
    _

// kernel: encode_uv_forward.6
$region0: #{encode_uv_forward.6}
  #allocation0 [shape = 'u32[]', space=smem, size = 0x4, offset = 0x4, fixed_abs, tag = 'smem constant byte address 0x4 - core index']
  #allocation1 [shape = 'u32[144,128]{1,0:T(1,128)}', space=vmem, size = 0x12000, scoped, tag = 'internal scratch']
  %s0 = inlined_call_operand.vmem [shape: bf16[256,512], index: 0, kind: input, shape index: {}]
  %s1 = inlined_call_operand.vmem [shape: f32[8,256], index: 1, kind: input, shape index: {}]
  %s2 = inlined_call_operand.vmem [shape: f32[8,1], index: 2, kind: input, shape index: {}]
  %s3 = inlined_call_operand.vmem [shape: bf16[8,512], index: 3, kind: output, shape index: {}]
  %s4 = sld [smem:[#allocation0]]
  $region83: #{encode_uv_forward.6} parent=0
    _
  %s6 = ssub.s32 1, %s4
  %s7 = scalar_select 0, %s6, %s4
  $region1: #{encode_uv_forward.6} parent=0
    #allocation2 [shape = 'u8[262144]{0}', space=vmem, size = 0x40000, scoped, tag = 'input window, operand 0']
    loop: start=0, step=1, limit=4
    $region2: #{encode_uv_forward.6} parent=1 // loop_pre_header
      _
    $region3: #{encode_uv_forward.6} parent=1 // loop_header
      %s9 = sphi 0, %s13
      %p10 = scmp.ge.s32.totalorder %s9, 4
      %s19 = sphi 0, %s21
      %s22 = sphi 0, %s19
      %s23 = sphi 0, %s22
      %s39 = sphi 0, %s23
      %s43 = sphi 0, %s43
      %s45 = sphi 0, %s43
      %s46 = sphi 0, %s45
      %s60 = sphi 0, %s46
      %s64 = sphi 0, %s64
      %s66 = sphi 0, %s64
      %s67 = sphi 0, %s66
      %s81 = sphi 0, %s67
      %s87 = sphi 0, %s89
      %s90 = sphi 0, %s87
      %s91 = sphi 0, %s90
      %s107 = sphi 0, %s91
    $region4: #{encode_uv_forward.6} parent=1 // loop_header_branch
      %12 = sbr.rel (%p10) target = $region8
    $region5: #{encode_uv_forward.6} parent=1 // loop_body
      %s14 = ssub.s32 %s9, 1
      %s15 = ssub.s32 %s9, 2
      %s16 = sadd.s32 %s9, 1
      %s17 = ssub.s32 %s9, %s16
      %p18 = scmp.eq.s32.totalorder %s17, 0
      %s20 = sadd.s32 %s19, 1
      %s21 = scalar_select %p18, %s19, %s20
      %p24 = pneg %p18
      %p25 = scmp.eq.s32.totalorder %s9, 1
      %p26 = por %p24, %p25
      %p27 = scmp.ne.s32.totalorder %s19, %s22
      %p28 = scmp.eq.s32.totalorder %s9, 0
      %p29 = por %p27, %p28
      %p30 = scmp.ne.s32.totalorder %s19, %s22
      %p31 = scmp.eq.s32.totalorder %s14, 1
      %p32 = por %p30, %p31
      %p33 = scmp.ne.s32.totalorder %s22, %s23
      %p34 = scmp.eq.s32.totalorder %s14, 0
      %p35 = por %p33, %p34
      %p36 = scmp.ne.s32.totalorder %s22, %s23
      %p37 = scmp.eq.s32.totalorder %s15, 1
      %p38 = por %p36, %p37
      %p40 = scmp.ne.s32.totalorder %s23, %s39
      %p41 = scmp.eq.s32.totalorder %s15, 0
      %p42 = por %p40, %p41
      %s44 = sadd.s32 %s43, 1
      %p47 = scmp.eq.s32.totalorder %s9, 1
      %p48 = scmp.ne.s32.totalorder %s43, %s45
      %p49 = scmp.eq.s32.totalorder %s9, 0
      %p50 = por %p48, %p49
      %p51 = scmp.ne.s32.totalorder %s43, %s45
      %p52 = scmp.eq.s32.totalorder %s14, 1
      %p53 = por %p51, %p52
      %p54 = scmp.ne.s32.totalorder %s45, %s46
      %p55 = scmp.eq.s32.totalorder %s14, 0
      %p56 = por %p54, %p55
      %p57 = scmp.ne.s32.totalorder %s45, %s46
      %p58 = scmp.eq.s32.totalorder %s15, 1
      %p59 = por %p57, %p58
      %p61 = scmp.ne.s32.totalorder %s46, %s60
      %p62 = scmp.eq.s32.totalorder %s15, 0
      %p63 = por %p61, %p62
      %s65 = sadd.s32 %s64, 1
      %p68 = scmp.eq.s32.totalorder %s9, 1
      %p69 = scmp.ne.s32.totalorder %s64, %s66
      %p70 = scmp.eq.s32.totalorder %s9, 0
      %p71 = por %p69, %p70
      %p72 = scmp.ne.s32.totalorder %s64, %s66
      %p73 = scmp.eq.s32.totalorder %s14, 1
      %p74 = por %p72, %p73
      %p75 = scmp.ne.s32.totalorder %s66, %s67
      %p76 = scmp.eq.s32.totalorder %s14, 0
      %p77 = por %p75, %p76
      %p78 = scmp.ne.s32.totalorder %s66, %s67
      %p79 = scmp.eq.s32.totalorder %s15, 1
      %p80 = por %p78, %p79
      %p82 = scmp.ne.s32.totalorder %s67, %s81
      %p83 = scmp.eq.s32.totalorder %s15, 0
      %p84 = por %p82, %p83
      %s85 = ssub.s32 %s9, %s16
      %p86 = scmp.eq.s32.totalorder %s85, 0
      %s88 = sadd.s32 %s87, 1
      %s89 = scalar_select %p86, %s87, %s88
      %p92 = pneg %p86
      %p93 = scmp.eq.s32.totalorder %s9, 1
      %p94 = por %p92, %p93
      %p95 = scmp.ne.s32.totalorder %s87, %s90
      %p96 = scmp.eq.s32.totalorder %s9, 0
      %p97 = por %p95, %p96
      %p98 = scmp.ne.s32.totalorder %s87, %s90
      %p99 = scmp.eq.s32.totalorder %s14, 1
      %p100 = por %p98, %p99
      %p101 = scmp.ne.s32.totalorder %s90, %s91
      %p102 = scmp.eq.s32.totalorder %s14, 0
      %p103 = por %p101, %p102
      %p104 = scmp.ne.s32.totalorder %s90, %s91
      %p105 = scmp.eq.s32.totalorder %s15, 1
      %p106 = por %p104, %p105
      %p108 = scmp.ne.s32.totalorder %s91, %s107
      %p109 = scmp.eq.s32.totalorder %s15, 0
      %p110 = por %p108, %p109
      %p111 = scmp.le.s32.totalorder 1, %s9
      %p112 = scmp.lt.s32.totalorder %s9, 3
      %p113 = pnand %p111, %p112
      %p114 = pneg %p113
      // Predicated region
      $region9: #{encode_uv_forward.6} parent=5 // pred_check
        _
      $region10: #{encode_uv_forward.6} parent=5 // pred_check_branch
        %116 = sbr.rel (%p113) target = $region12
      $region11: #{encode_uv_forward.6} parent=5 // pred_region
        %s117 = ssub.s32 %s9, 1
        // Predicated region
        $region13: #{encode_uv_forward.6} parent=11 // pred_check
          %p118 = pneg %p56
        $region14: #{encode_uv_forward.6} parent=11 // pred_check_branch
          %120 = sbr.rel (%p118) target = $region16
        $region15: #{encode_uv_forward.6} parent=11 // pred_region
          _
        $region16: #{encode_uv_forward.6} parent=11 // pred_fallthru
          _
        // Predicated region
        $region17: #{encode_uv_forward.6} parent=11 // pred_check
          %p121 = pneg %p77
        $region18: #{encode_uv_forward.6} parent=11 // pred_check_branch
          %123 = sbr.rel (%p121) target = $region20
        $region19: #{encode_uv_forward.6} parent=11 // pred_region
          _
        $region20: #{encode_uv_forward.6} parent=11 // pred_fallthru
          _
      $region12: #{encode_uv_forward.6} parent=5 // pred_fallthru
        _
      %p124 = scmp.lt.s32.totalorder %s9, 2
      // Predicated region
      $region21: #{encode_uv_forward.6} parent=5 // pred_check
        %p125 = pneg %p124
      $region22: #{encode_uv_forward.6} parent=5 // pred_check_branch
        %127 = sbr.rel (%p125) target = $region24
      $region23: #{encode_uv_forward.6} parent=5 // pred_region
        // Predicated region
        $region25: #{encode_uv_forward.6} parent=23 // pred_check
          %p128 = pneg %p29
        $region26: #{encode_uv_forward.6} parent=23 // pred_check_branch
          %130 = sbr.rel (%p128) target = $region28
        $region27: #{encode_uv_forward.6} parent=23 // pred_region
          %s131 = sand.u32 %s19, 1
          %s132 = sand.u32 %s19, 1
          %s133 = smul.addr %s132, 256
          %s134 = scalar_lea.vmem [#allocation2], %s133
          %s135 = smul.u32 2, %s9
          %s136 = smul.addr %s135, 4
          %s137 = scalar_lea.vmem %s0, %s136
          // Predicated region
          $region29: #{encode_uv_forward.6} parent=27 // pred_check
            _
          $region30: #{encode_uv_forward.6} parent=27 // pred_check_branch
            %139 = sbr.rel (0) target = $region32
          $region31: #{encode_uv_forward.6} parent=27 // pred_region
            // Predicated region
            $region33: #{encode_uv_forward.6} parent=31 // pred_check
              _
            $region34: #{encode_uv_forward.6} parent=31 // pred_check_branch
              %141 = sbr.rel (0) target = $region36
            $region35: #{encode_uv_forward.6} parent=31 // pred_region
              // Predicated region
              $region48: #{encode_uv_forward.6} parent=35 // pred_check
                _
              $region49: #{encode_uv_forward.6} parent=35 // pred_check_branch
                %218 = sbr.rel (0) target = $region51
              $region50: #{encode_uv_forward.6} parent=35 // pred_region
                loop: start=0, step=1, limit=1
                $region52: #{encode_uv_forward.6} parent=50 // loop_pre_header
                  _
                $region53: #{encode_uv_forward.6} parent=50 // loop_header
                  %s220 = sphi 0, %s224
                  %p221 = scmp.ge.s32.totalorder %s220, 1
                  %s225 = sphi %s137, %s137
                  %s226 = sphi %s134, %s134
                $region54: #{encode_uv_forward.6} parent=50 // loop_header_branch
                  %223 = sbr.rel (%p221) target = $region58
                $region55: #{encode_uv_forward.6} parent=50 // loop_body
                  %v227 = vld [vmem:[%s225] sm:$0xff]
                  %228 = vst [vmem:[%s226] sm:$0xff] %v227
                  %v229 = vld [vmem:[%s225 + $0x10] sm:$0xff]
                  %230 = vst [vmem:[%s226 + $0x8] sm:$0xff] %v229
                  %v231 = vld [vmem:[%s225 + $0x20] sm:$0xff]
                  %232 = vst [vmem:[%s226 + $0x10] sm:$0xff] %v231
                  %v233 = vld [vmem:[%s225 + $0x30] sm:$0xff]
                  %234 = vst [vmem:[%s226 + $0x18] sm:$0xff] %v233
                  %v235 = vld [vmem:[%s225 + $0x40] sm:$0xff]
                  %236 = vst [vmem:[%s226 + $0x20] sm:$0xff] %v235
                  %v237 = vld [vmem:[%s225 + $0x50] sm:$0xff]
                  %238 = vst [vmem:[%s226 + $0x28] sm:$0xff] %v237
                  %v239 = vld [vmem:[%s225 + $0x60] sm:$0xff]
                  %240 = vst [vmem:[%s226 + $0x30] sm:$0xff] %v239
                  %v241 = vld [vmem:[%s225 + $0x70] sm:$0xff]
                  %242 = vst [vmem:[%s226 + $0x38] sm:$0xff] %v241
                  %v243 = vld [vmem:[%s225 + $0x80] sm:$0xff]
                  %244 = vst [vmem:[%s226 + $0x40] sm:$0xff] %v243
                  %v245 = vld [vmem:[%s225 + $0x90] sm:$0xff]
                  %246 = vst [vmem:[%s226 + $0x48] sm:$0xff] %v245
                  %v247 = vld [vmem:[%s225 + $0xa0] sm:$0xff]
                  %248 = vst [vmem:[%s226 + $0x50] sm:$0xff] %v247
                  %v249 = vld [vmem:[%s225 + $0xb0] sm:$0xff]
                  %250 = vst [vmem:[%s226 + $0x58] sm:$0xff] %v249
                  %v251 = vld [vmem:[%s225 + $0xc0] sm:$0xff]
                  %252 = vst [vmem:[%s226 + $0x60] sm:$0xff] %v251
                  %v253 = vld [vmem:[%s225 + $0xd0] sm:$0xff]
                  %254 = vst [vmem:[%s226 + $0x68] sm:$0xff] %v253
                  %v255 = vld [vmem:[%s225 + $0xe0] sm:$0xff]
                  %256 = vst [vmem:[%s226 + $0x70] sm:$0xff] %v255
                  %v257 = vld [vmem:[%s225 + $0xf0] sm:$0xff]
                  %258 = vst [vmem:[%s226 + $0x78] sm:$0xff] %v257
                  %v259 = vld [vmem:[%s225 + $0x100] sm:$0xff]
                  %260 = vst [vmem:[%s226 + $0x80] sm:$0xff] %v259
                  %v261 = vld [vmem:[%s225 + $0x110] sm:$0xff]
                  %262 = vst [vmem:[%s226 + $0x88] sm:$0xff] %v261
                  %v263 = vld [vmem:[%s225 + $0x120] sm:$0xff]
                  %264 = vst [vmem:[%s226 + $0x90] sm:$0xff] %v263
                  %v265 = vld [vmem:[%s225 + $0x130] sm:$0xff]
                  %266 = vst [vmem:[%s226 + $0x98] sm:$0xff] %v265
                  %v267 = vld [vmem:[%s225 + $0x140] sm:$0xff]
                  %268 = vst [vmem:[%s226 + $0xa0] sm:$0xff] %v267
                  %v269 = vld [vmem:[%s225 + $0x150] sm:$0xff]
                  %270 = vst [vmem:[%s226 + $0xa8] sm:$0xff] %v269
                  %v271 = vld [vmem:[%s225 + $0x160] sm:$0xff]
                  %272 = vst [vmem:[%s226 + $0xb0] sm:$0xff] %v271
                  %v273 = vld [vmem:[%s225 + $0x170] sm:$0xff]
                  %274 = vst [vmem:[%s226 + $0xb8] sm:$0xff] %v273
                  %v275 = vld [vmem:[%s225 + $0x180] sm:$0xff]
                  %276 = vst [vmem:[%s226 + $0xc0] sm:$0xff] %v275
                  %v277 = vld [vmem:[%s225 + $0x190] sm:$0xff]
                  %278 = vst [vmem:[%s226 + $0xc8] sm:$0xff] %v277
                  %v279 = vld [vmem:[%s225 + $0x1a0] sm:$0xff]
                  %280 = vst [vmem:[%s226 + $0xd0] sm:$0xff] %v279
                  %v281 = vld [vmem:[%s225 + $0x1b0] sm:$0xff]
                  %282 = vst [vmem:[%s226 + $0xd8] sm:$0xff] %v281
                  %v283 = vld [vmem:[%s225 + $0x1c0] sm:$0xff]
                  %284 = vst [vmem:[%s226 + $0xe0] sm:$0xff] %v283
                  %v285 = vld [vmem:[%s225 + $0x1d0] sm:$0xff]
                  %286 = vst [vmem:[%s226 + $0xe8] sm:$0xff] %v285
                  %v287 = vld [vmem:[%s225 + $0x1e0] sm:$0xff]
                  %288 = vst [vmem:[%s226 + $0xf0] sm:$0xff] %v287
                  %v289 = vld [vmem:[%s225 + $0x1f0] sm:$0xff]
                  %290 = vst [vmem:[%s226 + $0xf8] sm:$0xff] %v289
                $region56: #{encode_uv_forward.6} parent=50 // loop_footer
                  %s224 = sadd.s32 1, %s220
                $region57: #{encode_uv_forward.6} parent=50 // loop_footer_branch
                  %219 = sbr.rel target = $region53
                $region58: #{encode_uv_forward.6} parent=50 // loop_exit
                  _
              $region51: #{encode_uv_forward.6} parent=35 // pred_fallthru
                _
              // Predicated region
              $region59: #{encode_uv_forward.6} parent=35 // pred_check
                _
              $region60: #{encode_uv_forward.6} parent=35 // pred_check_branch
                %292 = sbr.rel target = $region62
              $region61: #{encode_uv_forward.6} parent=35 // pred_region
                _
              $region62: #{encode_uv_forward.6} parent=35 // pred_fallthru
                _
            $region36: #{encode_uv_forward.6} parent=31 // pred_fallthru
              _
            // Predicated region
            $region37: #{encode_uv_forward.6} parent=31 // pred_check
              _
            $region38: #{encode_uv_forward.6} parent=31 // pred_check_branch
              %143 = sbr.rel target = $region40
            $region39: #{encode_uv_forward.6} parent=31 // pred_region
              loop: start=0, step=1, limit=1
              $region41: #{encode_uv_forward.6} parent=39 // loop_pre_header
                _
              $region42: #{encode_uv_forward.6} parent=39 // loop_header
                %s146 = sphi 0, %s150
                %p147 = scmp.ge.s32.totalorder %s146, 1
                %s151 = sphi %s137, %s137
                %s152 = sphi %s134, %s134
              $region43: #{encode_uv_forward.6} parent=39 // loop_header_branch
                %149 = sbr.rel (%p147) target = $region47
              $region44: #{encode_uv_forward.6} parent=39 // loop_body
                %v153 = vld [vmem:[%s151] sm:$0xff]
                %154 = vst [vmem:[%s152] sm:$0xff] %v153
                %v155 = vld [vmem:[%s151 + $0x10] sm:$0xff]
                %156 = vst [vmem:[%s152 + $0x8] sm:$0xff] %v155
                %v157 = vld [vmem:[%s151 + $0x20] sm:$0xff]
                %158 = vst [vmem:[%s152 + $0x10] sm:$0xff] %v157
                %v159 = vld [vmem:[%s151 + $0x30] sm:$0xff]
                %160 = vst [vmem:[%s152 + $0x18] sm:$0xff] %v159
                %v161 = vld [vmem:[%s151 + $0x40] sm:$0xff]
                %162 = vst [vmem:[%s152 + $0x20] sm:$0xff] %v161
                %v163 = vld [vmem:[%s151 + $0x50] sm:$0xff]
                %164 = vst [vmem:[%s152 + $0x28] sm:$0xff] %v163
                %v165 = vld [vmem:[%s151 + $0x60] sm:$0xff]
                %166 = vst [vmem:[%s152 + $0x30] sm:$0xff] %v165
                %v167 = vld [vmem:[%s151 + $0x70] sm:$0xff]
                %168 = vst [vmem:[%s152 + $0x38] sm:$0xff] %v167
                %v169 = vld [vmem:[%s151 + $0x80] sm:$0xff]
                %170 = vst [vmem:[%s152 + $0x40] sm:$0xff] %v169
                %v171 = vld [vmem:[%s151 + $0x90] sm:$0xff]
                %172 = vst [vmem:[%s152 + $0x48] sm:$0xff] %v171
                %v173 = vld [vmem:[%s151 + $0xa0] sm:$0xff]
                %174 = vst [vmem:[%s152 + $0x50] sm:$0xff] %v173
                %v175 = vld [vmem:[%s151 + $0xb0] sm:$0xff]
                %176 = vst [vmem:[%s152 + $0x58] sm:$0xff] %v175
                %v177 = vld [vmem:[%s151 + $0xc0] sm:$0xff]
                %178 = vst [vmem:[%s152 + $0x60] sm:$0xff] %v177
                %v179 = vld [vmem:[%s151 + $0xd0] sm:$0xff]
                %180 = vst [vmem:[%s152 + $0x68] sm:$0xff] %v179
                %v181 = vld [vmem:[%s151 + $0xe0] sm:$0xff]
                %182 = vst [vmem:[%s152 + $0x70] sm:$0xff] %v181
                %v183 = vld [vmem:[%s151 + $0xf0] sm:$0xff]
                %184 = vst [vmem:[%s152 + $0x78] sm:$0xff] %v183
                %v185 = vld [vmem:[%s151 + $0x100] sm:$0xff]
                %186 = vst [vmem:[%s152 + $0x80] sm:$0xff] %v185
                %v187 = vld [vmem:[%s151 + $0x110] sm:$0xff]
                %188 = vst [vmem:[%s152 + $0x88] sm:$0xff] %v187
                %v189 = vld [vmem:[%s151 + $0x120] sm:$0xff]
                %190 = vst [vmem:[%s152 + $0x90] sm:$0xff] %v189
                %v191 = vld [vmem:[%s151 + $0x130] sm:$0xff]
                %192 = vst [vmem:[%s152 + $0x98] sm:$0xff] %v191
                %v193 = vld [vmem:[%s151 + $0x140] sm:$0xff]
                %194 = vst [vmem:[%s152 + $0xa0] sm:$0xff] %v193
                %v195 = vld [vmem:[%s151 + $0x150] sm:$0xff]
                %196 = vst [vmem:[%s152 + $0xa8] sm:$0xff] %v195
                %v197 = vld [vmem:[%s151 + $0x160] sm:$0xff]
                %198 = vst [vmem:[%s152 + $0xb0] sm:$0xff] %v197
                %v199 = vld [vmem:[%s151 + $0x170] sm:$0xff]
                %200 = vst [vmem:[%s152 + $0xb8] sm:$0xff] %v199
                %v201 = vld [vmem:[%s151 + $0x180] sm:$0xff]
                %202 = vst [vmem:[%s152 + $0xc0] sm:$0xff] %v201
                %v203 = vld [vmem:[%s151 + $0x190] sm:$0xff]
                %204 = vst [vmem:[%s152 + $0xc8] sm:$0xff] %v203
                %v205 = vld [vmem:[%s151 + $0x1a0] sm:$0xff]
                %206 = vst [vmem:[%s152 + $0xd0] sm:$0xff] %v205
                %v207 = vld [vmem:[%s151 + $0x1b0] sm:$0xff]
                %208 = vst [vmem:[%s152 + $0xd8] sm:$0xff] %v207
                %v209 = vld [vmem:[%s151 + $0x1c0] sm:$0xff]
                %210 = vst [vmem:[%s152 + $0xe0] sm:$0xff] %v209
                %v211 = vld [vmem:[%s151 + $0x1d0] sm:$0xff]
                %212 = vst [vmem:[%s152 + $0xe8] sm:$0xff] %v211
                %v213 = vld [vmem:[%s151 + $0x1e0] sm:$0xff]
                %214 = vst [vmem:[%s152 + $0xf0] sm:$0xff] %v213
                %v215 = vld [vmem:[%s151 + $0x1f0] sm:$0xff]
                %216 = vst [vmem:[%s152 + $0xf8] sm:$0xff] %v215
              $region45: #{encode_uv_forward.6} parent=39 // loop_footer
                %s150 = sadd.s32 1, %s146
              $region46: #{encode_uv_forward.6} parent=39 // loop_footer_branch
                %145 = sbr.rel target = $region42
              $region47: #{encode_uv_forward.6} parent=39 // loop_exit
                _
            $region40: #{encode_uv_forward.6} parent=31 // pred_fallthru
              _
          $region32: #{encode_uv_forward.6} parent=27 // pred_fallthru
            _
          %293 = vnop
        $region28: #{encode_uv_forward.6} parent=23 // pred_fallthru
          _
      $region24: #{encode_uv_forward.6} parent=5 // pred_fallthru
        _
      %p294 = scmp.le.s32.totalorder 1, %s9
      %p295 = scmp.lt.s32.totalorder %s9, 3
      %p296 = pnand %p294, %p295
      %p297 = pneg %p296
      // Predicated region
      $region63: #{encode_uv_forward.6} parent=5 // pred_check
        _
      $region64: #{encode_uv_forward.6} parent=5 // pred_check_branch
        %299 = sbr.rel (%p296) target = $region66
      $region65: #{encode_uv_forward.6} parent=5 // pred_region
        %s300 = ssub.s32 %s9, 1
        %s301 = sand.u32 %s22, 1
        %s302 = sand.u32 %s22, 1
        %s303 = smul.addr %s302, 256
        %s304 = scalar_lea.vmem [#allocation2], %s303
        // Predicated region
        $region67: #{encode_uv_forward.6} parent=65 // pred_check
          %p305 = pneg %p35
        $region68: #{encode_uv_forward.6} parent=65 // pred_check_branch
          %307 = sbr.rel (%p305) target = $region70
        $region69: #{encode_uv_forward.6} parent=65 // pred_region
          _
        $region70: #{encode_uv_forward.6} parent=65 // pred_fallthru
          _
        %s308 = sand.u32 %s22, 1
        %s309 = sand.u32 %s22, 1
        %s310 = smul.addr %s309, 256
        %s311 = scalar_lea.vmem [#allocation2], %s310
        %p312 = pneg %p35
        %p313 = pneg %p32
        %p314 = pneg %p56
        %p315 = pneg %p53
        %p316 = pneg %p77
        %p317 = pneg %p74
        %p318 = pneg %p103
        %p319 = pneg %p100
        %s320 = smul.u32 2, %s14
        %p321 = scmp.lt.s32.totalorder %s320, 3
        %s322 = scalar_select %p321, %s320, 3
        %s323 = smul.addr %s322, 4
        %s324 = scalar_lea.vmem %s3, %s323
        %s325 = smul.u32 2, %s14
        %s326 = smul.u32 2, %s14
        %p327 = scmp.lt.s32.totalorder %s326, 3
        %s328 = scalar_select %p327, %s326, 3
        %s329 = smul.addr %s328, 4
        %s330 = scalar_lea.vmem %s3, %s329
        %s331 = smul.u32 2, %s14
        %v332 = vld [vmem:[%s304] sm:$0xff]
        %v333 = vld [vmem:[%s304 + $0x8] sm:$0xff]
        %v334 = vld [vmem:[%s304 + $0x10] sm:$0xff]
        %v335 = vld [vmem:[%s304 + $0x18] sm:$0xff]
        %v336 = vld [vmem:[%s304 + $0x20] sm:$0xff]
        %v337 = vld [vmem:[%s304 + $0x28] sm:$0xff]
        %v338 = vld [vmem:[%s304 + $0x30] sm:$0xff]
        %v339 = vld [vmem:[%s304 + $0x38] sm:$0xff]
        %v340 = vld [vmem:[%s304 + $0x40] sm:$0xff]
        %v341 = vld [vmem:[%s304 + $0x48] sm:$0xff]
        %v342 = vld [vmem:[%s304 + $0x50] sm:$0xff]
        %v343 = vld [vmem:[%s304 + $0x58] sm:$0xff]
        %v344 = vld [vmem:[%s304 + $0x60] sm:$0xff]
        %v345 = vld [vmem:[%s304 + $0x68] sm:$0xff]
        %v346 = vld [vmem:[%s304 + $0x70] sm:$0xff]
        %v347 = vld [vmem:[%s304 + $0x78] sm:$0xff]
        %v348 = vld [vmem:[%s304 + $0x80] sm:$0xff]
        %v349 = vld [vmem:[%s304 + $0x88] sm:$0xff]
        %v350 = vld [vmem:[%s304 + $0x90] sm:$0xff]
        %v351 = vld [vmem:[%s304 + $0x98] sm:$0xff]
        %v352 = vld [vmem:[%s304 + $0xa0] sm:$0xff]
        %v353 = vld [vmem:[%s304 + $0xa8] sm:$0xff]
        %v354 = vld [vmem:[%s304 + $0xb0] sm:$0xff]
        %v355 = vld [vmem:[%s304 + $0xb8] sm:$0xff]
        %v356 = vld [vmem:[%s304 + $0xc0] sm:$0xff]
        %v357 = vld [vmem:[%s304 + $0xc8] sm:$0xff]
        %v358 = vld [vmem:[%s304 + $0xd0] sm:$0xff]
        %v359 = vld [vmem:[%s304 + $0xd8] sm:$0xff]
        %v360 = vld [vmem:[%s304 + $0xe0] sm:$0xff]
        %v361 = vld [vmem:[%s304 + $0xe8] sm:$0xff]
        %v362 = vld [vmem:[%s304 + $0xf0] sm:$0xff]
        %v363 = vld [vmem:[%s304 + $0xf8] sm:$0xff]
        %v364 = vunpack.c.l.bf16 %v332
        %v365 = vunpack.c.h.bf16 %v332
        %v366 = vunpack.c.l.bf16 %v333
        %v367 = vunpack.c.h.bf16 %v333
        %v368 = vunpack.c.l.bf16 %v334
        %v369 = vunpack.c.h.bf16 %v334
        %v370 = vunpack.c.l.bf16 %v335
        %v371 = vunpack.c.h.bf16 %v335
        %v372 = vunpack.c.l.bf16 %v336
        %v373 = vunpack.c.h.bf16 %v336
        %v374 = vunpack.c.l.bf16 %v337
        %v375 = vunpack.c.h.bf16 %v337
        %v376 = vunpack.c.l.bf16 %v338
        %v377 = vunpack.c.h.bf16 %v338
        %v378 = vunpack.c.l.bf16 %v339
        %v379 = vunpack.c.h.bf16 %v339
        %v380 = vunpack.c.l.bf16 %v340
        %v381 = vunpack.c.h.bf16 %v340
        %v382 = vunpack.c.l.bf16 %v341
        %v383 = vunpack.c.h.bf16 %v341
        %v384 = vunpack.c.l.bf16 %v342
        %v385 = vunpack.c.h.bf16 %v342
        %v386 = vunpack.c.l.bf16 %v343
        %v387 = vunpack.c.h.bf16 %v343
        %v388 = vunpack.c.l.bf16 %v344
        %v389 = vunpack.c.h.bf16 %v344
        %v390 = vunpack.c.l.bf16 %v345
        %v391 = vunpack.c.h.bf16 %v345
        %v392 = vunpack.c.l.bf16 %v346
        %v393 = vunpack.c.h.bf16 %v346
        %v394 = vunpack.c.l.bf16 %v347
        %v395 = vunpack.c.h.bf16 %v347
        %v396 = vunpack.c.l.bf16 %v348
        %v397 = vunpack.c.h.bf16 %v348
        %v398 = vunpack.c.l.bf16 %v349
        %v399 = vunpack.c.h.bf16 %v349
        %v400 = vunpack.c.l.bf16 %v350
        %v401 = vunpack.c.h.bf16 %v350
        %v402 = vunpack.c.l.bf16 %v351
        %v403 = vunpack.c.h.bf16 %v351
        %v404 = vunpack.c.l.bf16 %v352
        %v405 = vunpack.c.h.bf16 %v352
        %v406 = vunpack.c.l.bf16 %v353
        %v407 = vunpack.c.h.bf16 %v353
        %v408 = vunpack.c.l.bf16 %v354
        %v409 = vunpack.c.h.bf16 %v354
        %v410 = vunpack.c.l.bf16 %v355
        %v411 = vunpack.c.h.bf16 %v355
        %v412 = vunpack.c.l.bf16 %v356
        %v413 = vunpack.c.h.bf16 %v356
        %v414 = vunpack.c.l.bf16 %v357
        %v415 = vunpack.c.h.bf16 %v357
        %v416 = vunpack.c.l.bf16 %v358
        %v417 = vunpack.c.h.bf16 %v358
        %v418 = vunpack.c.l.bf16 %v359
        %v419 = vunpack.c.h.bf16 %v359
        %v420 = vunpack.c.l.bf16 %v360
        %v421 = vunpack.c.h.bf16 %v360
        %v422 = vunpack.c.l.bf16 %v361
        %v423 = vunpack.c.h.bf16 %v361
        %v424 = vunpack.c.l.bf16 %v362
        %v425 = vunpack.c.h.bf16 %v362
        %v426 = vunpack.c.l.bf16 %v363
        %v427 = vunpack.c.h.bf16 %v363
        %v428 = vld [vmem:[%s1] sm:$0xff]
        %v429 = vld [vmem:[%s1 + $0x8] sm:$0xff]
        %v430 = vld [vmem:[%s2] sm:$0xff]
        %432 = vset.pattern.permute.xlu0 0
        %433 = vperm.xlu0 %432, %v430
        %v434 = vpop.permute.xlu0 %433
        %436 = vmatprep.subr.mxu0 %v365
        %437 = vmatpush1.msra.mxu0 %v364
        %438 = vmatprep.subr.mxu0 %v367
        %439 = vmatpush1.msra.mxu0 %v366
        %440 = vmatprep.subr.mxu0 %v369
        %441 = vmatpush1.msra.mxu0 %v368
        %442 = vmatprep.subr.mxu0 %v371
        %443 = vmatpush1.msra.mxu0 %v370
        %444 = vmatprep.subr.mxu0 %v373
        %445 = vmatpush1.msra.mxu0 %v372
        %446 = vmatprep.subr.mxu0 %v375
        %447 = vmatpush1.msra.mxu0 %v374
        %448 = vmatprep.subr.mxu0 %v377
        %449 = vmatpush1.msra.mxu0 %v376
        %450 = vmatprep.subr.mxu0 %v379
        %451 = vmatpush1.msra.mxu0 %v378
        %452 = vmatprep.subr.mxu0 %v381
        %453 = vmatpush1.msra.mxu0 %v380
        %454 = vmatprep.subr.mxu0 %v383
        %455 = vmatpush1.msra.mxu0 %v382
        %456 = vmatprep.subr.mxu0 %v385
        %457 = vmatpush1.msra.mxu0 %v384
        %458 = vmatprep.subr.mxu0 %v387
        %459 = vmatpush1.msra.mxu0 %v386
        %460 = vmatprep.subr.mxu0 %v389
        %461 = vmatpush1.msra.mxu0 %v388
        %462 = vmatprep.subr.mxu0 %v391
        %463 = vmatpush1.msra.mxu0 %v390
        %464 = vmatprep.subr.mxu0 %v393
        %465 = vmatpush1.msra.mxu0 %v392
        %466 = vmatprep.subr.mxu0 %v395
        %467 = vmatpush1.msra.mxu0 %v394
        %468 = vmatprep.subr.mxu0 %v397
        %469 = vmatpush1.msra.mxu0 %v396
        %470 = vmatprep.subr.mxu0 %v399
        %471 = vmatpush1.msra.mxu0 %v398
        %472 = vmatprep.subr.mxu0 %v401
        %473 = vmatpush1.msra.mxu0 %v400
        %474 = vmatprep.subr.mxu0 %v403
        %475 = vmatpush1.msra.mxu0 %v402
        %476 = vmatprep.subr.mxu0 %v405
        %477 = vmatpush1.msra.mxu0 %v404
        %478 = vmatprep.subr.mxu0 %v407
        %479 = vmatpush1.msra.mxu0 %v406
        %480 = vmatprep.subr.mxu0 %v409
        %481 = vmatpush1.msra.mxu0 %v408
        %482 = vmatprep.subr.mxu0 %v411
        %483 = vmatpush1.msra.mxu0 %v410
        %484 = vmatprep.subr.mxu0 %v413
        %485 = vmatpush1.msra.mxu0 %v412
        %486 = vmatprep.subr.mxu0 %v415
        %487 = vmatpush1.msra.mxu0 %v414
        %488 = vmatprep.subr.mxu0 %v417
        %489 = vmatpush1.msra.mxu0 %v416
        %490 = vmatprep.subr.mxu0 %v419
        %491 = vmatpush1.msra.mxu0 %v418
        %492 = vmatprep.subr.mxu0 %v421
        %493 = vmatpush1.msra.mxu0 %v420
        %494 = vmatprep.subr.mxu0 %v423
        %495 = vmatpush1.msra.mxu0 %v422
        %496 = vmatprep.subr.mxu0 %v425
        %497 = vmatpush1.msra.mxu0 %v424
        %498 = vmatprep.subr.mxu0 %v427
        %499 = vmatpush1.msra.mxu0 %v426
        %500 = vmatprep.mubr.f32.mxu0 %v429
        %501 = vmatmul.mubr.f32.gmra.mrb[0].mxu0 %v428
        %v502 = vpop.f32.mrb[0].mxu0
        %v503 = vadd.f32 %v434, %v502
        %v504 = vpop.f32.mrb[0].mxu0
        %v505 = vadd.f32 %v434, %v504
        %506 = vdwg.mxu0
        %v507 = vmax.f32 %v503, 0.0
        %v508 = vmax.f32 %v505, 0.0
        %v509 = vpack.c.bf16 %v507, %v507
        %v510 = vpack.c.bf16 %v508, %v508
        %v513 = vunpack.c.l.b16 %v509
        %v514 = vunpack.c.l.b16 %v510
        %v515 = vpack.c.b16 %v514, %v513
        %517 = vst [vmem:[%s330] sm:$0xff] %v515
        %s518 = smul.u32 2, %s14
        %p519 = scmp.lt.s32.totalorder %s518, 3
        %s520 = scalar_select %p519, %s518, 3
        %s521 = smul.addr %s520, 4
        %s522 = scalar_lea.vmem %s3, %s521
        // Predicated region
        $region71: #{encode_uv_forward.6} parent=65 // pred_check
          %p523 = pneg %p100
        $region72: #{encode_uv_forward.6} parent=65 // pred_check_branch
          %525 = sbr.rel (%p523) target = $region74
        $region73: #{encode_uv_forward.6} parent=65 // pred_region
          %s526 = smul.u32 2, %s14
        $region74: #{encode_uv_forward.6} parent=65 // pred_fallthru
          _
      $region66: #{encode_uv_forward.6} parent=5 // pred_fallthru
        _
      %p527 = scmp.le.s32.totalorder 2, %s9
      // Predicated region
      $region75: #{encode_uv_forward.6} parent=5 // pred_check
        %p528 = pneg %p527
      $region76: #{encode_uv_forward.6} parent=5 // pred_check_branch
        %530 = sbr.rel (%p528) target = $region78
      $region77: #{encode_uv_forward.6} parent=5 // pred_region
        %s531 = ssub.s32 %s9, 2
        // Predicated region
        $region79: #{encode_uv_forward.6} parent=77 // pred_check
          %p532 = pneg %p106
        $region80: #{encode_uv_forward.6} parent=77 // pred_check_branch
          %534 = sbr.rel (%p532) target = $region82
        $region81: #{encode_uv_forward.6} parent=77 // pred_region
          %s535 = smul.u32 2, %s15
          %p536 = scmp.lt.s32.totalorder %s535, 3
          %s537 = scalar_select %p536, %s535, 3
          %s538 = smul.addr %s537, 4
          %s539 = scalar_lea.vmem %s3, %s538
        $region82: #{encode_uv_forward.6} parent=77 // pred_fallthru
          _
      $region78: #{encode_uv_forward.6} parent=5 // pred_fallthru
        _
    $region6: #{encode_uv_forward.6} parent=1 // loop_footer
      %s13 = sadd.s32 1, %s9
    $region7: #{encode_uv_forward.6} parent=1 // loop_footer_branch
      %8 = sbr.rel target = $region3
    $region8: #{encode_uv_forward.6} parent=1 // loop_exit
      _

// kernel: encode_uv_forward.8
$region0: #{encode_uv_forward.8}
  #allocation0 [shape = 'u32[]', space=smem, size = 0x4, offset = 0x4, fixed_abs, tag = 'smem constant byte address 0x4 - core index']
  #allocation1 [shape = 'u32[144,128]{1,0:T(1,128)}', space=vmem, size = 0x12000, scoped, tag = 'internal scratch']
  %s0 = inlined_call_operand.vmem [shape: bf16[72,128], index: 0, kind: input, shape index: {}]
  %s1 = inlined_call_operand.vmem [shape: f32[72,128], index: 1, kind: input, shape index: {}]
  %s2 = inlined_call_operand.vmem [shape: f32[8,72], index: 2, kind: input, shape index: {}]
  %s3 = inlined_call_operand.vmem [shape: f32[8,1], index: 3, kind: input, shape index: {}]
  %s4 = inlined_call_operand.vmem [shape: f32[8,72], index: 4, kind: input, shape index: {}]
  %s5 = inlined_call_operand.vmem [shape: f32[8,1], index: 5, kind: input, shape index: {}]
  %s6 = inlined_call_operand.vmem [shape: f32[8,72], index: 6, kind: input, shape index: {}]
  %s7 = inlined_call_operand.vmem [shape: f32[8,1], index: 7, kind: input, shape index: {}]
  %s8 = inlined_call_operand.vmem [shape: f32[8,72], index: 8, kind: input, shape index: {}]
  %s9 = inlined_call_operand.vmem [shape: f32[8,1], index: 9, kind: input, shape index: {}]
  %s10 = inlined_call_operand.vmem [shape: bf16[8,128], index: 10, kind: output, shape index: {}]
  %s11 = sld [smem:[#allocation0]]
  $region50: #{encode_uv_forward.8} parent=0
    _
  %s13 = ssub.s32 1, %s11
  %s14 = scalar_select 0, %s13, %s11
  // Predicated region
  $region2: #{encode_uv_forward.8} parent=0 // pred_check
    _
  $region3: #{encode_uv_forward.8} parent=0 // pred_check_branch
    %16 = sbr.rel (0) target = $region5
  $region4: #{encode_uv_forward.8} parent=0 // pred_region
    _
  $region5: #{encode_uv_forward.8} parent=0 // pred_fallthru
    _
  // Predicated region
  $region6: #{encode_uv_forward.8} parent=0 // pred_check
    _
  $region7: #{encode_uv_forward.8} parent=0 // pred_check_branch
    %18 = sbr.rel (0) target = $region9
  $region8: #{encode_uv_forward.8} parent=0 // pred_region
    _
  $region9: #{encode_uv_forward.8} parent=0 // pred_fallthru
    _
  // Predicated region
  $region10: #{encode_uv_forward.8} parent=0 // pred_check
    _
  $region11: #{encode_uv_forward.8} parent=0 // pred_check_branch
    %20 = sbr.rel (0) target = $region13
  $region12: #{encode_uv_forward.8} parent=0 // pred_region
    _
  $region13: #{encode_uv_forward.8} parent=0 // pred_fallthru
    _
  // Predicated region
  $region14: #{encode_uv_forward.8} parent=0 // pred_check
    _
  $region15: #{encode_uv_forward.8} parent=0 // pred_check_branch
    %22 = sbr.rel (0) target = $region17
  $region16: #{encode_uv_forward.8} parent=0 // pred_region
    _
  $region17: #{encode_uv_forward.8} parent=0 // pred_fallthru
    _
  // Predicated region
  $region18: #{encode_uv_forward.8} parent=0 // pred_check
    _
  $region19: #{encode_uv_forward.8} parent=0 // pred_check_branch
    %24 = sbr.rel (0) target = $region21
  $region20: #{encode_uv_forward.8} parent=0 // pred_region
    _
  $region21: #{encode_uv_forward.8} parent=0 // pred_fallthru
    _
  // Predicated region
  $region22: #{encode_uv_forward.8} parent=0 // pred_check
    _
  $region23: #{encode_uv_forward.8} parent=0 // pred_check_branch
    %26 = sbr.rel (0) target = $region25
  $region24: #{encode_uv_forward.8} parent=0 // pred_region
    _
  $region25: #{encode_uv_forward.8} parent=0 // pred_fallthru
    _
  // Predicated region
  $region26: #{encode_uv_forward.8} parent=0 // pred_check
    _
  $region27: #{encode_uv_forward.8} parent=0 // pred_check_branch
    %28 = sbr.rel (0) target = $region29
  $region28: #{encode_uv_forward.8} parent=0 // pred_region
    _
  $region29: #{encode_uv_forward.8} parent=0 // pred_fallthru
    _
  // Predicated region
  $region30: #{encode_uv_forward.8} parent=0 // pred_check
    _
  $region31: #{encode_uv_forward.8} parent=0 // pred_check_branch
    %30 = sbr.rel (0) target = $region33
  $region32: #{encode_uv_forward.8} parent=0 // pred_region
    _
  $region33: #{encode_uv_forward.8} parent=0 // pred_fallthru
    _
  // Predicated region
  $region34: #{encode_uv_forward.8} parent=0 // pred_check
    _
  $region35: #{encode_uv_forward.8} parent=0 // pred_check_branch
    %32 = sbr.rel (0) target = $region37
  $region36: #{encode_uv_forward.8} parent=0 // pred_region
    _
  $region37: #{encode_uv_forward.8} parent=0 // pred_fallthru
    _
  // Predicated region
  $region38: #{encode_uv_forward.8} parent=0 // pred_check
    _
  $region39: #{encode_uv_forward.8} parent=0 // pred_check_branch
    %34 = sbr.rel (0) target = $region41
  $region40: #{encode_uv_forward.8} parent=0 // pred_region
    _
  $region41: #{encode_uv_forward.8} parent=0 // pred_fallthru
    _
  %v35 = vld [vmem:[%s0] sm:$0xf]
  %v36 = vld [vmem:[%s0 + $0x4] sm:$0xf]
  %v37 = vld [vmem:[%s0 + $0x8] sm:$0xf]
  %v38 = vld [vmem:[%s0 + $0xc] sm:$0xf]
  %v39 = vld [vmem:[%s0 + $0x10] sm:$0xf]
  %v40 = vld [vmem:[%s0 + $0x14] sm:$0xf]
  %v41 = vld [vmem:[%s0 + $0x18] sm:$0xf]
  %v42 = vld [vmem:[%s0 + $0x1c] sm:$0xf]
  %v43 = vld [vmem:[%s0 + $0x20] sm:$0xf]
  %v44 = vunpack.c.l.bf16 %v35
  %v45 = vunpack.c.l.bf16 %v36
  %v46 = vunpack.c.l.bf16 %v37
  %v47 = vunpack.c.l.bf16 %v38
  %v48 = vunpack.c.l.bf16 %v39
  %v49 = vunpack.c.l.bf16 %v40
  %v50 = vunpack.c.l.bf16 %v41
  %v51 = vunpack.c.l.bf16 %v42
  %v52 = vunpack.c.l.bf16 %v43
  %v53 = vld [vmem:[%s1] sm:$0xff]
  %v54 = vld [vmem:[%s1 + $0x8] sm:$0xff]
  %v55 = vld [vmem:[%s1 + $0x10] sm:$0xff]
  %v56 = vld [vmem:[%s1 + $0x18] sm:$0xff]
  %v57 = vld [vmem:[%s1 + $0x20] sm:$0xff]
  %v58 = vld [vmem:[%s1 + $0x28] sm:$0xff]
  %v59 = vld [vmem:[%s1 + $0x30] sm:$0xff]
  %v60 = vld [vmem:[%s1 + $0x38] sm:$0xff]
  %v61 = vld [vmem:[%s1 + $0x40] sm:$0xff]
  %v62 = vld [vmem:[%s2] sm:$0xff]
  %v63 = vld [vmem:[%s3] sm:$0xff]
  %65 = vset.pattern.permute.xlu0 0
  %66 = vperm.xlu0 %65, %v63
  %v67 = vpop.permute.xlu0 %66
  %vm69 = vcmask 588800
  %v71 = vsel %vm69, %v62, 0
  %73 = vmatprep.subr.mxu0 0.0
  %74 = vmatpush1.msra.mxu0 %v44
  %75 = vmatprep.subr.mxu0 0.0
  %76 = vmatpush1.msra.mxu0 %v45
  %77 = vmatprep.subr.mxu0 0.0
  %78 = vmatpush1.msra.mxu0 %v46
  %79 = vmatprep.subr.mxu0 0.0
  %80 = vmatpush1.msra.mxu0 %v47
  %81 = vmatprep.subr.mxu0 0.0
  %82 = vmatpush1.msra.mxu0 %v48
  %83 = vmatprep.subr.mxu0 0.0
  %84 = vmatpush1.msra.mxu0 %v49
  %85 = vmatprep.subr.mxu0 0.0
  %86 = vmatpush1.msra.mxu0 %v50
  %87 = vmatprep.subr.mxu0 0.0
  %88 = vmatpush1.msra.mxu0 %v51
  %89 = vmatprep.subr.mxu0 0.0
  %90 = vmatpush1.msra.mxu0 %v52
  %91 = vmatprep.subr.mxu0 0.0
  %92 = vmatpush1.msra.mxu0 0.0
  %93 = vmatprep.subr.mxu0 0.0
  %94 = vmatpush1.msra.mxu0 0.0
  %95 = vmatprep.subr.mxu0 0.0
  %96 = vmatpush1.msra.mxu0 0.0
  %97 = vmatprep.subr.mxu0 0.0
  %98 = vmatpush1.msra.mxu0 0.0
  %99 = vmatprep.subr.mxu0 0.0
  %100 = vmatpush1.msra.mxu0 0.0
  %101 = vmatprep.subr.mxu0 0.0
  %102 = vmatpush1.msra.mxu0 0.0
  %103 = vmatprep.subr.mxu0 0.0
  %104 = vmatpush1.msra.mxu0 0.0
  %105 = vmatprep.subr.mxu0 0.0
  %106 = vmatpush1.msra.mxu0 0.0
  %107 = vmatprep.subr.mxu0 0.0
  %108 = vmatpush1.msra.mxu0 0.0
  %109 = vmatprep.subr.mxu0 0.0
  %110 = vmatpush1.msra.mxu0 0.0
  %111 = vmatprep.subr.mxu0 0.0
  %112 = vmatpush1.msra.mxu0 0.0
  %113 = vmatprep.subr.mxu0 0.0
  %114 = vmatpush1.msra.mxu0 0.0
  %115 = vmatprep.subr.mxu0 0.0
  %116 = vmatpush1.msra.mxu0 0.0
  %117 = vmatprep.subr.mxu0 0.0
  %118 = vmatpush1.msra.mxu0 0.0
  %119 = vmatprep.subr.mxu0 0.0
  %120 = vmatpush1.msra.mxu0 0.0
  %121 = vmatprep.subr.mxu0 0.0
  %122 = vmatpush1.msra.mxu0 0.0
  %123 = vmatprep.subr.mxu0 0.0
  %124 = vmatpush1.msra.mxu0 0.0
  %125 = vmatprep.subr.mxu0 0.0
  %126 = vmatpush1.msra.mxu0 0.0
  %127 = vmatprep.subr.mxu0 0.0
  %128 = vmatpush1.msra.mxu0 0.0
  %129 = vmatprep.subr.mxu0 0.0
  %130 = vmatpush1.msra.mxu0 0.0
  %131 = vmatprep.subr.mxu0 0.0
  %132 = vmatpush1.msra.mxu0 0.0
  %133 = vmatprep.subr.mxu0 0.0
  %134 = vmatpush1.msra.mxu0 0.0
  %135 = vmatprep.subr.mxu0 0.0
  %136 = vmatpush1.msra.mxu0 0.0
  %137 = vmatprep.mubr.f32.mxu0 0.0
  %138 = vmatmul.mubr.f32.gmra.mrb[0].mxu0 %v71
  %v139 = vpop.f32.mrb[0].mxu0
  %v140 = vadd.f32 %v67, %v139
  %v141 = vpop.f32.mrb[0].mxu0
  %142 = vdwg.mxu0
  %v143 = vmax.f32 %v140, 0.0
  %v144 = vld [vmem:[%s4] sm:$0xff]
  %146 = vrot.lane.b32.xlu0 %v143, 9
  %v147 = vpop.permute.xlu0 %146
  %vm149 = vcmask 72704
  %v150 = vsel %vm149, 0.0, %v147
  %151 = vrot.lane.b32.xlu0 %v143, 8
  %v152 = vpop.permute.xlu0 %151
  %vm154 = vcmask 64512
  %v155 = vsel %vm154, 0.0, %v152
  %156 = vrot.lane.b32.xlu0 %v143, 7
  %v157 = vpop.permute.xlu0 %156
  %vm159 = vcmask 56320
  %v160 = vsel %vm159, 0.0, %v157
  %161 = vrot.lane.b32.xlu0 %v143, 1
  %v162 = vpop.permute.xlu0 %161
  %vm164 = vcmask 7168
  %v165 = vsel %vm164, 0.0, %v162
  %166 = vrot.lane.b32.xlu0 %v143, 127
  %v167 = vpop.permute.xlu0 %166
  %vm169 = vcmask 1039360
  %v170 = vsel %vm169, %v167, 0.0
  %171 = vrot.lane.b32.xlu0 %v143, 121
  %v172 = vpop.permute.xlu0 %171
  %vm174 = vcmask 990208
  %v175 = vsel %vm174, %v172, 0.0
  %176 = vrot.lane.b32.xlu0 %v143, 120
  %v177 = vpop.permute.xlu0 %176
  %vm179 = vcmask 982016
  %v180 = vsel %vm179, %v177, 0.0
  %181 = vrot.lane.b32.xlu0 %v143, 119
  %v182 = vpop.permute.xlu0 %181
  %vm184 = vcmask 973824
  %v185 = vsel %vm184, %v182, 0.0
  %v186 = vmul.f32 %v150, %v53
  %v187 = vmul.f32 %v155, %v54
  %v188 = vmul.f32 %v160, %v55
  %v189 = vmul.f32 %v165, %v56
  %v190 = vmul.f32 %v143, %v57
  %v191 = vmul.f32 %v170, %v58
  %v192 = vmul.f32 %v175, %v59
  %v193 = vmul.f32 %v180, %v60
  %v194 = vmul.f32 %v185, %v61
  %v195 = vld [vmem:[%s5] sm:$0xff]
  %197 = vset.pattern.permute.xlu0 0
  %198 = vperm.xlu0 %197, %v195
  %v199 = vpop.permute.xlu0 %198
  %v202 = vsel %vm69, %v144, 0
  %204 = vmatprep.subr.mxu0 0.0
  %205 = vmatpush1.msra.mxu0 %v186
  %206 = vmatprep.subr.mxu0 0.0
  %207 = vmatpush1.msra.mxu0 %v187
  %208 = vmatprep.subr.mxu0 0.0
  %209 = vmatpush1.msra.mxu0 %v188
  %210 = vmatprep.subr.mxu0 0.0
  %211 = vmatpush1.msra.mxu0 %v189
  %212 = vmatprep.subr.mxu0 0.0
  %213 = vmatpush1.msra.mxu0 %v190
  %214 = vmatprep.subr.mxu0 0.0
  %215 = vmatpush1.msra.mxu0 %v191
  %216 = vmatprep.subr.mxu0 0.0
  %217 = vmatpush1.msra.mxu0 %v192
  %218 = vmatprep.subr.mxu0 0.0
  %219 = vmatpush1.msra.mxu0 %v193
  %220 = vmatprep.subr.mxu0 0.0
  %221 = vmatpush1.msra.mxu0 %v194
  %222 = vmatprep.subr.mxu0 0.0
  %223 = vmatpush1.msra.mxu0 0.0
  %224 = vmatprep.subr.mxu0 0.0
  %225 = vmatpush1.msra.mxu0 0.0
  %226 = vmatprep.subr.mxu0 0.0
  %227 = vmatpush1.msra.mxu0 0.0
  %228 = vmatprep.subr.mxu0 0.0
  %229 = vmatpush1.msra.mxu0 0.0
  %230 = vmatprep.subr.mxu0 0.0
  %231 = vmatpush1.msra.mxu0 0.0
  %232 = vmatprep.subr.mxu0 0.0
  %233 = vmatpush1.msra.mxu0 0.0
  %234 = vmatprep.subr.mxu0 0.0
  %235 = vmatpush1.msra.mxu0 0.0
  %236 = vmatprep.subr.mxu0 0.0
  %237 = vmatpush1.msra.mxu0 0.0
  %238 = vmatprep.subr.mxu0 0.0
  %239 = vmatpush1.msra.mxu0 0.0
  %240 = vmatprep.subr.mxu0 0.0
  %241 = vmatpush1.msra.mxu0 0.0
  %242 = vmatprep.subr.mxu0 0.0
  %243 = vmatpush1.msra.mxu0 0.0
  %244 = vmatprep.subr.mxu0 0.0
  %245 = vmatpush1.msra.mxu0 0.0
  %246 = vmatprep.subr.mxu0 0.0
  %247 = vmatpush1.msra.mxu0 0.0
  %248 = vmatprep.subr.mxu0 0.0
  %249 = vmatpush1.msra.mxu0 0.0
  %250 = vmatprep.subr.mxu0 0.0
  %251 = vmatpush1.msra.mxu0 0.0
  %252 = vmatprep.subr.mxu0 0.0
  %253 = vmatpush1.msra.mxu0 0.0
  %254 = vmatprep.subr.mxu0 0.0
  %255 = vmatpush1.msra.mxu0 0.0
  %256 = vmatprep.subr.mxu0 0.0
  %257 = vmatpush1.msra.mxu0 0.0
  %258 = vmatprep.subr.mxu0 0.0
  %259 = vmatpush1.msra.mxu0 0.0
  %260 = vmatprep.subr.mxu0 0.0
  %261 = vmatpush1.msra.mxu0 0.0
  %262 = vmatprep.subr.mxu0 0.0
  %263 = vmatpush1.msra.mxu0 0.0
  %264 = vmatprep.subr.mxu0 0.0
  %265 = vmatpush1.msra.mxu0 0.0
  %266 = vmatprep.subr.mxu0 0.0
  %267 = vmatpush1.msra.mxu0 0.0
  %268 = vmatprep.mubr.f32.mxu0 0.0
  %269 = vmatmul.mubr.f32.gmra.mrb[0].mxu0 %v202
  %v270 = vpop.f32.mrb[0].mxu0
  %v271 = vadd.f32 %v199, %v270
  %v272 = vpop.f32.mrb[0].mxu0
  %273 = vdwg.mxu0
  %v274 = vadd.f32 %v271, %v48
  %v275 = vmax.f32 %v274, 0.0
  %v276 = vld [vmem:[%s6] sm:$0xff]
  %278 = vrot.lane.b32.xlu0 %v275, 9
  %v279 = vpop.permute.xlu0 %278
  %v281 = vsel %vm149, 0.0, %v279
  %282 = vrot.lane.b32.xlu0 %v275, 8
  %v283 = vpop.permute.xlu0 %282
  %v285 = vsel %vm154, 0.0, %v283
  %286 = vrot.lane.b32.xlu0 %v275, 7
  %v287 = vpop.permute.xlu0 %286
  %v289 = vsel %vm159, 0.0, %v287
  %290 = vrot.lane.b32.xlu0 %v275, 1
  %v291 = vpop.permute.xlu0 %290
  %v293 = vsel %vm164, 0.0, %v291
  %294 = vrot.lane.b32.xlu0 %v275, 127
  %v295 = vpop.permute.xlu0 %294
  %v297 = vsel %vm169, %v295, 0.0
  %298 = vrot.lane.b32.xlu0 %v275, 121
  %v299 = vpop.permute.xlu0 %298
  %v301 = vsel %vm174, %v299, 0.0
  %302 = vrot.lane.b32.xlu0 %v275, 120
  %v303 = vpop.permute.xlu0 %302
  %v305 = vsel %vm179, %v303, 0.0
  %306 = vrot.lane.b32.xlu0 %v275, 119
  %v307 = vpop.permute.xlu0 %306
  %v309 = vsel %vm184, %v307, 0.0
  %v310 = vmul.f32 %v281, %v53
  %v311 = vmul.f32 %v285, %v54
  %v312 = vmul.f32 %v289, %v55
  %v313 = vmul.f32 %v293, %v56
  %v314 = vmul.f32 %v275, %v57
  %v315 = vmul.f32 %v297, %v58
  %v316 = vmul.f32 %v301, %v59
  %v317 = vmul.f32 %v305, %v60
  %v318 = vmul.f32 %v309, %v61
  %v319 = vld [vmem:[%s7] sm:$0xff]
  %321 = vset.pattern.permute.xlu0 0
  %322 = vperm.xlu0 %321, %v319
  %v323 = vpop.permute.xlu0 %322
  %v326 = vsel %vm69, %v276, 0
  %328 = vmatprep.subr.mxu0 0.0
  %329 = vmatpush1.msra.mxu0 %v310
  %330 = vmatprep.subr.mxu0 0.0
  %331 = vmatpush1.msra.mxu0 %v311
  %332 = vmatprep.subr.mxu0 0.0
  %333 = vmatpush1.msra.mxu0 %v312
  %334 = vmatprep.subr.mxu0 0.0
  %335 = vmatpush1.msra.mxu0 %v313
  %336 = vmatprep.subr.mxu0 0.0
  %337 = vmatpush1.msra.mxu0 %v314
  %338 = vmatprep.subr.mxu0 0.0
  %339 = vmatpush1.msra.mxu0 %v315
  %340 = vmatprep.subr.mxu0 0.0
  %341 = vmatpush1.msra.mxu0 %v316
  %342 = vmatprep.subr.mxu0 0.0
  %343 = vmatpush1.msra.mxu0 %v317
  %344 = vmatprep.subr.mxu0 0.0
  %345 = vmatpush1.msra.mxu0 %v318
  %346 = vmatprep.subr.mxu0 0.0
  %347 = vmatpush1.msra.mxu0 0.0
  %348 = vmatprep.subr.mxu0 0.0
  %349 = vmatpush1.msra.mxu0 0.0
  %350 = vmatprep.subr.mxu0 0.0
  %351 = vmatpush1.msra.mxu0 0.0
  %352 = vmatprep.subr.mxu0 0.0
  %353 = vmatpush1.msra.mxu0 0.0
  %354 = vmatprep.subr.mxu0 0.0
  %355 = vmatpush1.msra.mxu0 0.0
  %356 = vmatprep.subr.mxu0 0.0
  %357 = vmatpush1.msra.mxu0 0.0
  %358 = vmatprep.subr.mxu0 0.0
  %359 = vmatpush1.msra.mxu0 0.0
  %360 = vmatprep.subr.mxu0 0.0
  %361 = vmatpush1.msra.mxu0 0.0
  %362 = vmatprep.subr.mxu0 0.0
  %363 = vmatpush1.msra.mxu0 0.0
  %364 = vmatprep.subr.mxu0 0.0
  %365 = vmatpush1.msra.mxu0 0.0
  %366 = vmatprep.subr.mxu0 0.0
  %367 = vmatpush1.msra.mxu0 0.0
  %368 = vmatprep.subr.mxu0 0.0
  %369 = vmatpush1.msra.mxu0 0.0
  %370 = vmatprep.subr.mxu0 0.0
  %371 = vmatpush1.msra.mxu0 0.0
  %372 = vmatprep.subr.mxu0 0.0
  %373 = vmatpush1.msra.mxu0 0.0
  %374 = vmatprep.subr.mxu0 0.0
  %375 = vmatpush1.msra.mxu0 0.0
  %376 = vmatprep.subr.mxu0 0.0
  %377 = vmatpush1.msra.mxu0 0.0
  %378 = vmatprep.subr.mxu0 0.0
  %379 = vmatpush1.msra.mxu0 0.0
  %380 = vmatprep.subr.mxu0 0.0
  %381 = vmatpush1.msra.mxu0 0.0
  %382 = vmatprep.subr.mxu0 0.0
  %383 = vmatpush1.msra.mxu0 0.0
  %384 = vmatprep.subr.mxu0 0.0
  %385 = vmatpush1.msra.mxu0 0.0
  %386 = vmatprep.subr.mxu0 0.0
  %387 = vmatpush1.msra.mxu0 0.0
  %388 = vmatprep.subr.mxu0 0.0
  %389 = vmatpush1.msra.mxu0 0.0
  %390 = vmatprep.subr.mxu0 0.0
  %391 = vmatpush1.msra.mxu0 0.0
  %392 = vmatprep.mubr.f32.mxu0 0.0
  %393 = vmatmul.mubr.f32.gmra.mrb[0].mxu0 %v326
  %v394 = vpop.f32.mrb[0].mxu0
  %v395 = vadd.f32 %v323, %v394
  %v396 = vpop.f32.mrb[0].mxu0
  %397 = vdwg.mxu0
  %v398 = vmax.f32 %v395, 0.0
  %v399 = vld [vmem:[%s8] sm:$0xff]
  %401 = vrot.lane.b32.xlu0 %v398, 9
  %v402 = vpop.permute.xlu0 %401
  %v404 = vsel %vm149, 0.0, %v402
  %405 = vrot.lane.b32.xlu0 %v398, 8
  %v406 = vpop.permute.xlu0 %405
  %v408 = vsel %vm154, 0.0, %v406
  %409 = vrot.lane.b32.xlu0 %v398, 7
  %v410 = vpop.permute.xlu0 %409
  %v412 = vsel %vm159, 0.0, %v410
  %413 = vrot.lane.b32.xlu0 %v398, 1
  %v414 = vpop.permute.xlu0 %413
  %v416 = vsel %vm164, 0.0, %v414
  %417 = vrot.lane.b32.xlu0 %v398, 127
  %v418 = vpop.permute.xlu0 %417
  %v420 = vsel %vm169, %v418, 0.0
  %421 = vrot.lane.b32.xlu0 %v398, 121
  %v422 = vpop.permute.xlu0 %421
  %v424 = vsel %vm174, %v422, 0.0
  %425 = vrot.lane.b32.xlu0 %v398, 120
  %v426 = vpop.permute.xlu0 %425
  %v428 = vsel %vm179, %v426, 0.0
  %429 = vrot.lane.b32.xlu0 %v398, 119
  %v430 = vpop.permute.xlu0 %429
  %v432 = vsel %vm184, %v430, 0.0
  %v433 = vmul.f32 %v404, %v53
  %v434 = vmul.f32 %v408, %v54
  %v435 = vmul.f32 %v412, %v55
  %v436 = vmul.f32 %v416, %v56
  %v437 = vmul.f32 %v398, %v57
  %v438 = vmul.f32 %v420, %v58
  %v439 = vmul.f32 %v424, %v59
  %v440 = vmul.f32 %v428, %v60
  %v441 = vmul.f32 %v432, %v61
  %v442 = vld [vmem:[%s9] sm:$0xff]
  %444 = vset.pattern.permute.xlu0 0
  %445 = vperm.xlu0 %444, %v442
  %v446 = vpop.permute.xlu0 %445
  %v449 = vsel %vm69, %v399, 0
  %451 = vmatprep.subr.mxu0 0.0
  %452 = vmatpush1.msra.mxu0 %v433
  %453 = vmatprep.subr.mxu0 0.0
  %454 = vmatpush1.msra.mxu0 %v434
  %455 = vmatprep.subr.mxu0 0.0
  %456 = vmatpush1.msra.mxu0 %v435
  %457 = vmatprep.subr.mxu0 0.0
  %458 = vmatpush1.msra.mxu0 %v436
  %459 = vmatprep.subr.mxu0 0.0
  %460 = vmatpush1.msra.mxu0 %v437
  %461 = vmatprep.subr.mxu0 0.0
  %462 = vmatpush1.msra.mxu0 %v438
  %463 = vmatprep.subr.mxu0 0.0
  %464 = vmatpush1.msra.mxu0 %v439
  %465 = vmatprep.subr.mxu0 0.0
  %466 = vmatpush1.msra.mxu0 %v440
  %467 = vmatprep.subr.mxu0 0.0
  %468 = vmatpush1.msra.mxu0 %v441
  %469 = vmatprep.subr.mxu0 0.0
  %470 = vmatpush1.msra.mxu0 0.0
  %471 = vmatprep.subr.mxu0 0.0
  %472 = vmatpush1.msra.mxu0 0.0
  %473 = vmatprep.subr.mxu0 0.0
  %474 = vmatpush1.msra.mxu0 0.0
  %475 = vmatprep.subr.mxu0 0.0
  %476 = vmatpush1.msra.mxu0 0.0
  %477 = vmatprep.subr.mxu0 0.0
  %478 = vmatpush1.msra.mxu0 0.0
  %479 = vmatprep.subr.mxu0 0.0
  %480 = vmatpush1.msra.mxu0 0.0
  %481 = vmatprep.subr.mxu0 0.0
  %482 = vmatpush1.msra.mxu0 0.0
  %483 = vmatprep.subr.mxu0 0.0
  %484 = vmatpush1.msra.mxu0 0.0
  %485 = vmatprep.subr.mxu0 0.0
  %486 = vmatpush1.msra.mxu0 0.0
  %487 = vmatprep.subr.mxu0 0.0
  %488 = vmatpush1.msra.mxu0 0.0
  %489 = vmatprep.subr.mxu0 0.0
  %490 = vmatpush1.msra.mxu0 0.0
  %491 = vmatprep.subr.mxu0 0.0
  %492 = vmatpush1.msra.mxu0 0.0
  %493 = vmatprep.subr.mxu0 0.0
  %494 = vmatpush1.msra.mxu0 0.0
  %495 = vmatprep.subr.mxu0 0.0
  %496 = vmatpush1.msra.mxu0 0.0
  %497 = vmatprep.subr.mxu0 0.0
  %498 = vmatpush1.msra.mxu0 0.0
  %499 = vmatprep.subr.mxu0 0.0
  %500 = vmatpush1.msra.mxu0 0.0
  %501 = vmatprep.subr.mxu0 0.0
  %502 = vmatpush1.msra.mxu0 0.0
  %503 = vmatprep.subr.mxu0 0.0
  %504 = vmatpush1.msra.mxu0 0.0
  %505 = vmatprep.subr.mxu0 0.0
  %506 = vmatpush1.msra.mxu0 0.0
  %507 = vmatprep.subr.mxu0 0.0
  %508 = vmatpush1.msra.mxu0 0.0
  %509 = vmatprep.subr.mxu0 0.0
  %510 = vmatpush1.msra.mxu0 0.0
  %511 = vmatprep.subr.mxu0 0.0
  %512 = vmatpush1.msra.mxu0 0.0
  %513 = vmatprep.subr.mxu0 0.0
  %514 = vmatpush1.msra.mxu0 0.0
  %515 = vmatprep.mubr.f32.mxu0 0.0
  %516 = vmatmul.mubr.f32.gmra.mrb[0].mxu0 %v449
  %v517 = vpop.f32.mrb[0].mxu0
  %v518 = vadd.f32 %v446, %v517
  %v519 = vpop.f32.mrb[0].mxu0
  %520 = vdwg.mxu0
  %v521 = vadd.f32 %v518, %v275
  %v522 = vmax.f32 %v521, 0.0
  %v523 = vpack.c.bf16 %v522, %v522
  %524 = vst [vmem:[%s10] sm:$0xf] %v523
  // Predicated region
  $region42: #{encode_uv_forward.8} parent=0 // pred_check
    _
  $region43: #{encode_uv_forward.8} parent=0 // pred_check_branch
    %526 = sbr.rel (0) target = $region45
  $region44: #{encode_uv_forward.8} parent=0 // pred_region
    _
  $region45: #{encode_uv_forward.8} parent=0 // pred_fallthru
    _
  // Predicated region
  $region46: #{encode_uv_forward.8} parent=0 // pred_check
    _
  $region47: #{encode_uv_forward.8} parent=0 // pred_check_branch
    %528 = sbr.rel (0) target = $region49
  $region48: #{encode_uv_forward.8} parent=0 // pred_region
    _
  $region49: #{encode_uv_forward.8} parent=0 // pred_fallthru
    _

// kernel: encode_uv_forward.9
$region0: #{encode_uv_forward.9}
  #allocation0 [shape = 'u32[]', space=smem, size = 0x4, offset = 0x4, fixed_abs, tag = 'smem constant byte address 0x4 - core index']
  #allocation1 [shape = 'u32[144,128]{1,0:T(1,128)}', space=vmem, size = 0x12000, scoped, tag = 'internal scratch']
  %s0 = inlined_call_operand.vmem [shape: bf16[72,32], index: 0, kind: input, shape index: {}]
  %s1 = inlined_call_operand.vmem [shape: f32[144,32], index: 1, kind: input, shape index: {}]
  %s2 = inlined_call_operand.vmem [shape: f32[16,72], index: 2, kind: input, shape index: {}]
  %s3 = inlined_call_operand.vmem [shape: f32[16,1], index: 3, kind: input, shape index: {}]
  %s4 = inlined_call_operand.vmem [shape: f32[16,8], index: 4, kind: input, shape index: {}]
  %s5 = inlined_call_operand.vmem [shape: f32[16,1], index: 5, kind: input, shape index: {}]
  %s6 = inlined_call_operand.vmem [shape: f32[16,144], index: 6, kind: input, shape index: {}]
  %s7 = inlined_call_operand.vmem [shape: f32[16,1], index: 7, kind: input, shape index: {}]
  %s8 = inlined_call_operand.vmem [shape: f32[16,144], index: 8, kind: input, shape index: {}]
  %s9 = inlined_call_operand.vmem [shape: f32[16,1], index: 9, kind: input, shape index: {}]
  %s10 = inlined_call_operand.vmem [shape: f32[16,144], index: 10, kind: input, shape index: {}]
  %s11 = inlined_call_operand.vmem [shape: f32[16,1], index: 11, kind: input, shape index: {}]
  %s12 = inlined_call_operand.vmem [shape: bf16[16,32], index: 12, kind: output, shape index: {}]
  %s13 = sld [smem:[#allocation0]]
  $region58: #{encode_uv_forward.9} parent=0
    _
  %s15 = ssub.s32 1, %s13
  %s16 = scalar_select 0, %s15, %s13
  // Predicated region
  $region2: #{encode_uv_forward.9} parent=0 // pred_check
    _
  $region3: #{encode_uv_forward.9} parent=0 // pred_check_branch
    %18 = sbr.rel (0) target = $region5
  $region4: #{encode_uv_forward.9} parent=0 // pred_region
    _
  $region5: #{encode_uv_forward.9} parent=0 // pred_fallthru
    _
  // Predicated region
  $region6: #{encode_uv_forward.9} parent=0 // pred_check
    _
  $region7: #{encode_uv_forward.9} parent=0 // pred_check_branch
    %20 = sbr.rel (0) target = $region9
  $region8: #{encode_uv_forward.9} parent=0 // pred_region
    _
  $region9: #{encode_uv_forward.9} parent=0 // pred_fallthru
    _
  // Predicated region
  $region10: #{encode_uv_forward.9} parent=0 // pred_check
    _
  $region11: #{encode_uv_forward.9} parent=0 // pred_check_branch
    %22 = sbr.rel (0) target = $region13
  $region12: #{encode_uv_forward.9} parent=0 // pred_region
    _
  $region13: #{encode_uv_forward.9} parent=0 // pred_fallthru
    _
  // Predicated region
  $region14: #{encode_uv_forward.9} parent=0 // pred_check
    _
  $region15: #{encode_uv_forward.9} parent=0 // pred_check_branch
    %24 = sbr.rel (0) target = $region17
  $region16: #{encode_uv_forward.9} parent=0 // pred_region
    _
  $region17: #{encode_uv_forward.9} parent=0 // pred_fallthru
    _
  // Predicated region
  $region18: #{encode_uv_forward.9} parent=0 // pred_check
    _
  $region19: #{encode_uv_forward.9} parent=0 // pred_check_branch
    %26 = sbr.rel (0) target = $region21
  $region20: #{encode_uv_forward.9} parent=0 // pred_region
    _
  $region21: #{encode_uv_forward.9} parent=0 // pred_fallthru
    _
  // Predicated region
  $region22: #{encode_uv_forward.9} parent=0 // pred_check
    _
  $region23: #{encode_uv_forward.9} parent=0 // pred_check_branch
    %28 = sbr.rel (0) target = $region25
  $region24: #{encode_uv_forward.9} parent=0 // pred_region
    _
  $region25: #{encode_uv_forward.9} parent=0 // pred_fallthru
    _
  // Predicated region
  $region26: #{encode_uv_forward.9} parent=0 // pred_check
    _
  $region27: #{encode_uv_forward.9} parent=0 // pred_check_branch
    %30 = sbr.rel (0) target = $region29
  $region28: #{encode_uv_forward.9} parent=0 // pred_region
    _
  $region29: #{encode_uv_forward.9} parent=0 // pred_fallthru
    _
  // Predicated region
  $region30: #{encode_uv_forward.9} parent=0 // pred_check
    _
  $region31: #{encode_uv_forward.9} parent=0 // pred_check_branch
    %32 = sbr.rel (0) target = $region33
  $region32: #{encode_uv_forward.9} parent=0 // pred_region
    _
  $region33: #{encode_uv_forward.9} parent=0 // pred_fallthru
    _
  // Predicated region
  $region34: #{encode_uv_forward.9} parent=0 // pred_check
    _
  $region35: #{encode_uv_forward.9} parent=0 // pred_check_branch
    %34 = sbr.rel (0) target = $region37
  $region36: #{encode_uv_forward.9} parent=0 // pred_region
    _
  $region37: #{encode_uv_forward.9} parent=0 // pred_fallthru
    _
  // Predicated region
  $region38: #{encode_uv_forward.9} parent=0 // pred_check
    _
  $region39: #{encode_uv_forward.9} parent=0 // pred_check_branch
    %36 = sbr.rel (0) target = $region41
  $region40: #{encode_uv_forward.9} parent=0 // pred_region
    _
  $region41: #{encode_uv_forward.9} parent=0 // pred_fallthru
    _
  // Predicated region
  $region42: #{encode_uv_forward.9} parent=0 // pred_check
    _
  $region43: #{encode_uv_forward.9} parent=0 // pred_check_branch
    %38 = sbr.rel (0) target = $region45
  $region44: #{encode_uv_forward.9} parent=0 // pred_region
    _
  $region45: #{encode_uv_forward.9} parent=0 // pred_fallthru
    _
  // Predicated region
  $region46: #{encode_uv_forward.9} parent=0 // pred_check
    _
  $region47: #{encode_uv_forward.9} parent=0 // pred_check_branch
    %40 = sbr.rel (0) target = $region49
  $region48: #{encode_uv_forward.9} parent=0 // pred_region
    _
  $region49: #{encode_uv_forward.9} parent=0 // pred_fallthru
    _
  %v41 = vld [vmem:[%s0] sm:$0xf]
  %v42 = vld [vmem:[%s0 + $0x4] sm:$0xf]
  %v43 = vld [vmem:[%s0 + $0x8] sm:$0xf]
  %v44 = vld [vmem:[%s0 + $0xc] sm:$0xf]
  %v45 = vld [vmem:[%s0 + $0x10] sm:$0xf]
  %v46 = vld [vmem:[%s0 + $0x14] sm:$0xf]
  %v47 = vld [vmem:[%s0 + $0x18] sm:$0xf]
  %v48 = vld [vmem:[%s0 + $0x1c] sm:$0xf]
  %v49 = vld [vmem:[%s0 + $0x20] sm:$0xf]
  %v50 = vunpack.c.l.bf16 %v41
  %v51 = vunpack.c.l.bf16 %v42
  %v52 = vunpack.c.l.bf16 %v43
  %v53 = vunpack.c.l.bf16 %v44
  %v54 = vunpack.c.l.bf16 %v45
  %v55 = vunpack.c.l.bf16 %v46
  %v56 = vunpack.c.l.bf16 %v47
  %v57 = vunpack.c.l.bf16 %v48
  %v58 = vunpack.c.l.bf16 %v49
  %v59 = vld [vmem:[%s1] sm:$0xff]
  %v60 = vld [vmem:[%s1 + $0x8] sm:$0xff]
  %v61 = vld [vmem:[%s1 + $0x10] sm:$0xff]
  %v62 = vld [vmem:[%s1 + $0x18] sm:$0xff]
  %v63 = vld [vmem:[%s1 + $0x20] sm:$0xff]
  %v64 = vld [vmem:[%s1 + $0x28] sm:$0xff]
  %v65 = vld [vmem:[%s1 + $0x30] sm:$0xff]
  %v66 = vld [vmem:[%s1 + $0x38] sm:$0xff]
  %v67 = vld [vmem:[%s1 + $0x40] sm:$0xff]
  %v68 = vld [vmem:[%s1 + $0x48] sm:$0xff]
  %v69 = vld [vmem:[%s1 + $0x50] sm:$0xff]
  %v70 = vld [vmem:[%s1 + $0x58] sm:$0xff]
  %v71 = vld [vmem:[%s1 + $0x60] sm:$0xff]
  %v72 = vld [vmem:[%s1 + $0x68] sm:$0xff]
  %v73 = vld [vmem:[%s1 + $0x70] sm:$0xff]
  %v74 = vld [vmem:[%s1 + $0x78] sm:$0xff]
  %v75 = vld [vmem:[%s1 + $0x80] sm:$0xff]
  %v76 = vld [vmem:[%s1 + $0x88] sm:$0xff]
  %v77 = vld [vmem:[%s2] sm:$0xff]
  %v78 = vld [vmem:[%s2 + $0x8] sm:$0xff]
  %v79 = vld [vmem:[%s3] sm:$0xff]
  %v80 = vld [vmem:[%s3 + $0x8] sm:$0xff]
  %82 = vset.pattern.permute.xlu0 0
  %83 = vperm.xlu0 %82, %v79
  %v84 = vpop.permute.xlu0 %83
  %87 = vset.pattern.permute.xlu0 0
  %88 = vperm.xlu0 %87, %v80
  %v89 = vpop.permute.xlu0 %88
  %vm91 = vcmask 588800
  %v93 = vsel %vm91, %v77, 0
  %v96 = vsel %vm91, %v78, 0
  %98 = vmatprep.subr.mxu0 0.0
  %99 = vmatpush1.msra.mxu0 %v50
  %100 = vmatprep.subr.mxu0 0.0
  %101 = vmatpush1.msra.mxu0 %v51
  %102 = vmatprep.subr.mxu0 0.0
  %103 = vmatpush1.msra.mxu0 %v52
  %104 = vmatprep.subr.mxu0 0.0
  %105 = vmatpush1.msra.mxu0 %v53
  %106 = vmatprep.subr.mxu0 0.0
  %107 = vmatpush1.msra.mxu0 %v54
  %108 = vmatprep.subr.mxu0 0.0
  %109 = vmatpush1.msra.mxu0 %v55
  %110 = vmatprep.subr.mxu0 0.0
  %111 = vmatpush1.msra.mxu0 %v56
  %112 = vmatprep.subr.mxu0 0.0
  %113 = vmatpush1.msra.mxu0 %v57
  %114 = vmatprep.subr.mxu0 0.0
  %115 = vmatpush1.msra.mxu0 %v58
  %116 = vmatprep.subr.mxu0 0.0
  %117 = vmatpush1.msra.mxu0 0.0
  %118 = vmatprep.subr.mxu0 0.0
  %119 = vmatpush1.msra.mxu0 0.0
  %120 = vmatprep.subr.mxu0 0.0
  %121 = vmatpush1.msra.mxu0 0.0
  %122 = vmatprep.subr.mxu0 0.0
  %123 = vmatpush1.msra.mxu0 0.0
  %124 = vmatprep.subr.mxu0 0.0
  %125 = vmatpush1.msra.mxu0 0.0
  %126 = vmatprep.subr.mxu0 0.0
  %127 = vmatpush1.msra.mxu0 0.0
  %128 = vmatprep.subr.mxu0 0.0
  %129 = vmatpush1.msra.mxu0 0.0
  %130 = vmatprep.subr.mxu0 0.0
  %131 = vmatpush1.msra.mxu0 0.0
  %132 = vmatprep.subr.mxu0 0.0
  %133 = vmatpush1.msra.mxu0 0.0
  %134 = vmatprep.subr.mxu0 0.0
  %135 = vmatpush1.msra.mxu0 0.0
  %136 = vmatprep.subr.mxu0 0.0
  %137 = vmatpush1.msra.mxu0 0.0
  %138 = vmatprep.subr.mxu0 0.0
  %139 = vmatpush1.msra.mxu0 0.0
  %140 = vmatprep.subr.mxu0 0.0
  %141 = vmatpush1.msra.mxu0 0.0
  %142 = vmatprep.subr.mxu0 0.0
  %143 = vmatpush1.msra.mxu0 0.0
  %144 = vmatprep.subr.mxu0 0.0
  %145 = vmatpush1.msra.mxu0 0.0
  %146 = vmatprep.subr.mxu0 0.0
  %147 = vmatpush1.msra.mxu0 0.0
  %148 = vmatprep.subr.mxu0 0.0
  %149 = vmatpush1.msra.mxu0 0.0
  %150 = vmatprep.subr.mxu0 0.0
  %151 = vmatpush1.msra.mxu0 0.0
  %152 = vmatprep.subr.mxu0 0.0
  %153 = vmatpush1.msra.mxu0 0.0
  %154 = vmatprep.subr.mxu0 0.0
  %155 = vmatpush1.msra.mxu0 0.0
  %156 = vmatprep.subr.mxu0 0.0
  %157 = vmatpush1.msra.mxu0 0.0
  %158 = vmatprep.subr.mxu0 0.0
  %159 = vmatpush1.msra.mxu0 0.0
  %160 = vmatprep.subr.mxu0 0.0
  %161 = vmatpush1.msra.mxu0 0.0
  %162 = vmatprep.mubr.f32.mxu0 0.0
  %163 = vmatmul.mubr.f32.gmra.mrb[0].mxu0 %v93
  %v164 = vpop.f32.mrb[0].mxu0
  %v165 = vadd.f32 %v84, %v164
  %v166 = vpop.f32.mrb[0].mxu0
  %167 = vmatprep.mubr.f32.mxu0 0.0
  %168 = vmatmul.mubr.f32.gmra.mrb[0].mxu0 %v96
  %v169 = vpop.f32.mrb[0].mxu0
  %v170 = vadd.f32 %v89, %v169
  %v171 = vpop.f32.mrb[0].mxu0
  %172 = vdwg.mxu0
  %v173 = vmax.f32 %v165, 0.0
  %v174 = vmax.f32 %v170, 0.0
  %v175 = vld [vmem:[%s4] sm:$0xff]
  %v176 = vld [vmem:[%s4 + $0x8] sm:$0xff]
  %v177 = vld [vmem:[%s5] sm:$0xff]
  %v178 = vld [vmem:[%s5 + $0x8] sm:$0xff]
  %180 = vset.pattern.permute.xlu0 0
  %181 = vperm.xlu0 %180, %v177
  %v182 = vpop.permute.xlu0 %181
  %185 = vset.pattern.permute.xlu0 0
  %186 = vperm.xlu0 %185, %v178
  %v187 = vpop.permute.xlu0 %186
  %vm189 = vcmask 64512
  %v191 = vsel %vm189, %v175, 0
  %v194 = vsel %vm189, %v176, 0
  %196 = vmatprep.subr.mxu0 0.0
  %197 = vmatpush1.msra.mxu0 %v54
  %198 = vmatprep.subr.mxu0 0.0
  %199 = vmatpush1.msra.mxu0 0.0
  %200 = vmatprep.subr.mxu0 0.0
  %201 = vmatpush1.msra.mxu0 0.0
  %202 = vmatprep.subr.mxu0 0.0
  %203 = vmatpush1.msra.mxu0 0.0
  %204 = vmatprep.subr.mxu0 0.0
  %205 = vmatpush1.msra.mxu0 0.0
  %206 = vmatprep.subr.mxu0 0.0
  %207 = vmatpush1.msra.mxu0 0.0
  %208 = vmatprep.subr.mxu0 0.0
  %209 = vmatpush1.msra.mxu0 0.0
  %210 = vmatprep.subr.mxu0 0.0
  %211 = vmatpush1.msra.mxu0 0.0
  %212 = vmatprep.subr.mxu0 0.0
  %213 = vmatpush1.msra.mxu0 0.0
  %214 = vmatprep.subr.mxu0 0.0
  %215 = vmatpush1.msra.mxu0 0.0
  %216 = vmatprep.subr.mxu0 0.0
  %217 = vmatpush1.msra.mxu0 0.0
  %218 = vmatprep.subr.mxu0 0.0
  %219 = vmatpush1.msra.mxu0 0.0
  %220 = vmatprep.subr.mxu0 0.0
  %221 = vmatpush1.msra.mxu0 0.0
  %222 = vmatprep.subr.mxu0 0.0
  %223 = vmatpush1.msra.mxu0 0.0
  %224 = vmatprep.subr.mxu0 0.0
  %225 = vmatpush1.msra.mxu0 0.0
  %226 = vmatprep.subr.mxu0 0.0
  %227 = vmatpush1.msra.mxu0 0.0
  %228 = vmatprep.subr.mxu0 0.0
  %229 = vmatpush1.msra.mxu0 0.0
  %230 = vmatprep.subr.mxu0 0.0
  %231 = vmatpush1.msra.mxu0 0.0
  %232 = vmatprep.subr.mxu0 0.0
  %233 = vmatpush1.msra.mxu0 0.0
  %234 = vmatprep.subr.mxu0 0.0
  %235 = vmatpush1.msra.mxu0 0.0
  %236 = vmatprep.subr.mxu0 0.0
  %237 = vmatpush1.msra.mxu0 0.0
  %238 = vmatprep.subr.mxu0 0.0
  %239 = vmatpush1.msra.mxu0 0.0
  %240 = vmatprep.subr.mxu0 0.0
  %241 = vmatpush1.msra.mxu0 0.0
  %242 = vmatprep.subr.mxu0 0.0
  %243 = vmatpush1.msra.mxu0 0.0
  %244 = vmatprep.subr.mxu0 0.0
  %245 = vmatpush1.msra.mxu0 0.0
  %246 = vmatprep.subr.mxu0 0.0
  %247 = vmatpush1.msra.mxu0 0.0
  %248 = vmatprep.subr.mxu0 0.0
  %249 = vmatpush1.msra.mxu0 0.0
  %250 = vmatprep.subr.mxu0 0.0
  %251 = vmatpush1.msra.mxu0 0.0
  %252 = vmatprep.subr.mxu0 0.0
  %253 = vmatpush1.msra.mxu0 0.0
  %254 = vmatprep.subr.mxu0 0.0
  %255 = vmatpush1.msra.mxu0 0.0
  %256 = vmatprep.subr.mxu0 0.0
  %257 = vmatpush1.msra.mxu0 0.0
  %258 = vmatprep.subr.mxu0 0.0
  %259 = vmatpush1.msra.mxu0 0.0
  %260 = vmatprep.mubr.f32.mxu0 0.0
  %261 = vmatmul.mubr.f32.gmra.mrb[0].mxu0 %v191
  %v262 = vpop.f32.mrb[0].mxu0
  %v263 = vadd.f32 %v182, %v262
  %v264 = vpop.f32.mrb[0].mxu0
  %265 = vmatprep.mubr.f32.mxu0 0.0
  %266 = vmatmul.mubr.f32.gmra.mrb[0].mxu0 %v194
  %v267 = vpop.f32.mrb[0].mxu0
  %v268 = vadd.f32 %v187, %v267
  %v269 = vpop.f32.mrb[0].mxu0
  %270 = vdwg.mxu0
  %v271 = vld [vmem:[%s6] sm:$0xff]
  %v272 = vld [vmem:[%s6 + $0x8] sm:$0xff]
  %v273 = vld [vmem:[%s6 + $0x10] sm:$0xff]
  %v274 = vld [vmem:[%s6 + $0x18] sm:$0xff]
  %277 = vrot.lane.b32.xlu0 %v173, 5
  %v278 = vpop.permute.xlu0 %277
  %279 = vrot.lane.b32.xlu0 %v174, 5
  %v280 = vpop.permute.xlu0 %279
  %vm283 = vcmask 39936
  %v284 = vsel %vm283, 0.0, %v278
  %v285 = vsel %vm283, 0.0, %v280
  %286 = vrot.lane.b32.xlu0 %v173, 4
  %v287 = vpop.permute.xlu0 %286
  %288 = vrot.lane.b32.xlu0 %v174, 4
  %v289 = vpop.permute.xlu0 %288
  %vm292 = vcmask 31744
  %v293 = vsel %vm292, 0.0, %v287
  %v294 = vsel %vm292, 0.0, %v289
  %295 = vrot.lane.b32.xlu0 %v173, 3
  %v296 = vpop.permute.xlu0 %295
  %297 = vrot.lane.b32.xlu0 %v174, 3
  %v298 = vpop.permute.xlu0 %297
  %vm301 = vcmask 23552
  %v302 = vsel %vm301, 0.0, %v296
  %v303 = vsel %vm301, 0.0, %v298
  %304 = vrot.lane.b32.xlu0 %v173, 1
  %v305 = vpop.permute.xlu0 %304
  %306 = vrot.lane.b32.xlu0 %v174, 1
  %v307 = vpop.permute.xlu0 %306
  %vm310 = vcmask 7168
  %v311 = vsel %vm310, 0.0, %v305
  %v312 = vsel %vm310, 0.0, %v307
  %313 = vrot.lane.b32.xlu0 %v173, 127
  %v314 = vpop.permute.xlu0 %313
  %315 = vrot.lane.b32.xlu0 %v174, 127
  %v316 = vpop.permute.xlu0 %315
  %vm319 = vcmask 252928
  %v320 = vsel %vm319, %v314, 0.0
  %v321 = vsel %vm319, %v316, 0.0
  %322 = vrot.lane.b32.xlu0 %v173, 125
  %v323 = vpop.permute.xlu0 %322
  %324 = vrot.lane.b32.xlu0 %v174, 125
  %v325 = vpop.permute.xlu0 %324
  %vm328 = vcmask 236544
  %v329 = vsel %vm328, %v323, 0.0
  %v330 = vsel %vm328, %v325, 0.0
  %331 = vrot.lane.b32.xlu0 %v173, 124
  %v332 = vpop.permute.xlu0 %331
  %333 = vrot.lane.b32.xlu0 %v174, 124
  %v334 = vpop.permute.xlu0 %333
  %vm337 = vcmask 228352
  %v338 = vsel %vm337, %v332, 0.0
  %v339 = vsel %vm337, %v334, 0.0
  %340 = vrot.lane.b32.xlu0 %v173, 123
  %v341 = vpop.permute.xlu0 %340
  %342 = vrot.lane.b32.xlu0 %v174, 123
  %v343 = vpop.permute.xlu0 %342
  %vm346 = vcmask 220160
  %v347 = vsel %vm346, %v341, 0.0
  %v348 = vsel %vm346, %v343, 0.0
  %v349 = vmul.f32 %v284, %v59
  %v350 = vmul.f32 %v285, %v60
  %v351 = vmul.f32 %v293, %v61
  %v352 = vmul.f32 %v294, %v62
  %v353 = vmul.f32 %v302, %v63
  %v354 = vmul.f32 %v303, %v64
  %v355 = vmul.f32 %v311, %v65
  %v356 = vmul.f32 %v312, %v66
  %v357 = vmul.f32 %v173, %v67
  %v358 = vmul.f32 %v174, %v68
  %v359 = vmul.f32 %v320, %v69
  %v360 = vmul.f32 %v321, %v70
  %v361 = vmul.f32 %v329, %v71
  %v362 = vmul.f32 %v330, %v72
  %v363 = vmul.f32 %v338, %v73
  %v364 = vmul.f32 %v339, %v74
  %v365 = vmul.f32 %v347, %v75
  %v366 = vmul.f32 %v348, %v76
  %v367 = vld [vmem:[%s7] sm:$0xff]
  %v368 = vld [vmem:[%s7 + $0x8] sm:$0xff]
  %370 = vset.pattern.permute.xlu0 0
  %371 = vperm.xlu0 %370, %v367
  %v372 = vpop.permute.xlu0 %371
  %375 = vset.pattern.permute.xlu0 0
  %376 = vperm.xlu0 %375, %v368
  %v377 = vpop.permute.xlu0 %376
  %vm379 = vcmask 130048
  %v381 = vsel %vm379, %v272, 0
  %v384 = vsel %vm379, %v274, 0
  %386 = vmatprep.subr.mxu0 0.0
  %387 = vmatpush1.msra.mxu0 %v349
  %388 = vmatprep.subr.mxu0 0.0
  %389 = vmatpush1.msra.mxu0 %v350
  %390 = vmatprep.subr.mxu0 0.0
  %391 = vmatpush1.msra.mxu0 %v351
  %392 = vmatprep.subr.mxu0 0.0
  %393 = vmatpush1.msra.mxu0 %v352
  %394 = vmatprep.subr.mxu0 0.0
  %395 = vmatpush1.msra.mxu0 %v353
  %396 = vmatprep.subr.mxu0 0.0
  %397 = vmatpush1.msra.mxu0 %v354
  %398 = vmatprep.subr.mxu0 0.0
  %399 = vmatpush1.msra.mxu0 %v355
  %400 = vmatprep.subr.mxu0 0.0
  %401 = vmatpush1.msra.mxu0 %v356
  %402 = vmatprep.subr.mxu0 0.0
  %403 = vmatpush1.msra.mxu0 %v357
  %404 = vmatprep.subr.mxu0 0.0
  %405 = vmatpush1.msra.mxu0 %v358
  %406 = vmatprep.subr.mxu0 0.0
  %407 = vmatpush1.msra.mxu0 %v359
  %408 = vmatprep.subr.mxu0 0.0
  %409 = vmatpush1.msra.mxu0 %v360
  %410 = vmatprep.subr.mxu0 0.0
  %411 = vmatpush1.msra.mxu0 %v361
  %412 = vmatprep.subr.mxu0 0.0
  %413 = vmatpush1.msra.mxu0 %v362
  %414 = vmatprep.subr.mxu0 0.0
  %415 = vmatpush1.msra.mxu0 %v363
  %416 = vmatprep.subr.mxu0 0.0
  %417 = vmatpush1.msra.mxu0 %v364
  %418 = vmatprep.subr.mxu0 0.0
  %419 = vmatpush1.msra.mxu0 %v365
  %420 = vmatprep.subr.mxu0 0.0
  %421 = vmatpush1.msra.mxu0 %v366
  %422 = vmatprep.subr.mxu0 0.0
  %423 = vmatpush1.msra.mxu0 0.0
  %424 = vmatprep.subr.mxu0 0.0
  %425 = vmatpush1.msra.mxu0 0.0
  %426 = vmatprep.subr.mxu0 0.0
  %427 = vmatpush1.msra.mxu0 0.0
  %428 = vmatprep.subr.mxu0 0.0
  %429 = vmatpush1.msra.mxu0 0.0
  %430 = vmatprep.subr.mxu0 0.0
  %431 = vmatpush1.msra.mxu0 0.0
  %432 = vmatprep.subr.mxu0 0.0
  %433 = vmatpush1.msra.mxu0 0.0
  %434 = vmatprep.subr.mxu0 0.0
  %435 = vmatpush1.msra.mxu0 0.0
  %436 = vmatprep.subr.mxu0 0.0
  %437 = vmatpush1.msra.mxu0 0.0
  %438 = vmatprep.subr.mxu0 0.0
  %439 = vmatpush1.msra.mxu0 0.0
  %440 = vmatprep.subr.mxu0 0.0
  %441 = vmatpush1.msra.mxu0 0.0
  %442 = vmatprep.subr.mxu0 0.0
  %443 = vmatpush1.msra.mxu0 0.0
  %444 = vmatprep.subr.mxu0 0.0
  %445 = vmatpush1.msra.mxu0 0.0
  %446 = vmatprep.subr.mxu0 0.0
  %447 = vmatpush1.msra.mxu0 0.0
  %448 = vmatprep.subr.mxu0 0.0
  %449 = vmatpush1.msra.mxu0 0.0
  %450 = vmatprep.mubr.f32.mxu0 %v381
  %451 = vmatmul.mubr.f32.gmra.mrb[0].mxu0 %v271
  %v452 = vpop.f32.mrb[0].mxu0
  %v453 = vadd.f32 %v372, %v452
  %v454 = vpop.f32.mrb[0].mxu0
  %455 = vmatprep.mubr.f32.mxu0 %v384
  %456 = vmatmul.mubr.f32.gmra.mrb[0].mxu0 %v273
  %v457 = vpop.f32.mrb[0].mxu0
  %v458 = vadd.f32 %v377, %v457
  %v459 = vpop.f32.mrb[0].mxu0
  %460 = vdwg.mxu0
  %v461 = vadd.f32 %v453, %v263
  %v462 = vadd.f32 %v458, %v268
  %v463 = vmax.f32 %v461, 0.0
  %v464 = vmax.f32 %v462, 0.0
  %v465 = vld [vmem:[%s8] sm:$0xff]
  %v466 = vld [vmem:[%s8 + $0x8] sm:$0xff]
  %v467 = vld [vmem:[%s8 + $0x10] sm:$0xff]
  %v468 = vld [vmem:[%s8 + $0x18] sm:$0xff]
  %471 = vrot.lane.b32.xlu0 %v463, 5
  %v472 = vpop.permute.xlu0 %471
  %473 = vrot.lane.b32.xlu0 %v464, 5
  %v474 = vpop.permute.xlu0 %473
  %v477 = vsel %vm283, 0.0, %v472
  %v478 = vsel %vm283, 0.0, %v474
  %479 = vrot.lane.b32.xlu0 %v463, 4
  %v480 = vpop.permute.xlu0 %479
  %481 = vrot.lane.b32.xlu0 %v464, 4
  %v482 = vpop.permute.xlu0 %481
  %v485 = vsel %vm292, 0.0, %v480
  %v486 = vsel %vm292, 0.0, %v482
  %487 = vrot.lane.b32.xlu0 %v463, 3
  %v488 = vpop.permute.xlu0 %487
  %489 = vrot.lane.b32.xlu0 %v464, 3
  %v490 = vpop.permute.xlu0 %489
  %v493 = vsel %vm301, 0.0, %v488
  %v494 = vsel %vm301, 0.0, %v490
  %495 = vrot.lane.b32.xlu0 %v463, 1
  %v496 = vpop.permute.xlu0 %495
  %497 = vrot.lane.b32.xlu0 %v464, 1
  %v498 = vpop.permute.xlu0 %497
  %v501 = vsel %vm310, 0.0, %v496
  %v502 = vsel %vm310, 0.0, %v498
  %503 = vrot.lane.b32.xlu0 %v463, 127
  %v504 = vpop.permute.xlu0 %503
  %505 = vrot.lane.b32.xlu0 %v464, 127
  %v506 = vpop.permute.xlu0 %505
  %v509 = vsel %vm319, %v504, 0.0
  %v510 = vsel %vm319, %v506, 0.0
  %511 = vrot.lane.b32.xlu0 %v463, 125
  %v512 = vpop.permute.xlu0 %511
  %513 = vrot.lane.b32.xlu0 %v464, 125
  %v514 = vpop.permute.xlu0 %513
  %v517 = vsel %vm328, %v512, 0.0
  %v518 = vsel %vm328, %v514, 0.0
  %519 = vrot.lane.b32.xlu0 %v463, 124
  %v520 = vpop.permute.xlu0 %519
  %521 = vrot.lane.b32.xlu0 %v464, 124
  %v522 = vpop.permute.xlu0 %521
  %v525 = vsel %vm337, %v520, 0.0
  %v526 = vsel %vm337, %v522, 0.0
  %527 = vrot.lane.b32.xlu0 %v463, 123
  %v528 = vpop.permute.xlu0 %527
  %529 = vrot.lane.b32.xlu0 %v464, 123
  %v530 = vpop.permute.xlu0 %529
  %v533 = vsel %vm346, %v528, 0.0
  %v534 = vsel %vm346, %v530, 0.0
  %v535 = vmul.f32 %v477, %v59
  %v536 = vmul.f32 %v478, %v60
  %v537 = vmul.f32 %v485, %v61
  %v538 = vmul.f32 %v486, %v62
  %v539 = vmul.f32 %v493, %v63
  %v540 = vmul.f32 %v494, %v64
  %v541 = vmul.f32 %v501, %v65
  %v542 = vmul.f32 %v502, %v66
  %v543 = vmul.f32 %v463, %v67
  %v544 = vmul.f32 %v464, %v68
  %v545 = vmul.f32 %v509, %v69
  %v546 = vmul.f32 %v510, %v70
  %v547 = vmul.f32 %v517, %v71
  %v548 = vmul.f32 %v518, %v72
  %v549 = vmul.f32 %v525, %v73
  %v550 = vmul.f32 %v526, %v74
  %v551 = vmul.f32 %v533, %v75
  %v552 = vmul.f32 %v534, %v76
  %v553 = vld [vmem:[%s9] sm:$0xff]
  %v554 = vld [vmem:[%s9 + $0x8] sm:$0xff]
  %556 = vset.pattern.permute.xlu0 0
  %557 = vperm.xlu0 %556, %v553
  %v558 = vpop.permute.xlu0 %557
  %561 = vset.pattern.permute.xlu0 0
  %562 = vperm.xlu0 %561, %v554
  %v563 = vpop.permute.xlu0 %562
  %v566 = vsel %vm379, %v466, 0
  %v569 = vsel %vm379, %v468, 0
  %571 = vmatprep.subr.mxu0 0.0
  %572 = vmatpush1.msra.mxu0 %v535
  %573 = vmatprep.subr.mxu0 0.0
  %574 = vmatpush1.msra.mxu0 %v536
  %575 = vmatprep.subr.mxu0 0.0
  %576 = vmatpush1.msra.mxu0 %v537
  %577 = vmatprep.subr.mxu0 0.0
  %578 = vmatpush1.msra.mxu0 %v538
  %579 = vmatprep.subr.mxu0 0.0
  %580 = vmatpush1.msra.mxu0 %v539
  %581 = vmatprep.subr.mxu0 0.0
  %582 = vmatpush1.msra.mxu0 %v540
  %583 = vmatprep.subr.mxu0 0.0
  %584 = vmatpush1.msra.mxu0 %v541
  %585 = vmatprep.subr.mxu0 0.0
  %586 = vmatpush1.msra.mxu0 %v542
  %587 = vmatprep.subr.mxu0 0.0
  %588 = vmatpush1.msra.mxu0 %v543
  %589 = vmatprep.subr.mxu0 0.0
  %590 = vmatpush1.msra.mxu0 %v544
  %591 = vmatprep.subr.mxu0 0.0
  %592 = vmatpush1.msra.mxu0 %v545
  %593 = vmatprep.subr.mxu0 0.0
  %594 = vmatpush1.msra.mxu0 %v546
  %595 = vmatprep.subr.mxu0 0.0
  %596 = vmatpush1.msra.mxu0 %v547
  %597 = vmatprep.subr.mxu0 0.0
  %598 = vmatpush1.msra.mxu0 %v548
  %599 = vmatprep.subr.mxu0 0.0
  %600 = vmatpush1.msra.mxu0 %v549
  %601 = vmatprep.subr.mxu0 0.0
  %602 = vmatpush1.msra.mxu0 %v550
  %603 = vmatprep.subr.mxu0 0.0
  %604 = vmatpush1.msra.mxu0 %v551
  %605 = vmatprep.subr.mxu0 0.0
  %606 = vmatpush1.msra.mxu0 %v552
  %607 = vmatprep.subr.mxu0 0.0
  %608 = vmatpush1.msra.mxu0 0.0
  %609 = vmatprep.subr.mxu0 0.0
  %610 = vmatpush1.msra.mxu0 0.0
  %611 = vmatprep.subr.mxu0 0.0
  %612 = vmatpush1.msra.mxu0 0.0
  %613 = vmatprep.subr.mxu0 0.0
  %614 = vmatpush1.msra.mxu0 0.0
  %615 = vmatprep.subr.mxu0 0.0
  %616 = vmatpush1.msra.mxu0 0.0
  %617 = vmatprep.subr.mxu0 0.0
  %618 = vmatpush1.msra.mxu0 0.0
  %619 = vmatprep.subr.mxu0 0.0
  %620 = vmatpush1.msra.mxu0 0.0
  %621 = vmatprep.subr.mxu0 0.0
  %622 = vmatpush1.msra.mxu0 0.0
  %623 = vmatprep.subr.mxu0 0.0
  %624 = vmatpush1.msra.mxu0 0.0
  %625 = vmatprep.subr.mxu0 0.0
  %626 = vmatpush1.msra.mxu0 0.0
  %627 = vmatprep.subr.mxu0 0.0
  %628 = vmatpush1.msra.mxu0 0.0
  %629 = vmatprep.subr.mxu0 0.0
  %630 = vmatpush1.msra.mxu0 0.0
  %631 = vmatprep.subr.mxu0 0.0
  %632 = vmatpush1.msra.mxu0 0.0
  %633 = vmatprep.subr.mxu0 0.0
  %634 = vmatpush1.msra.mxu0 0.0
  %635 = vmatprep.mubr.f32.mxu0 %v566
  %636 = vmatmul.mubr.f32.gmra.mrb[0].mxu0 %v465
  %v637 = vpop.f32.mrb[0].mxu0
  %v638 = vadd.f32 %v558, %v637
  %v639 = vpop.f32.mrb[0].mxu0
  %640 = vmatprep.mubr.f32.mxu0 %v569
  %641 = vmatmul.mubr.f32.gmra.mrb[0].mxu0 %v467
  %v642 = vpop.f32.mrb[0].mxu0
  %v643 = vadd.f32 %v563, %v642
  %v644 = vpop.f32.mrb[0].mxu0
  %645 = vdwg.mxu0
  %v646 = vmax.f32 %v638, 0.0
  %v647 = vmax.f32 %v643, 0.0
  %v648 = vld [vmem:[%s10] sm:$0xff]
  %v649 = vld [vmem:[%s10 + $0x8] sm:$0xff]
  %v650 = vld [vmem:[%s10 + $0x10] sm:$0xff]
  %v651 = vld [vmem:[%s10 + $0x18] sm:$0xff]
  %654 = vrot.lane.b32.xlu0 %v646, 5
  %v655 = vpop.permute.xlu0 %654
  %656 = vrot.lane.b32.xlu0 %v647, 5
  %v657 = vpop.permute.xlu0 %656
  %v660 = vsel %vm283, 0.0, %v655
  %v661 = vsel %vm283, 0.0, %v657
  %662 = vrot.lane.b32.xlu0 %v646, 4
  %v663 = vpop.permute.xlu0 %662
  %664 = vrot.lane.b32.xlu0 %v647, 4
  %v665 = vpop.permute.xlu0 %664
  %v668 = vsel %vm292, 0.0, %v663
  %v669 = vsel %vm292, 0.0, %v665
  %670 = vrot.lane.b32.xlu0 %v646, 3
  %v671 = vpop.permute.xlu0 %670
  %672 = vrot.lane.b32.xlu0 %v647, 3
  %v673 = vpop.permute.xlu0 %672
  %v676 = vsel %vm301, 0.0, %v671
  %v677 = vsel %vm301, 0.0, %v673
  %678 = vrot.lane.b32.xlu0 %v646, 1
  %v679 = vpop.permute.xlu0 %678
  %680 = vrot.lane.b32.xlu0 %v647, 1
  %v681 = vpop.permute.xlu0 %680
  %v684 = vsel %vm310, 0.0, %v679
  %v685 = vsel %vm310, 0.0, %v681
  %686 = vrot.lane.b32.xlu0 %v646, 127
  %v687 = vpop.permute.xlu0 %686
  %688 = vrot.lane.b32.xlu0 %v647, 127
  %v689 = vpop.permute.xlu0 %688
  %v692 = vsel %vm319, %v687, 0.0
  %v693 = vsel %vm319, %v689, 0.0
  %694 = vrot.lane.b32.xlu0 %v646, 125
  %v695 = vpop.permute.xlu0 %694
  %696 = vrot.lane.b32.xlu0 %v647, 125
  %v697 = vpop.permute.xlu0 %696
  %v700 = vsel %vm328, %v695, 0.0
  %v701 = vsel %vm328, %v697, 0.0
  %702 = vrot.lane.b32.xlu0 %v646, 124
  %v703 = vpop.permute.xlu0 %702
  %704 = vrot.lane.b32.xlu0 %v647, 124
  %v705 = vpop.permute.xlu0 %704
  %v708 = vsel %vm337, %v703, 0.0
  %v709 = vsel %vm337, %v705, 0.0
  %710 = vrot.lane.b32.xlu0 %v646, 123
  %v711 = vpop.permute.xlu0 %710
  %712 = vrot.lane.b32.xlu0 %v647, 123
  %v713 = vpop.permute.xlu0 %712
  %v716 = vsel %vm346, %v711, 0.0
  %v717 = vsel %vm346, %v713, 0.0
  %v718 = vmul.f32 %v660, %v59
  %v719 = vmul.f32 %v661, %v60
  %v720 = vmul.f32 %v668, %v61
  %v721 = vmul.f32 %v669, %v62
  %v722 = vmul.f32 %v676, %v63
  %v723 = vmul.f32 %v677, %v64
  %v724 = vmul.f32 %v684, %v65
  %v725 = vmul.f32 %v685, %v66
  %v726 = vmul.f32 %v646, %v67
  %v727 = vmul.f32 %v647, %v68
  %v728 = vmul.f32 %v692, %v69
  %v729 = vmul.f32 %v693, %v70
  %v730 = vmul.f32 %v700, %v71
  %v731 = vmul.f32 %v701, %v72
  %v732 = vmul.f32 %v708, %v73
  %v733 = vmul.f32 %v709, %v74
  %v734 = vmul.f32 %v716, %v75
  %v735 = vmul.f32 %v717, %v76
  %v736 = vld [vmem:[%s11] sm:$0xff]
  %v737 = vld [vmem:[%s11 + $0x8] sm:$0xff]
  %739 = vset.pattern.permute.xlu0 0
  %740 = vperm.xlu0 %739, %v736
  %v741 = vpop.permute.xlu0 %740
  %744 = vset.pattern.permute.xlu0 0
  %745 = vperm.xlu0 %744, %v737
  %v746 = vpop.permute.xlu0 %745
  %v749 = vsel %vm379, %v649, 0
  %v752 = vsel %vm379, %v651, 0
  %754 = vmatprep.subr.mxu0 0.0
  %755 = vmatpush1.msra.mxu0 %v718
  %756 = vmatprep.subr.mxu0 0.0
  %757 = vmatpush1.msra.mxu0 %v719
  %758 = vmatprep.subr.mxu0 0.0
  %759 = vmatpush1.msra.mxu0 %v720
  %760 = vmatprep.subr.mxu0 0.0
  %761 = vmatpush1.msra.mxu0 %v721
  %762 = vmatprep.subr.mxu0 0.0
  %763 = vmatpush1.msra.mxu0 %v722
  %764 = vmatprep.subr.mxu0 0.0
  %765 = vmatpush1.msra.mxu0 %v723
  %766 = vmatprep.subr.mxu0 0.0
  %767 = vmatpush1.msra.mxu0 %v724
  %768 = vmatprep.subr.mxu0 0.0
  %769 = vmatpush1.msra.mxu0 %v725
  %770 = vmatprep.subr.mxu0 0.0
  %771 = vmatpush1.msra.mxu0 %v726
  %772 = vmatprep.subr.mxu0 0.0
  %773 = vmatpush1.msra.mxu0 %v727
  %774 = vmatprep.subr.mxu0 0.0
  %775 = vmatpush1.msra.mxu0 %v728
  %776 = vmatprep.subr.mxu0 0.0
  %777 = vmatpush1.msra.mxu0 %v729
  %778 = vmatprep.subr.mxu0 0.0
  %779 = vmatpush1.msra.mxu0 %v730
  %780 = vmatprep.subr.mxu0 0.0
  %781 = vmatpush1.msra.mxu0 %v731
  %782 = vmatprep.subr.mxu0 0.0
  %783 = vmatpush1.msra.mxu0 %v732
  %784 = vmatprep.subr.mxu0 0.0
  %785 = vmatpush1.msra.mxu0 %v733
  %786 = vmatprep.subr.mxu0 0.0
  %787 = vmatpush1.msra.mxu0 %v734
  %788 = vmatprep.subr.mxu0 0.0
  %789 = vmatpush1.msra.mxu0 %v735
  %790 = vmatprep.subr.mxu0 0.0
  %791 = vmatpush1.msra.mxu0 0.0
  %792 = vmatprep.subr.mxu0 0.0
  %793 = vmatpush1.msra.mxu0 0.0
  %794 = vmatprep.subr.mxu0 0.0
  %795 = vmatpush1.msra.mxu0 0.0
  %796 = vmatprep.subr.mxu0 0.0
  %797 = vmatpush1.msra.mxu0 0.0
  %798 = vmatprep.subr.mxu0 0.0
  %799 = vmatpush1.msra.mxu0 0.0
  %800 = vmatprep.subr.mxu0 0.0
  %801 = vmatpush1.msra.mxu0 0.0
  %802 = vmatprep.subr.mxu0 0.0
  %803 = vmatpush1.msra.mxu0 0.0
  %804 = vmatprep.subr.mxu0 0.0
  %805 = vmatpush1.msra.mxu0 0.0
  %806 = vmatprep.subr.mxu0 0.0
  %807 = vmatpush1.msra.mxu0 0.0
  %808 = vmatprep.subr.mxu0 0.0
  %809 = vmatpush1.msra.mxu0 0.0
  %810 = vmatprep.subr.mxu0 0.0
  %811 = vmatpush1.msra.mxu0 0.0
  %812 = vmatprep.subr.mxu0 0.0
  %813 = vmatpush1.msra.mxu0 0.0
  %814 = vmatprep.subr.mxu0 0.0
  %815 = vmatpush1.msra.mxu0 0.0
  %816 = vmatprep.subr.mxu0 0.0
  %817 = vmatpush1.msra.mxu0 0.0
  %818 = vmatprep.mubr.f32.mxu0 %v749
  %819 = vmatmul.mubr.f32.gmra.mrb[0].mxu0 %v648
  %v820 = vpop.f32.mrb[0].mxu0
  %v821 = vadd.f32 %v741, %v820
  %v822 = vpop.f32.mrb[0].mxu0
  %823 = vmatprep.mubr.f32.mxu0 %v752
  %824 = vmatmul.mubr.f32.gmra.mrb[0].mxu0 %v650
  %v825 = vpop.f32.mrb[0].mxu0
  %v826 = vadd.f32 %v746, %v825
  %v827 = vpop.f32.mrb[0].mxu0
  %828 = vdwg.mxu0
  %v829 = vadd.f32 %v821, %v463
  %v830 = vadd.f32 %v826, %v464
  %v831 = vmax.f32 %v829, 0.0
  %v832 = vmax.f32 %v830, 0.0
  %v833 = vpack.c.bf16 %v832, %v831
  %v835 = vunpack.c.l.b16 %v833
  %v836 = vunpack.c.h.b16 %v833
  %v837 = vpack.c.b16 %v835, %v835
  %v838 = vpack.c.b16 %v836, %v836
  %vm841 = vcmask 257024
  %842 = vst.msk [vmem:[%s12] sm:$0xf] %vm841, %v837
  %843 = vst.msk [vmem:[%s12 + $0x4] sm:$0xf] %vm841, %v838
  // Predicated region
  $region50: #{encode_uv_forward.9} parent=0 // pred_check
    _
  $region51: #{encode_uv_forward.9} parent=0 // pred_check_branch
    %845 = sbr.rel (0) target = $region53
  $region52: #{encode_uv_forward.9} parent=0 // pred_region
    _
  $region53: #{encode_uv_forward.9} parent=0 // pred_fallthru
    _
  // Predicated region
  $region54: #{encode_uv_forward.9} parent=0 // pred_check
    _
  $region55: #{encode_uv_forward.9} parent=0 // pred_check_branch
    %847 = sbr.rel (0) target = $region57
  $region56: #{encode_uv_forward.9} parent=0 // pred_region
    _
  $region57: #{encode_uv_forward.9} parent=0 // pred_fallthru
    _

// kernel: encode_uv_forward.10
$region0: #{encode_uv_forward.10}
  #allocation0 [shape = 'u32[]', space=smem, size = 0x4, offset = 0x4, fixed_abs, tag = 'smem constant byte address 0x4 - core index']
  #allocation1 [shape = 'u32[144,128]{1,0:T(1,128)}', space=vmem, size = 0x12000, scoped, tag = 'internal scratch']
  %s0 = inlined_call_operand.vmem [shape: bf16[144,8], index: 0, kind: input, shape index: {}]
  %s1 = inlined_call_operand.vmem [shape: f32[288,8], index: 1, kind: input, shape index: {}]
  %s2 = inlined_call_operand.vmem [shape: f32[32,144], index: 2, kind: input, shape index: {}]
  %s3 = inlined_call_operand.vmem [shape: f32[32,1], index: 3, kind: input, shape index: {}]
  %s4 = inlined_call_operand.vmem [shape: f32[32,16], index: 4, kind: input, shape index: {}]
  %s5 = inlined_call_operand.vmem [shape: f32[32,1], index: 5, kind: input, shape index: {}]
  %s6 = inlined_call_operand.vmem [shape: f32[32,288], index: 6, kind: input, shape index: {}]
  %s7 = inlined_call_operand.vmem [shape: f32[32,1], index: 7, kind: input, shape index: {}]
  %s8 = inlined_call_operand.vmem [shape: f32[32,288], index: 8, kind: input, shape index: {}]
  %s9 = inlined_call_operand.vmem [shape: f32[32,1], index: 9, kind: input, shape index: {}]
  %s10 = inlined_call_operand.vmem [shape: f32[32,288], index: 10, kind: input, shape index: {}]
  %s11 = inlined_call_operand.vmem [shape: f32[32,1], index: 11, kind: input, shape index: {}]
  %s12 = inlined_call_operand.vmem [shape: bf16[32,8], index: 12, kind: output, shape index: {}]
  %s13 = sld [smem:[#allocation0]]
  $region58: #{encode_uv_forward.10} parent=0
    _
  %s15 = ssub.s32 1, %s13
  %s16 = scalar_select 0, %s15, %s13
  // Predicated region
  $region2: #{encode_uv_forward.10} parent=0 // pred_check
    _
  $region3: #{encode_uv_forward.10} parent=0 // pred_check_branch
    %18 = sbr.rel (0) target = $region5
  $region4: #{encode_uv_forward.10} parent=0 // pred_region
    _
  $region5: #{encode_uv_forward.10} parent=0 // pred_fallthru
    _
  // Predicated region
  $region6: #{encode_uv_forward.10} parent=0 // pred_check
    _
  $region7: #{encode_uv_forward.10} parent=0 // pred_check_branch
    %20 = sbr.rel (0) target = $region9
  $region8: #{encode_uv_forward.10} parent=0 // pred_region
    _
  $region9: #{encode_uv_forward.10} parent=0 // pred_fallthru
    _
  // Predicated region
  $region10: #{encode_uv_forward.10} parent=0 // pred_check
    _
  $region11: #{encode_uv_forward.10} parent=0 // pred_check_branch
    %22 = sbr.rel (0) target = $region13
  $region12: #{encode_uv_forward.10} parent=0 // pred_region
    _
  $region13: #{encode_uv_forward.10} parent=0 // pred_fallthru
    _
  // Predicated region
  $region14: #{encode_uv_forward.10} parent=0 // pred_check
    _
  $region15: #{encode_uv_forward.10} parent=0 // pred_check_branch
    %24 = sbr.rel (0) target = $region17
  $region16: #{encode_uv_forward.10} parent=0 // pred_region
    _
  $region17: #{encode_uv_forward.10} parent=0 // pred_fallthru
    _
  // Predicated region
  $region18: #{encode_uv_forward.10} parent=0 // pred_check
    _
  $region19: #{encode_uv_forward.10} parent=0 // pred_check_branch
    %26 = sbr.rel (0) target = $region21
  $region20: #{encode_uv_forward.10} parent=0 // pred_region
    _
  $region21: #{encode_uv_forward.10} parent=0 // pred_fallthru
    _
  // Predicated region
  $region22: #{encode_uv_forward.10} parent=0 // pred_check
    _
  $region23: #{encode_uv_forward.10} parent=0 // pred_check_branch
    %28 = sbr.rel (0) target = $region25
  $region24: #{encode_uv_forward.10} parent=0 // pred_region
    _
  $region25: #{encode_uv_forward.10} parent=0 // pred_fallthru
    _
  // Predicated region
  $region26: #{encode_uv_forward.10} parent=0 // pred_check
    _
  $region27: #{encode_uv_forward.10} parent=0 // pred_check_branch
    %30 = sbr.rel (0) target = $region29
  $region28: #{encode_uv_forward.10} parent=0 // pred_region
    _
  $region29: #{encode_uv_forward.10} parent=0 // pred_fallthru
    _
  // Predicated region
  $region30: #{encode_uv_forward.10} parent=0 // pred_check
    _
  $region31: #{encode_uv_forward.10} parent=0 // pred_check_branch
    %32 = sbr.rel (0) target = $region33
  $region32: #{encode_uv_forward.10} parent=0 // pred_region
    _
  $region33: #{encode_uv_forward.10} parent=0 // pred_fallthru
    _
  // Predicated region
  $region34: #{encode_uv_forward.10} parent=0 // pred_check
    _
  $region35: #{encode_uv_forward.10} parent=0 // pred_check_branch
    %34 = sbr.rel (0) target = $region37
  $region36: #{encode_uv_forward.10} parent=0 // pred_region
    _
  $region37: #{encode_uv_forward.10} parent=0 // pred_fallthru
    _
  // Predicated region
  $region38: #{encode_uv_forward.10} parent=0 // pred_check
    _
  $region39: #{encode_uv_forward.10} parent=0 // pred_check_branch
    %36 = sbr.rel (0) target = $region41
  $region40: #{encode_uv_forward.10} parent=0 // pred_region
    _
  $region41: #{encode_uv_forward.10} parent=0 // pred_fallthru
    _
  // Predicated region
  $region42: #{encode_uv_forward.10} parent=0 // pred_check
    _
  $region43: #{encode_uv_forward.10} parent=0 // pred_check_branch
    %38 = sbr.rel (0) target = $region45
  $region44: #{encode_uv_forward.10} parent=0 // pred_region
    _
  $region45: #{encode_uv_forward.10} parent=0 // pred_fallthru
    _
  // Predicated region
  $region46: #{encode_uv_forward.10} parent=0 // pred_check
    _
  $region47: #{encode_uv_forward.10} parent=0 // pred_check_branch
    %40 = sbr.rel (0) target = $region49
  $region48: #{encode_uv_forward.10} parent=0 // pred_region
    _
  $region49: #{encode_uv_forward.10} parent=0 // pred_fallthru
    _
  %v41 = vld [vmem:[%s0] sm:$0xf]
  %v42 = vld [vmem:[%s0 + $0x4] sm:$0xf]
  %v43 = vld [vmem:[%s0 + $0x8] sm:$0xf]
  %v44 = vld [vmem:[%s0 + $0xc] sm:$0xf]
  %v45 = vld [vmem:[%s0 + $0x10] sm:$0xf]
  %v46 = vld [vmem:[%s0 + $0x14] sm:$0xf]
  %v47 = vld [vmem:[%s0 + $0x18] sm:$0xf]
  %v48 = vld [vmem:[%s0 + $0x1c] sm:$0xf]
  %v49 = vld [vmem:[%s0 + $0x20] sm:$0xf]
  %v50 = vld [vmem:[%s0 + $0x24] sm:$0xf]
  %v51 = vld [vmem:[%s0 + $0x28] sm:$0xf]
  %v52 = vld [vmem:[%s0 + $0x2c] sm:$0xf]
  %v53 = vld [vmem:[%s0 + $0x30] sm:$0xf]
  %v54 = vld [vmem:[%s0 + $0x34] sm:$0xf]
  %v55 = vld [vmem:[%s0 + $0x38] sm:$0xf]
  %v56 = vld [vmem:[%s0 + $0x3c] sm:$0xf]
  %v57 = vld [vmem:[%s0 + $0x40] sm:$0xf]
  %v58 = vld [vmem:[%s0 + $0x44] sm:$0xf]
  %v59 = vunpack.c.l.bf16 %v41
  %v60 = vunpack.c.l.bf16 %v42
  %v61 = vunpack.c.l.bf16 %v43
  %v62 = vunpack.c.l.bf16 %v44
  %v63 = vunpack.c.l.bf16 %v45
  %v64 = vunpack.c.l.bf16 %v46
  %v65 = vunpack.c.l.bf16 %v47
  %v66 = vunpack.c.l.bf16 %v48
  %v67 = vunpack.c.l.bf16 %v49
  %v68 = vunpack.c.l.bf16 %v50
  %v69 = vunpack.c.l.bf16 %v51
  %v70 = vunpack.c.l.bf16 %v52
  %v71 = vunpack.c.l.bf16 %v53
  %v72 = vunpack.c.l.bf16 %v54
  %v73 = vunpack.c.l.bf16 %v55
  %v74 = vunpack.c.l.bf16 %v56
  %v75 = vunpack.c.l.bf16 %v57
  %v76 = vunpack.c.l.bf16 %v58
  %v77 = vld [vmem:[%s1] sm:$0xff]
  %v78 = vld [vmem:[%s1 + $0x8] sm:$0xff]
  %v79 = vld [vmem:[%s1 + $0x10] sm:$0xff]
  %v80 = vld [vmem:[%s1 + $0x18] sm:$0xff]
  %v81 = vld [vmem:[%s1 + $0x20] sm:$0xff]
  %v82 = vld [vmem:[%s1 + $0x28] sm:$0xff]
  %v83 = vld [vmem:[%s1 + $0x30] sm:$0xff]
  %v84 = vld [vmem:[%s1 + $0x38] sm:$0xff]
  %v85 = vld [vmem:[%s1 + $0x40] sm:$0xff]
  %v86 = vld [vmem:[%s1 + $0x48] sm:$0xff]
  %v87 = vld [vmem:[%s1 + $0x50] sm:$0xff]
  %v88 = vld [vmem:[%s1 + $0x58] sm:$0xff]
  %v89 = vld [vmem:[%s1 + $0x60] sm:$0xff]
  %v90 = vld [vmem:[%s1 + $0x68] sm:$0xff]
  %v91 = vld [vmem:[%s1 + $0x70] sm:$0xff]
  %v92 = vld [vmem:[%s1 + $0x78] sm:$0xff]
  %v93 = vld [vmem:[%s1 + $0x80] sm:$0xff]
  %v94 = vld [vmem:[%s1 + $0x88] sm:$0xff]
  %v95 = vld [vmem:[%s1 + $0x90] sm:$0xff]
  %v96 = vld [vmem:[%s1 + $0x98] sm:$0xff]
  %v97 = vld [vmem:[%s1 + $0xa0] sm:$0xff]
  %v98 = vld [vmem:[%s1 + $0xa8] sm:$0xff]
  %v99 = vld [vmem:[%s1 + $0xb0] sm:$0xff]
  %v100 = vld [vmem:[%s1 + $0xb8] sm:$0xff]
  %v101 = vld [vmem:[%s1 + $0xc0] sm:$0xff]
  %v102 = vld [vmem:[%s1 + $0xc8] sm:$0xff]
  %v103 = vld [vmem:[%s1 + $0xd0] sm:$0xff]
  %v104 = vld [vmem:[%s1 + $0xd8] sm:$0xff]
  %v105 = vld [vmem:[%s1 + $0xe0] sm:$0xff]
  %v106 = vld [vmem:[%s1 + $0xe8] sm:$0xff]
  %v107 = vld [vmem:[%s1 + $0xf0] sm:$0xff]
  %v108 = vld [vmem:[%s1 + $0xf8] sm:$0xff]
  %v109 = vld [vmem:[%s1 + $0x100] sm:$0xff]
  %v110 = vld [vmem:[%s1 + $0x108] sm:$0xff]
  %v111 = vld [vmem:[%s1 + $0x110] sm:$0xff]
  %v112 = vld [vmem:[%s1 + $0x118] sm:$0xff]
  %v113 = vld [vmem:[%s2] sm:$0xff]
  %v114 = vld [vmem:[%s2 + $0x8] sm:$0xff]
  %v115 = vld [vmem:[%s2 + $0x10] sm:$0xff]
  %v116 = vld [vmem:[%s2 + $0x18] sm:$0xff]
  %v117 = vld [vmem:[%s2 + $0x20] sm:$0xff]
  %v118 = vld [vmem:[%s2 + $0x28] sm:$0xff]
  %v119 = vld [vmem:[%s2 + $0x30] sm:$0xff]
  %v120 = vld [vmem:[%s2 + $0x38] sm:$0xff]
  %v121 = vld [vmem:[%s3] sm:$0xff]
  %v122 = vld [vmem:[%s3 + $0x8] sm:$0xff]
  %v123 = vld [vmem:[%s3 + $0x10] sm:$0xff]
  %v124 = vld [vmem:[%s3 + $0x18] sm:$0xff]
  %126 = vset.pattern.permute.xlu0 0
  %127 = vperm.xlu0 %126, %v121
  %v128 = vpop.permute.xlu0 %127
  %131 = vset.pattern.permute.xlu0 0
  %132 = vperm.xlu0 %131, %v122
  %v133 = vpop.permute.xlu0 %132
  %136 = vset.pattern.permute.xlu0 0
  %137 = vperm.xlu0 %136, %v123
  %v138 = vpop.permute.xlu0 %137
  %141 = vset.pattern.permute.xlu0 0
  %142 = vperm.xlu0 %141, %v124
  %v143 = vpop.permute.xlu0 %142
  %vm145 = vcmask 130048
  %v147 = vsel %vm145, %v114, 0
  %v150 = vsel %vm145, %v116, 0
  %v153 = vsel %vm145, %v118, 0
  %v156 = vsel %vm145, %v120, 0
  %158 = vmatprep.subr.mxu0 0.0
  %159 = vmatpush1.msra.mxu0 %v59
  %160 = vmatprep.subr.mxu0 0.0
  %161 = vmatpush1.msra.mxu0 %v60
  %162 = vmatprep.subr.mxu0 0.0
  %163 = vmatpush1.msra.mxu0 %v61
  %164 = vmatprep.subr.mxu0 0.0
  %165 = vmatpush1.msra.mxu0 %v62
  %166 = vmatprep.subr.mxu0 0.0
  %167 = vmatpush1.msra.mxu0 %v63
  %168 = vmatprep.subr.mxu0 0.0
  %169 = vmatpush1.msra.mxu0 %v64
  %170 = vmatprep.subr.mxu0 0.0
  %171 = vmatpush1.msra.mxu0 %v65
  %172 = vmatprep.subr.mxu0 0.0
  %173 = vmatpush1.msra.mxu0 %v66
  %174 = vmatprep.subr.mxu0 0.0
  %175 = vmatpush1.msra.mxu0 %v67
  %176 = vmatprep.subr.mxu0 0.0
  %177 = vmatpush1.msra.mxu0 %v68
  %178 = vmatprep.subr.mxu0 0.0
  %179 = vmatpush1.msra.mxu0 %v69
  %180 = vmatprep.subr.mxu0 0.0
  %181 = vmatpush1.msra.mxu0 %v70
  %182 = vmatprep.subr.mxu0 0.0
  %183 = vmatpush1.msra.mxu0 %v71
  %184 = vmatprep.subr.mxu0 0.0
  %185 = vmatpush1.msra.mxu0 %v72
  %186 = vmatprep.subr.mxu0 0.0
  %187 = vmatpush1.msra.mxu0 %v73
  %188 = vmatprep.subr.mxu0 0.0
  %189 = vmatpush1.msra.mxu0 %v74
  %190 = vmatprep.subr.mxu0 0.0
  %191 = vmatpush1.msra.mxu0 %v75
  %192 = vmatprep.subr.mxu0 0.0
  %193 = vmatpush1.msra.mxu0 %v76
  %194 = vmatprep.subr.mxu0 0.0
  %195 = vmatpush1.msra.mxu0 0.0
  %196 = vmatprep.subr.mxu0 0.0
  %197 = vmatpush1.msra.mxu0 0.0
  %198 = vmatprep.subr.mxu0 0.0
  %199 = vmatpush1.msra.mxu0 0.0
  %200 = vmatprep.subr.mxu0 0.0
  %201 = vmatpush1.msra.mxu0 0.0
  %202 = vmatprep.subr.mxu0 0.0
  %203 = vmatpush1.msra.mxu0 0.0
  %204 = vmatprep.subr.mxu0 0.0
  %205 = vmatpush1.msra.mxu0 0.0
  %206 = vmatprep.subr.mxu0 0.0
  %207 = vmatpush1.msra.mxu0 0.0
  %208 = vmatprep.subr.mxu0 0.0
  %209 = vmatpush1.msra.mxu0 0.0
  %210 = vmatprep.subr.mxu0 0.0
  %211 = vmatpush1.msra.mxu0 0.0
  %212 = vmatprep.subr.mxu0 0.0
  %213 = vmatpush1.msra.mxu0 0.0
  %214 = vmatprep.subr.mxu0 0.0
  %215 = vmatpush1.msra.mxu0 0.0
  %216 = vmatprep.subr.mxu0 0.0
  %217 = vmatpush1.msra.mxu0 0.0
  %218 = vmatprep.subr.mxu0 0.0
  %219 = vmatpush1.msra.mxu0 0.0
  %220 = vmatprep.subr.mxu0 0.0
  %221 = vmatpush1.msra.mxu0 0.0
  %222 = vmatprep.mubr.f32.mxu0 %v147
  %223 = vmatmul.mubr.f32.gmra.mrb[0].mxu0 %v113
  %v224 = vpop.f32.mrb[0].mxu0
  %v225 = vadd.f32 %v128, %v224
  %v226 = vpop.f32.mrb[0].mxu0
  %227 = vmatprep.mubr.f32.mxu0 %v150
  %228 = vmatmul.mubr.f32.gmra.mrb[0].mxu0 %v115
  %v229 = vpop.f32.mrb[0].mxu0
  %v230 = vadd.f32 %v133, %v229
  %v231 = vpop.f32.mrb[0].mxu0
  %232 = vmatprep.mubr.f32.mxu0 %v153
  %233 = vmatmul.mubr.f32.gmra.mrb[0].mxu0 %v117
  %v234 = vpop.f32.mrb[0].mxu0
  %v235 = vadd.f32 %v138, %v234
  %v236 = vpop.f32.mrb[0].mxu0
  %237 = vmatprep.mubr.f32.mxu0 %v156
  %238 = vmatmul.mubr.f32.gmra.mrb[0].mxu0 %v119
  %v239 = vpop.f32.mrb[0].mxu0
  %v240 = vadd.f32 %v143, %v239
  %v241 = vpop.f32.mrb[0].mxu0
  %242 = vdwg.mxu0
  %v243 = vmax.f32 %v225, 0.0
  %v244 = vmax.f32 %v230, 0.0
  %v245 = vmax.f32 %v235, 0.0
  %v246 = vmax.f32 %v240, 0.0
  %v247 = vld [vmem:[%s4] sm:$0xff]
  %v248 = vld [vmem:[%s4 + $0x8] sm:$0xff]
  %v249 = vld [vmem:[%s4 + $0x10] sm:$0xff]
  %v250 = vld [vmem:[%s4 + $0x18] sm:$0xff]
  %v251 = vld [vmem:[%s5] sm:$0xff]
  %v252 = vld [vmem:[%s5 + $0x8] sm:$0xff]
  %v253 = vld [vmem:[%s5 + $0x10] sm:$0xff]
  %v254 = vld [vmem:[%s5 + $0x18] sm:$0xff]
  %256 = vset.pattern.permute.xlu0 0
  %257 = vperm.xlu0 %256, %v251
  %v258 = vpop.permute.xlu0 %257
  %261 = vset.pattern.permute.xlu0 0
  %262 = vperm.xlu0 %261, %v252
  %v263 = vpop.permute.xlu0 %262
  %266 = vset.pattern.permute.xlu0 0
  %267 = vperm.xlu0 %266, %v253
  %v268 = vpop.permute.xlu0 %267
  %271 = vset.pattern.permute.xlu0 0
  %272 = vperm.xlu0 %271, %v254
  %v273 = vpop.permute.xlu0 %272
  %v276 = vsel %vm145, %v247, 0
  %v279 = vsel %vm145, %v248, 0
  %v282 = vsel %vm145, %v249, 0
  %v285 = vsel %vm145, %v250, 0
  %287 = vmatprep.subr.mxu0 0.0
  %288 = vmatpush1.msra.mxu0 %v67
  %289 = vmatprep.subr.mxu0 0.0
  %290 = vmatpush1.msra.mxu0 %v68
  %291 = vmatprep.subr.mxu0 0.0
  %292 = vmatpush1.msra.mxu0 0.0
  %293 = vmatprep.subr.mxu0 0.0
  %294 = vmatpush1.msra.mxu0 0.0
  %295 = vmatprep.subr.mxu0 0.0
  %296 = vmatpush1.msra.mxu0 0.0
  %297 = vmatprep.subr.mxu0 0.0
  %298 = vmatpush1.msra.mxu0 0.0
  %299 = vmatprep.subr.mxu0 0.0
  %300 = vmatpush1.msra.mxu0 0.0
  %301 = vmatprep.subr.mxu0 0.0
  %302 = vmatpush1.msra.mxu0 0.0
  %303 = vmatprep.subr.mxu0 0.0
  %304 = vmatpush1.msra.mxu0 0.0
  %305 = vmatprep.subr.mxu0 0.0
  %306 = vmatpush1.msra.mxu0 0.0
  %307 = vmatprep.subr.mxu0 0.0
  %308 = vmatpush1.msra.mxu0 0.0
  %309 = vmatprep.subr.mxu0 0.0
  %310 = vmatpush1.msra.mxu0 0.0
  %311 = vmatprep.subr.mxu0 0.0
  %312 = vmatpush1.msra.mxu0 0.0
  %313 = vmatprep.subr.mxu0 0.0
  %314 = vmatpush1.msra.mxu0 0.0
  %315 = vmatprep.subr.mxu0 0.0
  %316 = vmatpush1.msra.mxu0 0.0
  %317 = vmatprep.subr.mxu0 0.0
  %318 = vmatpush1.msra.mxu0 0.0
  %319 = vmatprep.subr.mxu0 0.0
  %320 = vmatpush1.msra.mxu0 0.0
  %321 = vmatprep.subr.mxu0 0.0
  %322 = vmatpush1.msra.mxu0 0.0
  %323 = vmatprep.subr.mxu0 0.0
  %324 = vmatpush1.msra.mxu0 0.0
  %325 = vmatprep.subr.mxu0 0.0
  %326 = vmatpush1.msra.mxu0 0.0
  %327 = vmatprep.subr.mxu0 0.0
  %328 = vmatpush1.msra.mxu0 0.0
  %329 = vmatprep.subr.mxu0 0.0
  %330 = vmatpush1.msra.mxu0 0.0
  %331 = vmatprep.subr.mxu0 0.0
  %332 = vmatpush1.msra.mxu0 0.0
  %333 = vmatprep.subr.mxu0 0.0
  %334 = vmatpush1.msra.mxu0 0.0
  %335 = vmatprep.subr.mxu0 0.0
  %336 = vmatpush1.msra.mxu0 0.0
  %337 = vmatprep.subr.mxu0 0.0
  %338 = vmatpush1.msra.mxu0 0.0
  %339 = vmatprep.subr.mxu0 0.0
  %340 = vmatpush1.msra.mxu0 0.0
  %341 = vmatprep.subr.mxu0 0.0
  %342 = vmatpush1.msra.mxu0 0.0
  %343 = vmatprep.subr.mxu0 0.0
  %344 = vmatpush1.msra.mxu0 0.0
  %345 = vmatprep.subr.mxu0 0.0
  %346 = vmatpush1.msra.mxu0 0.0
  %347 = vmatprep.subr.mxu0 0.0
  %348 = vmatpush1.msra.mxu0 0.0
  %349 = vmatprep.subr.mxu0 0.0
  %350 = vmatpush1.msra.mxu0 0.0
  %351 = vmatprep.mubr.f32.mxu0 0.0
  %352 = vmatmul.mubr.f32.gmra.mrb[0].mxu0 %v276
  %v353 = vpop.f32.mrb[0].mxu0
  %v354 = vadd.f32 %v258, %v353
  %v355 = vpop.f32.mrb[0].mxu0
  %356 = vmatprep.mubr.f32.mxu0 0.0
  %357 = vmatmul.mubr.f32.gmra.mrb[0].mxu0 %v279
  %v358 = vpop.f32.mrb[0].mxu0
  %v359 = vadd.f32 %v263, %v358
  %v360 = vpop.f32.mrb[0].mxu0
  %361 = vmatprep.mubr.f32.mxu0 0.0
  %362 = vmatmul.mubr.f32.gmra.mrb[0].mxu0 %v282
  %v363 = vpop.f32.mrb[0].mxu0
  %v364 = vadd.f32 %v268, %v363
  %v365 = vpop.f32.mrb[0].mxu0
  %366 = vmatprep.mubr.f32.mxu0 0.0
  %367 = vmatmul.mubr.f32.gmra.mrb[0].mxu0 %v285
  %v368 = vpop.f32.mrb[0].mxu0
  %v369 = vadd.f32 %v273, %v368
  %v370 = vpop.f32.mrb[0].mxu0
  %371 = vdwg.mxu0
  %v372 = vld [vmem:[%s6] sm:$0xff]
  %v373 = vld [vmem:[%s6 + $0x8] sm:$0xff]
  %v374 = vld [vmem:[%s6 + $0x10] sm:$0xff]
  %v375 = vld [vmem:[%s6 + $0x18] sm:$0xff]
  %v376 = vld [vmem:[%s6 + $0x20] sm:$0xff]
  %v377 = vld [vmem:[%s6 + $0x28] sm:$0xff]
  %v378 = vld [vmem:[%s6 + $0x30] sm:$0xff]
  %v379 = vld [vmem:[%s6 + $0x38] sm:$0xff]
  %v380 = vld [vmem:[%s6 + $0x40] sm:$0xff]
  %v381 = vld [vmem:[%s6 + $0x48] sm:$0xff]
  %v382 = vld [vmem:[%s6 + $0x50] sm:$0xff]
  %v383 = vld [vmem:[%s6 + $0x58] sm:$0xff]
  %388 = vrot.lane.b32.xlu0 %v243, 3
  %v389 = vpop.permute.xlu0 %388
  %390 = vrot.lane.b32.xlu0 %v244, 3
  %v391 = vpop.permute.xlu0 %390
  %392 = vrot.lane.b32.xlu0 %v245, 3
  %v393 = vpop.permute.xlu0 %392
  %394 = vrot.lane.b32.xlu0 %v246, 3
  %v395 = vpop.permute.xlu0 %394
  %vm400 = vcmask 23552
  %v401 = vsel %vm400, 0.0, %v389
  %v402 = vsel %vm400, 0.0, %v391
  %v403 = vsel %vm400, 0.0, %v393
  %v404 = vsel %vm400, 0.0, %v395
  %405 = vrot.lane.b32.xlu0 %v243, 2
  %v406 = vpop.permute.xlu0 %405
  %407 = vrot.lane.b32.xlu0 %v244, 2
  %v408 = vpop.permute.xlu0 %407
  %409 = vrot.lane.b32.xlu0 %v245, 2
  %v410 = vpop.permute.xlu0 %409
  %411 = vrot.lane.b32.xlu0 %v246, 2
  %v412 = vpop.permute.xlu0 %411
  %vm417 = vcmask 15360
  %v418 = vsel %vm417, 0.0, %v406
  %v419 = vsel %vm417, 0.0, %v408
  %v420 = vsel %vm417, 0.0, %v410
  %v421 = vsel %vm417, 0.0, %v412
  %422 = vrot.lane.b32.xlu0 %v243, 1
  %v423 = vpop.permute.xlu0 %422
  %424 = vrot.lane.b32.xlu0 %v244, 1
  %v425 = vpop.permute.xlu0 %424
  %426 = vrot.lane.b32.xlu0 %v245, 1
  %v427 = vpop.permute.xlu0 %426
  %428 = vrot.lane.b32.xlu0 %v246, 1
  %v429 = vpop.permute.xlu0 %428
  %vm434 = vcmask 7168
  %v435 = vsel %vm434, 0.0, %v423
  %v436 = vsel %vm434, 0.0, %v425
  %v437 = vsel %vm434, 0.0, %v427
  %v438 = vsel %vm434, 0.0, %v429
  %439 = vrot.lane.b32.xlu0 %v243, 127
  %v440 = vpop.permute.xlu0 %439
  %441 = vrot.lane.b32.xlu0 %v244, 127
  %v442 = vpop.permute.xlu0 %441
  %443 = vrot.lane.b32.xlu0 %v245, 127
  %v444 = vpop.permute.xlu0 %443
  %445 = vrot.lane.b32.xlu0 %v246, 127
  %v446 = vpop.permute.xlu0 %445
  %vm451 = vcmask 56320
  %v452 = vsel %vm451, %v440, 0.0
  %v453 = vsel %vm451, %v442, 0.0
  %v454 = vsel %vm451, %v444, 0.0
  %v455 = vsel %vm451, %v446, 0.0
  %456 = vrot.lane.b32.xlu0 %v243, 126
  %v457 = vpop.permute.xlu0 %456
  %458 = vrot.lane.b32.xlu0 %v244, 126
  %v459 = vpop.permute.xlu0 %458
  %460 = vrot.lane.b32.xlu0 %v245, 126
  %v461 = vpop.permute.xlu0 %460
  %462 = vrot.lane.b32.xlu0 %v246, 126
  %v463 = vpop.permute.xlu0 %462
  %vm468 = vcmask 48128
  %v469 = vsel %vm468, %v457, 0.0
  %v470 = vsel %vm468, %v459, 0.0
  %v471 = vsel %vm468, %v461, 0.0
  %v472 = vsel %vm468, %v463, 0.0
  %473 = vrot.lane.b32.xlu0 %v243, 125
  %v474 = vpop.permute.xlu0 %473
  %475 = vrot.lane.b32.xlu0 %v244, 125
  %v476 = vpop.permute.xlu0 %475
  %477 = vrot.lane.b32.xlu0 %v245, 125
  %v478 = vpop.permute.xlu0 %477
  %479 = vrot.lane.b32.xlu0 %v246, 125
  %v480 = vpop.permute.xlu0 %479
  %vm485 = vcmask 39936
  %v486 = vsel %vm485, %v474, 0.0
  %v487 = vsel %vm485, %v476, 0.0
  %v488 = vsel %vm485, %v478, 0.0
  %v489 = vsel %vm485, %v480, 0.0
  %v490 = vmul.f32 %v401, %v77
  %v491 = vmul.f32 %v402, %v78
  %v492 = vmul.f32 %v403, %v79
  %v493 = vmul.f32 %v404, %v80
  %v494 = vmul.f32 %v418, %v81
  %v495 = vmul.f32 %v419, %v82
  %v496 = vmul.f32 %v420, %v83
  %v497 = vmul.f32 %v421, %v84
  %v498 = vmul.f32 %v435, %v85
  %v499 = vmul.f32 %v436, %v86
  %v500 = vmul.f32 %v437, %v87
  %v501 = vmul.f32 %v438, %v88
  %v502 = vmul.f32 %v435, %v89
  %v503 = vmul.f32 %v436, %v90
  %v504 = vmul.f32 %v437, %v91
  %v505 = vmul.f32 %v438, %v92
  %v506 = vmul.f32 %v243, %v93
  %v507 = vmul.f32 %v244, %v94
  %v508 = vmul.f32 %v245, %v95
  %v509 = vmul.f32 %v246, %v96
  %v510 = vmul.f32 %v452, %v97
  %v511 = vmul.f32 %v453, %v98
  %v512 = vmul.f32 %v454, %v99
  %v513 = vmul.f32 %v455, %v100
  %v514 = vmul.f32 %v452, %v101
  %v515 = vmul.f32 %v453, %v102
  %v516 = vmul.f32 %v454, %v103
  %v517 = vmul.f32 %v455, %v104
  %v518 = vmul.f32 %v469, %v105
  %v519 = vmul.f32 %v470, %v106
  %v520 = vmul.f32 %v471, %v107
  %v521 = vmul.f32 %v472, %v108
  %v522 = vmul.f32 %v486, %v109
  %v523 = vmul.f32 %v487, %v110
  %v524 = vmul.f32 %v488, %v111
  %v525 = vmul.f32 %v489, %v112
  %v526 = vld [vmem:[%s7] sm:$0xff]
  %v527 = vld [vmem:[%s7 + $0x8] sm:$0xff]
  %v528 = vld [vmem:[%s7 + $0x10] sm:$0xff]
  %v529 = vld [vmem:[%s7 + $0x18] sm:$0xff]
  %531 = vset.pattern.permute.xlu0 0
  %532 = vperm.xlu0 %531, %v526
  %v533 = vpop.permute.xlu0 %532
  %536 = vset.pattern.permute.xlu0 0
  %537 = vperm.xlu0 %536, %v527
  %v538 = vpop.permute.xlu0 %537
  %541 = vset.pattern.permute.xlu0 0
  %542 = vperm.xlu0 %541, %v528
  %v543 = vpop.permute.xlu0 %542
  %546 = vset.pattern.permute.xlu0 0
  %547 = vperm.xlu0 %546, %v529
  %v548 = vpop.permute.xlu0 %547
  %vm550 = vcmask 261120
  %v552 = vsel %vm550, %v374, 0
  %v555 = vsel %vm550, %v377, 0
  %v558 = vsel %vm550, %v380, 0
  %v561 = vsel %vm550, %v383, 0
  %563 = vmatprep.subr.mxu0 0.0
  %564 = vmatpush1.msra.mxu0 %v490
  %565 = vmatprep.subr.mxu0 0.0
  %566 = vmatpush1.msra.mxu0 %v491
  %567 = vmatprep.subr.mxu0 0.0
  %568 = vmatpush1.msra.mxu0 %v492
  %569 = vmatprep.subr.mxu0 0.0
  %570 = vmatpush1.msra.mxu0 %v493
  %571 = vmatprep.subr.mxu0 0.0
  %572 = vmatpush1.msra.mxu0 %v494
  %573 = vmatprep.subr.mxu0 0.0
  %574 = vmatpush1.msra.mxu0 %v495
  %575 = vmatprep.subr.mxu0 0.0
  %576 = vmatpush1.msra.mxu0 %v496
  %577 = vmatprep.subr.mxu0 0.0
  %578 = vmatpush1.msra.mxu0 %v497
  %579 = vmatprep.subr.mxu0 0.0
  %580 = vmatpush1.msra.mxu0 %v498
  %581 = vmatprep.subr.mxu0 0.0
  %582 = vmatpush1.msra.mxu0 %v499
  %583 = vmatprep.subr.mxu0 0.0
  %584 = vmatpush1.msra.mxu0 %v500
  %585 = vmatprep.subr.mxu0 0.0
  %586 = vmatpush1.msra.mxu0 %v501
  %587 = vmatprep.subr.mxu0 0.0
  %588 = vmatpush1.msra.mxu0 %v502
  %589 = vmatprep.subr.mxu0 0.0
  %590 = vmatpush1.msra.mxu0 %v503
  %591 = vmatprep.subr.mxu0 0.0
  %592 = vmatpush1.msra.mxu0 %v504
  %593 = vmatprep.subr.mxu0 0.0
  %594 = vmatpush1.msra.mxu0 %v505
  %595 = vmatprep.subr.mxu0 0.0
  %596 = vmatpush1.msra.mxu0 %v506
  %597 = vmatprep.subr.mxu0 0.0
  %598 = vmatpush1.msra.mxu0 %v507
  %599 = vmatprep.subr.mxu0 0.0
  %600 = vmatpush1.msra.mxu0 %v508
  %601 = vmatprep.subr.mxu0 0.0
  %602 = vmatpush1.msra.mxu0 %v509
  %603 = vmatprep.subr.mxu0 0.0
  %604 = vmatpush1.msra.mxu0 %v510
  %605 = vmatprep.subr.mxu0 0.0
  %606 = vmatpush1.msra.mxu0 %v511
  %607 = vmatprep.subr.mxu0 0.0
  %608 = vmatpush1.msra.mxu0 %v512
  %609 = vmatprep.subr.mxu0 0.0
  %610 = vmatpush1.msra.mxu0 %v513
  %611 = vmatprep.subr.mxu0 0.0
  %612 = vmatpush1.msra.mxu0 %v514
  %613 = vmatprep.subr.mxu0 0.0
  %614 = vmatpush1.msra.mxu0 %v515
  %615 = vmatprep.subr.mxu0 0.0
  %616 = vmatpush1.msra.mxu0 %v516
  %617 = vmatprep.subr.mxu0 0.0
  %618 = vmatpush1.msra.mxu0 %v517
  %619 = vmatprep.subr.mxu0 0.0
  %620 = vmatpush1.msra.mxu0 %v518
  %621 = vmatprep.subr.mxu0 0.0
  %622 = vmatpush1.msra.mxu0 %v519
  %623 = vmatprep.subr.mxu0 0.0
  %624 = vmatpush1.msra.mxu0 %v520
  %625 = vmatprep.subr.mxu0 0.0
  %626 = vmatpush1.msra.mxu0 %v521
  %627 = vmatprep.mubr.f32.mxu0 %v373
  %628 = vmatmul.mubr.f32.gmra.mrb[0].mxu0 %v372
  %v629 = vpop.f32.mrb[0].mxu0
  %v630 = vadd.f32 %v533, %v629
  %v631 = vpop.f32.mrb[0].mxu0
  %632 = vmatprep.mubr.f32.mxu0 %v376
  %633 = vmatmul.mubr.f32.gmra.mrb[0].mxu0 %v375
  %v634 = vpop.f32.mrb[0].mxu0
  %v635 = vadd.f32 %v538, %v634
  %v636 = vpop.f32.mrb[0].mxu0
  %637 = vmatprep.mubr.f32.mxu0 %v379
  %638 = vmatmul.mubr.f32.gmra.mrb[0].mxu0 %v378
  %v639 = vpop.f32.mrb[0].mxu0
  %v640 = vadd.f32 %v543, %v639
  %v641 = vpop.f32.mrb[0].mxu0
  %642 = vmatprep.mubr.f32.mxu0 %v382
  %643 = vmatmul.mubr.f32.gmra.mrb[0].mxu0 %v381
  %v644 = vpop.f32.mrb[0].mxu0
  %v645 = vadd.f32 %v548, %v644
  %v646 = vpop.f32.mrb[0].mxu0
  %647 = vdwg.mxu0
  %648 = vmatprep.subr.mxu0 0.0
  %649 = vmatpush1.msra.mxu0 %v522
  %650 = vmatprep.subr.mxu0 0.0
  %651 = vmatpush1.msra.mxu0 %v523
  %652 = vmatprep.subr.mxu0 0.0
  %653 = vmatpush1.msra.mxu0 %v524
  %654 = vmatprep.subr.mxu0 0.0
  %655 = vmatpush1.msra.mxu0 %v525
  %656 = vmatprep.subr.mxu0 0.0
  %657 = vmatpush1.msra.mxu0 0.0
  %658 = vmatprep.subr.mxu0 0.0
  %659 = vmatpush1.msra.mxu0 0.0
  %660 = vmatprep.subr.mxu0 0.0
  %661 = vmatpush1.msra.mxu0 0.0
  %662 = vmatprep.subr.mxu0 0.0
  %663 = vmatpush1.msra.mxu0 0.0
  %664 = vmatprep.subr.mxu0 0.0
  %665 = vmatpush1.msra.mxu0 0.0
  %666 = vmatprep.subr.mxu0 0.0
  %667 = vmatpush1.msra.mxu0 0.0
  %668 = vmatprep.subr.mxu0 0.0
  %669 = vmatpush1.msra.mxu0 0.0
  %670 = vmatprep.subr.mxu0 0.0
  %671 = vmatpush1.msra.mxu0 0.0
  %672 = vmatprep.subr.mxu0 0.0
  %673 = vmatpush1.msra.mxu0 0.0
  %674 = vmatprep.subr.mxu0 0.0
  %675 = vmatpush1.msra.mxu0 0.0
  %676 = vmatprep.subr.mxu0 0.0
  %677 = vmatpush1.msra.mxu0 0.0
  %678 = vmatprep.subr.mxu0 0.0
  %679 = vmatpush1.msra.mxu0 0.0
  %680 = vmatprep.subr.mxu0 0.0
  %681 = vmatpush1.msra.mxu0 0.0
  %682 = vmatprep.subr.mxu0 0.0
  %683 = vmatpush1.msra.mxu0 0.0
  %684 = vmatprep.subr.mxu0 0.0
  %685 = vmatpush1.msra.mxu0 0.0
  %686 = vmatprep.subr.mxu0 0.0
  %687 = vmatpush1.msra.mxu0 0.0
  %688 = vmatprep.subr.mxu0 0.0
  %689 = vmatpush1.msra.mxu0 0.0
  %690 = vmatprep.subr.mxu0 0.0
  %691 = vmatpush1.msra.mxu0 0.0
  %692 = vmatprep.subr.mxu0 0.0
  %693 = vmatpush1.msra.mxu0 0.0
  %694 = vmatprep.subr.mxu0 0.0
  %695 = vmatpush1.msra.mxu0 0.0
  %696 = vmatprep.subr.mxu0 0.0
  %697 = vmatpush1.msra.mxu0 0.0
  %698 = vmatprep.subr.mxu0 0.0
  %699 = vmatpush1.msra.mxu0 0.0
  %700 = vmatprep.subr.mxu0 0.0
  %701 = vmatpush1.msra.mxu0 0.0
  %702 = vmatprep.subr.mxu0 0.0
  %703 = vmatpush1.msra.mxu0 0.0
  %704 = vmatprep.subr.mxu0 0.0
  %705 = vmatpush1.msra.mxu0 0.0
  %706 = vmatprep.subr.mxu0 0.0
  %707 = vmatpush1.msra.mxu0 0.0
  %708 = vmatprep.subr.mxu0 0.0
  %709 = vmatpush1.msra.mxu0 0.0
  %710 = vmatprep.subr.mxu0 0.0
  %711 = vmatpush1.msra.mxu0 0.0
  %712 = vmatprep.mubr.f32.mxu0 0.0
  %713 = vmatmul.mubr.f32.gmra.mrb[0].mxu0 %v552
  %v714 = vpop.f32.mrb[0].mxu0
  %v715 = vadd.f32 %v630, %v714
  %v716 = vpop.f32.mrb[0].mxu0
  %717 = vmatprep.mubr.f32.mxu0 0.0
  %718 = vmatmul.mubr.f32.gmra.mrb[0].mxu0 %v555
  %v719 = vpop.f32.mrb[0].mxu0
  %v720 = vadd.f32 %v635, %v719
  %v721 = vpop.f32.mrb[0].mxu0
  %722 = vmatprep.mubr.f32.mxu0 0.0
  %723 = vmatmul.mubr.f32.gmra.mrb[0].mxu0 %v558
  %v724 = vpop.f32.mrb[0].mxu0
  %v725 = vadd.f32 %v640, %v724
  %v726 = vpop.f32.mrb[0].mxu0
  %727 = vmatprep.mubr.f32.mxu0 0.0
  %728 = vmatmul.mubr.f32.gmra.mrb[0].mxu0 %v561
  %v729 = vpop.f32.mrb[0].mxu0
  %v730 = vadd.f32 %v645, %v729
  %v731 = vpop.f32.mrb[0].mxu0
  %732 = vdwg.mxu0
  %v733 = vadd.f32 %v715, %v354
  %v734 = vadd.f32 %v720, %v359
  %v735 = vadd.f32 %v725, %v364
  %v736 = vadd.f32 %v730, %v369
  %v737 = vmax.f32 %v733, 0.0
  %v738 = vmax.f32 %v734, 0.0
  %v739 = vmax.f32 %v735, 0.0
  %v740 = vmax.f32 %v736, 0.0
  %v741 = vld [vmem:[%s8] sm:$0xff]
  %v742 = vld [vmem:[%s8 + $0x8] sm:$0xff]
  %v743 = vld [vmem:[%s8 + $0x10] sm:$0xff]
  %v744 = vld [vmem:[%s8 + $0x18] sm:$0xff]
  %v745 = vld [vmem:[%s8 + $0x20] sm:$0xff]
  %v746 = vld [vmem:[%s8 + $0x28] sm:$0xff]
  %v747 = vld [vmem:[%s8 + $0x30] sm:$0xff]
  %v748 = vld [vmem:[%s8 + $0x38] sm:$0xff]
  %v749 = vld [vmem:[%s8 + $0x40] sm:$0xff]
  %v750 = vld [vmem:[%s8 + $0x48] sm:$0xff]
  %v751 = vld [vmem:[%s8 + $0x50] sm:$0xff]
  %v752 = vld [vmem:[%s8 + $0x58] sm:$0xff]
  %757 = vrot.lane.b32.xlu0 %v737, 3
  %v758 = vpop.permute.xlu0 %757
  %759 = vrot.lane.b32.xlu0 %v738, 3
  %v760 = vpop.permute.xlu0 %759
  %761 = vrot.lane.b32.xlu0 %v739, 3
  %v762 = vpop.permute.xlu0 %761
  %763 = vrot.lane.b32.xlu0 %v740, 3
  %v764 = vpop.permute.xlu0 %763
  %v769 = vsel %vm400, 0.0, %v758
  %v770 = vsel %vm400, 0.0, %v760
  %v771 = vsel %vm400, 0.0, %v762
  %v772 = vsel %vm400, 0.0, %v764
  %773 = vrot.lane.b32.xlu0 %v737, 2
  %v774 = vpop.permute.xlu0 %773
  %775 = vrot.lane.b32.xlu0 %v738, 2
  %v776 = vpop.permute.xlu0 %775
  %777 = vrot.lane.b32.xlu0 %v739, 2
  %v778 = vpop.permute.xlu0 %777
  %779 = vrot.lane.b32.xlu0 %v740, 2
  %v780 = vpop.permute.xlu0 %779
  %v785 = vsel %vm417, 0.0, %v774
  %v786 = vsel %vm417, 0.0, %v776
  %v787 = vsel %vm417, 0.0, %v778
  %v788 = vsel %vm417, 0.0, %v780
  %789 = vrot.lane.b32.xlu0 %v737, 1
  %v790 = vpop.permute.xlu0 %789
  %791 = vrot.lane.b32.xlu0 %v738, 1
  %v792 = vpop.permute.xlu0 %791
  %793 = vrot.lane.b32.xlu0 %v739, 1
  %v794 = vpop.permute.xlu0 %793
  %795 = vrot.lane.b32.xlu0 %v740, 1
  %v796 = vpop.permute.xlu0 %795
  %v801 = vsel %vm434, 0.0, %v790
  %v802 = vsel %vm434, 0.0, %v792
  %v803 = vsel %vm434, 0.0, %v794
  %v804 = vsel %vm434, 0.0, %v796
  %805 = vrot.lane.b32.xlu0 %v737, 127
  %v806 = vpop.permute.xlu0 %805
  %807 = vrot.lane.b32.xlu0 %v738, 127
  %v808 = vpop.permute.xlu0 %807
  %809 = vrot.lane.b32.xlu0 %v739, 127
  %v810 = vpop.permute.xlu0 %809
  %811 = vrot.lane.b32.xlu0 %v740, 127
  %v812 = vpop.permute.xlu0 %811
  %v817 = vsel %vm451, %v806, 0.0
  %v818 = vsel %vm451, %v808, 0.0
  %v819 = vsel %vm451, %v810, 0.0
  %v820 = vsel %vm451, %v812, 0.0
  %821 = vrot.lane.b32.xlu0 %v737, 126
  %v822 = vpop.permute.xlu0 %821
  %823 = vrot.lane.b32.xlu0 %v738, 126
  %v824 = vpop.permute.xlu0 %823
  %825 = vrot.lane.b32.xlu0 %v739, 126
  %v826 = vpop.permute.xlu0 %825
  %827 = vrot.lane.b32.xlu0 %v740, 126
  %v828 = vpop.permute.xlu0 %827
  %v833 = vsel %vm468, %v822, 0.0
  %v834 = vsel %vm468, %v824, 0.0
  %v835 = vsel %vm468, %v826, 0.0
  %v836 = vsel %vm468, %v828, 0.0
  %837 = vrot.lane.b32.xlu0 %v737, 125
  %v838 = vpop.permute.xlu0 %837
  %839 = vrot.lane.b32.xlu0 %v738, 125
  %v840 = vpop.permute.xlu0 %839
  %841 = vrot.lane.b32.xlu0 %v739, 125
  %v842 = vpop.permute.xlu0 %841
  %843 = vrot.lane.b32.xlu0 %v740, 125
  %v844 = vpop.permute.xlu0 %843
  %v849 = vsel %vm485, %v838, 0.0
  %v850 = vsel %vm485, %v840, 0.0
  %v851 = vsel %vm485, %v842, 0.0
  %v852 = vsel %vm485, %v844, 0.0
  %v853 = vmul.f32 %v769, %v77
  %v854 = vmul.f32 %v770, %v78
  %v855 = vmul.f32 %v771, %v79
  %v856 = vmul.f32 %v772, %v80
  %v857 = vmul.f32 %v785, %v81
  %v858 = vmul.f32 %v786, %v82
  %v859 = vmul.f32 %v787, %v83
  %v860 = vmul.f32 %v788, %v84
  %v861 = vmul.f32 %v801, %v85
  %v862 = vmul.f32 %v802, %v86
  %v863 = vmul.f32 %v803, %v87
  %v864 = vmul.f32 %v804, %v88
  %v865 = vmul.f32 %v801, %v89
  %v866 = vmul.f32 %v802, %v90
  %v867 = vmul.f32 %v803, %v91
  %v868 = vmul.f32 %v804, %v92
  %v869 = vmul.f32 %v737, %v93
  %v870 = vmul.f32 %v738, %v94
  %v871 = vmul.f32 %v739, %v95
  %v872 = vmul.f32 %v740, %v96
  %v873 = vmul.f32 %v817, %v97
  %v874 = vmul.f32 %v818, %v98
  %v875 = vmul.f32 %v819, %v99
  %v876 = vmul.f32 %v820, %v100
  %v877 = vmul.f32 %v817, %v101
  %v878 = vmul.f32 %v818, %v102
  %v879 = vmul.f32 %v819, %v103
  %v880 = vmul.f32 %v820, %v104
  %v881 = vmul.f32 %v833, %v105
  %v882 = vmul.f32 %v834, %v106
  %v883 = vmul.f32 %v835, %v107
  %v884 = vmul.f32 %v836, %v108
  %v885 = vmul.f32 %v849, %v109
  %v886 = vmul.f32 %v850, %v110
  %v887 = vmul.f32 %v851, %v111
  %v888 = vmul.f32 %v852, %v112
  %v889 = vld [vmem:[%s9] sm:$0xff]
  %v890 = vld [vmem:[%s9 + $0x8] sm:$0xff]
  %v891 = vld [vmem:[%s9 + $0x10] sm:$0xff]
  %v892 = vld [vmem:[%s9 + $0x18] sm:$0xff]
  %894 = vset.pattern.permute.xlu0 0
  %895 = vperm.xlu0 %894, %v889
  %v896 = vpop.permute.xlu0 %895
  %899 = vset.pattern.permute.xlu0 0
  %900 = vperm.xlu0 %899, %v890
  %v901 = vpop.permute.xlu0 %900
  %904 = vset.pattern.permute.xlu0 0
  %905 = vperm.xlu0 %904, %v891
  %v906 = vpop.permute.xlu0 %905
  %909 = vset.pattern.permute.xlu0 0
  %910 = vperm.xlu0 %909, %v892
  %v911 = vpop.permute.xlu0 %910
  %v914 = vsel %vm550, %v743, 0
  %v917 = vsel %vm550, %v746, 0
  %v920 = vsel %vm550, %v749, 0
  %v923 = vsel %vm550, %v752, 0
  %925 = vmatprep.subr.mxu0 0.0
  %926 = vmatpush1.msra.mxu0 %v853
  %927 = vmatprep.subr.mxu0 0.0
  %928 = vmatpush1.msra.mxu0 %v854
  %929 = vmatprep.subr.mxu0 0.0
  %930 = vmatpush1.msra.mxu0 %v855
  %931 = vmatprep.subr.mxu0 0.0
  %932 = vmatpush1.msra.mxu0 %v856
  %933 = vmatprep.subr.mxu0 0.0
  %934 = vmatpush1.msra.mxu0 %v857
  %935 = vmatprep.subr.mxu0 0.0
  %936 = vmatpush1.msra.mxu0 %v858
  %937 = vmatprep.subr.mxu0 0.0
  %938 = vmatpush1.msra.mxu0 %v859
  %939 = vmatprep.subr.mxu0 0.0
  %940 = vmatpush1.msra.mxu0 %v860
  %941 = vmatprep.subr.mxu0 0.0
  %942 = vmatpush1.msra.mxu0 %v861
  %943 = vmatprep.subr.mxu0 0.0
  %944 = vmatpush1.msra.mxu0 %v862
  %945 = vmatprep.subr.mxu0 0.0
  %946 = vmatpush1.msra.mxu0 %v863
  %947 = vmatprep.subr.mxu0 0.0
  %948 = vmatpush1.msra.mxu0 %v864
  %949 = vmatprep.subr.mxu0 0.0
  %950 = vmatpush1.msra.mxu0 %v865
  %951 = vmatprep.subr.mxu0 0.0
  %952 = vmatpush1.msra.mxu0 %v866
  %953 = vmatprep.subr.mxu0 0.0
  %954 = vmatpush1.msra.mxu0 %v867
  %955 = vmatprep.subr.mxu0 0.0
  %956 = vmatpush1.msra.mxu0 %v868
  %957 = vmatprep.subr.mxu0 0.0
  %958 = vmatpush1.msra.mxu0 %v869
  %959 = vmatprep.subr.mxu0 0.0
  %960 = vmatpush1.msra.mxu0 %v870
  %961 = vmatprep.subr.mxu0 0.0
  %962 = vmatpush1.msra.mxu0 %v871
  %963 = vmatprep.subr.mxu0 0.0
  %964 = vmatpush1.msra.mxu0 %v872
  %965 = vmatprep.subr.mxu0 0.0
  %966 = vmatpush1.msra.mxu0 %v873
  %967 = vmatprep.subr.mxu0 0.0
  %968 = vmatpush1.msra.mxu0 %v874
  %969 = vmatprep.subr.mxu0 0.0
  %970 = vmatpush1.msra.mxu0 %v875
  %971 = vmatprep.subr.mxu0 0.0
  %972 = vmatpush1.msra.mxu0 %v876
  %973 = vmatprep.subr.mxu0 0.0
  %974 = vmatpush1.msra.mxu0 %v877
  %975 = vmatprep.subr.mxu0 0.0
  %976 = vmatpush1.msra.mxu0 %v878
  %977 = vmatprep.subr.mxu0 0.0
  %978 = vmatpush1.msra.mxu0 %v879
  %979 = vmatprep.subr.mxu0 0.0
  %980 = vmatpush1.msra.mxu0 %v880
  %981 = vmatprep.subr.mxu0 0.0
  %982 = vmatpush1.msra.mxu0 %v881
  %983 = vmatprep.subr.mxu0 0.0
  %984 = vmatpush1.msra.mxu0 %v882
  %985 = vmatprep.subr.mxu0 0.0
  %986 = vmatpush1.msra.mxu0 %v883
  %987 = vmatprep.subr.mxu0 0.0
  %988 = vmatpush1.msra.mxu0 %v884
  %989 = vmatprep.mubr.f32.mxu0 %v742
  %990 = vmatmul.mubr.f32.gmra.mrb[0].mxu0 %v741
  %v991 = vpop.f32.mrb[0].mxu0
  %v992 = vadd.f32 %v896, %v991
  %v993 = vpop.f32.mrb[0].mxu0
  %994 = vmatprep.mubr.f32.mxu0 %v745
  %995 = vmatmul.mubr.f32.gmra.mrb[0].mxu0 %v744
  %v996 = vpop.f32.mrb[0].mxu0
  %v997 = vadd.f32 %v901, %v996
  %v998 = vpop.f32.mrb[0].mxu0
  %999 = vmatprep.mubr.f32.mxu0 %v748
  %1000 = vmatmul.mubr.f32.gmra.mrb[0].mxu0 %v747
  %v1001 = vpop.f32.mrb[0].mxu0
  %v1002 = vadd.f32 %v906, %v1001
  %v1003 = vpop.f32.mrb[0].mxu0
  %1004 = vmatprep.mubr.f32.mxu0 %v751
  %1005 = vmatmul.mubr.f32.gmra.mrb[0].mxu0 %v750
  %v1006 = vpop.f32.mrb[0].mxu0
  %v1007 = vadd.f32 %v911, %v1006
  %v1008 = vpop.f32.mrb[0].mxu0
  %1009 = vdwg.mxu0
  %1010 = vmatprep.subr.mxu0 0.0
  %1011 = vmatpush1.msra.mxu0 %v885
  %1012 = vmatprep.subr.mxu0 0.0
  %1013 = vmatpush1.msra.mxu0 %v886
  %1014 = vmatprep.subr.mxu0 0.0
  %1015 = vmatpush1.msra.mxu0 %v887
  %1016 = vmatprep.subr.mxu0 0.0
  %1017 = vmatpush1.msra.mxu0 %v888
  %1018 = vmatprep.subr.mxu0 0.0
  %1019 = vmatpush1.msra.mxu0 0.0
  %1020 = vmatprep.subr.mxu0 0.0
  %1021 = vmatpush1.msra.mxu0 0.0
  %1022 = vmatprep.subr.mxu0 0.0
  %1023 = vmatpush1.msra.mxu0 0.0
  %1024 = vmatprep.subr.mxu0 0.0
  %1025 = vmatpush1.msra.mxu0 0.0
  %1026 = vmatprep.subr.mxu0 0.0
  %1027 = vmatpush1.msra.mxu0 0.0
  %1028 = vmatprep.subr.mxu0 0.0
  %1029 = vmatpush1.msra.mxu0 0.0
  %1030 = vmatprep.subr.mxu0 0.0
  %1031 = vmatpush1.msra.mxu0 0.0
  %1032 = vmatprep.subr.mxu0 0.0
  %1033 = vmatpush1.msra.mxu0 0.0
  %1034 = vmatprep.subr.mxu0 0.0
  %1035 = vmatpush1.msra.mxu0 0.0
  %1036 = vmatprep.subr.mxu0 0.0
  %1037 = vmatpush1.msra.mxu0 0.0
  %1038 = vmatprep.subr.mxu0 0.0
  %1039 = vmatpush1.msra.mxu0 0.0
  %1040 = vmatprep.subr.mxu0 0.0
  %1041 = vmatpush1.msra.mxu0 0.0
  %1042 = vmatprep.subr.mxu0 0.0
  %1043 = vmatpush1.msra.mxu0 0.0
  %1044 = vmatprep.subr.mxu0 0.0
  %1045 = vmatpush1.msra.mxu0 0.0
  %1046 = vmatprep.subr.mxu0 0.0
  %1047 = vmatpush1.msra.mxu0 0.0
  %1048 = vmatprep.subr.mxu0 0.0
  %1049 = vmatpush1.msra.mxu0 0.0
  %1050 = vmatprep.subr.mxu0 0.0
  %1051 = vmatpush1.msra.mxu0 0.0
  %1052 = vmatprep.subr.mxu0 0.0
  %1053 = vmatpush1.msra.mxu0 0.0
  %1054 = vmatprep.subr.mxu0 0.0
  %1055 = vmatpush1.msra.mxu0 0.0
  %1056 = vmatprep.subr.mxu0 0.0
  %1057 = vmatpush1.msra.mxu0 0.0
  %1058 = vmatprep.subr.mxu0 0.0
  %1059 = vmatpush1.msra.mxu0 0.0
  %1060 = vmatprep.subr.mxu0 0.0
  %1061 = vmatpush1.msra.mxu0 0.0
  %1062 = vmatprep.subr.mxu0 0.0
  %1063 = vmatpush1.msra.mxu0 0.0
  %1064 = vmatprep.subr.mxu0 0.0
  %1065 = vmatpush1.msra.mxu0 0.0
  %1066 = vmatprep.subr.mxu0 0.0
  %1067 = vmatpush1.msra.mxu0 0.0
  %1068 = vmatprep.subr.mxu0 0.0
  %1069 = vmatpush1.msra.mxu0 0.0
  %1070 = vmatprep.subr.mxu0 0.0
  %1071 = vmatpush1.msra.mxu0 0.0
  %1072 = vmatprep.subr.mxu0 0.0
  %1073 = vmatpush1.msra.mxu0 0.0
  %1074 = vmatprep.mubr.f32.mxu0 0.0
  %1075 = vmatmul.mubr.f32.gmra.mrb[0].mxu0 %v914
  %v1076 = vpop.f32.mrb[0].mxu0
  %v1077 = vadd.f32 %v992, %v1076
  %v1078 = vpop.f32.mrb[0].mxu0
  %1079 = vmatprep.mubr.f32.mxu0 0.0
  %1080 = vmatmul.mubr.f32.gmra.mrb[0].mxu0 %v917
  %v1081 = vpop.f32.mrb[0].mxu0
  %v1082 = vadd.f32 %v997, %v1081
  %v1083 = vpop.f32.mrb[0].mxu0
  %1084 = vmatprep.mubr.f32.mxu0 0.0
  %1085 = vmatmul.mubr.f32.gmra.mrb[0].mxu0 %v920
  %v1086 = vpop.f32.mrb[0].mxu0
  %v1087 = vadd.f32 %v1002, %v1086
  %v1088 = vpop.f32.mrb[0].mxu0
  %1089 = vmatprep.mubr.f32.mxu0 0.0
  %1090 = vmatmul.mubr.f32.gmra.mrb[0].mxu0 %v923
  %v1091 = vpop.f32.mrb[0].mxu0
  %v1092 = vadd.f32 %v1007, %v1091
  %v1093 = vpop.f32.mrb[0].mxu0
  %1094 = vdwg.mxu0
  %v1095 = vmax.f32 %v1077, 0.0
  %v1096 = vmax.f32 %v1082, 0.0
  %v1097 = vmax.f32 %v1087, 0.0
  %v1098 = vmax.f32 %v1092, 0.0
  %v1099 = vld [vmem:[%s10] sm:$0xff]
  %v1100 = vld [vmem:[%s10 + $0x8] sm:$0xff]
  %v1101 = vld [vmem:[%s10 + $0x10] sm:$0xff]
  %v1102 = vld [vmem:[%s10 + $0x18] sm:$0xff]
  %v1103 = vld [vmem:[%s10 + $0x20] sm:$0xff]
  %v1104 = vld [vmem:[%s10 + $0x28] sm:$0xff]
  %v1105 = vld [vmem:[%s10 + $0x30] sm:$0xff]
  %v1106 = vld [vmem:[%s10 + $0x38] sm:$0xff]
  %v1107 = vld [vmem:[%s10 + $0x40] sm:$0xff]
  %v1108 = vld [vmem:[%s10 + $0x48] sm:$0xff]
  %v1109 = vld [vmem:[%s10 + $0x50] sm:$0xff]
  %v1110 = vld [vmem:[%s10 + $0x58] sm:$0xff]
  %1115 = vrot.lane.b32.xlu0 %v1095, 3
  %v1116 = vpop.permute.xlu0 %1115
  %1117 = vrot.lane.b32.xlu0 %v1096, 3
  %v1118 = vpop.permute.xlu0 %1117
  %1119 = vrot.lane.b32.xlu0 %v1097, 3
  %v1120 = vpop.permute.xlu0 %1119
  %1121 = vrot.lane.b32.xlu0 %v1098, 3
  %v1122 = vpop.permute.xlu0 %1121
  %v1127 = vsel %vm400, 0.0, %v1116
  %v1128 = vsel %vm400, 0.0, %v1118
  %v1129 = vsel %vm400, 0.0, %v1120
  %v1130 = vsel %vm400, 0.0, %v1122
  %1131 = vrot.lane.b32.xlu0 %v1095, 2
  %v1132 = vpop.permute.xlu0 %1131
  %1133 = vrot.lane.b32.xlu0 %v1096, 2
  %v1134 = vpop.permute.xlu0 %1133
  %1135 = vrot.lane.b32.xlu0 %v1097, 2
  %v1136 = vpop.permute.xlu0 %1135
  %1137 = vrot.lane.b32.xlu0 %v1098, 2
  %v1138 = vpop.permute.xlu0 %1137
  %v1143 = vsel %vm417, 0.0, %v1132
  %v1144 = vsel %vm417, 0.0, %v1134
  %v1145 = vsel %vm417, 0.0, %v1136
  %v1146 = vsel %vm417, 0.0, %v1138
  %1147 = vrot.lane.b32.xlu0 %v1095, 1
  %v1148 = vpop.permute.xlu0 %1147
  %1149 = vrot.lane.b32.xlu0 %v1096, 1
  %v1150 = vpop.permute.xlu0 %1149
  %1151 = vrot.lane.b32.xlu0 %v1097, 1
  %v1152 = vpop.permute.xlu0 %1151
  %1153 = vrot.lane.b32.xlu0 %v1098, 1
  %v1154 = vpop.permute.xlu0 %1153
  %v1159 = vsel %vm434, 0.0, %v1148
  %v1160 = vsel %vm434, 0.0, %v1150
  %v1161 = vsel %vm434, 0.0, %v1152
  %v1162 = vsel %vm434, 0.0, %v1154
  %1163 = vrot.lane.b32.xlu0 %v1095, 127
  %v1164 = vpop.permute.xlu0 %1163
  %1165 = vrot.lane.b32.xlu0 %v1096, 127
  %v1166 = vpop.permute.xlu0 %1165
  %1167 = vrot.lane.b32.xlu0 %v1097, 127
  %v1168 = vpop.permute.xlu0 %1167
  %1169 = vrot.lane.b32.xlu0 %v1098, 127
  %v1170 = vpop.permute.xlu0 %1169
  %v1175 = vsel %vm451, %v1164, 0.0
  %v1176 = vsel %vm451, %v1166, 0.0
  %v1177 = vsel %vm451, %v1168, 0.0
  %v1178 = vsel %vm451, %v1170, 0.0
  %1179 = vrot.lane.b32.xlu0 %v1095, 126
  %v1180 = vpop.permute.xlu0 %1179
  %1181 = vrot.lane.b32.xlu0 %v1096, 126
  %v1182 = vpop.permute.xlu0 %1181
  %1183 = vrot.lane.b32.xlu0 %v1097, 126
  %v1184 = vpop.permute.xlu0 %1183
  %1185 = vrot.lane.b32.xlu0 %v1098, 126
  %v1186 = vpop.permute.xlu0 %1185
  %v1191 = vsel %vm468, %v1180, 0.0
  %v1192 = vsel %vm468, %v1182, 0.0
  %v1193 = vsel %vm468, %v1184, 0.0
  %v1194 = vsel %vm468, %v1186, 0.0
  %1195 = vrot.lane.b32.xlu0 %v1095, 125
  %v1196 = vpop.permute.xlu0 %1195
  %1197 = vrot.lane.b32.xlu0 %v1096, 125
  %v1198 = vpop.permute.xlu0 %1197
  %1199 = vrot.lane.b32.xlu0 %v1097, 125
  %v1200 = vpop.permute.xlu0 %1199
  %1201 = vrot.lane.b32.xlu0 %v1098, 125
  %v1202 = vpop.permute.xlu0 %1201
  %v1207 = vsel %vm485, %v1196, 0.0
  %v1208 = vsel %vm485, %v1198, 0.0
  %v1209 = vsel %vm485, %v1200, 0.0
  %v1210 = vsel %vm485, %v1202, 0.0
  %v1211 = vmul.f32 %v1127, %v77
  %v1212 = vmul.f32 %v1128, %v78
  %v1213 = vmul.f32 %v1129, %v79
  %v1214 = vmul.f32 %v1130, %v80
  %v1215 = vmul.f32 %v1143, %v81
  %v1216 = vmul.f32 %v1144, %v82
  %v1217 = vmul.f32 %v1145, %v83
  %v1218 = vmul.f32 %v1146, %v84
  %v1219 = vmul.f32 %v1159, %v85
  %v1220 = vmul.f32 %v1160, %v86
  %v1221 = vmul.f32 %v1161, %v87
  %v1222 = vmul.f32 %v1162, %v88
  %v1223 = vmul.f32 %v1159, %v89
  %v1224 = vmul.f32 %v1160, %v90
  %v1225 = vmul.f32 %v1161, %v91
  %v1226 = vmul.f32 %v1162, %v92
  %v1227 = vmul.f32 %v1095, %v93
  %v1228 = vmul.f32 %v1096, %v94
  %v1229 = vmul.f32 %v1097, %v95
  %v1230 = vmul.f32 %v1098, %v96
  %v1231 = vmul.f32 %v1175, %v97
  %v1232 = vmul.f32 %v1176, %v98
  %v1233 = vmul.f32 %v1177, %v99
  %v1234 = vmul.f32 %v1178, %v100
  %v1235 = vmul.f32 %v1175, %v101
  %v1236 = vmul.f32 %v1176, %v102
  %v1237 = vmul.f32 %v1177, %v103
  %v1238 = vmul.f32 %v1178, %v104
  %v1239 = vmul.f32 %v1191, %v105
  %v1240 = vmul.f32 %v1192, %v106
  %v1241 = vmul.f32 %v1193, %v107
  %v1242 = vmul.f32 %v1194, %v108
  %v1243 = vmul.f32 %v1207, %v109
  %v1244 = vmul.f32 %v1208, %v110
  %v1245 = vmul.f32 %v1209, %v111
  %v1246 = vmul.f32 %v1210, %v112
  %v1247 = vld [vmem:[%s11] sm:$0xff]
  %v1248 = vld [vmem:[%s11 + $0x8] sm:$0xff]
  %v1249 = vld [vmem:[%s11 + $0x10] sm:$0xff]
  %v1250 = vld [vmem:[%s11 + $0x18] sm:$0xff]
  %1252 = vset.pattern.permute.xlu0 0
  %1253 = vperm.xlu0 %1252, %v1247
  %v1254 = vpop.permute.xlu0 %1253
  %1257 = vset.pattern.permute.xlu0 0
  %1258 = vperm.xlu0 %1257, %v1248
  %v1259 = vpop.permute.xlu0 %1258
  %1262 = vset.pattern.permute.xlu0 0
  %1263 = vperm.xlu0 %1262, %v1249
  %v1264 = vpop.permute.xlu0 %1263
  %1267 = vset.pattern.permute.xlu0 0
  %1268 = vperm.xlu0 %1267, %v1250
  %v1269 = vpop.permute.xlu0 %1268
  %v1272 = vsel %vm550, %v1101, 0
  %v1275 = vsel %vm550, %v1104, 0
  %v1278 = vsel %vm550, %v1107, 0
  %v1281 = vsel %vm550, %v1110, 0
  %1283 = vmatprep.subr.mxu0 0.0
  %1284 = vmatpush1.msra.mxu0 %v1211
  %1285 = vmatprep.subr.mxu0 0.0
  %1286 = vmatpush1.msra.mxu0 %v1212
  %1287 = vmatprep.subr.mxu0 0.0
  %1288 = vmatpush1.msra.mxu0 %v1213
  %1289 = vmatprep.subr.mxu0 0.0
  %1290 = vmatpush1.msra.mxu0 %v1214
  %1291 = vmatprep.subr.mxu0 0.0
  %1292 = vmatpush1.msra.mxu0 %v1215
  %1293 = vmatprep.subr.mxu0 0.0
  %1294 = vmatpush1.msra.mxu0 %v1216
  %1295 = vmatprep.subr.mxu0 0.0
  %1296 = vmatpush1.msra.mxu0 %v1217
  %1297 = vmatprep.subr.mxu0 0.0
  %1298 = vmatpush1.msra.mxu0 %v1218
  %1299 = vmatprep.subr.mxu0 0.0
  %1300 = vmatpush1.msra.mxu0 %v1219
  %1301 = vmatprep.subr.mxu0 0.0
  %1302 = vmatpush1.msra.mxu0 %v1220
  %1303 = vmatprep.subr.mxu0 0.0
  %1304 = vmatpush1.msra.mxu0 %v1221
  %1305 = vmatprep.subr.mxu0 0.0
  %1306 = vmatpush1.msra.mxu0 %v1222
  %1307 = vmatprep.subr.mxu0 0.0
  %1308 = vmatpush1.msra.mxu0 %v1223
  %1309 = vmatprep.subr.mxu0 0.0
  %1310 = vmatpush1.msra.mxu0 %v1224
  %1311 = vmatprep.subr.mxu0 0.0
  %1312 = vmatpush1.msra.mxu0 %v1225
  %1313 = vmatprep.subr.mxu0 0.0
  %1314 = vmatpush1.msra.mxu0 %v1226
  %1315 = vmatprep.subr.mxu0 0.0
  %1316 = vmatpush1.msra.mxu0 %v1227
  %1317 = vmatprep.subr.mxu0 0.0
  %1318 = vmatpush1.msra.mxu0 %v1228
  %1319 = vmatprep.subr.mxu0 0.0
  %1320 = vmatpush1.msra.mxu0 %v1229
  %1321 = vmatprep.subr.mxu0 0.0
  %1322 = vmatpush1.msra.mxu0 %v1230
  %1323 = vmatprep.subr.mxu0 0.0
  %1324 = vmatpush1.msra.mxu0 %v1231
  %1325 = vmatprep.subr.mxu0 0.0
  %1326 = vmatpush1.msra.mxu0 %v1232
  %1327 = vmatprep.subr.mxu0 0.0
  %1328 = vmatpush1.msra.mxu0 %v1233
  %1329 = vmatprep.subr.mxu0 0.0
  %1330 = vmatpush1.msra.mxu0 %v1234
  %1331 = vmatprep.subr.mxu0 0.0
  %1332 = vmatpush1.msra.mxu0 %v1235
  %1333 = vmatprep.subr.mxu0 0.0
  %1334 = vmatpush1.msra.mxu0 %v1236
  %1335 = vmatprep.subr.mxu0 0.0
  %1336 = vmatpush1.msra.mxu0 %v1237
  %1337 = vmatprep.subr.mxu0 0.0
  %1338 = vmatpush1.msra.mxu0 %v1238
  %1339 = vmatprep.subr.mxu0 0.0
  %1340 = vmatpush1.msra.mxu0 %v1239
  %1341 = vmatprep.subr.mxu0 0.0
  %1342 = vmatpush1.msra.mxu0 %v1240
  %1343 = vmatprep.subr.mxu0 0.0
  %1344 = vmatpush1.msra.mxu0 %v1241
  %1345 = vmatprep.subr.mxu0 0.0
  %1346 = vmatpush1.msra.mxu0 %v1242
  %1347 = vmatprep.mubr.f32.mxu0 %v1100
  %1348 = vmatmul.mubr.f32.gmra.mrb[0].mxu0 %v1099
  %v1349 = vpop.f32.mrb[0].mxu0
  %v1350 = vadd.f32 %v1254, %v1349
  %v1351 = vpop.f32.mrb[0].mxu0
  %1352 = vmatprep.mubr.f32.mxu0 %v1103
  %1353 = vmatmul.mubr.f32.gmra.mrb[0].mxu0 %v1102
  %v1354 = vpop.f32.mrb[0].mxu0
  %v1355 = vadd.f32 %v1259, %v1354
  %v1356 = vpop.f32.mrb[0].mxu0
  %1357 = vmatprep.mubr.f32.mxu0 %v1106
  %1358 = vmatmul.mubr.f32.gmra.mrb[0].mxu0 %v1105
  %v1359 = vpop.f32.mrb[0].mxu0
  %v1360 = vadd.f32 %v1264, %v1359
  %v1361 = vpop.f32.mrb[0].mxu0
  %1362 = vmatprep.mubr.f32.mxu0 %v1109
  %1363 = vmatmul.mubr.f32.gmra.mrb[0].mxu0 %v1108
  %v1364 = vpop.f32.mrb[0].mxu0
  %v1365 = vadd.f32 %v1269, %v1364
  %v1366 = vpop.f32.mrb[0].mxu0
  %1367 = vdwg.mxu0
  %1368 = vmatprep.subr.mxu0 0.0
  %1369 = vmatpush1.msra.mxu0 %v1243
  %1370 = vmatprep.subr.mxu0 0.0
  %1371 = vmatpush1.msra.mxu0 %v1244
  %1372 = vmatprep.subr.mxu0 0.0
  %1373 = vmatpush1.msra.mxu0 %v1245
  %1374 = vmatprep.subr.mxu0 0.0
  %1375 = vmatpush1.msra.mxu0 %v1246
  %1376 = vmatprep.subr.mxu0 0.0
  %1377 = vmatpush1.msra.mxu0 0.0
  %1378 = vmatprep.subr.mxu0 0.0
  %1379 = vmatpush1.msra.mxu0 0.0
  %1380 = vmatprep.subr.mxu0 0.0
  %1381 = vmatpush1.msra.mxu0 0.0
  %1382 = vmatprep.subr.mxu0 0.0
  %1383 = vmatpush1.msra.mxu0 0.0
  %1384 = vmatprep.subr.mxu0 0.0
  %1385 = vmatpush1.msra.mxu0 0.0
  %1386 = vmatprep.subr.mxu0 0.0
  %1387 = vmatpush1.msra.mxu0 0.0
  %1388 = vmatprep.subr.mxu0 0.0
  %1389 = vmatpush1.msra.mxu0 0.0
  %1390 = vmatprep.subr.mxu0 0.0
  %1391 = vmatpush1.msra.mxu0 0.0
  %1392 = vmatprep.subr.mxu0 0.0
  %1393 = vmatpush1.msra.mxu0 0.0
  %1394 = vmatprep.subr.mxu0 0.0
  %1395 = vmatpush1.msra.mxu0 0.0
  %1396 = vmatprep.subr.mxu0 0.0
  %1397 = vmatpush1.msra.mxu0 0.0
  %1398 = vmatprep.subr.mxu0 0.0
  %1399 = vmatpush1.msra.mxu0 0.0
  %1400 = vmatprep.subr.mxu0 0.0
  %1401 = vmatpush1.msra.mxu0 0.0
  %1402 = vmatprep.subr.mxu0 0.0
  %1403 = vmatpush1.msra.mxu0 0.0
  %1404 = vmatprep.subr.mxu0 0.0
  %1405 = vmatpush1.msra.mxu0 0.0
  %1406 = vmatprep.subr.mxu0 0.0
  %1407 = vmatpush1.msra.mxu0 0.0
  %1408 = vmatprep.subr.mxu0 0.0
  %1409 = vmatpush1.msra.mxu0 0.0
  %1410 = vmatprep.subr.mxu0 0.0
  %1411 = vmatpush1.msra.mxu0 0.0
  %1412 = vmatprep.subr.mxu0 0.0
  %1413 = vmatpush1.msra.mxu0 0.0
  %1414 = vmatprep.subr.mxu0 0.0
  %1415 = vmatpush1.msra.mxu0 0.0
  %1416 = vmatprep.subr.mxu0 0.0
  %1417 = vmatpush1.msra.mxu0 0.0
  %1418 = vmatprep.subr.mxu0 0.0
  %1419 = vmatpush1.msra.mxu0 0.0
  %1420 = vmatprep.subr.mxu0 0.0
  %1421 = vmatpush1.msra.mxu0 0.0
  %1422 = vmatprep.subr.mxu0 0.0
  %1423 = vmatpush1.msra.mxu0 0.0
  %1424 = vmatprep.subr.mxu0 0.0
  %1425 = vmatpush1.msra.mxu0 0.0
  %1426 = vmatprep.subr.mxu0 0.0
  %1427 = vmatpush1.msra.mxu0 0.0
  %1428 = vmatprep.subr.mxu0 0.0
  %1429 = vmatpush1.msra.mxu0 0.0
  %1430 = vmatprep.subr.mxu0 0.0
  %1431 = vmatpush1.msra.mxu0 0.0
  %1432 = vmatprep.mubr.f32.mxu0 0.0
  %1433 = vmatmul.mubr.f32.gmra.mrb[0].mxu0 %v1272
  %v1434 = vpop.f32.mrb[0].mxu0
  %v1435 = vadd.f32 %v1350, %v1434
  %v1436 = vpop.f32.mrb[0].mxu0
  %1437 = vmatprep.mubr.f32.mxu0 0.0
  %1438 = vmatmul.mubr.f32.gmra.mrb[0].mxu0 %v1275
  %v1439 = vpop.f32.mrb[0].mxu0
  %v1440 = vadd.f32 %v1355, %v1439
  %v1441 = vpop.f32.mrb[0].mxu0
  %1442 = vmatprep.mubr.f32.mxu0 0.0
  %1443 = vmatmul.mubr.f32.gmra.mrb[0].mxu0 %v1278
  %v1444 = vpop.f32.mrb[0].mxu0
  %v1445 = vadd.f32 %v1360, %v1444
  %v1446 = vpop.f32.mrb[0].mxu0
  %1447 = vmatprep.mubr.f32.mxu0 0.0
  %1448 = vmatmul.mubr.f32.gmra.mrb[0].mxu0 %v1281
  %v1449 = vpop.f32.mrb[0].mxu0
  %v1450 = vadd.f32 %v1365, %v1449
  %v1451 = vpop.f32.mrb[0].mxu0
  %1452 = vdwg.mxu0
  %v1453 = vadd.f32 %v1435, %v737
  %v1454 = vadd.f32 %v1440, %v738
  %v1455 = vadd.f32 %v1445, %v739
  %v1456 = vadd.f32 %v1450, %v740
  %v1457 = vmax.f32 %v1453, 0.0
  %v1458 = vmax.f32 %v1454, 0.0
  %v1459 = vmax.f32 %v1455, 0.0
  %v1460 = vmax.f32 %v1456, 0.0
  %v1461 = vpack.c.bf16 %v1458, %v1457
  %v1462 = vpack.c.bf16 %v1460, %v1459
  %v1465 = vunpack.c.l.b16 %v1461
  %v1466 = vunpack.c.h.b16 %v1461
  %v1467 = vunpack.c.l.b16 %v1462
  %v1468 = vunpack.c.h.b16 %v1462
  %v1469 = vpack.c.b16 %v1465, %v1465
  %v1470 = vpack.c.b16 %v1466, %v1466
  %v1471 = vpack.c.b16 %v1467, %v1467
  %v1472 = vpack.c.b16 %v1468, %v1468
  %vm1477 = vcmask 60416
  %1478 = vst.msk [vmem:[%s12] sm:$0xf] %vm1477, %v1469
  %1479 = vst.msk [vmem:[%s12 + $0x4] sm:$0xf] %vm1477, %v1470
  %1480 = vst.msk [vmem:[%s12 + $0x8] sm:$0xf] %vm1477, %v1471
  %1481 = vst.msk [vmem:[%s12 + $0xc] sm:$0xf] %vm1477, %v1472
  // Predicated region
  $region50: #{encode_uv_forward.10} parent=0 // pred_check
    _
  $region51: #{encode_uv_forward.10} parent=0 // pred_check_branch
    %1483 = sbr.rel (0) target = $region53
  $region52: #{encode_uv_forward.10} parent=0 // pred_region
    _
  $region53: #{encode_uv_forward.10} parent=0 // pred_fallthru
    _
  // Predicated region
  $region54: #{encode_uv_forward.10} parent=0 // pred_check
    _
  $region55: #{encode_uv_forward.10} parent=0 // pred_check_branch
    %1485 = sbr.rel (0) target = $region57
  $region56: #{encode_uv_forward.10} parent=0 // pred_region
    _
  $region57: #{encode_uv_forward.10} parent=0 // pred_fallthru
    _

// kernel: encode_uv_forward.11
$region0: #{encode_uv_forward.11}
  #allocation0 [shape = 'u32[]', space=smem, size = 0x4, offset = 0x4, fixed_abs, tag = 'smem constant byte address 0x4 - core index']
  #allocation1 [shape = 'u32[144,128]{1,0:T(1,128)}', space=vmem, size = 0x12000, scoped, tag = 'internal scratch']
  %s0 = inlined_call_operand.vmem [shape: bf16[288,2], index: 0, kind: input, shape index: {}]
  %s1 = inlined_call_operand.vmem [shape: f32[576,2], index: 1, kind: input, shape index: {}]
  %s2 = inlined_call_operand.vmem [shape: f32[64,288], index: 2, kind: input, shape index: {}]
  %s3 = inlined_call_operand.vmem [shape: f32[64,1], index: 3, kind: input, shape index: {}]
  %s4 = inlined_call_operand.vmem [shape: f32[64,32], index: 4, kind: input, shape index: {}]
  %s5 = inlined_call_operand.vmem [shape: f32[64,1], index: 5, kind: input, shape index: {}]
  %s6 = inlined_call_operand.vmem [shape: f32[64,576], index: 6, kind: input, shape index: {}]
  %s7 = inlined_call_operand.vmem [shape: f32[64,1], index: 7, kind: input, shape index: {}]
  %s8 = inlined_call_operand.vmem [shape: f32[64,576], index: 8, kind: input, shape index: {}]
  %s9 = inlined_call_operand.vmem [shape: f32[64,1], index: 9, kind: input, shape index: {}]
  %s10 = inlined_call_operand.vmem [shape: f32[64,576], index: 10, kind: input, shape index: {}]
  %s11 = inlined_call_operand.vmem [shape: f32[64,1], index: 11, kind: input, shape index: {}]
  %s12 = inlined_call_operand.vmem [shape: bf16[64,2], index: 12, kind: output, shape index: {}]
  %s13 = sld [smem:[#allocation0]]
  $region58: #{encode_uv_forward.11} parent=0
    _
  %s15 = ssub.s32 1, %s13
  %s16 = scalar_select 0, %s15, %s13
  // Predicated region
  $region2: #{encode_uv_forward.11} parent=0 // pred_check
    _
  $region3: #{encode_uv_forward.11} parent=0 // pred_check_branch
    %18 = sbr.rel (0) target = $region5
  $region4: #{encode_uv_forward.11} parent=0 // pred_region
    _
  $region5: #{encode_uv_forward.11} parent=0 // pred_fallthru
    _
  // Predicated region
  $region6: #{encode_uv_forward.11} parent=0 // pred_check
    _
  $region7: #{encode_uv_forward.11} parent=0 // pred_check_branch
    %20 = sbr.rel (0) target = $region9
  $region8: #{encode_uv_forward.11} parent=0 // pred_region
    _
  $region9: #{encode_uv_forward.11} parent=0 // pred_fallthru
    _
  // Predicated region
  $region10: #{encode_uv_forward.11} parent=0 // pred_check
    _
  $region11: #{encode_uv_forward.11} parent=0 // pred_check_branch
    %22 = sbr.rel (0) target = $region13
  $region12: #{encode_uv_forward.11} parent=0 // pred_region
    _
  $region13: #{encode_uv_forward.11} parent=0 // pred_fallthru
    _
  // Predicated region
  $region14: #{encode_uv_forward.11} parent=0 // pred_check
    _
  $region15: #{encode_uv_forward.11} parent=0 // pred_check_branch
    %24 = sbr.rel (0) target = $region17
  $region16: #{encode_uv_forward.11} parent=0 // pred_region
    _
  $region17: #{encode_uv_forward.11} parent=0 // pred_fallthru
    _
  // Predicated region
  $region18: #{encode_uv_forward.11} parent=0 // pred_check
    _
  $region19: #{encode_uv_forward.11} parent=0 // pred_check_branch
    %26 = sbr.rel (0) target = $region21
  $region20: #{encode_uv_forward.11} parent=0 // pred_region
    _
  $region21: #{encode_uv_forward.11} parent=0 // pred_fallthru
    _
  // Predicated region
  $region22: #{encode_uv_forward.11} parent=0 // pred_check
    _
  $region23: #{encode_uv_forward.11} parent=0 // pred_check_branch
    %28 = sbr.rel (0) target = $region25
  $region24: #{encode_uv_forward.11} parent=0 // pred_region
    _
  $region25: #{encode_uv_forward.11} parent=0 // pred_fallthru
    _
  // Predicated region
  $region26: #{encode_uv_forward.11} parent=0 // pred_check
    _
  $region27: #{encode_uv_forward.11} parent=0 // pred_check_branch
    %30 = sbr.rel (0) target = $region29
  $region28: #{encode_uv_forward.11} parent=0 // pred_region
    _
  $region29: #{encode_uv_forward.11} parent=0 // pred_fallthru
    _
  // Predicated region
  $region30: #{encode_uv_forward.11} parent=0 // pred_check
    _
  $region31: #{encode_uv_forward.11} parent=0 // pred_check_branch
    %32 = sbr.rel (0) target = $region33
  $region32: #{encode_uv_forward.11} parent=0 // pred_region
    _
  $region33: #{encode_uv_forward.11} parent=0 // pred_fallthru
    _
  // Predicated region
  $region34: #{encode_uv_forward.11} parent=0 // pred_check
    _
  $region35: #{encode_uv_forward.11} parent=0 // pred_check_branch
    %34 = sbr.rel (0) target = $region37
  $region36: #{encode_uv_forward.11} parent=0 // pred_region
    _
  $region37: #{encode_uv_forward.11} parent=0 // pred_fallthru
    _
  // Predicated region
  $region38: #{encode_uv_forward.11} parent=0 // pred_check
    _
  $region39: #{encode_uv_forward.11} parent=0 // pred_check_branch
    %36 = sbr.rel (0) target = $region41
  $region40: #{encode_uv_forward.11} parent=0 // pred_region
    _
  $region41: #{encode_uv_forward.11} parent=0 // pred_fallthru
    _
  // Predicated region
  $region42: #{encode_uv_forward.11} parent=0 // pred_check
    _
  $region43: #{encode_uv_forward.11} parent=0 // pred_check_branch
    %38 = sbr.rel (0) target = $region45
  $region44: #{encode_uv_forward.11} parent=0 // pred_region
    _
  $region45: #{encode_uv_forward.11} parent=0 // pred_fallthru
    _
  // Predicated region
  $region46: #{encode_uv_forward.11} parent=0 // pred_check
    _
  $region47: #{encode_uv_forward.11} parent=0 // pred_check_branch
    %40 = sbr.rel (0) target = $region49
  $region48: #{encode_uv_forward.11} parent=0 // pred_region
    _
  $region49: #{encode_uv_forward.11} parent=0 // pred_fallthru
    _
  %v41 = vld [vmem:[%s0] sm:$0xf]
  %v42 = vld [vmem:[%s0 + $0x4] sm:$0xf]
  %v43 = vld [vmem:[%s0 + $0x8] sm:$0xf]
  %v44 = vld [vmem:[%s0 + $0xc] sm:$0xf]
  %v45 = vld [vmem:[%s0 + $0x10] sm:$0xf]
  %v46 = vld [vmem:[%s0 + $0x14] sm:$0xf]
  %v47 = vld [vmem:[%s0 + $0x18] sm:$0xf]
  %v48 = vld [vmem:[%s0 + $0x1c] sm:$0xf]
  %v49 = vld [vmem:[%s0 + $0x20] sm:$0xf]
  %v50 = vld [vmem:[%s0 + $0x24] sm:$0xf]
  %v51 = vld [vmem:[%s0 + $0x28] sm:$0xf]
  %v52 = vld [vmem:[%s0 + $0x2c] sm:$0xf]
  %v53 = vld [vmem:[%s0 + $0x30] sm:$0xf]
  %v54 = vld [vmem:[%s0 + $0x34] sm:$0xf]
  %v55 = vld [vmem:[%s0 + $0x38] sm:$0xf]
  %v56 = vld [vmem:[%s0 + $0x3c] sm:$0xf]
  %v57 = vld [vmem:[%s0 + $0x40] sm:$0xf]
  %v58 = vld [vmem:[%s0 + $0x44] sm:$0xf]
  %v59 = vld [vmem:[%s0 + $0x48] sm:$0xf]
  %v60 = vld [vmem:[%s0 + $0x4c] sm:$0xf]
  %v61 = vld [vmem:[%s0 + $0x50] sm:$0xf]
  %v62 = vld [vmem:[%s0 + $0x54] sm:$0xf]
  %v63 = vld [vmem:[%s0 + $0x58] sm:$0xf]
  %v64 = vld [vmem:[%s0 + $0x5c] sm:$0xf]
  %v65 = vld [vmem:[%s0 + $0x60] sm:$0xf]
  %v66 = vld [vmem:[%s0 + $0x64] sm:$0xf]
  %v67 = vld [vmem:[%s0 + $0x68] sm:$0xf]
  %v68 = vld [vmem:[%s0 + $0x6c] sm:$0xf]
  %v69 = vld [vmem:[%s0 + $0x70] sm:$0xf]
  %v70 = vld [vmem:[%s0 + $0x74] sm:$0xf]
  %v71 = vld [vmem:[%s0 + $0x78] sm:$0xf]
  %v72 = vld [vmem:[%s0 + $0x7c] sm:$0xf]
  %v73 = vld [vmem:[%s0 + $0x80] sm:$0xf]
  %v74 = vld [vmem:[%s0 + $0x84] sm:$0xf]
  %v75 = vld [vmem:[%s0 + $0x88] sm:$0xf]
  %v76 = vld [vmem:[%s0 + $0x8c] sm:$0xf]
  %v77 = vunpack.c.l.bf16 %v41
  %v78 = vunpack.c.l.bf16 %v42
  %v79 = vunpack.c.l.bf16 %v43
  %v80 = vunpack.c.l.bf16 %v44
  %v81 = vunpack.c.l.bf16 %v45
  %v82 = vunpack.c.l.bf16 %v46
  %v83 = vunpack.c.l.bf16 %v47
  %v84 = vunpack.c.l.bf16 %v48
  %v85 = vunpack.c.l.bf16 %v49
  %v86 = vunpack.c.l.bf16 %v50
  %v87 = vunpack.c.l.bf16 %v51
  %v88 = vunpack.c.l.bf16 %v52
  %v89 = vunpack.c.l.bf16 %v53
  %v90 = vunpack.c.l.bf16 %v54
  %v91 = vunpack.c.l.bf16 %v55
  %v92 = vunpack.c.l.bf16 %v56
  %v93 = vunpack.c.l.bf16 %v57
  %v94 = vunpack.c.l.bf16 %v58
  %v95 = vunpack.c.l.bf16 %v59
  %v96 = vunpack.c.l.bf16 %v60
  %v97 = vunpack.c.l.bf16 %v61
  %v98 = vunpack.c.l.bf16 %v62
  %v99 = vunpack.c.l.bf16 %v63
  %v100 = vunpack.c.l.bf16 %v64
  %v101 = vunpack.c.l.bf16 %v65
  %v102 = vunpack.c.l.bf16 %v66
  %v103 = vunpack.c.l.bf16 %v67
  %v104 = vunpack.c.l.bf16 %v68
  %v105 = vunpack.c.l.bf16 %v69
  %v106 = vunpack.c.l.bf16 %v70
  %v107 = vunpack.c.l.bf16 %v71
  %v108 = vunpack.c.l.bf16 %v72
  %v109 = vunpack.c.l.bf16 %v73
  %v110 = vunpack.c.l.bf16 %v74
  %v111 = vunpack.c.l.bf16 %v75
  %v112 = vunpack.c.l.bf16 %v76
  %v113 = vld [vmem:[%s1] sm:$0xff]
  %v114 = vld [vmem:[%s1 + $0x8] sm:$0xff]
  %v115 = vld [vmem:[%s1 + $0x10] sm:$0xff]
  %v116 = vld [vmem:[%s1 + $0x18] sm:$0xff]
  %v117 = vld [vmem:[%s1 + $0x20] sm:$0xff]
  %v118 = vld [vmem:[%s1 + $0x28] sm:$0xff]
  %v119 = vld [vmem:[%s1 + $0x30] sm:$0xff]
  %v120 = vld [vmem:[%s1 + $0x38] sm:$0xff]
  %v121 = vld [vmem:[%s1 + $0x40] sm:$0xff]
  %v122 = vld [vmem:[%s1 + $0x48] sm:$0xff]
  %v123 = vld [vmem:[%s1 + $0x50] sm:$0xff]
  %v124 = vld [vmem:[%s1 + $0x58] sm:$0xff]
  %v125 = vld [vmem:[%s1 + $0x60] sm:$0xff]
  %v126 = vld [vmem:[%s1 + $0x68] sm:$0xff]
  %v127 = vld [vmem:[%s1 + $0x70] sm:$0xff]
  %v128 = vld [vmem:[%s1 + $0x78] sm:$0xff]
  %v129 = vld [vmem:[%s1 + $0x80] sm:$0xff]
  %v130 = vld [vmem:[%s1 + $0x88] sm:$0xff]
  %v131 = vld [vmem:[%s1 + $0x90] sm:$0xff]
  %v132 = vld [vmem:[%s1 + $0x98] sm:$0xff]
  %v133 = vld [vmem:[%s1 + $0xa0] sm:$0xff]
  %v134 = vld [vmem:[%s1 + $0xa8] sm:$0xff]
  %v135 = vld [vmem:[%s1 + $0xb0] sm:$0xff]
  %v136 = vld [vmem:[%s1 + $0xb8] sm:$0xff]
  %v137 = vld [vmem:[%s1 + $0xc0] sm:$0xff]
  %v138 = vld [vmem:[%s1 + $0xc8] sm:$0xff]
  %v139 = vld [vmem:[%s1 + $0xd0] sm:$0xff]
  %v140 = vld [vmem:[%s1 + $0xd8] sm:$0xff]
  %v141 = vld [vmem:[%s1 + $0xe0] sm:$0xff]
  %v142 = vld [vmem:[%s1 + $0xe8] sm:$0xff]
  %v143 = vld [vmem:[%s1 + $0xf0] sm:$0xff]
  %v144 = vld [vmem:[%s1 + $0xf8] sm:$0xff]
  %v145 = vld [vmem:[%s1 + $0x100] sm:$0xff]
  %v146 = vld [vmem:[%s1 + $0x108] sm:$0xff]
  %v147 = vld [vmem:[%s1 + $0x110] sm:$0xff]
  %v148 = vld [vmem:[%s1 + $0x118] sm:$0xff]
  %v149 = vld [vmem:[%s1 + $0x120] sm:$0xff]
  %v150 = vld [vmem:[%s1 + $0x128] sm:$0xff]
  %v151 = vld [vmem:[%s1 + $0x130] sm:$0xff]
  %v152 = vld [vmem:[%s1 + $0x138] sm:$0xff]
  %v153 = vld [vmem:[%s1 + $0x140] sm:$0xff]
  %v154 = vld [vmem:[%s1 + $0x148] sm:$0xff]
  %v155 = vld [vmem:[%s1 + $0x150] sm:$0xff]
  %v156 = vld [vmem:[%s1 + $0x158] sm:$0xff]
  %v157 = vld [vmem:[%s1 + $0x160] sm:$0xff]
  %v158 = vld [vmem:[%s1 + $0x168] sm:$0xff]
  %v159 = vld [vmem:[%s1 + $0x170] sm:$0xff]
  %v160 = vld [vmem:[%s1 + $0x178] sm:$0xff]
  %v161 = vld [vmem:[%s1 + $0x180] sm:$0xff]
  %v162 = vld [vmem:[%s1 + $0x188] sm:$0xff]
  %v163 = vld [vmem:[%s1 + $0x190] sm:$0xff]
  %v164 = vld [vmem:[%s1 + $0x198] sm:$0xff]
  %v165 = vld [vmem:[%s1 + $0x1a0] sm:$0xff]
  %v166 = vld [vmem:[%s1 + $0x1a8] sm:$0xff]
  %v167 = vld [vmem:[%s1 + $0x1b0] sm:$0xff]
  %v168 = vld [vmem:[%s1 + $0x1b8] sm:$0xff]
  %v169 = vld [vmem:[%s1 + $0x1c0] sm:$0xff]
  %v170 = vld [vmem:[%s1 + $0x1c8] sm:$0xff]
  %v171 = vld [vmem:[%s1 + $0x1d0] sm:$0xff]
  %v172 = vld [vmem:[%s1 + $0x1d8] sm:$0xff]
  %v173 = vld [vmem:[%s1 + $0x1e0] sm:$0xff]
  %v174 = vld [vmem:[%s1 + $0x1e8] sm:$0xff]
  %v175 = vld [vmem:[%s1 + $0x1f0] sm:$0xff]
  %v176 = vld [vmem:[%s1 + $0x1f8] sm:$0xff]
  %v177 = vld [vmem:[%s1 + $0x200] sm:$0xff]
  %v178 = vld [vmem:[%s1 + $0x208] sm:$0xff]
  %v179 = vld [vmem:[%s1 + $0x210] sm:$0xff]
  %v180 = vld [vmem:[%s1 + $0x218] sm:$0xff]
  %v181 = vld [vmem:[%s1 + $0x220] sm:$0xff]
  %v182 = vld [vmem:[%s1 + $0x228] sm:$0xff]
  %v183 = vld [vmem:[%s1 + $0x230] sm:$0xff]
  %v184 = vld [vmem:[%s1 + $0x238] sm:$0xff]
  %v185 = vld [vmem:[%s2] sm:$0xff]
  %v186 = vld [vmem:[%s2 + $0x8] sm:$0xff]
  %v187 = vld [vmem:[%s2 + $0x10] sm:$0xff]
  %v188 = vld [vmem:[%s2 + $0x18] sm:$0xff]
  %v189 = vld [vmem:[%s2 + $0x20] sm:$0xff]
  %v190 = vld [vmem:[%s2 + $0x28] sm:$0xff]
  %v191 = vld [vmem:[%s2 + $0x30] sm:$0xff]
  %v192 = vld [vmem:[%s2 + $0x38] sm:$0xff]
  %v193 = vld [vmem:[%s2 + $0x40] sm:$0xff]
  %v194 = vld [vmem:[%s2 + $0x48] sm:$0xff]
  %v195 = vld [vmem:[%s2 + $0x50] sm:$0xff]
  %v196 = vld [vmem:[%s2 + $0x58] sm:$0xff]
  %v197 = vld [vmem:[%s2 + $0x60] sm:$0xff]
  %v198 = vld [vmem:[%s2 + $0x68] sm:$0xff]
  %v199 = vld [vmem:[%s2 + $0x70] sm:$0xff]
  %v200 = vld [vmem:[%s2 + $0x78] sm:$0xff]
  %v201 = vld [vmem:[%s2 + $0x80] sm:$0xff]
  %v202 = vld [vmem:[%s2 + $0x88] sm:$0xff]
  %v203 = vld [vmem:[%s2 + $0x90] sm:$0xff]
  %v204 = vld [vmem:[%s2 + $0x98] sm:$0xff]
  %v205 = vld [vmem:[%s2 + $0xa0] sm:$0xff]
  %v206 = vld [vmem:[%s2 + $0xa8] sm:$0xff]
  %v207 = vld [vmem:[%s2 + $0xb0] sm:$0xff]
  %v208 = vld [vmem:[%s2 + $0xb8] sm:$0xff]
  %v209 = vld [vmem:[%s3] sm:$0xff]
  %v210 = vld [vmem:[%s3 + $0x8] sm:$0xff]
  %v211 = vld [vmem:[%s3 + $0x10] sm:$0xff]
  %v212 = vld [vmem:[%s3 + $0x18] sm:$0xff]
  %v213 = vld [vmem:[%s3 + $0x20] sm:$0xff]
  %v214 = vld [vmem:[%s3 + $0x28] sm:$0xff]
  %v215 = vld [vmem:[%s3 + $0x30] sm:$0xff]
  %v216 = vld [vmem:[%s3 + $0x38] sm:$0xff]
  %218 = vset.pattern.permute.xlu0 0
  %219 = vperm.xlu0 %218, %v209
  %v220 = vpop.permute.xlu0 %219
  %223 = vset.pattern.permute.xlu0 0
  %224 = vperm.xlu0 %223, %v210
  %v225 = vpop.permute.xlu0 %224
  %228 = vset.pattern.permute.xlu0 0
  %229 = vperm.xlu0 %228, %v211
  %v230 = vpop.permute.xlu0 %229
  %233 = vset.pattern.permute.xlu0 0
  %234 = vperm.xlu0 %233, %v212
  %v235 = vpop.permute.xlu0 %234
  %238 = vset.pattern.permute.xlu0 0
  %239 = vperm.xlu0 %238, %v213
  %v240 = vpop.permute.xlu0 %239
  %243 = vset.pattern.permute.xlu0 0
  %244 = vperm.xlu0 %243, %v214
  %v245 = vpop.permute.xlu0 %244
  %248 = vset.pattern.permute.xlu0 0
  %249 = vperm.xlu0 %248, %v215
  %v250 = vpop.permute.xlu0 %249
  %253 = vset.pattern.permute.xlu0 0
  %254 = vperm.xlu0 %253, %v216
  %v255 = vpop.permute.xlu0 %254
  %vm257 = vcmask 261120
  %v259 = vsel %vm257, %v187, 0
  %v262 = vsel %vm257, %v190, 0
  %v265 = vsel %vm257, %v193, 0
  %v268 = vsel %vm257, %v196, 0
  %v271 = vsel %vm257, %v199, 0
  %v274 = vsel %vm257, %v202, 0
  %v277 = vsel %vm257, %v205, 0
  %v280 = vsel %vm257, %v208, 0
  %282 = vmatprep.subr.mxu0 0.0
  %283 = vmatpush1.msra.mxu0 %v77
  %284 = vmatprep.subr.mxu0 0.0
  %285 = vmatpush1.msra.mxu0 %v78
  %286 = vmatprep.subr.mxu0 0.0
  %287 = vmatpush1.msra.mxu0 %v79
  %288 = vmatprep.subr.mxu0 0.0
  %289 = vmatpush1.msra.mxu0 %v80
  %290 = vmatprep.subr.mxu0 0.0
  %291 = vmatpush1.msra.mxu0 %v81
  %292 = vmatprep.subr.mxu0 0.0
  %293 = vmatpush1.msra.mxu0 %v82
  %294 = vmatprep.subr.mxu0 0.0
  %295 = vmatpush1.msra.mxu0 %v83
  %296 = vmatprep.subr.mxu0 0.0
  %297 = vmatpush1.msra.mxu0 %v84
  %298 = vmatprep.subr.mxu0 0.0
  %299 = vmatpush1.msra.mxu0 %v85
  %300 = vmatprep.subr.mxu0 0.0
  %301 = vmatpush1.msra.mxu0 %v86
  %302 = vmatprep.subr.mxu0 0.0
  %303 = vmatpush1.msra.mxu0 %v87
  %304 = vmatprep.subr.mxu0 0.0
  %305 = vmatpush1.msra.mxu0 %v88
  %306 = vmatprep.subr.mxu0 0.0
  %307 = vmatpush1.msra.mxu0 %v89
  %308 = vmatprep.subr.mxu0 0.0
  %309 = vmatpush1.msra.mxu0 %v90
  %310 = vmatprep.subr.mxu0 0.0
  %311 = vmatpush1.msra.mxu0 %v91
  %312 = vmatprep.subr.mxu0 0.0
  %313 = vmatpush1.msra.mxu0 %v92
  %314 = vmatprep.subr.mxu0 0.0
  %315 = vmatpush1.msra.mxu0 %v93
  %316 = vmatprep.subr.mxu0 0.0
  %317 = vmatpush1.msra.mxu0 %v94
  %318 = vmatprep.subr.mxu0 0.0
  %319 = vmatpush1.msra.mxu0 %v95
  %320 = vmatprep.subr.mxu0 0.0
  %321 = vmatpush1.msra.mxu0 %v96
  %322 = vmatprep.subr.mxu0 0.0
  %323 = vmatpush1.msra.mxu0 %v97
  %324 = vmatprep.subr.mxu0 0.0
  %325 = vmatpush1.msra.mxu0 %v98
  %326 = vmatprep.subr.mxu0 0.0
  %327 = vmatpush1.msra.mxu0 %v99
  %328 = vmatprep.subr.mxu0 0.0
  %329 = vmatpush1.msra.mxu0 %v100
  %330 = vmatprep.subr.mxu0 0.0
  %331 = vmatpush1.msra.mxu0 %v101
  %332 = vmatprep.subr.mxu0 0.0
  %333 = vmatpush1.msra.mxu0 %v102
  %334 = vmatprep.subr.mxu0 0.0
  %335 = vmatpush1.msra.mxu0 %v103
  %336 = vmatprep.subr.mxu0 0.0
  %337 = vmatpush1.msra.mxu0 %v104
  %338 = vmatprep.subr.mxu0 0.0
  %339 = vmatpush1.msra.mxu0 %v105
  %340 = vmatprep.subr.mxu0 0.0
  %341 = vmatpush1.msra.mxu0 %v106
  %342 = vmatprep.subr.mxu0 0.0
  %343 = vmatpush1.msra.mxu0 %v107
  %344 = vmatprep.subr.mxu0 0.0
  %345 = vmatpush1.msra.mxu0 %v108
  %346 = vmatprep.mubr.f32.mxu0 %v186
  %347 = vmatmul.mubr.f32.gmra.mrb[0].mxu0 %v185
  %v348 = vpop.f32.mrb[0].mxu0
  %v349 = vadd.f32 %v220, %v348
  %v350 = vpop.f32.mrb[0].mxu0
  %351 = vmatprep.mubr.f32.mxu0 %v189
  %352 = vmatmul.mubr.f32.gmra.mrb[0].mxu0 %v188
  %v353 = vpop.f32.mrb[0].mxu0
  %v354 = vadd.f32 %v225, %v353
  %v355 = vpop.f32.mrb[0].mxu0
  %356 = vmatprep.mubr.f32.mxu0 %v192
  %357 = vmatmul.mubr.f32.gmra.mrb[0].mxu0 %v191
  %v358 = vpop.f32.mrb[0].mxu0
  %v359 = vadd.f32 %v230, %v358
  %v360 = vpop.f32.mrb[0].mxu0
  %361 = vmatprep.mubr.f32.mxu0 %v195
  %362 = vmatmul.mubr.f32.gmra.mrb[0].mxu0 %v194
  %v363 = vpop.f32.mrb[0].mxu0
  %v364 = vadd.f32 %v235, %v363
  %v365 = vpop.f32.mrb[0].mxu0
  %366 = vmatprep.mubr.f32.mxu0 %v198
  %367 = vmatmul.mubr.f32.gmra.mrb[0].mxu0 %v197
  %v368 = vpop.f32.mrb[0].mxu0
  %v369 = vadd.f32 %v240, %v368
  %v370 = vpop.f32.mrb[0].mxu0
  %371 = vmatprep.mubr.f32.mxu0 %v201
  %372 = vmatmul.mubr.f32.gmra.mrb[0].mxu0 %v200
  %v373 = vpop.f32.mrb[0].mxu0
  %v374 = vadd.f32 %v245, %v373
  %v375 = vpop.f32.mrb[0].mxu0
  %376 = vmatprep.mubr.f32.mxu0 %v204
  %377 = vmatmul.mubr.f32.gmra.mrb[0].mxu0 %v203
  %v378 = vpop.f32.mrb[0].mxu0
  %v379 = vadd.f32 %v250, %v378
  %v380 = vpop.f32.mrb[0].mxu0
  %381 = vmatprep.mubr.f32.mxu0 %v207
  %382 = vmatmul.mubr.f32.gmra.mrb[0].mxu0 %v206
  %v383 = vpop.f32.mrb[0].mxu0
  %v384 = vadd.f32 %v255, %v383
  %v385 = vpop.f32.mrb[0].mxu0
  %386 = vdwg.mxu0
  %387 = vmatprep.subr.mxu0 0.0
  %388 = vmatpush1.msra.mxu0 %v109
  %389 = vmatprep.subr.mxu0 0.0
  %390 = vmatpush1.msra.mxu0 %v110
  %391 = vmatprep.subr.mxu0 0.0
  %392 = vmatpush1.msra.mxu0 %v111
  %393 = vmatprep.subr.mxu0 0.0
  %394 = vmatpush1.msra.mxu0 %v112
  %395 = vmatprep.subr.mxu0 0.0
  %396 = vmatpush1.msra.mxu0 0.0
  %397 = vmatprep.subr.mxu0 0.0
  %398 = vmatpush1.msra.mxu0 0.0
  %399 = vmatprep.subr.mxu0 0.0
  %400 = vmatpush1.msra.mxu0 0.0
  %401 = vmatprep.subr.mxu0 0.0
  %402 = vmatpush1.msra.mxu0 0.0
  %403 = vmatprep.subr.mxu0 0.0
  %404 = vmatpush1.msra.mxu0 0.0
  %405 = vmatprep.subr.mxu0 0.0
  %406 = vmatpush1.msra.mxu0 0.0
  %407 = vmatprep.subr.mxu0 0.0
  %408 = vmatpush1.msra.mxu0 0.0
  %409 = vmatprep.subr.mxu0 0.0
  %410 = vmatpush1.msra.mxu0 0.0
  %411 = vmatprep.subr.mxu0 0.0
  %412 = vmatpush1.msra.mxu0 0.0
  %413 = vmatprep.subr.mxu0 0.0
  %414 = vmatpush1.msra.mxu0 0.0
  %415 = vmatprep.subr.mxu0 0.0
  %416 = vmatpush1.msra.mxu0 0.0
  %417 = vmatprep.subr.mxu0 0.0
  %418 = vmatpush1.msra.mxu0 0.0
  %419 = vmatprep.subr.mxu0 0.0
  %420 = vmatpush1.msra.mxu0 0.0
  %421 = vmatprep.subr.mxu0 0.0
  %422 = vmatpush1.msra.mxu0 0.0
  %423 = vmatprep.subr.mxu0 0.0
  %424 = vmatpush1.msra.mxu0 0.0
  %425 = vmatprep.subr.mxu0 0.0
  %426 = vmatpush1.msra.mxu0 0.0
  %427 = vmatprep.subr.mxu0 0.0
  %428 = vmatpush1.msra.mxu0 0.0
  %429 = vmatprep.subr.mxu0 0.0
  %430 = vmatpush1.msra.mxu0 0.0
  %431 = vmatprep.subr.mxu0 0.0
  %432 = vmatpush1.msra.mxu0 0.0
  %433 = vmatprep.subr.mxu0 0.0
  %434 = vmatpush1.msra.mxu0 0.0
  %435 = vmatprep.subr.mxu0 0.0
  %436 = vmatpush1.msra.mxu0 0.0
  %437 = vmatprep.subr.mxu0 0.0
  %438 = vmatpush1.msra.mxu0 0.0
  %439 = vmatprep.subr.mxu0 0.0
  %440 = vmatpush1.msra.mxu0 0.0
  %441 = vmatprep.subr.mxu0 0.0
  %442 = vmatpush1.msra.mxu0 0.0
  %443 = vmatprep.subr.mxu0 0.0
  %444 = vmatpush1.msra.mxu0 0.0
  %445 = vmatprep.subr.mxu0 0.0
  %446 = vmatpush1.msra.mxu0 0.0
  %447 = vmatprep.subr.mxu0 0.0
  %448 = vmatpush1.msra.mxu0 0.0
  %449 = vmatprep.subr.mxu0 0.0
  %450 = vmatpush1.msra.mxu0 0.0
  %451 = vmatprep.mubr.f32.mxu0 0.0
  %452 = vmatmul.mubr.f32.gmra.mrb[0].mxu0 %v259
  %v453 = vpop.f32.mrb[0].mxu0
  %v454 = vadd.f32 %v349, %v453
  %v455 = vpop.f32.mrb[0].mxu0
  %456 = vmatprep.mubr.f32.mxu0 0.0
  %457 = vmatmul.mubr.f32.gmra.mrb[0].mxu0 %v262
  %v458 = vpop.f32.mrb[0].mxu0
  %v459 = vadd.f32 %v354, %v458
  %v460 = vpop.f32.mrb[0].mxu0
  %461 = vmatprep.mubr.f32.mxu0 0.0
  %462 = vmatmul.mubr.f32.gmra.mrb[0].mxu0 %v265
  %v463 = vpop.f32.mrb[0].mxu0
  %v464 = vadd.f32 %v359, %v463
  %v465 = vpop.f32.mrb[0].mxu0
  %466 = vmatprep.mubr.f32.mxu0 0.0
  %467 = vmatmul.mubr.f32.gmra.mrb[0].mxu0 %v268
  %v468 = vpop.f32.mrb[0].mxu0
  %v469 = vadd.f32 %v364, %v468
  %v470 = vpop.f32.mrb[0].mxu0
  %471 = vmatprep.mubr.f32.mxu0 0.0
  %472 = vmatmul.mubr.f32.gmra.mrb[0].mxu0 %v271
  %v473 = vpop.f32.mrb[0].mxu0
  %v474 = vadd.f32 %v369, %v473
  %v475 = vpop.f32.mrb[0].mxu0
  %476 = vmatprep.mubr.f32.mxu0 0.0
  %477 = vmatmul.mubr.f32.gmra.mrb[0].mxu0 %v274
  %v478 = vpop.f32.mrb[0].mxu0
  %v479 = vadd.f32 %v374, %v478
  %v480 = vpop.f32.mrb[0].mxu0
  %481 = vmatprep.mubr.f32.mxu0 0.0
  %482 = vmatmul.mubr.f32.gmra.mrb[0].mxu0 %v277
  %v483 = vpop.f32.mrb[0].mxu0
  %v484 = vadd.f32 %v379, %v483
  %v485 = vpop.f32.mrb[0].mxu0
  %486 = vmatprep.mubr.f32.mxu0 0.0
  %487 = vmatmul.mubr.f32.gmra.mrb[0].mxu0 %v280
  %v488 = vpop.f32.mrb[0].mxu0
  %v489 = vadd.f32 %v384, %v488
  %v490 = vpop.f32.mrb[0].mxu0
  %491 = vdwg.mxu0
  %v492 = vmax.f32 %v454, 0.0
  %v493 = vmax.f32 %v459, 0.0
  %v494 = vmax.f32 %v464, 0.0
  %v495 = vmax.f32 %v469, 0.0
  %v496 = vmax.f32 %v474, 0.0
  %v497 = vmax.f32 %v479, 0.0
  %v498 = vmax.f32 %v484, 0.0
  %v499 = vmax.f32 %v489, 0.0
  %v500 = vld [vmem:[%s4] sm:$0xff]
  %v501 = vld [vmem:[%s4 + $0x8] sm:$0xff]
  %v502 = vld [vmem:[%s4 + $0x10] sm:$0xff]
  %v503 = vld [vmem:[%s4 + $0x18] sm:$0xff]
  %v504 = vld [vmem:[%s4 + $0x20] sm:$0xff]
  %v505 = vld [vmem:[%s4 + $0x28] sm:$0xff]
  %v506 = vld [vmem:[%s4 + $0x30] sm:$0xff]
  %v507 = vld [vmem:[%s4 + $0x38] sm:$0xff]
  %v508 = vld [vmem:[%s5] sm:$0xff]
  %v509 = vld [vmem:[%s5 + $0x8] sm:$0xff]
  %v510 = vld [vmem:[%s5 + $0x10] sm:$0xff]
  %v511 = vld [vmem:[%s5 + $0x18] sm:$0xff]
  %v512 = vld [vmem:[%s5 + $0x20] sm:$0xff]
  %v513 = vld [vmem:[%s5 + $0x28] sm:$0xff]
  %v514 = vld [vmem:[%s5 + $0x30] sm:$0xff]
  %v515 = vld [vmem:[%s5 + $0x38] sm:$0xff]
  %517 = vset.pattern.permute.xlu0 0
  %518 = vperm.xlu0 %517, %v508
  %v519 = vpop.permute.xlu0 %518
  %522 = vset.pattern.permute.xlu0 0
  %523 = vperm.xlu0 %522, %v509
  %v524 = vpop.permute.xlu0 %523
  %527 = vset.pattern.permute.xlu0 0
  %528 = vperm.xlu0 %527, %v510
  %v529 = vpop.permute.xlu0 %528
  %532 = vset.pattern.permute.xlu0 0
  %533 = vperm.xlu0 %532, %v511
  %v534 = vpop.permute.xlu0 %533
  %537 = vset.pattern.permute.xlu0 0
  %538 = vperm.xlu0 %537, %v512
  %v539 = vpop.permute.xlu0 %538
  %542 = vset.pattern.permute.xlu0 0
  %543 = vperm.xlu0 %542, %v513
  %v544 = vpop.permute.xlu0 %543
  %547 = vset.pattern.permute.xlu0 0
  %548 = vperm.xlu0 %547, %v514
  %v549 = vpop.permute.xlu0 %548
  %552 = vset.pattern.permute.xlu0 0
  %553 = vperm.xlu0 %552, %v515
  %v554 = vpop.permute.xlu0 %553
  %v557 = vsel %vm257, %v500, 0
  %v560 = vsel %vm257, %v501, 0
  %v563 = vsel %vm257, %v502, 0
  %v566 = vsel %vm257, %v503, 0
  %v569 = vsel %vm257, %v504, 0
  %v572 = vsel %vm257, %v505, 0
  %v575 = vsel %vm257, %v506, 0
  %v578 = vsel %vm257, %v507, 0
  %580 = vmatprep.subr.mxu0 0.0
  %581 = vmatpush1.msra.mxu0 %v93
  %582 = vmatprep.subr.mxu0 0.0
  %583 = vmatpush1.msra.mxu0 %v94
  %584 = vmatprep.subr.mxu0 0.0
  %585 = vmatpush1.msra.mxu0 %v95
  %586 = vmatprep.subr.mxu0 0.0
  %587 = vmatpush1.msra.mxu0 %v96
  %588 = vmatprep.subr.mxu0 0.0
  %589 = vmatpush1.msra.mxu0 0.0
  %590 = vmatprep.subr.mxu0 0.0
  %591 = vmatpush1.msra.mxu0 0.0
  %592 = vmatprep.subr.mxu0 0.0
  %593 = vmatpush1.msra.mxu0 0.0
  %594 = vmatprep.subr.mxu0 0.0
  %595 = vmatpush1.msra.mxu0 0.0
  %596 = vmatprep.subr.mxu0 0.0
  %597 = vmatpush1.msra.mxu0 0.0
  %598 = vmatprep.subr.mxu0 0.0
  %599 = vmatpush1.msra.mxu0 0.0
  %600 = vmatprep.subr.mxu0 0.0
  %601 = vmatpush1.msra.mxu0 0.0
  %602 = vmatprep.subr.mxu0 0.0
  %603 = vmatpush1.msra.mxu0 0.0
  %604 = vmatprep.subr.mxu0 0.0
  %605 = vmatpush1.msra.mxu0 0.0
  %606 = vmatprep.subr.mxu0 0.0
  %607 = vmatpush1.msra.mxu0 0.0
  %608 = vmatprep.subr.mxu0 0.0
  %609 = vmatpush1.msra.mxu0 0.0
  %610 = vmatprep.subr.mxu0 0.0
  %611 = vmatpush1.msra.mxu0 0.0
  %612 = vmatprep.subr.mxu0 0.0
  %613 = vmatpush1.msra.mxu0 0.0
  %614 = vmatprep.subr.mxu0 0.0
  %615 = vmatpush1.msra.mxu0 0.0
  %616 = vmatprep.subr.mxu0 0.0
  %617 = vmatpush1.msra.mxu0 0.0
  %618 = vmatprep.subr.mxu0 0.0
  %619 = vmatpush1.msra.mxu0 0.0
  %620 = vmatprep.subr.mxu0 0.0
  %621 = vmatpush1.msra.mxu0 0.0
  %622 = vmatprep.subr.mxu0 0.0
  %623 = vmatpush1.msra.mxu0 0.0
  %624 = vmatprep.subr.mxu0 0.0
  %625 = vmatpush1.msra.mxu0 0.0
  %626 = vmatprep.subr.mxu0 0.0
  %627 = vmatpush1.msra.mxu0 0.0
  %628 = vmatprep.subr.mxu0 0.0
  %629 = vmatpush1.msra.mxu0 0.0
  %630 = vmatprep.subr.mxu0 0.0
  %631 = vmatpush1.msra.mxu0 0.0
  %632 = vmatprep.subr.mxu0 0.0
  %633 = vmatpush1.msra.mxu0 0.0
  %634 = vmatprep.subr.mxu0 0.0
  %635 = vmatpush1.msra.mxu0 0.0
  %636 = vmatprep.subr.mxu0 0.0
  %637 = vmatpush1.msra.mxu0 0.0
  %638 = vmatprep.subr.mxu0 0.0
  %639 = vmatpush1.msra.mxu0 0.0
  %640 = vmatprep.subr.mxu0 0.0
  %641 = vmatpush1.msra.mxu0 0.0
  %642 = vmatprep.subr.mxu0 0.0
  %643 = vmatpush1.msra.mxu0 0.0
  %644 = vmatprep.mubr.f32.mxu0 0.0
  %645 = vmatmul.mubr.f32.gmra.mrb[0].mxu0 %v557
  %v646 = vpop.f32.mrb[0].mxu0
  %v647 = vadd.f32 %v519, %v646
  %v648 = vpop.f32.mrb[0].mxu0
  %649 = vmatprep.mubr.f32.mxu0 0.0
  %650 = vmatmul.mubr.f32.gmra.mrb[0].mxu0 %v560
  %v651 = vpop.f32.mrb[0].mxu0
  %v652 = vadd.f32 %v524, %v651
  %v653 = vpop.f32.mrb[0].mxu0
  %654 = vmatprep.mubr.f32.mxu0 0.0
  %655 = vmatmul.mubr.f32.gmra.mrb[0].mxu0 %v563
  %v656 = vpop.f32.mrb[0].mxu0
  %v657 = vadd.f32 %v529, %v656
  %v658 = vpop.f32.mrb[0].mxu0
  %659 = vmatprep.mubr.f32.mxu0 0.0
  %660 = vmatmul.mubr.f32.gmra.mrb[0].mxu0 %v566
  %v661 = vpop.f32.mrb[0].mxu0
  %v662 = vadd.f32 %v534, %v661
  %v663 = vpop.f32.mrb[0].mxu0
  %664 = vmatprep.mubr.f32.mxu0 0.0
  %665 = vmatmul.mubr.f32.gmra.mrb[0].mxu0 %v569
  %v666 = vpop.f32.mrb[0].mxu0
  %v667 = vadd.f32 %v539, %v666
  %v668 = vpop.f32.mrb[0].mxu0
  %669 = vmatprep.mubr.f32.mxu0 0.0
  %670 = vmatmul.mubr.f32.gmra.mrb[0].mxu0 %v572
  %v671 = vpop.f32.mrb[0].mxu0
  %v672 = vadd.f32 %v544, %v671
  %v673 = vpop.f32.mrb[0].mxu0
  %674 = vmatprep.mubr.f32.mxu0 0.0
  %675 = vmatmul.mubr.f32.gmra.mrb[0].mxu0 %v575
  %v676 = vpop.f32.mrb[0].mxu0
  %v677 = vadd.f32 %v549, %v676
  %v678 = vpop.f32.mrb[0].mxu0
  %679 = vmatprep.mubr.f32.mxu0 0.0
  %680 = vmatmul.mubr.f32.gmra.mrb[0].mxu0 %v578
  %v681 = vpop.f32.mrb[0].mxu0
  %v682 = vadd.f32 %v554, %v681
  %v683 = vpop.f32.mrb[0].mxu0
  %684 = vdwg.mxu0
  %v685 = vld [vmem:[%s6] sm:$0xff]
  %v686 = vld [vmem:[%s6 + $0x8] sm:$0xff]
  %v687 = vld [vmem:[%s6 + $0x10] sm:$0xff]
  %v688 = vld [vmem:[%s6 + $0x18] sm:$0xff]
  %v689 = vld [vmem:[%s6 + $0x20] sm:$0xff]
  %v690 = vld [vmem:[%s6 + $0x28] sm:$0xff]
  %v691 = vld [vmem:[%s6 + $0x30] sm:$0xff]
  %v692 = vld [vmem:[%s6 + $0x38] sm:$0xff]
  %v693 = vld [vmem:[%s6 + $0x40] sm:$0xff]
  %v694 = vld [vmem:[%s6 + $0x48] sm:$0xff]
  %v695 = vld [vmem:[%s6 + $0x50] sm:$0xff]
  %v696 = vld [vmem:[%s6 + $0x58] sm:$0xff]
  %v697 = vld [vmem:[%s6 + $0x60] sm:$0xff]
  %v698 = vld [vmem:[%s6 + $0x68] sm:$0xff]
  %v699 = vld [vmem:[%s6 + $0x70] sm:$0xff]
  %v700 = vld [vmem:[%s6 + $0x78] sm:$0xff]
  %v701 = vld [vmem:[%s6 + $0x80] sm:$0xff]
  %v702 = vld [vmem:[%s6 + $0x88] sm:$0xff]
  %v703 = vld [vmem:[%s6 + $0x90] sm:$0xff]
  %v704 = vld [vmem:[%s6 + $0x98] sm:$0xff]
  %v705 = vld [vmem:[%s6 + $0xa0] sm:$0xff]
  %v706 = vld [vmem:[%s6 + $0xa8] sm:$0xff]
  %v707 = vld [vmem:[%s6 + $0xb0] sm:$0xff]
  %v708 = vld [vmem:[%s6 + $0xb8] sm:$0xff]
  %v709 = vld [vmem:[%s6 + $0xc0] sm:$0xff]
  %v710 = vld [vmem:[%s6 + $0xc8] sm:$0xff]
  %v711 = vld [vmem:[%s6 + $0xd0] sm:$0xff]
  %v712 = vld [vmem:[%s6 + $0xd8] sm:$0xff]
  %v713 = vld [vmem:[%s6 + $0xe0] sm:$0xff]
  %v714 = vld [vmem:[%s6 + $0xe8] sm:$0xff]
  %v715 = vld [vmem:[%s6 + $0xf0] sm:$0xff]
  %v716 = vld [vmem:[%s6 + $0xf8] sm:$0xff]
  %v717 = vld [vmem:[%s6 + $0x100] sm:$0xff]
  %v718 = vld [vmem:[%s6 + $0x108] sm:$0xff]
  %v719 = vld [vmem:[%s6 + $0x110] sm:$0xff]
  %v720 = vld [vmem:[%s6 + $0x118] sm:$0xff]
  %v721 = vld [vmem:[%s6 + $0x120] sm:$0xff]
  %v722 = vld [vmem:[%s6 + $0x128] sm:$0xff]
  %v723 = vld [vmem:[%s6 + $0x130] sm:$0xff]
  %v724 = vld [vmem:[%s6 + $0x138] sm:$0xff]
  %733 = vrot.lane.b32.xlu0 %v492, 1
  %v734 = vpop.permute.xlu0 %733
  %735 = vrot.lane.b32.xlu0 %v493, 1
  %v736 = vpop.permute.xlu0 %735
  %737 = vrot.lane.b32.xlu0 %v494, 1
  %v738 = vpop.permute.xlu0 %737
  %739 = vrot.lane.b32.xlu0 %v495, 1
  %v740 = vpop.permute.xlu0 %739
  %741 = vrot.lane.b32.xlu0 %v496, 1
  %v742 = vpop.permute.xlu0 %741
  %743 = vrot.lane.b32.xlu0 %v497, 1
  %v744 = vpop.permute.xlu0 %743
  %745 = vrot.lane.b32.xlu0 %v498, 1
  %v746 = vpop.permute.xlu0 %745
  %747 = vrot.lane.b32.xlu0 %v499, 1
  %v748 = vpop.permute.xlu0 %747
  %vm757 = vcmask 7168
  %v758 = vsel %vm757, 0.0, %v734
  %v759 = vsel %vm757, 0.0, %v736
  %v760 = vsel %vm757, 0.0, %v738
  %v761 = vsel %vm757, 0.0, %v740
  %v762 = vsel %vm757, 0.0, %v742
  %v763 = vsel %vm757, 0.0, %v744
  %v764 = vsel %vm757, 0.0, %v746
  %v765 = vsel %vm757, 0.0, %v748
  %766 = vrot.lane.b32.xlu0 %v492, 127
  %v767 = vpop.permute.xlu0 %766
  %768 = vrot.lane.b32.xlu0 %v493, 127
  %v769 = vpop.permute.xlu0 %768
  %770 = vrot.lane.b32.xlu0 %v494, 127
  %v771 = vpop.permute.xlu0 %770
  %772 = vrot.lane.b32.xlu0 %v495, 127
  %v773 = vpop.permute.xlu0 %772
  %774 = vrot.lane.b32.xlu0 %v496, 127
  %v775 = vpop.permute.xlu0 %774
  %776 = vrot.lane.b32.xlu0 %v497, 127
  %v777 = vpop.permute.xlu0 %776
  %778 = vrot.lane.b32.xlu0 %v498, 127
  %v779 = vpop.permute.xlu0 %778
  %780 = vrot.lane.b32.xlu0 %v499, 127
  %v781 = vpop.permute.xlu0 %780
  %v790 = vsel %vm757, %v767, 0.0
  %v791 = vsel %vm757, %v769, 0.0
  %v792 = vsel %vm757, %v771, 0.0
  %v793 = vsel %vm757, %v773, 0.0
  %v794 = vsel %vm757, %v775, 0.0
  %v795 = vsel %vm757, %v777, 0.0
  %v796 = vsel %vm757, %v779, 0.0
  %v797 = vsel %vm757, %v781, 0.0
  %v798 = vmul.f32 %v113, 0.0
  %v799 = vmul.f32 %v114, 0.0
  %v800 = vmul.f32 %v115, 0.0
  %v801 = vmul.f32 %v116, 0.0
  %v802 = vmul.f32 %v117, 0.0
  %v803 = vmul.f32 %v118, 0.0
  %v804 = vmul.f32 %v119, 0.0
  %v805 = vmul.f32 %v120, 0.0
  %v806 = vmul.f32 %v758, %v121
  %v807 = vmul.f32 %v759, %v122
  %v808 = vmul.f32 %v760, %v123
  %v809 = vmul.f32 %v761, %v124
  %v810 = vmul.f32 %v762, %v125
  %v811 = vmul.f32 %v763, %v126
  %v812 = vmul.f32 %v764, %v127
  %v813 = vmul.f32 %v765, %v128
  %v814 = vmul.f32 %v492, %v129
  %v815 = vmul.f32 %v493, %v130
  %v816 = vmul.f32 %v494, %v131
  %v817 = vmul.f32 %v495, %v132
  %v818 = vmul.f32 %v496, %v133
  %v819 = vmul.f32 %v497, %v134
  %v820 = vmul.f32 %v498, %v135
  %v821 = vmul.f32 %v499, %v136
  %v822 = vmul.f32 %v758, %v137
  %v823 = vmul.f32 %v759, %v138
  %v824 = vmul.f32 %v760, %v139
  %v825 = vmul.f32 %v761, %v140
  %v826 = vmul.f32 %v762, %v141
  %v827 = vmul.f32 %v763, %v142
  %v828 = vmul.f32 %v764, %v143
  %v829 = vmul.f32 %v765, %v144
  %v830 = vmul.f32 %v492, %v145
  %v831 = vmul.f32 %v493, %v146
  %v832 = vmul.f32 %v494, %v147
  %v833 = vmul.f32 %v495, %v148
  %v834 = vmul.f32 %v496, %v149
  %v835 = vmul.f32 %v497, %v150
  %v836 = vmul.f32 %v498, %v151
  %v837 = vmul.f32 %v499, %v152
  %v838 = vmul.f32 %v790, %v153
  %v839 = vmul.f32 %v791, %v154
  %v840 = vmul.f32 %v792, %v155
  %v841 = vmul.f32 %v793, %v156
  %v842 = vmul.f32 %v794, %v157
  %v843 = vmul.f32 %v795, %v158
  %v844 = vmul.f32 %v796, %v159
  %v845 = vmul.f32 %v797, %v160
  %v846 = vmul.f32 %v492, %v161
  %v847 = vmul.f32 %v493, %v162
  %v848 = vmul.f32 %v494, %v163
  %v849 = vmul.f32 %v495, %v164
  %v850 = vmul.f32 %v496, %v165
  %v851 = vmul.f32 %v497, %v166
  %v852 = vmul.f32 %v498, %v167
  %v853 = vmul.f32 %v499, %v168
  %v854 = vmul.f32 %v790, %v169
  %v855 = vmul.f32 %v791, %v170
  %v856 = vmul.f32 %v792, %v171
  %v857 = vmul.f32 %v793, %v172
  %v858 = vmul.f32 %v794, %v173
  %v859 = vmul.f32 %v795, %v174
  %v860 = vmul.f32 %v796, %v175
  %v861 = vmul.f32 %v797, %v176
  %v862 = vmul.f32 %v177, 0.0
  %v863 = vmul.f32 %v178, 0.0
  %v864 = vmul.f32 %v179, 0.0
  %v865 = vmul.f32 %v180, 0.0
  %v866 = vmul.f32 %v181, 0.0
  %v867 = vmul.f32 %v182, 0.0
  %v868 = vmul.f32 %v183, 0.0
  %v869 = vmul.f32 %v184, 0.0
  %v870 = vld [vmem:[%s7] sm:$0xff]
  %v871 = vld [vmem:[%s7 + $0x8] sm:$0xff]
  %v872 = vld [vmem:[%s7 + $0x10] sm:$0xff]
  %v873 = vld [vmem:[%s7 + $0x18] sm:$0xff]
  %v874 = vld [vmem:[%s7 + $0x20] sm:$0xff]
  %v875 = vld [vmem:[%s7 + $0x28] sm:$0xff]
  %v876 = vld [vmem:[%s7 + $0x30] sm:$0xff]
  %v877 = vld [vmem:[%s7 + $0x38] sm:$0xff]
  %879 = vset.pattern.permute.xlu0 0
  %880 = vperm.xlu0 %879, %v870
  %v881 = vpop.permute.xlu0 %880
  %884 = vset.pattern.permute.xlu0 0
  %885 = vperm.xlu0 %884, %v871
  %v886 = vpop.permute.xlu0 %885
  %889 = vset.pattern.permute.xlu0 0
  %890 = vperm.xlu0 %889, %v872
  %v891 = vpop.permute.xlu0 %890
  %894 = vset.pattern.permute.xlu0 0
  %895 = vperm.xlu0 %894, %v873
  %v896 = vpop.permute.xlu0 %895
  %899 = vset.pattern.permute.xlu0 0
  %900 = vperm.xlu0 %899, %v874
  %v901 = vpop.permute.xlu0 %900
  %904 = vset.pattern.permute.xlu0 0
  %905 = vperm.xlu0 %904, %v875
  %v906 = vpop.permute.xlu0 %905
  %909 = vset.pattern.permute.xlu0 0
  %910 = vperm.xlu0 %909, %v876
  %v911 = vpop.permute.xlu0 %910
  %914 = vset.pattern.permute.xlu0 0
  %915 = vperm.xlu0 %914, %v877
  %v916 = vpop.permute.xlu0 %915
  %vm918 = vcmask 523264
  %v920 = vsel %vm918, %v689, 0
  %v923 = vsel %vm918, %v694, 0
  %v926 = vsel %vm918, %v699, 0
  %v929 = vsel %vm918, %v704, 0
  %v932 = vsel %vm918, %v709, 0
  %v935 = vsel %vm918, %v714, 0
  %v938 = vsel %vm918, %v719, 0
  %v941 = vsel %vm918, %v724, 0
  %943 = vmatprep.subr.mxu0 0.0
  %944 = vmatpush1.msra.mxu0 %v798
  %945 = vmatprep.subr.mxu0 0.0
  %946 = vmatpush1.msra.mxu0 %v799
  %947 = vmatprep.subr.mxu0 0.0
  %948 = vmatpush1.msra.mxu0 %v800
  %949 = vmatprep.subr.mxu0 0.0
  %950 = vmatpush1.msra.mxu0 %v801
  %951 = vmatprep.subr.mxu0 0.0
  %952 = vmatpush1.msra.mxu0 %v802
  %953 = vmatprep.subr.mxu0 0.0
  %954 = vmatpush1.msra.mxu0 %v803
  %955 = vmatprep.subr.mxu0 0.0
  %956 = vmatpush1.msra.mxu0 %v804
  %957 = vmatprep.subr.mxu0 0.0
  %958 = vmatpush1.msra.mxu0 %v805
  %959 = vmatprep.subr.mxu0 0.0
  %960 = vmatpush1.msra.mxu0 %v806
  %961 = vmatprep.subr.mxu0 0.0
  %962 = vmatpush1.msra.mxu0 %v807
  %963 = vmatprep.subr.mxu0 0.0
  %964 = vmatpush1.msra.mxu0 %v808
  %965 = vmatprep.subr.mxu0 0.0
  %966 = vmatpush1.msra.mxu0 %v809
  %967 = vmatprep.subr.mxu0 0.0
  %968 = vmatpush1.msra.mxu0 %v810
  %969 = vmatprep.subr.mxu0 0.0
  %970 = vmatpush1.msra.mxu0 %v811
  %971 = vmatprep.subr.mxu0 0.0
  %972 = vmatpush1.msra.mxu0 %v812
  %973 = vmatprep.subr.mxu0 0.0
  %974 = vmatpush1.msra.mxu0 %v813
  %975 = vmatprep.subr.mxu0 0.0
  %976 = vmatpush1.msra.mxu0 %v814
  %977 = vmatprep.subr.mxu0 0.0
  %978 = vmatpush1.msra.mxu0 %v815
  %979 = vmatprep.subr.mxu0 0.0
  %980 = vmatpush1.msra.mxu0 %v816
  %981 = vmatprep.subr.mxu0 0.0
  %982 = vmatpush1.msra.mxu0 %v817
  %983 = vmatprep.subr.mxu0 0.0
  %984 = vmatpush1.msra.mxu0 %v818
  %985 = vmatprep.subr.mxu0 0.0
  %986 = vmatpush1.msra.mxu0 %v819
  %987 = vmatprep.subr.mxu0 0.0
  %988 = vmatpush1.msra.mxu0 %v820
  %989 = vmatprep.subr.mxu0 0.0
  %990 = vmatpush1.msra.mxu0 %v821
  %991 = vmatprep.subr.mxu0 0.0
  %992 = vmatpush1.msra.mxu0 %v822
  %993 = vmatprep.subr.mxu0 0.0
  %994 = vmatpush1.msra.mxu0 %v823
  %995 = vmatprep.subr.mxu0 0.0
  %996 = vmatpush1.msra.mxu0 %v824
  %997 = vmatprep.subr.mxu0 0.0
  %998 = vmatpush1.msra.mxu0 %v825
  %999 = vmatprep.subr.mxu0 0.0
  %1000 = vmatpush1.msra.mxu0 %v826
  %1001 = vmatprep.subr.mxu0 0.0
  %1002 = vmatpush1.msra.mxu0 %v827
  %1003 = vmatprep.subr.mxu0 0.0
  %1004 = vmatpush1.msra.mxu0 %v828
  %1005 = vmatprep.subr.mxu0 0.0
  %1006 = vmatpush1.msra.mxu0 %v829
  %1007 = vmatprep.mubr.f32.mxu0 %v686
  %1008 = vmatmul.mubr.f32.gmra.mrb[0].mxu0 %v685
  %v1009 = vpop.f32.mrb[0].mxu0
  %v1010 = vadd.f32 %v881, %v1009
  %v1011 = vpop.f32.mrb[0].mxu0
  %1012 = vmatprep.mubr.f32.mxu0 %v691
  %1013 = vmatmul.mubr.f32.gmra.mrb[0].mxu0 %v690
  %v1014 = vpop.f32.mrb[0].mxu0
  %v1015 = vadd.f32 %v886, %v1014
  %v1016 = vpop.f32.mrb[0].mxu0
  %1017 = vmatprep.mubr.f32.mxu0 %v696
  %1018 = vmatmul.mubr.f32.gmra.mrb[0].mxu0 %v695
  %v1019 = vpop.f32.mrb[0].mxu0
  %v1020 = vadd.f32 %v891, %v1019
  %v1021 = vpop.f32.mrb[0].mxu0
  %1022 = vmatprep.mubr.f32.mxu0 %v701
  %1023 = vmatmul.mubr.f32.gmra.mrb[0].mxu0 %v700
  %v1024 = vpop.f32.mrb[0].mxu0
  %v1025 = vadd.f32 %v896, %v1024
  %v1026 = vpop.f32.mrb[0].mxu0
  %1027 = vmatprep.mubr.f32.mxu0 %v706
  %1028 = vmatmul.mubr.f32.gmra.mrb[0].mxu0 %v705
  %v1029 = vpop.f32.mrb[0].mxu0
  %v1030 = vadd.f32 %v901, %v1029
  %v1031 = vpop.f32.mrb[0].mxu0
  %1032 = vmatprep.mubr.f32.mxu0 %v711
  %1033 = vmatmul.mubr.f32.gmra.mrb[0].mxu0 %v710
  %v1034 = vpop.f32.mrb[0].mxu0
  %v1035 = vadd.f32 %v906, %v1034
  %v1036 = vpop.f32.mrb[0].mxu0
  %1037 = vmatprep.mubr.f32.mxu0 %v716
  %1038 = vmatmul.mubr.f32.gmra.mrb[0].mxu0 %v715
  %v1039 = vpop.f32.mrb[0].mxu0
  %v1040 = vadd.f32 %v911, %v1039
  %v1041 = vpop.f32.mrb[0].mxu0
  %1042 = vmatprep.mubr.f32.mxu0 %v721
  %1043 = vmatmul.mubr.f32.gmra.mrb[0].mxu0 %v720
  %v1044 = vpop.f32.mrb[0].mxu0
  %v1045 = vadd.f32 %v916, %v1044
  %v1046 = vpop.f32.mrb[0].mxu0
  %1047 = vdwg.mxu0
  %1048 = vmatprep.subr.mxu0 0.0
  %1049 = vmatpush1.msra.mxu0 %v830
  %1050 = vmatprep.subr.mxu0 0.0
  %1051 = vmatpush1.msra.mxu0 %v831
  %1052 = vmatprep.subr.mxu0 0.0
  %1053 = vmatpush1.msra.mxu0 %v832
  %1054 = vmatprep.subr.mxu0 0.0
  %1055 = vmatpush1.msra.mxu0 %v833
  %1056 = vmatprep.subr.mxu0 0.0
  %1057 = vmatpush1.msra.mxu0 %v834
  %1058 = vmatprep.subr.mxu0 0.0
  %1059 = vmatpush1.msra.mxu0 %v835
  %1060 = vmatprep.subr.mxu0 0.0
  %1061 = vmatpush1.msra.mxu0 %v836
  %1062 = vmatprep.subr.mxu0 0.0
  %1063 = vmatpush1.msra.mxu0 %v837
  %1064 = vmatprep.subr.mxu0 0.0
  %1065 = vmatpush1.msra.mxu0 %v838
  %1066 = vmatprep.subr.mxu0 0.0
  %1067 = vmatpush1.msra.mxu0 %v839
  %1068 = vmatprep.subr.mxu0 0.0
  %1069 = vmatpush1.msra.mxu0 %v840
  %1070 = vmatprep.subr.mxu0 0.0
  %1071 = vmatpush1.msra.mxu0 %v841
  %1072 = vmatprep.subr.mxu0 0.0
  %1073 = vmatpush1.msra.mxu0 %v842
  %1074 = vmatprep.subr.mxu0 0.0
  %1075 = vmatpush1.msra.mxu0 %v843
  %1076 = vmatprep.subr.mxu0 0.0
  %1077 = vmatpush1.msra.mxu0 %v844
  %1078 = vmatprep.subr.mxu0 0.0
  %1079 = vmatpush1.msra.mxu0 %v845
  %1080 = vmatprep.subr.mxu0 0.0
  %1081 = vmatpush1.msra.mxu0 %v846
  %1082 = vmatprep.subr.mxu0 0.0
  %1083 = vmatpush1.msra.mxu0 %v847
  %1084 = vmatprep.subr.mxu0 0.0
  %1085 = vmatpush1.msra.mxu0 %v848
  %1086 = vmatprep.subr.mxu0 0.0
  %1087 = vmatpush1.msra.mxu0 %v849
  %1088 = vmatprep.subr.mxu0 0.0
  %1089 = vmatpush1.msra.mxu0 %v850
  %1090 = vmatprep.subr.mxu0 0.0
  %1091 = vmatpush1.msra.mxu0 %v851
  %1092 = vmatprep.subr.mxu0 0.0
  %1093 = vmatpush1.msra.mxu0 %v852
  %1094 = vmatprep.subr.mxu0 0.0
  %1095 = vmatpush1.msra.mxu0 %v853
  %1096 = vmatprep.subr.mxu0 0.0
  %1097 = vmatpush1.msra.mxu0 %v854
  %1098 = vmatprep.subr.mxu0 0.0
  %1099 = vmatpush1.msra.mxu0 %v855
  %1100 = vmatprep.subr.mxu0 0.0
  %1101 = vmatpush1.msra.mxu0 %v856
  %1102 = vmatprep.subr.mxu0 0.0
  %1103 = vmatpush1.msra.mxu0 %v857
  %1104 = vmatprep.subr.mxu0 0.0
  %1105 = vmatpush1.msra.mxu0 %v858
  %1106 = vmatprep.subr.mxu0 0.0
  %1107 = vmatpush1.msra.mxu0 %v859
  %1108 = vmatprep.subr.mxu0 0.0
  %1109 = vmatpush1.msra.mxu0 %v860
  %1110 = vmatprep.subr.mxu0 0.0
  %1111 = vmatpush1.msra.mxu0 %v861
  %1112 = vmatprep.mubr.f32.mxu0 %v688
  %1113 = vmatmul.mubr.f32.gmra.mrb[0].mxu0 %v687
  %v1114 = vpop.f32.mrb[0].mxu0
  %v1115 = vadd.f32 %v1010, %v1114
  %v1116 = vpop.f32.mrb[0].mxu0
  %1117 = vmatprep.mubr.f32.mxu0 %v693
  %1118 = vmatmul.mubr.f32.gmra.mrb[0].mxu0 %v692
  %v1119 = vpop.f32.mrb[0].mxu0
  %v1120 = vadd.f32 %v1015, %v1119
  %v1121 = vpop.f32.mrb[0].mxu0
  %1122 = vmatprep.mubr.f32.mxu0 %v698
  %1123 = vmatmul.mubr.f32.gmra.mrb[0].mxu0 %v697
  %v1124 = vpop.f32.mrb[0].mxu0
  %v1125 = vadd.f32 %v1020, %v1124
  %v1126 = vpop.f32.mrb[0].mxu0
  %1127 = vmatprep.mubr.f32.mxu0 %v703
  %1128 = vmatmul.mubr.f32.gmra.mrb[0].mxu0 %v702
  %v1129 = vpop.f32.mrb[0].mxu0
  %v1130 = vadd.f32 %v1025, %v1129
  %v1131 = vpop.f32.mrb[0].mxu0
  %1132 = vmatprep.mubr.f32.mxu0 %v708
  %1133 = vmatmul.mubr.f32.gmra.mrb[0].mxu0 %v707
  %v1134 = vpop.f32.mrb[0].mxu0
  %v1135 = vadd.f32 %v1030, %v1134
  %v1136 = vpop.f32.mrb[0].mxu0
  %1137 = vmatprep.mubr.f32.mxu0 %v713
  %1138 = vmatmul.mubr.f32.gmra.mrb[0].mxu0 %v712
  %v1139 = vpop.f32.mrb[0].mxu0
  %v1140 = vadd.f32 %v1035, %v1139
  %v1141 = vpop.f32.mrb[0].mxu0
  %1142 = vmatprep.mubr.f32.mxu0 %v718
  %1143 = vmatmul.mubr.f32.gmra.mrb[0].mxu0 %v717
  %v1144 = vpop.f32.mrb[0].mxu0
  %v1145 = vadd.f32 %v1040, %v1144
  %v1146 = vpop.f32.mrb[0].mxu0
  %1147 = vmatprep.mubr.f32.mxu0 %v723
  %1148 = vmatmul.mubr.f32.gmra.mrb[0].mxu0 %v722
  %v1149 = vpop.f32.mrb[0].mxu0
  %v1150 = vadd.f32 %v1045, %v1149
  %v1151 = vpop.f32.mrb[0].mxu0
  %1152 = vdwg.mxu0
  %1153 = vmatprep.subr.mxu0 0.0
  %1154 = vmatpush1.msra.mxu0 %v862
  %1155 = vmatprep.subr.mxu0 0.0
  %1156 = vmatpush1.msra.mxu0 %v863
  %1157 = vmatprep.subr.mxu0 0.0
  %1158 = vmatpush1.msra.mxu0 %v864
  %1159 = vmatprep.subr.mxu0 0.0
  %1160 = vmatpush1.msra.mxu0 %v865
  %1161 = vmatprep.subr.mxu0 0.0
  %1162 = vmatpush1.msra.mxu0 %v866
  %1163 = vmatprep.subr.mxu0 0.0
  %1164 = vmatpush1.msra.mxu0 %v867
  %1165 = vmatprep.subr.mxu0 0.0
  %1166 = vmatpush1.msra.mxu0 %v868
  %1167 = vmatprep.subr.mxu0 0.0
  %1168 = vmatpush1.msra.mxu0 %v869
  %1169 = vmatprep.subr.mxu0 0.0
  %1170 = vmatpush1.msra.mxu0 0.0
  %1171 = vmatprep.subr.mxu0 0.0
  %1172 = vmatpush1.msra.mxu0 0.0
  %1173 = vmatprep.subr.mxu0 0.0
  %1174 = vmatpush1.msra.mxu0 0.0
  %1175 = vmatprep.subr.mxu0 0.0
  %1176 = vmatpush1.msra.mxu0 0.0
  %1177 = vmatprep.subr.mxu0 0.0
  %1178 = vmatpush1.msra.mxu0 0.0
  %1179 = vmatprep.subr.mxu0 0.0
  %1180 = vmatpush1.msra.mxu0 0.0
  %1181 = vmatprep.subr.mxu0 0.0
  %1182 = vmatpush1.msra.mxu0 0.0
  %1183 = vmatprep.subr.mxu0 0.0
  %1184 = vmatpush1.msra.mxu0 0.0
  %1185 = vmatprep.subr.mxu0 0.0
  %1186 = vmatpush1.msra.mxu0 0.0
  %1187 = vmatprep.subr.mxu0 0.0
  %1188 = vmatpush1.msra.mxu0 0.0
  %1189 = vmatprep.subr.mxu0 0.0
  %1190 = vmatpush1.msra.mxu0 0.0
  %1191 = vmatprep.subr.mxu0 0.0
  %1192 = vmatpush1.msra.mxu0 0.0
  %1193 = vmatprep.subr.mxu0 0.0
  %1194 = vmatpush1.msra.mxu0 0.0
  %1195 = vmatprep.subr.mxu0 0.0
  %1196 = vmatpush1.msra.mxu0 0.0
  %1197 = vmatprep.subr.mxu0 0.0
  %1198 = vmatpush1.msra.mxu0 0.0
  %1199 = vmatprep.subr.mxu0 0.0
  %1200 = vmatpush1.msra.mxu0 0.0
  %1201 = vmatprep.subr.mxu0 0.0
  %1202 = vmatpush1.msra.mxu0 0.0
  %1203 = vmatprep.subr.mxu0 0.0
  %1204 = vmatpush1.msra.mxu0 0.0
  %1205 = vmatprep.subr.mxu0 0.0
  %1206 = vmatpush1.msra.mxu0 0.0
  %1207 = vmatprep.subr.mxu0 0.0
  %1208 = vmatpush1.msra.mxu0 0.0
  %1209 = vmatprep.subr.mxu0 0.0
  %1210 = vmatpush1.msra.mxu0 0.0
  %1211 = vmatprep.subr.mxu0 0.0
  %1212 = vmatpush1.msra.mxu0 0.0
  %1213 = vmatprep.subr.mxu0 0.0
  %1214 = vmatpush1.msra.mxu0 0.0
  %1215 = vmatprep.subr.mxu0 0.0
  %1216 = vmatpush1.msra.mxu0 0.0
  %1217 = vmatprep.mubr.f32.mxu0 0.0
  %1218 = vmatmul.mubr.f32.gmra.mrb[0].mxu0 %v920
  %v1219 = vpop.f32.mrb[0].mxu0
  %v1220 = vadd.f32 %v1115, %v1219
  %v1221 = vpop.f32.mrb[0].mxu0
  %1222 = vmatprep.mubr.f32.mxu0 0.0
  %1223 = vmatmul.mubr.f32.gmra.mrb[0].mxu0 %v923
  %v1224 = vpop.f32.mrb[0].mxu0
  %v1225 = vadd.f32 %v1120, %v1224
  %v1226 = vpop.f32.mrb[0].mxu0
  %1227 = vmatprep.mubr.f32.mxu0 0.0
  %1228 = vmatmul.mubr.f32.gmra.mrb[0].mxu0 %v926
  %v1229 = vpop.f32.mrb[0].mxu0
  %v1230 = vadd.f32 %v1125, %v1229
  %v1231 = vpop.f32.mrb[0].mxu0
  %1232 = vmatprep.mubr.f32.mxu0 0.0
  %1233 = vmatmul.mubr.f32.gmra.mrb[0].mxu0 %v929
  %v1234 = vpop.f32.mrb[0].mxu0
  %v1235 = vadd.f32 %v1130, %v1234
  %v1236 = vpop.f32.mrb[0].mxu0
  %1237 = vmatprep.mubr.f32.mxu0 0.0
  %1238 = vmatmul.mubr.f32.gmra.mrb[0].mxu0 %v932
  %v1239 = vpop.f32.mrb[0].mxu0
  %v1240 = vadd.f32 %v1135, %v1239
  %v1241 = vpop.f32.mrb[0].mxu0
  %1242 = vmatprep.mubr.f32.mxu0 0.0
  %1243 = vmatmul.mubr.f32.gmra.mrb[0].mxu0 %v935
  %v1244 = vpop.f32.mrb[0].mxu0
  %v1245 = vadd.f32 %v1140, %v1244
  %v1246 = vpop.f32.mrb[0].mxu0
  %1247 = vmatprep.mubr.f32.mxu0 0.0
  %1248 = vmatmul.mubr.f32.gmra.mrb[0].mxu0 %v938
  %v1249 = vpop.f32.mrb[0].mxu0
  %v1250 = vadd.f32 %v1145, %v1249
  %v1251 = vpop.f32.mrb[0].mxu0
  %1252 = vmatprep.mubr.f32.mxu0 0.0
  %1253 = vmatmul.mubr.f32.gmra.mrb[0].mxu0 %v941
  %v1254 = vpop.f32.mrb[0].mxu0
  %v1255 = vadd.f32 %v1150, %v1254
  %v1256 = vpop.f32.mrb[0].mxu0
  %1257 = vdwg.mxu0
  %v1258 = vadd.f32 %v1220, %v647
  %v1259 = vadd.f32 %v1225, %v652
  %v1260 = vadd.f32 %v1230, %v657
  %v1261 = vadd.f32 %v1235, %v662
  %v1262 = vadd.f32 %v1240, %v667
  %v1263 = vadd.f32 %v1245, %v672
  %v1264 = vadd.f32 %v1250, %v677
  %v1265 = vadd.f32 %v1255, %v682
  %v1266 = vmax.f32 %v1258, 0.0
  %v1267 = vmax.f32 %v1259, 0.0
  %v1268 = vmax.f32 %v1260, 0.0
  %v1269 = vmax.f32 %v1261, 0.0
  %v1270 = vmax.f32 %v1262, 0.0
  %v1271 = vmax.f32 %v1263, 0.0
  %v1272 = vmax.f32 %v1264, 0.0
  %v1273 = vmax.f32 %v1265, 0.0
  %v1274 = vld [vmem:[%s8] sm:$0xff]
  %v1275 = vld [vmem:[%s8 + $0x8] sm:$0xff]
  %v1276 = vld [vmem:[%s8 + $0x10] sm:$0xff]
  %v1277 = vld [vmem:[%s8 + $0x18] sm:$0xff]
  %v1278 = vld [vmem:[%s8 + $0x20] sm:$0xff]
  %v1279 = vld [vmem:[%s8 + $0x28] sm:$0xff]
  %v1280 = vld [vmem:[%s8 + $0x30] sm:$0xff]
  %v1281 = vld [vmem:[%s8 + $0x38] sm:$0xff]
  %v1282 = vld [vmem:[%s8 + $0x40] sm:$0xff]
  %v1283 = vld [vmem:[%s8 + $0x48] sm:$0xff]
  %v1284 = vld [vmem:[%s8 + $0x50] sm:$0xff]
  %v1285 = vld [vmem:[%s8 + $0x58] sm:$0xff]
  %v1286 = vld [vmem:[%s8 + $0x60] sm:$0xff]
  %v1287 = vld [vmem:[%s8 + $0x68] sm:$0xff]
  %v1288 = vld [vmem:[%s8 + $0x70] sm:$0xff]
  %v1289 = vld [vmem:[%s8 + $0x78] sm:$0xff]
  %v1290 = vld [vmem:[%s8 + $0x80] sm:$0xff]
  %v1291 = vld [vmem:[%s8 + $0x88] sm:$0xff]
  %v1292 = vld [vmem:[%s8 + $0x90] sm:$0xff]
  %v1293 = vld [vmem:[%s8 + $0x98] sm:$0xff]
  %v1294 = vld [vmem:[%s8 + $0xa0] sm:$0xff]
  %v1295 = vld [vmem:[%s8 + $0xa8] sm:$0xff]
  %v1296 = vld [vmem:[%s8 + $0xb0] sm:$0xff]
  %v1297 = vld [vmem:[%s8 + $0xb8] sm:$0xff]
  %v1298 = vld [vmem:[%s8 + $0xc0] sm:$0xff]
  %v1299 = vld [vmem:[%s8 + $0xc8] sm:$0xff]
  %v1300 = vld [vmem:[%s8 + $0xd0] sm:$0xff]
  %v1301 = vld [vmem:[%s8 + $0xd8] sm:$0xff]
  %v1302 = vld [vmem:[%s8 + $0xe0] sm:$0xff]
  %v1303 = vld [vmem:[%s8 + $0xe8] sm:$0xff]
  %v1304 = vld [vmem:[%s8 + $0xf0] sm:$0xff]
  %v1305 = vld [vmem:[%s8 + $0xf8] sm:$0xff]
  %v1306 = vld [vmem:[%s8 + $0x100] sm:$0xff]
  %v1307 = vld [vmem:[%s8 + $0x108] sm:$0xff]
  %v1308 = vld [vmem:[%s8 + $0x110] sm:$0xff]
  %v1309 = vld [vmem:[%s8 + $0x118] sm:$0xff]
  %v1310 = vld [vmem:[%s8 + $0x120] sm:$0xff]
  %v1311 = vld [vmem:[%s8 + $0x128] sm:$0xff]
  %v1312 = vld [vmem:[%s8 + $0x130] sm:$0xff]
  %v1313 = vld [vmem:[%s8 + $0x138] sm:$0xff]
  %1322 = vrot.lane.b32.xlu0 %v1266, 1
  %v1323 = vpop.permute.xlu0 %1322
  %1324 = vrot.lane.b32.xlu0 %v1267, 1
  %v1325 = vpop.permute.xlu0 %1324
  %1326 = vrot.lane.b32.xlu0 %v1268, 1
  %v1327 = vpop.permute.xlu0 %1326
  %1328 = vrot.lane.b32.xlu0 %v1269, 1
  %v1329 = vpop.permute.xlu0 %1328
  %1330 = vrot.lane.b32.xlu0 %v1270, 1
  %v1331 = vpop.permute.xlu0 %1330
  %1332 = vrot.lane.b32.xlu0 %v1271, 1
  %v1333 = vpop.permute.xlu0 %1332
  %1334 = vrot.lane.b32.xlu0 %v1272, 1
  %v1335 = vpop.permute.xlu0 %1334
  %1336 = vrot.lane.b32.xlu0 %v1273, 1
  %v1337 = vpop.permute.xlu0 %1336
  %v1346 = vsel %vm757, 0.0, %v1323
  %v1347 = vsel %vm757, 0.0, %v1325
  %v1348 = vsel %vm757, 0.0, %v1327
  %v1349 = vsel %vm757, 0.0, %v1329
  %v1350 = vsel %vm757, 0.0, %v1331
  %v1351 = vsel %vm757, 0.0, %v1333
  %v1352 = vsel %vm757, 0.0, %v1335
  %v1353 = vsel %vm757, 0.0, %v1337
  %1354 = vrot.lane.b32.xlu0 %v1266, 127
  %v1355 = vpop.permute.xlu0 %1354
  %1356 = vrot.lane.b32.xlu0 %v1267, 127
  %v1357 = vpop.permute.xlu0 %1356
  %1358 = vrot.lane.b32.xlu0 %v1268, 127
  %v1359 = vpop.permute.xlu0 %1358
  %1360 = vrot.lane.b32.xlu0 %v1269, 127
  %v1361 = vpop.permute.xlu0 %1360
  %1362 = vrot.lane.b32.xlu0 %v1270, 127
  %v1363 = vpop.permute.xlu0 %1362
  %1364 = vrot.lane.b32.xlu0 %v1271, 127
  %v1365 = vpop.permute.xlu0 %1364
  %1366 = vrot.lane.b32.xlu0 %v1272, 127
  %v1367 = vpop.permute.xlu0 %1366
  %1368 = vrot.lane.b32.xlu0 %v1273, 127
  %v1369 = vpop.permute.xlu0 %1368
  %v1378 = vsel %vm757, %v1355, 0.0
  %v1379 = vsel %vm757, %v1357, 0.0
  %v1380 = vsel %vm757, %v1359, 0.0
  %v1381 = vsel %vm757, %v1361, 0.0
  %v1382 = vsel %vm757, %v1363, 0.0
  %v1383 = vsel %vm757, %v1365, 0.0
  %v1384 = vsel %vm757, %v1367, 0.0
  %v1385 = vsel %vm757, %v1369, 0.0
  %v1386 = vmul.f32 %v1346, %v121
  %v1387 = vmul.f32 %v1347, %v122
  %v1388 = vmul.f32 %v1348, %v123
  %v1389 = vmul.f32 %v1349, %v124
  %v1390 = vmul.f32 %v1350, %v125
  %v1391 = vmul.f32 %v1351, %v126
  %v1392 = vmul.f32 %v1352, %v127
  %v1393 = vmul.f32 %v1353, %v128
  %v1394 = vmul.f32 %v1266, %v129
  %v1395 = vmul.f32 %v1267, %v130
  %v1396 = vmul.f32 %v1268, %v131
  %v1397 = vmul.f32 %v1269, %v132
  %v1398 = vmul.f32 %v1270, %v133
  %v1399 = vmul.f32 %v1271, %v134
  %v1400 = vmul.f32 %v1272, %v135
  %v1401 = vmul.f32 %v1273, %v136
  %v1402 = vmul.f32 %v1346, %v137
  %v1403 = vmul.f32 %v1347, %v138
  %v1404 = vmul.f32 %v1348, %v139
  %v1405 = vmul.f32 %v1349, %v140
  %v1406 = vmul.f32 %v1350, %v141
  %v1407 = vmul.f32 %v1351, %v142
  %v1408 = vmul.f32 %v1352, %v143
  %v1409 = vmul.f32 %v1353, %v144
  %v1410 = vmul.f32 %v1266, %v145
  %v1411 = vmul.f32 %v1267, %v146
  %v1412 = vmul.f32 %v1268, %v147
  %v1413 = vmul.f32 %v1269, %v148
  %v1414 = vmul.f32 %v1270, %v149
  %v1415 = vmul.f32 %v1271, %v150
  %v1416 = vmul.f32 %v1272, %v151
  %v1417 = vmul.f32 %v1273, %v152
  %v1418 = vmul.f32 %v1378, %v153
  %v1419 = vmul.f32 %v1379, %v154
  %v1420 = vmul.f32 %v1380, %v155
  %v1421 = vmul.f32 %v1381, %v156
  %v1422 = vmul.f32 %v1382, %v157
  %v1423 = vmul.f32 %v1383, %v158
  %v1424 = vmul.f32 %v1384, %v159
  %v1425 = vmul.f32 %v1385, %v160
  %v1426 = vmul.f32 %v1266, %v161
  %v1427 = vmul.f32 %v1267, %v162
  %v1428 = vmul.f32 %v1268, %v163
  %v1429 = vmul.f32 %v1269, %v164
  %v1430 = vmul.f32 %v1270, %v165
  %v1431 = vmul.f32 %v1271, %v166
  %v1432 = vmul.f32 %v1272, %v167
  %v1433 = vmul.f32 %v1273, %v168
  %v1434 = vmul.f32 %v1378, %v169
  %v1435 = vmul.f32 %v1379, %v170
  %v1436 = vmul.f32 %v1380, %v171
  %v1437 = vmul.f32 %v1381, %v172
  %v1438 = vmul.f32 %v1382, %v173
  %v1439 = vmul.f32 %v1383, %v174
  %v1440 = vmul.f32 %v1384, %v175
  %v1441 = vmul.f32 %v1385, %v176
  %v1442 = vld [vmem:[%s9] sm:$0xff]
  %v1443 = vld [vmem:[%s9 + $0x8] sm:$0xff]
  %v1444 = vld [vmem:[%s9 + $0x10] sm:$0xff]
  %v1445 = vld [vmem:[%s9 + $0x18] sm:$0xff]
  %v1446 = vld [vmem:[%s9 + $0x20] sm:$0xff]
  %v1447 = vld [vmem:[%s9 + $0x28] sm:$0xff]
  %v1448 = vld [vmem:[%s9 + $0x30] sm:$0xff]
  %v1449 = vld [vmem:[%s9 + $0x38] sm:$0xff]
  %1451 = vset.pattern.permute.xlu0 0
  %1452 = vperm.xlu0 %1451, %v1442
  %v1453 = vpop.permute.xlu0 %1452
  %1456 = vset.pattern.permute.xlu0 0
  %1457 = vperm.xlu0 %1456, %v1443
  %v1458 = vpop.permute.xlu0 %1457
  %1461 = vset.pattern.permute.xlu0 0
  %1462 = vperm.xlu0 %1461, %v1444
  %v1463 = vpop.permute.xlu0 %1462
  %1466 = vset.pattern.permute.xlu0 0
  %1467 = vperm.xlu0 %1466, %v1445
  %v1468 = vpop.permute.xlu0 %1467
  %1471 = vset.pattern.permute.xlu0 0
  %1472 = vperm.xlu0 %1471, %v1446
  %v1473 = vpop.permute.xlu0 %1472
  %1476 = vset.pattern.permute.xlu0 0
  %1477 = vperm.xlu0 %1476, %v1447
  %v1478 = vpop.permute.xlu0 %1477
  %1481 = vset.pattern.permute.xlu0 0
  %1482 = vperm.xlu0 %1481, %v1448
  %v1483 = vpop.permute.xlu0 %1482
  %1486 = vset.pattern.permute.xlu0 0
  %1487 = vperm.xlu0 %1486, %v1449
  %v1488 = vpop.permute.xlu0 %1487
  %v1491 = vsel %vm918, %v1278, 0
  %v1494 = vsel %vm918, %v1283, 0
  %v1497 = vsel %vm918, %v1288, 0
  %v1500 = vsel %vm918, %v1293, 0
  %v1503 = vsel %vm918, %v1298, 0
  %v1506 = vsel %vm918, %v1303, 0
  %v1509 = vsel %vm918, %v1308, 0
  %v1512 = vsel %vm918, %v1313, 0
  %1514 = vmatprep.subr.mxu0 0.0
  %1515 = vmatpush1.msra.mxu0 %v798
  %1516 = vmatprep.subr.mxu0 0.0
  %1517 = vmatpush1.msra.mxu0 %v799
  %1518 = vmatprep.subr.mxu0 0.0
  %1519 = vmatpush1.msra.mxu0 %v800
  %1520 = vmatprep.subr.mxu0 0.0
  %1521 = vmatpush1.msra.mxu0 %v801
  %1522 = vmatprep.subr.mxu0 0.0
  %1523 = vmatpush1.msra.mxu0 %v802
  %1524 = vmatprep.subr.mxu0 0.0
  %1525 = vmatpush1.msra.mxu0 %v803
  %1526 = vmatprep.subr.mxu0 0.0
  %1527 = vmatpush1.msra.mxu0 %v804
  %1528 = vmatprep.subr.mxu0 0.0
  %1529 = vmatpush1.msra.mxu0 %v805
  %1530 = vmatprep.subr.mxu0 0.0
  %1531 = vmatpush1.msra.mxu0 %v1386
  %1532 = vmatprep.subr.mxu0 0.0
  %1533 = vmatpush1.msra.mxu0 %v1387
  %1534 = vmatprep.subr.mxu0 0.0
  %1535 = vmatpush1.msra.mxu0 %v1388
  %1536 = vmatprep.subr.mxu0 0.0
  %1537 = vmatpush1.msra.mxu0 %v1389
  %1538 = vmatprep.subr.mxu0 0.0
  %1539 = vmatpush1.msra.mxu0 %v1390
  %1540 = vmatprep.subr.mxu0 0.0
  %1541 = vmatpush1.msra.mxu0 %v1391
  %1542 = vmatprep.subr.mxu0 0.0
  %1543 = vmatpush1.msra.mxu0 %v1392
  %1544 = vmatprep.subr.mxu0 0.0
  %1545 = vmatpush1.msra.mxu0 %v1393
  %1546 = vmatprep.subr.mxu0 0.0
  %1547 = vmatpush1.msra.mxu0 %v1394
  %1548 = vmatprep.subr.mxu0 0.0
  %1549 = vmatpush1.msra.mxu0 %v1395
  %1550 = vmatprep.subr.mxu0 0.0
  %1551 = vmatpush1.msra.mxu0 %v1396
  %1552 = vmatprep.subr.mxu0 0.0
  %1553 = vmatpush1.msra.mxu0 %v1397
  %1554 = vmatprep.subr.mxu0 0.0
  %1555 = vmatpush1.msra.mxu0 %v1398
  %1556 = vmatprep.subr.mxu0 0.0
  %1557 = vmatpush1.msra.mxu0 %v1399
  %1558 = vmatprep.subr.mxu0 0.0
  %1559 = vmatpush1.msra.mxu0 %v1400
  %1560 = vmatprep.subr.mxu0 0.0
  %1561 = vmatpush1.msra.mxu0 %v1401
  %1562 = vmatprep.subr.mxu0 0.0
  %1563 = vmatpush1.msra.mxu0 %v1402
  %1564 = vmatprep.subr.mxu0 0.0
  %1565 = vmatpush1.msra.mxu0 %v1403
  %1566 = vmatprep.subr.mxu0 0.0
  %1567 = vmatpush1.msra.mxu0 %v1404
  %1568 = vmatprep.subr.mxu0 0.0
  %1569 = vmatpush1.msra.mxu0 %v1405
  %1570 = vmatprep.subr.mxu0 0.0
  %1571 = vmatpush1.msra.mxu0 %v1406
  %1572 = vmatprep.subr.mxu0 0.0
  %1573 = vmatpush1.msra.mxu0 %v1407
  %1574 = vmatprep.subr.mxu0 0.0
  %1575 = vmatpush1.msra.mxu0 %v1408
  %1576 = vmatprep.subr.mxu0 0.0
  %1577 = vmatpush1.msra.mxu0 %v1409
  %1578 = vmatprep.mubr.f32.mxu0 %v1275
  %1579 = vmatmul.mubr.f32.gmra.mrb[0].mxu0 %v1274
  %v1580 = vpop.f32.mrb[0].mxu0
  %v1581 = vadd.f32 %v1453, %v1580
  %v1582 = vpop.f32.mrb[0].mxu0
  %1583 = vmatprep.mubr.f32.mxu0 %v1280
  %1584 = vmatmul.mubr.f32.gmra.mrb[0].mxu0 %v1279
  %v1585 = vpop.f32.mrb[0].mxu0
  %v1586 = vadd.f32 %v1458, %v1585
  %v1587 = vpop.f32.mrb[0].mxu0
  %1588 = vmatprep.mubr.f32.mxu0 %v1285
  %1589 = vmatmul.mubr.f32.gmra.mrb[0].mxu0 %v1284
  %v1590 = vpop.f32.mrb[0].mxu0
  %v1591 = vadd.f32 %v1463, %v1590
  %v1592 = vpop.f32.mrb[0].mxu0
  %1593 = vmatprep.mubr.f32.mxu0 %v1290
  %1594 = vmatmul.mubr.f32.gmra.mrb[0].mxu0 %v1289
  %v1595 = vpop.f32.mrb[0].mxu0
  %v1596 = vadd.f32 %v1468, %v1595
  %v1597 = vpop.f32.mrb[0].mxu0
  %1598 = vmatprep.mubr.f32.mxu0 %v1295
  %1599 = vmatmul.mubr.f32.gmra.mrb[0].mxu0 %v1294
  %v1600 = vpop.f32.mrb[0].mxu0
  %v1601 = vadd.f32 %v1473, %v1600
  %v1602 = vpop.f32.mrb[0].mxu0
  %1603 = vmatprep.mubr.f32.mxu0 %v1300
  %1604 = vmatmul.mubr.f32.gmra.mrb[0].mxu0 %v1299
  %v1605 = vpop.f32.mrb[0].mxu0
  %v1606 = vadd.f32 %v1478, %v1605
  %v1607 = vpop.f32.mrb[0].mxu0
  %1608 = vmatprep.mubr.f32.mxu0 %v1305
  %1609 = vmatmul.mubr.f32.gmra.mrb[0].mxu0 %v1304
  %v1610 = vpop.f32.mrb[0].mxu0
  %v1611 = vadd.f32 %v1483, %v1610
  %v1612 = vpop.f32.mrb[0].mxu0
  %1613 = vmatprep.mubr.f32.mxu0 %v1310
  %1614 = vmatmul.mubr.f32.gmra.mrb[0].mxu0 %v1309
  %v1615 = vpop.f32.mrb[0].mxu0
  %v1616 = vadd.f32 %v1488, %v1615
  %v1617 = vpop.f32.mrb[0].mxu0
  %1618 = vdwg.mxu0
  %1619 = vmatprep.subr.mxu0 0.0
  %1620 = vmatpush1.msra.mxu0 %v1410
  %1621 = vmatprep.subr.mxu0 0.0
  %1622 = vmatpush1.msra.mxu0 %v1411
  %1623 = vmatprep.subr.mxu0 0.0
  %1624 = vmatpush1.msra.mxu0 %v1412
  %1625 = vmatprep.subr.mxu0 0.0
  %1626 = vmatpush1.msra.mxu0 %v1413
  %1627 = vmatprep.subr.mxu0 0.0
  %1628 = vmatpush1.msra.mxu0 %v1414
  %1629 = vmatprep.subr.mxu0 0.0
  %1630 = vmatpush1.msra.mxu0 %v1415
  %1631 = vmatprep.subr.mxu0 0.0
  %1632 = vmatpush1.msra.mxu0 %v1416
  %1633 = vmatprep.subr.mxu0 0.0
  %1634 = vmatpush1.msra.mxu0 %v1417
  %1635 = vmatprep.subr.mxu0 0.0
  %1636 = vmatpush1.msra.mxu0 %v1418
  %1637 = vmatprep.subr.mxu0 0.0
  %1638 = vmatpush1.msra.mxu0 %v1419
  %1639 = vmatprep.subr.mxu0 0.0
  %1640 = vmatpush1.msra.mxu0 %v1420
  %1641 = vmatprep.subr.mxu0 0.0
  %1642 = vmatpush1.msra.mxu0 %v1421
  %1643 = vmatprep.subr.mxu0 0.0
  %1644 = vmatpush1.msra.mxu0 %v1422
  %1645 = vmatprep.subr.mxu0 0.0
  %1646 = vmatpush1.msra.mxu0 %v1423
  %1647 = vmatprep.subr.mxu0 0.0
  %1648 = vmatpush1.msra.mxu0 %v1424
  %1649 = vmatprep.subr.mxu0 0.0
  %1650 = vmatpush1.msra.mxu0 %v1425
  %1651 = vmatprep.subr.mxu0 0.0
  %1652 = vmatpush1.msra.mxu0 %v1426
  %1653 = vmatprep.subr.mxu0 0.0
  %1654 = vmatpush1.msra.mxu0 %v1427
  %1655 = vmatprep.subr.mxu0 0.0
  %1656 = vmatpush1.msra.mxu0 %v1428
  %1657 = vmatprep.subr.mxu0 0.0
  %1658 = vmatpush1.msra.mxu0 %v1429
  %1659 = vmatprep.subr.mxu0 0.0
  %1660 = vmatpush1.msra.mxu0 %v1430
  %1661 = vmatprep.subr.mxu0 0.0
  %1662 = vmatpush1.msra.mxu0 %v1431
  %1663 = vmatprep.subr.mxu0 0.0
  %1664 = vmatpush1.msra.mxu0 %v1432
  %1665 = vmatprep.subr.mxu0 0.0
  %1666 = vmatpush1.msra.mxu0 %v1433
  %1667 = vmatprep.subr.mxu0 0.0
  %1668 = vmatpush1.msra.mxu0 %v1434
  %1669 = vmatprep.subr.mxu0 0.0
  %1670 = vmatpush1.msra.mxu0 %v1435
  %1671 = vmatprep.subr.mxu0 0.0
  %1672 = vmatpush1.msra.mxu0 %v1436
  %1673 = vmatprep.subr.mxu0 0.0
  %1674 = vmatpush1.msra.mxu0 %v1437
  %1675 = vmatprep.subr.mxu0 0.0
  %1676 = vmatpush1.msra.mxu0 %v1438
  %1677 = vmatprep.subr.mxu0 0.0
  %1678 = vmatpush1.msra.mxu0 %v1439
  %1679 = vmatprep.subr.mxu0 0.0
  %1680 = vmatpush1.msra.mxu0 %v1440
  %1681 = vmatprep.subr.mxu0 0.0
  %1682 = vmatpush1.msra.mxu0 %v1441
  %1683 = vmatprep.mubr.f32.mxu0 %v1277
  %1684 = vmatmul.mubr.f32.gmra.mrb[0].mxu0 %v1276
  %v1685 = vpop.f32.mrb[0].mxu0
  %v1686 = vadd.f32 %v1581, %v1685
  %v1687 = vpop.f32.mrb[0].mxu0
  %1688 = vmatprep.mubr.f32.mxu0 %v1282
  %1689 = vmatmul.mubr.f32.gmra.mrb[0].mxu0 %v1281
  %v1690 = vpop.f32.mrb[0].mxu0
  %v1691 = vadd.f32 %v1586, %v1690
  %v1692 = vpop.f32.mrb[0].mxu0
  %1693 = vmatprep.mubr.f32.mxu0 %v1287
  %1694 = vmatmul.mubr.f32.gmra.mrb[0].mxu0 %v1286
  %v1695 = vpop.f32.mrb[0].mxu0
  %v1696 = vadd.f32 %v1591, %v1695
  %v1697 = vpop.f32.mrb[0].mxu0
  %1698 = vmatprep.mubr.f32.mxu0 %v1292
  %1699 = vmatmul.mubr.f32.gmra.mrb[0].mxu0 %v1291
  %v1700 = vpop.f32.mrb[0].mxu0
  %v1701 = vadd.f32 %v1596, %v1700
  %v1702 = vpop.f32.mrb[0].mxu0
  %1703 = vmatprep.mubr.f32.mxu0 %v1297
  %1704 = vmatmul.mubr.f32.gmra.mrb[0].mxu0 %v1296
  %v1705 = vpop.f32.mrb[0].mxu0
  %v1706 = vadd.f32 %v1601, %v1705
  %v1707 = vpop.f32.mrb[0].mxu0
  %1708 = vmatprep.mubr.f32.mxu0 %v1302
  %1709 = vmatmul.mubr.f32.gmra.mrb[0].mxu0 %v1301
  %v1710 = vpop.f32.mrb[0].mxu0
  %v1711 = vadd.f32 %v1606, %v1710
  %v1712 = vpop.f32.mrb[0].mxu0
  %1713 = vmatprep.mubr.f32.mxu0 %v1307
  %1714 = vmatmul.mubr.f32.gmra.mrb[0].mxu0 %v1306
  %v1715 = vpop.f32.mrb[0].mxu0
  %v1716 = vadd.f32 %v1611, %v1715
  %v1717 = vpop.f32.mrb[0].mxu0
  %1718 = vmatprep.mubr.f32.mxu0 %v1312
  %1719 = vmatmul.mubr.f32.gmra.mrb[0].mxu0 %v1311
  %v1720 = vpop.f32.mrb[0].mxu0
  %v1721 = vadd.f32 %v1616, %v1720
  %v1722 = vpop.f32.mrb[0].mxu0
  %1723 = vdwg.mxu0
  %1724 = vmatprep.subr.mxu0 0.0
  %1725 = vmatpush1.msra.mxu0 %v862
  %1726 = vmatprep.subr.mxu0 0.0
  %1727 = vmatpush1.msra.mxu0 %v863
  %1728 = vmatprep.subr.mxu0 0.0
  %1729 = vmatpush1.msra.mxu0 %v864
  %1730 = vmatprep.subr.mxu0 0.0
  %1731 = vmatpush1.msra.mxu0 %v865
  %1732 = vmatprep.subr.mxu0 0.0
  %1733 = vmatpush1.msra.mxu0 %v866
  %1734 = vmatprep.subr.mxu0 0.0
  %1735 = vmatpush1.msra.mxu0 %v867
  %1736 = vmatprep.subr.mxu0 0.0
  %1737 = vmatpush1.msra.mxu0 %v868
  %1738 = vmatprep.subr.mxu0 0.0
  %1739 = vmatpush1.msra.mxu0 %v869
  %1740 = vmatprep.subr.mxu0 0.0
  %1741 = vmatpush1.msra.mxu0 0.0
  %1742 = vmatprep.subr.mxu0 0.0
  %1743 = vmatpush1.msra.mxu0 0.0
  %1744 = vmatprep.subr.mxu0 0.0
  %1745 = vmatpush1.msra.mxu0 0.0
  %1746 = vmatprep.subr.mxu0 0.0
  %1747 = vmatpush1.msra.mxu0 0.0
  %1748 = vmatprep.subr.mxu0 0.0
  %1749 = vmatpush1.msra.mxu0 0.0
  %1750 = vmatprep.subr.mxu0 0.0
  %1751 = vmatpush1.msra.mxu0 0.0
  %1752 = vmatprep.subr.mxu0 0.0
  %1753 = vmatpush1.msra.mxu0 0.0
  %1754 = vmatprep.subr.mxu0 0.0
  %1755 = vmatpush1.msra.mxu0 0.0
  %1756 = vmatprep.subr.mxu0 0.0
  %1757 = vmatpush1.msra.mxu0 0.0
  %1758 = vmatprep.subr.mxu0 0.0
  %1759 = vmatpush1.msra.mxu0 0.0
  %1760 = vmatprep.subr.mxu0 0.0
  %1761 = vmatpush1.msra.mxu0 0.0
  %1762 = vmatprep.subr.mxu0 0.0
  %1763 = vmatpush1.msra.mxu0 0.0
  %1764 = vmatprep.subr.mxu0 0.0
  %1765 = vmatpush1.msra.mxu0 0.0
  %1766 = vmatprep.subr.mxu0 0.0
  %1767 = vmatpush1.msra.mxu0 0.0
  %1768 = vmatprep.subr.mxu0 0.0
  %1769 = vmatpush1.msra.mxu0 0.0
  %1770 = vmatprep.subr.mxu0 0.0
  %1771 = vmatpush1.msra.mxu0 0.0
  %1772 = vmatprep.subr.mxu0 0.0
  %1773 = vmatpush1.msra.mxu0 0.0
  %1774 = vmatprep.subr.mxu0 0.0
  %1775 = vmatpush1.msra.mxu0 0.0
  %1776 = vmatprep.subr.mxu0 0.0
  %1777 = vmatpush1.msra.mxu0 0.0
  %1778 = vmatprep.subr.mxu0 0.0
  %1779 = vmatpush1.msra.mxu0 0.0
  %1780 = vmatprep.subr.mxu0 0.0
  %1781 = vmatpush1.msra.mxu0 0.0
  %1782 = vmatprep.subr.mxu0 0.0
  %1783 = vmatpush1.msra.mxu0 0.0
  %1784 = vmatprep.subr.mxu0 0.0
  %1785 = vmatpush1.msra.mxu0 0.0
  %1786 = vmatprep.subr.mxu0 0.0
  %1787 = vmatpush1.msra.mxu0 0.0
  %1788 = vmatprep.mubr.f32.mxu0 0.0
  %1789 = vmatmul.mubr.f32.gmra.mrb[0].mxu0 %v1491
  %v1790 = vpop.f32.mrb[0].mxu0
  %v1791 = vadd.f32 %v1686, %v1790
  %v1792 = vpop.f32.mrb[0].mxu0
  %1793 = vmatprep.mubr.f32.mxu0 0.0
  %1794 = vmatmul.mubr.f32.gmra.mrb[0].mxu0 %v1494
  %v1795 = vpop.f32.mrb[0].mxu0
  %v1796 = vadd.f32 %v1691, %v1795
  %v1797 = vpop.f32.mrb[0].mxu0
  %1798 = vmatprep.mubr.f32.mxu0 0.0
  %1799 = vmatmul.mubr.f32.gmra.mrb[0].mxu0 %v1497
  %v1800 = vpop.f32.mrb[0].mxu0
  %v1801 = vadd.f32 %v1696, %v1800
  %v1802 = vpop.f32.mrb[0].mxu0
  %1803 = vmatprep.mubr.f32.mxu0 0.0
  %1804 = vmatmul.mubr.f32.gmra.mrb[0].mxu0 %v1500
  %v1805 = vpop.f32.mrb[0].mxu0
  %v1806 = vadd.f32 %v1701, %v1805
  %v1807 = vpop.f32.mrb[0].mxu0
  %1808 = vmatprep.mubr.f32.mxu0 0.0
  %1809 = vmatmul.mubr.f32.gmra.mrb[0].mxu0 %v1503
  %v1810 = vpop.f32.mrb[0].mxu0
  %v1811 = vadd.f32 %v1706, %v1810
  %v1812 = vpop.f32.mrb[0].mxu0
  %1813 = vmatprep.mubr.f32.mxu0 0.0
  %1814 = vmatmul.mubr.f32.gmra.mrb[0].mxu0 %v1506
  %v1815 = vpop.f32.mrb[0].mxu0
  %v1816 = vadd.f32 %v1711, %v1815
  %v1817 = vpop.f32.mrb[0].mxu0
  %1818 = vmatprep.mubr.f32.mxu0 0.0
  %1819 = vmatmul.mubr.f32.gmra.mrb[0].mxu0 %v1509
  %v1820 = vpop.f32.mrb[0].mxu0
  %v1821 = vadd.f32 %v1716, %v1820
  %v1822 = vpop.f32.mrb[0].mxu0
  %1823 = vmatprep.mubr.f32.mxu0 0.0
  %1824 = vmatmul.mubr.f32.gmra.mrb[0].mxu0 %v1512
  %v1825 = vpop.f32.mrb[0].mxu0
  %v1826 = vadd.f32 %v1721, %v1825
  %v1827 = vpop.f32.mrb[0].mxu0
  %1828 = vdwg.mxu0
  %v1829 = vmax.f32 %v1791, 0.0
  %v1830 = vmax.f32 %v1796, 0.0
  %v1831 = vmax.f32 %v1801, 0.0
  %v1832 = vmax.f32 %v1806, 0.0
  %v1833 = vmax.f32 %v1811, 0.0
  %v1834 = vmax.f32 %v1816, 0.0
  %v1835 = vmax.f32 %v1821, 0.0
  %v1836 = vmax.f32 %v1826, 0.0
  %v1837 = vld [vmem:[%s10] sm:$0xff]
  %v1838 = vld [vmem:[%s10 + $0x8] sm:$0xff]
  %v1839 = vld [vmem:[%s10 + $0x10] sm:$0xff]
  %v1840 = vld [vmem:[%s10 + $0x18] sm:$0xff]
  %v1841 = vld [vmem:[%s10 + $0x20] sm:$0xff]
  %v1842 = vld [vmem:[%s10 + $0x28] sm:$0xff]
  %v1843 = vld [vmem:[%s10 + $0x30] sm:$0xff]
  %v1844 = vld [vmem:[%s10 + $0x38] sm:$0xff]
  %v1845 = vld [vmem:[%s10 + $0x40] sm:$0xff]
  %v1846 = vld [vmem:[%s10 + $0x48] sm:$0xff]
  %v1847 = vld [vmem:[%s10 + $0x50] sm:$0xff]
  %v1848 = vld [vmem:[%s10 + $0x58] sm:$0xff]
  %v1849 = vld [vmem:[%s10 + $0x60] sm:$0xff]
  %v1850 = vld [vmem:[%s10 + $0x68] sm:$0xff]
  %v1851 = vld [vmem:[%s10 + $0x70] sm:$0xff]
  %v1852 = vld [vmem:[%s10 + $0x78] sm:$0xff]
  %v1853 = vld [vmem:[%s10 + $0x80] sm:$0xff]
  %v1854 = vld [vmem:[%s10 + $0x88] sm:$0xff]
  %v1855 = vld [vmem:[%s10 + $0x90] sm:$0xff]
  %v1856 = vld [vmem:[%s10 + $0x98] sm:$0xff]
  %v1857 = vld [vmem:[%s10 + $0xa0] sm:$0xff]
  %v1858 = vld [vmem:[%s10 + $0xa8] sm:$0xff]
  %v1859 = vld [vmem:[%s10 + $0xb0] sm:$0xff]
  %v1860 = vld [vmem:[%s10 + $0xb8] sm:$0xff]
  %v1861 = vld [vmem:[%s10 + $0xc0] sm:$0xff]
  %v1862 = vld [vmem:[%s10 + $0xc8] sm:$0xff]
  %v1863 = vld [vmem:[%s10 + $0xd0] sm:$0xff]
  %v1864 = vld [vmem:[%s10 + $0xd8] sm:$0xff]
  %v1865 = vld [vmem:[%s10 + $0xe0] sm:$0xff]
  %v1866 = vld [vmem:[%s10 + $0xe8] sm:$0xff]
  %v1867 = vld [vmem:[%s10 + $0xf0] sm:$0xff]
  %v1868 = vld [vmem:[%s10 + $0xf8] sm:$0xff]
  %v1869 = vld [vmem:[%s10 + $0x100] sm:$0xff]
  %v1870 = vld [vmem:[%s10 + $0x108] sm:$0xff]
  %v1871 = vld [vmem:[%s10 + $0x110] sm:$0xff]
  %v1872 = vld [vmem:[%s10 + $0x118] sm:$0xff]
  %v1873 = vld [vmem:[%s10 + $0x120] sm:$0xff]
  %v1874 = vld [vmem:[%s10 + $0x128] sm:$0xff]
  %v1875 = vld [vmem:[%s10 + $0x130] sm:$0xff]
  %v1876 = vld [vmem:[%s10 + $0x138] sm:$0xff]
  %1885 = vrot.lane.b32.xlu0 %v1829, 1
  %v1886 = vpop.permute.xlu0 %1885
  %1887 = vrot.lane.b32.xlu0 %v1830, 1
  %v1888 = vpop.permute.xlu0 %1887
  %1889 = vrot.lane.b32.xlu0 %v1831, 1
  %v1890 = vpop.permute.xlu0 %1889
  %1891 = vrot.lane.b32.xlu0 %v1832, 1
  %v1892 = vpop.permute.xlu0 %1891
  %1893 = vrot.lane.b32.xlu0 %v1833, 1
  %v1894 = vpop.permute.xlu0 %1893
  %1895 = vrot.lane.b32.xlu0 %v1834, 1
  %v1896 = vpop.permute.xlu0 %1895
  %1897 = vrot.lane.b32.xlu0 %v1835, 1
  %v1898 = vpop.permute.xlu0 %1897
  %1899 = vrot.lane.b32.xlu0 %v1836, 1
  %v1900 = vpop.permute.xlu0 %1899
  %v1909 = vsel %vm757, 0.0, %v1886
  %v1910 = vsel %vm757, 0.0, %v1888
  %v1911 = vsel %vm757, 0.0, %v1890
  %v1912 = vsel %vm757, 0.0, %v1892
  %v1913 = vsel %vm757, 0.0, %v1894
  %v1914 = vsel %vm757, 0.0, %v1896
  %v1915 = vsel %vm757, 0.0, %v1898
  %v1916 = vsel %vm757, 0.0, %v1900
  %1917 = vrot.lane.b32.xlu0 %v1829, 127
  %v1918 = vpop.permute.xlu0 %1917
  %1919 = vrot.lane.b32.xlu0 %v1830, 127
  %v1920 = vpop.permute.xlu0 %1919
  %1921 = vrot.lane.b32.xlu0 %v1831, 127
  %v1922 = vpop.permute.xlu0 %1921
  %1923 = vrot.lane.b32.xlu0 %v1832, 127
  %v1924 = vpop.permute.xlu0 %1923
  %1925 = vrot.lane.b32.xlu0 %v1833, 127
  %v1926 = vpop.permute.xlu0 %1925
  %1927 = vrot.lane.b32.xlu0 %v1834, 127
  %v1928 = vpop.permute.xlu0 %1927
  %1929 = vrot.lane.b32.xlu0 %v1835, 127
  %v1930 = vpop.permute.xlu0 %1929
  %1931 = vrot.lane.b32.xlu0 %v1836, 127
  %v1932 = vpop.permute.xlu0 %1931
  %v1941 = vsel %vm757, %v1918, 0.0
  %v1942 = vsel %vm757, %v1920, 0.0
  %v1943 = vsel %vm757, %v1922, 0.0
  %v1944 = vsel %vm757, %v1924, 0.0
  %v1945 = vsel %vm757, %v1926, 0.0
  %v1946 = vsel %vm757, %v1928, 0.0
  %v1947 = vsel %vm757, %v1930, 0.0
  %v1948 = vsel %vm757, %v1932, 0.0
  %v1949 = vmul.f32 %v1909, %v121
  %v1950 = vmul.f32 %v1910, %v122
  %v1951 = vmul.f32 %v1911, %v123
  %v1952 = vmul.f32 %v1912, %v124
  %v1953 = vmul.f32 %v1913, %v125
  %v1954 = vmul.f32 %v1914, %v126
  %v1955 = vmul.f32 %v1915, %v127
  %v1956 = vmul.f32 %v1916, %v128
  %v1957 = vmul.f32 %v1829, %v129
  %v1958 = vmul.f32 %v1830, %v130
  %v1959 = vmul.f32 %v1831, %v131
  %v1960 = vmul.f32 %v1832, %v132
  %v1961 = vmul.f32 %v1833, %v133
  %v1962 = vmul.f32 %v1834, %v134
  %v1963 = vmul.f32 %v1835, %v135
  %v1964 = vmul.f32 %v1836, %v136
  %v1965 = vmul.f32 %v1909, %v137
  %v1966 = vmul.f32 %v1910, %v138
  %v1967 = vmul.f32 %v1911, %v139
  %v1968 = vmul.f32 %v1912, %v140
  %v1969 = vmul.f32 %v1913, %v141
  %v1970 = vmul.f32 %v1914, %v142
  %v1971 = vmul.f32 %v1915, %v143
  %v1972 = vmul.f32 %v1916, %v144
  %v1973 = vmul.f32 %v1829, %v145
  %v1974 = vmul.f32 %v1830, %v146
  %v1975 = vmul.f32 %v1831, %v147
  %v1976 = vmul.f32 %v1832, %v148
  %v1977 = vmul.f32 %v1833, %v149
  %v1978 = vmul.f32 %v1834, %v150
  %v1979 = vmul.f32 %v1835, %v151
  %v1980 = vmul.f32 %v1836, %v152
  %v1981 = vmul.f32 %v1941, %v153
  %v1982 = vmul.f32 %v1942, %v154
  %v1983 = vmul.f32 %v1943, %v155
  %v1984 = vmul.f32 %v1944, %v156
  %v1985 = vmul.f32 %v1945, %v157
  %v1986 = vmul.f32 %v1946, %v158
  %v1987 = vmul.f32 %v1947, %v159
  %v1988 = vmul.f32 %v1948, %v160
  %v1989 = vmul.f32 %v1829, %v161
  %v1990 = vmul.f32 %v1830, %v162
  %v1991 = vmul.f32 %v1831, %v163
  %v1992 = vmul.f32 %v1832, %v164
  %v1993 = vmul.f32 %v1833, %v165
  %v1994 = vmul.f32 %v1834, %v166
  %v1995 = vmul.f32 %v1835, %v167
  %v1996 = vmul.f32 %v1836, %v168
  %v1997 = vmul.f32 %v1941, %v169
  %v1998 = vmul.f32 %v1942, %v170
  %v1999 = vmul.f32 %v1943, %v171
  %v2000 = vmul.f32 %v1944, %v172
  %v2001 = vmul.f32 %v1945, %v173
  %v2002 = vmul.f32 %v1946, %v174
  %v2003 = vmul.f32 %v1947, %v175
  %v2004 = vmul.f32 %v1948, %v176
  %v2005 = vld [vmem:[%s11] sm:$0xff]
  %v2006 = vld [vmem:[%s11 + $0x8] sm:$0xff]
  %v2007 = vld [vmem:[%s11 + $0x10] sm:$0xff]
  %v2008 = vld [vmem:[%s11 + $0x18] sm:$0xff]
  %v2009 = vld [vmem:[%s11 + $0x20] sm:$0xff]
  %v2010 = vld [vmem:[%s11 + $0x28] sm:$0xff]
  %v2011 = vld [vmem:[%s11 + $0x30] sm:$0xff]
  %v2012 = vld [vmem:[%s11 + $0x38] sm:$0xff]
  %2014 = vset.pattern.permute.xlu0 0
  %2015 = vperm.xlu0 %2014, %v2005
  %v2016 = vpop.permute.xlu0 %2015
  %2019 = vset.pattern.permute.xlu0 0
  %2020 = vperm.xlu0 %2019, %v2006
  %v2021 = vpop.permute.xlu0 %2020
  %2024 = vset.pattern.permute.xlu0 0
  %2025 = vperm.xlu0 %2024, %v2007
  %v2026 = vpop.permute.xlu0 %2025
  %2029 = vset.pattern.permute.xlu0 0
  %2030 = vperm.xlu0 %2029, %v2008
  %v2031 = vpop.permute.xlu0 %2030
  %2034 = vset.pattern.permute.xlu0 0
  %2035 = vperm.xlu0 %2034, %v2009
  %v2036 = vpop.permute.xlu0 %2035
  %2039 = vset.pattern.permute.xlu0 0
  %2040 = vperm.xlu0 %2039, %v2010
  %v2041 = vpop.permute.xlu0 %2040
  %2044 = vset.pattern.permute.xlu0 0
  %2045 = vperm.xlu0 %2044, %v2011
  %v2046 = vpop.permute.xlu0 %2045
  %2049 = vset.pattern.permute.xlu0 0
  %2050 = vperm.xlu0 %2049, %v2012
  %v2051 = vpop.permute.xlu0 %2050
  %v2054 = vsel %vm918, %v1841, 0
  %v2057 = vsel %vm918, %v1846, 0
  %v2060 = vsel %vm918, %v1851, 0
  %v2063 = vsel %vm918, %v1856, 0
  %v2066 = vsel %vm918, %v1861, 0
  %v2069 = vsel %vm918, %v1866, 0
  %v2072 = vsel %vm918, %v1871, 0
  %v2075 = vsel %vm918, %v1876, 0
  %2077 = vmatprep.subr.mxu0 0.0
  %2078 = vmatpush1.msra.mxu0 %v798
  %2079 = vmatprep.subr.mxu0 0.0
  %2080 = vmatpush1.msra.mxu0 %v799
  %2081 = vmatprep.subr.mxu0 0.0
  %2082 = vmatpush1.msra.mxu0 %v800
  %2083 = vmatprep.subr.mxu0 0.0
  %2084 = vmatpush1.msra.mxu0 %v801
  %2085 = vmatprep.subr.mxu0 0.0
  %2086 = vmatpush1.msra.mxu0 %v802
  %2087 = vmatprep.subr.mxu0 0.0
  %2088 = vmatpush1.msra.mxu0 %v803
  %2089 = vmatprep.subr.mxu0 0.0
  %2090 = vmatpush1.msra.mxu0 %v804
  %2091 = vmatprep.subr.mxu0 0.0
  %2092 = vmatpush1.msra.mxu0 %v805
  %2093 = vmatprep.subr.mxu0 0.0
  %2094 = vmatpush1.msra.mxu0 %v1949
  %2095 = vmatprep.subr.mxu0 0.0
  %2096 = vmatpush1.msra.mxu0 %v1950
  %2097 = vmatprep.subr.mxu0 0.0
  %2098 = vmatpush1.msra.mxu0 %v1951
  %2099 = vmatprep.subr.mxu0 0.0
  %2100 = vmatpush1.msra.mxu0 %v1952
  %2101 = vmatprep.subr.mxu0 0.0
  %2102 = vmatpush1.msra.mxu0 %v1953
  %2103 = vmatprep.subr.mxu0 0.0
  %2104 = vmatpush1.msra.mxu0 %v1954
  %2105 = vmatprep.subr.mxu0 0.0
  %2106 = vmatpush1.msra.mxu0 %v1955
  %2107 = vmatprep.subr.mxu0 0.0
  %2108 = vmatpush1.msra.mxu0 %v1956
  %2109 = vmatprep.subr.mxu0 0.0
  %2110 = vmatpush1.msra.mxu0 %v1957
  %2111 = vmatprep.subr.mxu0 0.0
  %2112 = vmatpush1.msra.mxu0 %v1958
  %2113 = vmatprep.subr.mxu0 0.0
  %2114 = vmatpush1.msra.mxu0 %v1959
  %2115 = vmatprep.subr.mxu0 0.0
  %2116 = vmatpush1.msra.mxu0 %v1960
  %2117 = vmatprep.subr.mxu0 0.0
  %2118 = vmatpush1.msra.mxu0 %v1961
  %2119 = vmatprep.subr.mxu0 0.0
  %2120 = vmatpush1.msra.mxu0 %v1962
  %2121 = vmatprep.subr.mxu0 0.0
  %2122 = vmatpush1.msra.mxu0 %v1963
  %2123 = vmatprep.subr.mxu0 0.0
  %2124 = vmatpush1.msra.mxu0 %v1964
  %2125 = vmatprep.subr.mxu0 0.0
  %2126 = vmatpush1.msra.mxu0 %v1965
  %2127 = vmatprep.subr.mxu0 0.0
  %2128 = vmatpush1.msra.mxu0 %v1966
  %2129 = vmatprep.subr.mxu0 0.0
  %2130 = vmatpush1.msra.mxu0 %v1967
  %2131 = vmatprep.subr.mxu0 0.0
  %2132 = vmatpush1.msra.mxu0 %v1968
  %2133 = vmatprep.subr.mxu0 0.0
  %2134 = vmatpush1.msra.mxu0 %v1969
  %2135 = vmatprep.subr.mxu0 0.0
  %2136 = vmatpush1.msra.mxu0 %v1970
  %2137 = vmatprep.subr.mxu0 0.0
  %2138 = vmatpush1.msra.mxu0 %v1971
  %2139 = vmatprep.subr.mxu0 0.0
  %2140 = vmatpush1.msra.mxu0 %v1972
  %2141 = vmatprep.mubr.f32.mxu0 %v1838
  %2142 = vmatmul.mubr.f32.gmra.mrb[0].mxu0 %v1837
  %v2143 = vpop.f32.mrb[0].mxu0
  %v2144 = vadd.f32 %v2016, %v2143
  %v2145 = vpop.f32.mrb[0].mxu0
  %2146 = vmatprep.mubr.f32.mxu0 %v1843
  %2147 = vmatmul.mubr.f32.gmra.mrb[0].mxu0 %v1842
  %v2148 = vpop.f32.mrb[0].mxu0
  %v2149 = vadd.f32 %v2021, %v2148
  %v2150 = vpop.f32.mrb[0].mxu0
  %2151 = vmatprep.mubr.f32.mxu0 %v1848
  %2152 = vmatmul.mubr.f32.gmra.mrb[0].mxu0 %v1847
  %v2153 = vpop.f32.mrb[0].mxu0
  %v2154 = vadd.f32 %v2026, %v2153
  %v2155 = vpop.f32.mrb[0].mxu0
  %2156 = vmatprep.mubr.f32.mxu0 %v1853
  %2157 = vmatmul.mubr.f32.gmra.mrb[0].mxu0 %v1852
  %v2158 = vpop.f32.mrb[0].mxu0
  %v2159 = vadd.f32 %v2031, %v2158
  %v2160 = vpop.f32.mrb[0].mxu0
  %2161 = vmatprep.mubr.f32.mxu0 %v1858
  %2162 = vmatmul.mubr.f32.gmra.mrb[0].mxu0 %v1857
  %v2163 = vpop.f32.mrb[0].mxu0
  %v2164 = vadd.f32 %v2036, %v2163
  %v2165 = vpop.f32.mrb[0].mxu0
  %2166 = vmatprep.mubr.f32.mxu0 %v1863
  %2167 = vmatmul.mubr.f32.gmra.mrb[0].mxu0 %v1862
  %v2168 = vpop.f32.mrb[0].mxu0
  %v2169 = vadd.f32 %v2041, %v2168
  %v2170 = vpop.f32.mrb[0].mxu0
  %2171 = vmatprep.mubr.f32.mxu0 %v1868
  %2172 = vmatmul.mubr.f32.gmra.mrb[0].mxu0 %v1867
  %v2173 = vpop.f32.mrb[0].mxu0
  %v2174 = vadd.f32 %v2046, %v2173
  %v2175 = vpop.f32.mrb[0].mxu0
  %2176 = vmatprep.mubr.f32.mxu0 %v1873
  %2177 = vmatmul.mubr.f32.gmra.mrb[0].mxu0 %v1872
  %v2178 = vpop.f32.mrb[0].mxu0
  %v2179 = vadd.f32 %v2051, %v2178
  %v2180 = vpop.f32.mrb[0].mxu0
  %2181 = vdwg.mxu0
  %2182 = vmatprep.subr.mxu0 0.0
  %2183 = vmatpush1.msra.mxu0 %v1973
  %2184 = vmatprep.subr.mxu0 0.0
  %2185 = vmatpush1.msra.mxu0 %v1974
  %2186 = vmatprep.subr.mxu0 0.0
  %2187 = vmatpush1.msra.mxu0 %v1975
  %2188 = vmatprep.subr.mxu0 0.0
  %2189 = vmatpush1.msra.mxu0 %v1976
  %2190 = vmatprep.subr.mxu0 0.0
  %2191 = vmatpush1.msra.mxu0 %v1977
  %2192 = vmatprep.subr.mxu0 0.0
  %2193 = vmatpush1.msra.mxu0 %v1978
  %2194 = vmatprep.subr.mxu0 0.0
  %2195 = vmatpush1.msra.mxu0 %v1979
  %2196 = vmatprep.subr.mxu0 0.0
  %2197 = vmatpush1.msra.mxu0 %v1980
  %2198 = vmatprep.subr.mxu0 0.0
  %2199 = vmatpush1.msra.mxu0 %v1981
  %2200 = vmatprep.subr.mxu0 0.0
  %2201 = vmatpush1.msra.mxu0 %v1982
  %2202 = vmatprep.subr.mxu0 0.0
  %2203 = vmatpush1.msra.mxu0 %v1983
  %2204 = vmatprep.subr.mxu0 0.0
  %2205 = vmatpush1.msra.mxu0 %v1984
  %2206 = vmatprep.subr.mxu0 0.0
  %2207 = vmatpush1.msra.mxu0 %v1985
  %2208 = vmatprep.subr.mxu0 0.0
  %2209 = vmatpush1.msra.mxu0 %v1986
  %2210 = vmatprep.subr.mxu0 0.0
  %2211 = vmatpush1.msra.mxu0 %v1987
  %2212 = vmatprep.subr.mxu0 0.0
  %2213 = vmatpush1.msra.mxu0 %v1988
  %2214 = vmatprep.subr.mxu0 0.0
  %2215 = vmatpush1.msra.mxu0 %v1989
  %2216 = vmatprep.subr.mxu0 0.0
  %2217 = vmatpush1.msra.mxu0 %v1990
  %2218 = vmatprep.subr.mxu0 0.0
  %2219 = vmatpush1.msra.mxu0 %v1991
  %2220 = vmatprep.subr.mxu0 0.0
  %2221 = vmatpush1.msra.mxu0 %v1992
  %2222 = vmatprep.subr.mxu0 0.0
  %2223 = vmatpush1.msra.mxu0 %v1993
  %2224 = vmatprep.subr.mxu0 0.0
  %2225 = vmatpush1.msra.mxu0 %v1994
  %2226 = vmatprep.subr.mxu0 0.0
  %2227 = vmatpush1.msra.mxu0 %v1995
  %2228 = vmatprep.subr.mxu0 0.0
  %2229 = vmatpush1.msra.mxu0 %v1996
  %2230 = vmatprep.subr.mxu0 0.0
  %2231 = vmatpush1.msra.mxu0 %v1997
  %2232 = vmatprep.subr.mxu0 0.0
  %2233 = vmatpush1.msra.mxu0 %v1998
  %2234 = vmatprep.subr.mxu0 0.0
  %2235 = vmatpush1.msra.mxu0 %v1999
  %2236 = vmatprep.subr.mxu0 0.0
  %2237 = vmatpush1.msra.mxu0 %v2000
  %2238 = vmatprep.subr.mxu0 0.0
  %2239 = vmatpush1.msra.mxu0 %v2001
  %2240 = vmatprep.subr.mxu0 0.0
  %2241 = vmatpush1.msra.mxu0 %v2002
  %2242 = vmatprep.subr.mxu0 0.0
  %2243 = vmatpush1.msra.mxu0 %v2003
  %2244 = vmatprep.subr.mxu0 0.0
  %2245 = vmatpush1.msra.mxu0 %v2004
  %2246 = vmatprep.mubr.f32.mxu0 %v1840
  %2247 = vmatmul.mubr.f32.gmra.mrb[0].mxu0 %v1839
  %v2248 = vpop.f32.mrb[0].mxu0
  %v2249 = vadd.f32 %v2144, %v2248
  %v2250 = vpop.f32.mrb[0].mxu0
  %2251 = vmatprep.mubr.f32.mxu0 %v1845
  %2252 = vmatmul.mubr.f32.gmra.mrb[0].mxu0 %v1844
  %v2253 = vpop.f32.mrb[0].mxu0
  %v2254 = vadd.f32 %v2149, %v2253
  %v2255 = vpop.f32.mrb[0].mxu0
  %2256 = vmatprep.mubr.f32.mxu0 %v1850
  %2257 = vmatmul.mubr.f32.gmra.mrb[0].mxu0 %v1849
  %v2258 = vpop.f32.mrb[0].mxu0
  %v2259 = vadd.f32 %v2154, %v2258
  %v2260 = vpop.f32.mrb[0].mxu0
  %2261 = vmatprep.mubr.f32.mxu0 %v1855
  %2262 = vmatmul.mubr.f32.gmra.mrb[0].mxu0 %v1854
  %v2263 = vpop.f32.mrb[0].mxu0
  %v2264 = vadd.f32 %v2159, %v2263
  %v2265 = vpop.f32.mrb[0].mxu0
  %2266 = vmatprep.mubr.f32.mxu0 %v1860
  %2267 = vmatmul.mubr.f32.gmra.mrb[0].mxu0 %v1859
  %v2268 = vpop.f32.mrb[0].mxu0
  %v2269 = vadd.f32 %v2164, %v2268
  %v2270 = vpop.f32.mrb[0].mxu0
  %2271 = vmatprep.mubr.f32.mxu0 %v1865
  %2272 = vmatmul.mubr.f32.gmra.mrb[0].mxu0 %v1864
  %v2273 = vpop.f32.mrb[0].mxu0
  %v2274 = vadd.f32 %v2169, %v2273
  %v2275 = vpop.f32.mrb[0].mxu0
  %2276 = vmatprep.mubr.f32.mxu0 %v1870
  %2277 = vmatmul.mubr.f32.gmra.mrb[0].mxu0 %v1869
  %v2278 = vpop.f32.mrb[0].mxu0
  %v2279 = vadd.f32 %v2174, %v2278
  %v2280 = vpop.f32.mrb[0].mxu0
  %2281 = vmatprep.mubr.f32.mxu0 %v1875
  %2282 = vmatmul.mubr.f32.gmra.mrb[0].mxu0 %v1874
  %v2283 = vpop.f32.mrb[0].mxu0
  %v2284 = vadd.f32 %v2179, %v2283
  %v2285 = vpop.f32.mrb[0].mxu0
  %2286 = vdwg.mxu0
  %2287 = vmatprep.subr.mxu0 0.0
  %2288 = vmatpush1.msra.mxu0 %v862
  %2289 = vmatprep.subr.mxu0 0.0
  %2290 = vmatpush1.msra.mxu0 %v863
  %2291 = vmatprep.subr.mxu0 0.0
  %2292 = vmatpush1.msra.mxu0 %v864
  %2293 = vmatprep.subr.mxu0 0.0
  %2294 = vmatpush1.msra.mxu0 %v865
  %2295 = vmatprep.subr.mxu0 0.0
  %2296 = vmatpush1.msra.mxu0 %v866
  %2297 = vmatprep.subr.mxu0 0.0
  %2298 = vmatpush1.msra.mxu0 %v867
  %2299 = vmatprep.subr.mxu0 0.0
  %2300 = vmatpush1.msra.mxu0 %v868
  %2301 = vmatprep.subr.mxu0 0.0
  %2302 = vmatpush1.msra.mxu0 %v869
  %2303 = vmatprep.subr.mxu0 0.0
  %2304 = vmatpush1.msra.mxu0 0.0
  %2305 = vmatprep.subr.mxu0 0.0
  %2306 = vmatpush1.msra.mxu0 0.0
  %2307 = vmatprep.subr.mxu0 0.0
  %2308 = vmatpush1.msra.mxu0 0.0
  %2309 = vmatprep.subr.mxu0 0.0
  %2310 = vmatpush1.msra.mxu0 0.0
  %2311 = vmatprep.subr.mxu0 0.0
  %2312 = vmatpush1.msra.mxu0 0.0
  %2313 = vmatprep.subr.mxu0 0.0
  %2314 = vmatpush1.msra.mxu0 0.0
  %2315 = vmatprep.subr.mxu0 0.0
  %2316 = vmatpush1.msra.mxu0 0.0
  %2317 = vmatprep.subr.mxu0 0.0
  %2318 = vmatpush1.msra.mxu0 0.0
  %2319 = vmatprep.subr.mxu0 0.0
  %2320 = vmatpush1.msra.mxu0 0.0
  %2321 = vmatprep.subr.mxu0 0.0
  %2322 = vmatpush1.msra.mxu0 0.0
  %2323 = vmatprep.subr.mxu0 0.0
  %2324 = vmatpush1.msra.mxu0 0.0
  %2325 = vmatprep.subr.mxu0 0.0
  %2326 = vmatpush1.msra.mxu0 0.0
  %2327 = vmatprep.subr.mxu0 0.0
  %2328 = vmatpush1.msra.mxu0 0.0
  %2329 = vmatprep.subr.mxu0 0.0
  %2330 = vmatpush1.msra.mxu0 0.0
  %2331 = vmatprep.subr.mxu0 0.0
  %2332 = vmatpush1.msra.mxu0 0.0
  %2333 = vmatprep.subr.mxu0 0.0
  %2334 = vmatpush1.msra.mxu0 0.0
  %2335 = vmatprep.subr.mxu0 0.0
  %2336 = vmatpush1.msra.mxu0 0.0
  %2337 = vmatprep.subr.mxu0 0.0
  %2338 = vmatpush1.msra.mxu0 0.0
  %2339 = vmatprep.subr.mxu0 0.0
  %2340 = vmatpush1.msra.mxu0 0.0
  %2341 = vmatprep.subr.mxu0 0.0
  %2342 = vmatpush1.msra.mxu0 0.0
  %2343 = vmatprep.subr.mxu0 0.0
  %2344 = vmatpush1.msra.mxu0 0.0
  %2345 = vmatprep.subr.mxu0 0.0
  %2346 = vmatpush1.msra.mxu0 0.0
  %2347 = vmatprep.subr.mxu0 0.0
  %2348 = vmatpush1.msra.mxu0 0.0
  %2349 = vmatprep.subr.mxu0 0.0
  %2350 = vmatpush1.msra.mxu0 0.0
  %2351 = vmatprep.mubr.f32.mxu0 0.0
  %2352 = vmatmul.mubr.f32.gmra.mrb[0].mxu0 %v2054
  %v2353 = vpop.f32.mrb[0].mxu0
  %v2354 = vadd.f32 %v2249, %v2353
  %v2355 = vpop.f32.mrb[0].mxu0
  %2356 = vmatprep.mubr.f32.mxu0 0.0
  %2357 = vmatmul.mubr.f32.gmra.mrb[0].mxu0 %v2057
  %v2358 = vpop.f32.mrb[0].mxu0
  %v2359 = vadd.f32 %v2254, %v2358
  %v2360 = vpop.f32.mrb[0].mxu0
  %2361 = vmatprep.mubr.f32.mxu0 0.0
  %2362 = vmatmul.mubr.f32.gmra.mrb[0].mxu0 %v2060
  %v2363 = vpop.f32.mrb[0].mxu0
  %v2364 = vadd.f32 %v2259, %v2363
  %v2365 = vpop.f32.mrb[0].mxu0
  %2366 = vmatprep.mubr.f32.mxu0 0.0
  %2367 = vmatmul.mubr.f32.gmra.mrb[0].mxu0 %v2063
  %v2368 = vpop.f32.mrb[0].mxu0
  %v2369 = vadd.f32 %v2264, %v2368
  %v2370 = vpop.f32.mrb[0].mxu0
  %2371 = vmatprep.mubr.f32.mxu0 0.0
  %2372 = vmatmul.mubr.f32.gmra.mrb[0].mxu0 %v2066
  %v2373 = vpop.f32.mrb[0].mxu0
  %v2374 = vadd.f32 %v2269, %v2373
  %v2375 = vpop.f32.mrb[0].mxu0
  %2376 = vmatprep.mubr.f32.mxu0 0.0
  %2377 = vmatmul.mubr.f32.gmra.mrb[0].mxu0 %v2069
  %v2378 = vpop.f32.mrb[0].mxu0
  %v2379 = vadd.f32 %v2274, %v2378
  %v2380 = vpop.f32.mrb[0].mxu0
  %2381 = vmatprep.mubr.f32.mxu0 0.0
  %2382 = vmatmul.mubr.f32.gmra.mrb[0].mxu0 %v2072
  %v2383 = vpop.f32.mrb[0].mxu0
  %v2384 = vadd.f32 %v2279, %v2383
  %v2385 = vpop.f32.mrb[0].mxu0
  %2386 = vmatprep.mubr.f32.mxu0 0.0
  %2387 = vmatmul.mubr.f32.gmra.mrb[0].mxu0 %v2075
  %v2388 = vpop.f32.mrb[0].mxu0
  %v2389 = vadd.f32 %v2284, %v2388
  %v2390 = vpop.f32.mrb[0].mxu0
  %2391 = vdwg.mxu0
  %v2392 = vadd.f32 %v2354, %v1266
  %v2393 = vadd.f32 %v2359, %v1267
  %v2394 = vadd.f32 %v2364, %v1268
  %v2395 = vadd.f32 %v2369, %v1269
  %v2396 = vadd.f32 %v2374, %v1270
  %v2397 = vadd.f32 %v2379, %v1271
  %v2398 = vadd.f32 %v2384, %v1272
  %v2399 = vadd.f32 %v2389, %v1273
  %v2400 = vmax.f32 %v2392, 0.0
  %v2401 = vmax.f32 %v2393, 0.0
  %v2402 = vmax.f32 %v2394, 0.0
  %v2403 = vmax.f32 %v2395, 0.0
  %v2404 = vmax.f32 %v2396, 0.0
  %v2405 = vmax.f32 %v2397, 0.0
  %v2406 = vmax.f32 %v2398, 0.0
  %v2407 = vmax.f32 %v2399, 0.0
  %v2408 = vpack.c.bf16 %v2401, %v2400
  %v2409 = vpack.c.bf16 %v2403, %v2402
  %v2410 = vpack.c.bf16 %v2405, %v2404
  %v2411 = vpack.c.bf16 %v2407, %v2406
  %v2416 = vunpack.c.l.b16 %v2408
  %v2417 = vunpack.c.h.b16 %v2408
  %v2418 = vunpack.c.l.b16 %v2409
  %v2419 = vunpack.c.h.b16 %v2409
  %v2420 = vunpack.c.l.b16 %v2410
  %v2421 = vunpack.c.h.b16 %v2410
  %v2422 = vunpack.c.l.b16 %v2411
  %v2423 = vunpack.c.h.b16 %v2411
  %v2424 = vpack.c.b16 %v2416, %v2416
  %v2425 = vpack.c.b16 %v2417, %v2417
  %v2426 = vpack.c.b16 %v2418, %v2418
  %v2427 = vpack.c.b16 %v2419, %v2419
  %v2428 = vpack.c.b16 %v2420, %v2420
  %v2429 = vpack.c.b16 %v2421, %v2421
  %v2430 = vpack.c.b16 %v2422, %v2422
  %v2431 = vpack.c.b16 %v2423, %v2423
  %vm2440 = vcmask 11264
  %2441 = vst.msk [vmem:[%s12] sm:$0xf] %vm2440, %v2424
  %2442 = vst.msk [vmem:[%s12 + $0x4] sm:$0xf] %vm2440, %v2425
  %2443 = vst.msk [vmem:[%s12 + $0x8] sm:$0xf] %vm2440, %v2426
  %2444 = vst.msk [vmem:[%s12 + $0xc] sm:$0xf] %vm2440, %v2427
  %2445 = vst.msk [vmem:[%s12 + $0x10] sm:$0xf] %vm2440, %v2428
  %2446 = vst.msk [vmem:[%s12 + $0x14] sm:$0xf] %vm2440, %v2429
  %2447 = vst.msk [vmem:[%s12 + $0x18] sm:$0xf] %vm2440, %v2430
  %2448 = vst.msk [vmem:[%s12 + $0x1c] sm:$0xf] %vm2440, %v2431
  // Predicated region
  $region50: #{encode_uv_forward.11} parent=0 // pred_check
    _
  $region51: #{encode_uv_forward.11} parent=0 // pred_check_branch
    %2450 = sbr.rel (0) target = $region53
  $region52: #{encode_uv_forward.11} parent=0 // pred_region
    _
  $region53: #{encode_uv_forward.11} parent=0 // pred_fallthru
    _
  // Predicated region
  $region54: #{encode_uv_forward.11} parent=0 // pred_check
    _
  $region55: #{encode_uv_forward.11} parent=0 // pred_check_branch
    %2452 = sbr.rel (0) target = $region57
  $region56: #{encode_uv_forward.11} parent=0 // pred_region
    _
  $region57: #{encode_uv_forward.11} parent=0 // pred_fallthru
    _

</llo_original>
